<compile_context>
chip_gen: v5e
topology: v5e:2x2
jax: 0.10.0
libtpu: 0.0.40
codegen_flags: <defaults>
</compile_context>

<pallas_src>
import functools

import jax
import jax.numpy as jnp
from jax import lax
from jax.experimental import pallas as pl
from jax.experimental.pallas import tpu as pltpu


# ----------------------------------------------------------------------------
# helpers
# ----------------------------------------------------------------------------
def _round_up(a: int, b: int) -> int:
    return ((a + b - 1) // b) * b


def _pad2d(x, rows, cols):
    r, c = x.shape
    if r == rows and c == cols:
        return x
    return jnp.pad(x, ((0, rows - r), (0, cols - c)))


# ----------------------------------------------------------------------------
# Kernel 1: PatchEmbed  (conv-as-matmul + bias + LayerNorm, eps=1e-5)
# ----------------------------------------------------------------------------
def _patch_embed_kernel(p_ref, w_ref, params_ref, o_ref, *, real_e, eps):
    x = p_ref[...].astype(jnp.float32)
    w = w_ref[...]
    y = jnp.dot(x, w, preferred_element_type=jnp.float32)

    bias = params_ref[0:1, :]
    gamma = params_ref[1:2, :]
    beta = params_ref[2:3, :]
    y = y + bias

    inv_e = 1.0 / float(real_e)
    s1 = jnp.sum(y, axis=-1, keepdims=True)
    s2 = jnp.sum(y * y, axis=-1, keepdims=True)
    mean = s1 * inv_e
    var = jnp.maximum(s2 * inv_e - mean * mean, 0.0)
    y_hat = (y - mean) * lax.rsqrt(var + eps)
    o_ref[...] = (y_hat * gamma + beta).astype(o_ref.dtype)


def patch_embed_forward(x, proj_w, proj_b, ln_g, ln_b, patch_size, *, tm_max=256):
    B, C, H, W = x.shape
    p = patch_size
    E = proj_w.shape[0]
    Hp, Wp = H // p, W // p
    N = Hp * Wp
    K = C * p * p
    M = B * N

    # patch extraction (layout glue only)
    patches = x.reshape(B, C, Hp, p, Wp, p).transpose(0, 2, 4, 1, 3, 5).reshape(M, K)
    w_mat = proj_w.reshape(E, K).T

    K_pad = _round_up(K, 128)
    E_pad = _round_up(E, 128)
    TM = min(tm_max, _round_up(M, 8))
    M_pad = _round_up(M, TM)

    patches = _pad2d(patches.astype(jnp.float32), M_pad, K_pad)
    w_mat = _pad2d(w_mat.astype(jnp.float32), K_pad, E_pad)
    params = _pad2d(jnp.stack([proj_b, ln_g, ln_b], axis=0).astype(jnp.float32), 3, E_pad)

    kernel = functools.partial(_patch_embed_kernel, real_e=E, eps=1e-5)
    out = pl.pallas_call(
        kernel,
        out_shape=jax.ShapeDtypeStruct((M_pad, E_pad), jnp.float32),
        grid_spec=pltpu.PrefetchScalarGridSpec(
            num_scalar_prefetch=0,
            grid=(M_pad // TM,),
            in_specs=[
                pl.BlockSpec((TM, K_pad), lambda i: (i, 0)),
                pl.BlockSpec((K_pad, E_pad), lambda i: (0, 0)),
                pl.BlockSpec((3, E_pad), lambda i: (0, 0)),
            ],
            out_specs=pl.BlockSpec((TM, E_pad), lambda i: (i, 0)),
        ),
        compiler_params=pltpu.CompilerParams(dimension_semantics=("parallel",)),
    )(patches, w_mat, params)
    return out[:M, :E].reshape(B, N, E)


# ----------------------------------------------------------------------------
# Kernel 2: LayerNorm -> Linear (+ optional GELU)
# ----------------------------------------------------------------------------
def _ln_linear_kernel(x_ref, lnp_ref, w_ref, b_ref, o_ref, *, real_c, eps, gelu):
    x = x_ref[...].astype(jnp.float32)
    gamma = lnp_ref[0:1, :]
    beta = lnp_ref[1:2, :]

    inv_c = 1.0 / float(real_c)
    s1 = jnp.sum(x, axis=-1, keepdims=True)
    s2 = jnp.sum(x * x, axis=-1, keepdims=True)
    mean = s1 * inv_c
    var = jnp.maximum(s2 * inv_c - mean * mean, 0.0)
    xh = (x - mean) * lax.rsqrt(var + eps)
    xh = xh * gamma + beta

    y = jnp.dot(xh, w_ref[...], preferred_element_type=jnp.float32) + b_ref[...]
    if gelu:
        y = jax.nn.gelu(y, approximate=True)
    o_ref[...] = y.astype(o_ref.dtype)


def ln_linear(x, ln_g, ln_b, w, b, *, eps, gelu=False, tm_max=256):
    M, C = x.shape
    F = w.shape[1]
    C_pad = _round_up(C, 128)
    F_pad = _round_up(F, 128)
    TM = min(tm_max, _round_up(M, 8))
    M_pad = _round_up(M, TM)

    x_p = _pad2d(x.astype(jnp.float32), M_pad, C_pad)
    lnp = _pad2d(jnp.stack([ln_g, ln_b], axis=0).astype(jnp.float32), 2, C_pad)
    w_p = _pad2d(w.astype(jnp.float32), C_pad, F_pad)
    b_p = _pad2d(b.astype(jnp.float32)[None, :], 1, F_pad)

    kernel = functools.partial(_ln_linear_kernel, real_c=C, eps=eps, gelu=gelu)
    out = pl.pallas_call(
        kernel,
        out_shape=jax.ShapeDtypeStruct((M_pad, F_pad), jnp.float32),
        grid_spec=pltpu.PrefetchScalarGridSpec(
            num_scalar_prefetch=0,
            grid=(M_pad // TM,),
            in_specs=[
                pl.BlockSpec((TM, C_pad), lambda i: (i, 0)),
                pl.BlockSpec((2, C_pad), lambda i: (0, 0)),
                pl.BlockSpec((C_pad, F_pad), lambda i: (0, 0)),
                pl.BlockSpec((1, F_pad), lambda i: (0, 0)),
            ],
            out_specs=pl.BlockSpec((TM, F_pad), lambda i: (i, 0)),
        ),
        compiler_params=pltpu.CompilerParams(dimension_semantics=("parallel",)),
    )(x_p, lnp, w_p, b_p)
    return out[:M, :F]


# ----------------------------------------------------------------------------
# Kernel 3: Linear + layerscale + residual
#   out = residual + gamma_ls * (y @ W + b)
# ----------------------------------------------------------------------------
def _linear_scale_res_kernel(y_ref, w_ref, p_ref, r_ref, o_ref):
    y = jnp.dot(y_ref[...].astype(jnp.float32), w_ref[...],
                preferred_element_type=jnp.float32)
    bias = p_ref[0:1, :]
    gamma_ls = p_ref[1:2, :]
    o_ref[...] = (r_ref[...].astype(jnp.float32) + gamma_ls * (y + bias)).astype(o_ref.dtype)


def linear_scale_residual(y, w, b, gamma_ls, residual, *, tm_max=256):
    M, F = y.shape
    C = w.shape[1]
    F_pad = _round_up(F, 128)
    C_pad = _round_up(C, 128)
    TM = min(tm_max, _round_up(M, 8))
    M_pad = _round_up(M, TM)

    y_p = _pad2d(y.astype(jnp.float32), M_pad, F_pad)
    w_p = _pad2d(w.astype(jnp.float32), F_pad, C_pad)
    p_p = _pad2d(jnp.stack([b, gamma_ls], axis=0).astype(jnp.float32), 2, C_pad)
    r_p = _pad2d(residual.astype(jnp.float32), M_pad, C_pad)

    out = pl.pallas_call(
        _linear_scale_res_kernel,
        out_shape=jax.ShapeDtypeStruct((M_pad, C_pad), jnp.float32),
        grid_spec=pltpu.PrefetchScalarGridSpec(
            num_scalar_prefetch=0,
            grid=(M_pad // TM,),
            in_specs=[
                pl.BlockSpec((TM, F_pad), lambda i: (i, 0)),
                pl.BlockSpec((F_pad, C_pad), lambda i: (0, 0)),
                pl.BlockSpec((2, C_pad), lambda i: (0, 0)),
                pl.BlockSpec((TM, C_pad), lambda i: (i, 0)),
            ],
            out_specs=pl.BlockSpec((TM, C_pad), lambda i: (i, 0)),
        ),
        compiler_params=pltpu.CompilerParams(dimension_semantics=("parallel",)),
    )(y_p, w_p, p_p, r_p)
    return out[:M, :C]


# ----------------------------------------------------------------------------
# Kernel 4: talking-head attention (per batch element)
#   logits = (q*scale) @ k^T ; head-mix (proj_l) ; softmax ; head-mix (proj_w)
#   out    = attn @ v, heads written back into the (N, E) layout directly.
# ----------------------------------------------------------------------------
def _talking_head_attn_kernel(q_ref, kt_ref, v_ref, wl_ref, bl_ref, ww_ref, bw_ref,
                              o_ref, *, num_heads, head_dim, scale):
    H, hd = num_heads, head_dim

    logits = []
    for h in range(H):
        qh = q_ref[0, h].astype(jnp.float32) * scale          # (N, hd)
        kh = kt_ref[0, h].astype(jnp.float32)                 # (hd, N)
        logits.append(jnp.dot(qh, kh, preferred_element_type=jnp.float32))

    # talking-head mix before softmax (scalar multipliers from SMEM)
    mixed = []
    for g in range(H):
        acc = logits[0] * wl_ref[g, 0]
        for h in range(1, H):
            acc = acc + logits[h] * wl_ref[g, h]
        mixed.append(acc + bl_ref[0, g])

    # softmax over keys
    probs = []
    for g in range(H):
        m = mixed[g] - jnp.max(mixed[g], axis=-1, keepdims=True)
        e = jnp.exp(m)
        probs.append(e / jnp.sum(e, axis=-1, keepdims=True))

    # talking-head mix after softmax, then attn @ v per head
    for g in range(H):
        acc = probs[0] * ww_ref[g, 0]
        for h in range(1, H):
            acc = acc + probs[h] * ww_ref[g, h]
        acc = acc + bw_ref[0, g]
        vh = v_ref[0, g].astype(jnp.float32)                  # (N, hd)
        oh = jnp.dot(acc, vh, preferred_element_type=jnp.float32)
        o_ref[0, :, g * hd:(g + 1) * hd] = oh.astype(o_ref.dtype)


def talking_head_attention(q, k, v, wl, bl, ww, bw, *, scale):
    B, H, N, hd = q.shape
    E = H * hd
    k_t = jnp.swapaxes(k, 2, 3)  # (B, H, hd, N)
    kernel = functools.partial(_talking_head_attn_kernel,
                               num_heads=H, head_dim=hd, scale=scale)
    out = pl.pallas_call(
        kernel,
        out_shape=jax.ShapeDtypeStruct((B, N, E), jnp.float32),
        grid_spec=pltpu.PrefetchScalarGridSpec(
            num_scalar_prefetch=0,
            grid=(B,),
            in_specs=[
                pl.BlockSpec((1, H, N, hd), lambda b: (b, 0, 0, 0)),
                pl.BlockSpec((1, H, hd, N), lambda b: (b, 0, 0, 0)),
                pl.BlockSpec((1, H, N, hd), lambda b: (b, 0, 0, 0)),
                pl.BlockSpec(memory_space=pltpu.MemorySpace.SMEM),
                pl.BlockSpec(memory_space=pltpu.MemorySpace.SMEM),
                pl.BlockSpec(memory_space=pltpu.MemorySpace.SMEM),
                pl.BlockSpec(memory_space=pltpu.MemorySpace.SMEM),
            ],
            out_specs=pl.BlockSpec((1, N, E), lambda b: (b, 0, 0)),
        ),
        compiler_params=pltpu.CompilerParams(dimension_semantics=("parallel",)),
    )(q.astype(jnp.float32), k_t.astype(jnp.float32), v.astype(jnp.float32),
      wl.astype(jnp.float32), bl.reshape(1, H).astype(jnp.float32),
      ww.astype(jnp.float32), bw.reshape(1, H).astype(jnp.float32))
    return out


# ----------------------------------------------------------------------------
# Kernel 5: class attention (per batch element, single query = cls token)
# ----------------------------------------------------------------------------
def _class_attn_kernel(q_ref, kt_ref, v_ref, o_ref, *, num_heads, head_dim, scale):
    H, hd = num_heads, head_dim
    for h in range(H):
        qh = q_ref[0, h].astype(jnp.float32) * scale          # (1, hd)
        kh = kt_ref[0, h].astype(jnp.float32)                 # (hd, Nk)
        logit = jnp.dot(qh, kh, preferred_element_type=jnp.float32)  # (1, Nk)
        logit = logit - jnp.max(logit, axis=-1, keepdims=True)
        e = jnp.exp(logit)
        p = e / jnp.sum(e, axis=-1, keepdims=True)
        vh = v_ref[0, h].astype(jnp.float32)                  # (Nk, hd)
        oh = jnp.dot(p, vh, preferred_element_type=jnp.float32)      # (1, hd)
        o_ref[0, :, h * hd:(h + 1) * hd] = oh.astype(o_ref.dtype)


def class_attention(q, k, v, *, scale):
    B, H, _, hd = q.shape
    Nk = k.shape[2]
    E = H * hd
    k_t = jnp.swapaxes(k, 2, 3)  # (B, H, hd, Nk)
    kernel = functools.partial(_class_attn_kernel,
                               num_heads=H, head_dim=hd, scale=scale)
    out = pl.pallas_call(
        kernel,
        out_shape=jax.ShapeDtypeStruct((B, 1, E), jnp.float32),
        grid_spec=pltpu.PrefetchScalarGridSpec(
            num_scalar_prefetch=0,
            grid=(B,),
            in_specs=[
                pl.BlockSpec((1, H, 1, hd), lambda b: (b, 0, 0, 0)),
                pl.BlockSpec((1, H, hd, Nk), lambda b: (b, 0, 0, 0)),
                pl.BlockSpec((1, H, Nk, hd), lambda b: (b, 0, 0, 0)),
            ],
            out_specs=pl.BlockSpec((1, 1, E), lambda b: (b, 0, 0)),
        ),
        compiler_params=pltpu.CompilerParams(dimension_semantics=("parallel",)),
    )(q.astype(jnp.float32), k_t.astype(jnp.float32), v.astype(jnp.float32))
    return out


# ----------------------------------------------------------------------------
# Full CaiT forward (Pallas path)
# ----------------------------------------------------------------------------
def cait_forward(params, x, *, patch_size, num_heads):
    B = x.shape[0]
    E = params['cls_token'].shape[-1]
    assert E % num_heads == 0
    hd = E // num_heads
    scale = hd ** -0.5

    tokens = patch_embed_forward(x, params['patch_w'], params['patch_b'],
                                 params['patch_ln_g'], params['patch_ln_b'],
                                 patch_size)                    # (B, N, E)
    N = tokens.shape[1]
    tokens = tokens + params['pos_embed']
    xf = tokens.reshape(B * N, E)

    # ---- LayerScale blocks (talking-head attention + MLP) -----------------
    for blk in params['blocks']:
        qkv = ln_linear(xf, blk['n1_g'], blk['n1_b'], blk['qkv_w'], blk['qkv_b'],
                        eps=1e-6)                               # (B*N, 3E)
        qkv = qkv.reshape(B, N, 3, num_heads, hd)
        q = qkv[:, :, 0].transpose(0, 2, 1, 3)                  # (B, H, N, hd)
        k = qkv[:, :, 1].transpose(0, 2, 1, 3)
        v = qkv[:, :, 2].transpose(0, 2, 1, 3)

        attn_out = talking_head_attention(q, k, v, blk['pl_w'], blk['pl_b'],
                                          blk['pw_w'], blk['pw_b'], scale=scale)
        attn_out = attn_out.reshape(B * N, E)
        xf = linear_scale_residual(attn_out, blk['proj_w'], blk['proj_b'],
                                   blk['gamma1'], xf)

        h = ln_linear(xf, blk['n2_g'], blk['n2_b'], blk['fc1_w'], blk['fc1_b'],
                      eps=1e-6, gelu=True)
        xf = linear_scale_residual(h, blk['fc2_w'], blk['fc2_b'],
                                   blk['gamma2'], xf)

    x_tok = xf.reshape(B, N, E)
    cls = jnp.broadcast_to(params['cls_token'], (B, 1, E))

    # ---- LayerScale CA blocks (class attention + MLP on the cls token) ----
    for blk in params['ca_blocks']:
        u = jnp.concatenate([cls, x_tok], axis=1)               # (B, N+1, E)
        Nk = u.shape[1]
        uf = u.reshape(B * Nk, E)

        kv_w = jnp.concatenate([blk['k_w'], blk['v_w']], axis=1)
        kv_b = jnp.concatenate([blk['k_b'], blk['v_b']], axis=0)
        kv = ln_linear(uf, blk['n1_g'], blk['n1_b'], kv_w, kv_b, eps=1e-6)
        k = kv[:, :E].reshape(B, Nk, num_heads, hd).transpose(0, 2, 1, 3)
        v = kv[:, E:].reshape(B, Nk, num_heads, hd).transpose(0, 2, 1, 3)

        cls_f = cls.reshape(B, E)
        qc = ln_linear(cls_f, blk['n1_g'], blk['n1_b'], blk['q_w'], blk['q_b'],
                       eps=1e-6)
        qc = qc.reshape(B, 1, num_heads, hd).transpose(0, 2, 1, 3)

        ca = class_attention(qc, k, v, scale=scale).reshape(B, E)
        cls_f = linear_scale_residual(ca, blk['proj_w'], blk['proj_b'],
                                      blk['gamma1'], cls_f)
        h = ln_linear(cls_f, blk['n2_g'], blk['n2_b'], blk['fc1_w'], blk['fc1_b'],
                      eps=1e-6, gelu=True)
        cls_f = linear_scale_residual(h, blk['fc2_w'], blk['fc2_b'],
                                      blk['gamma2'], cls_f)
        cls = cls_f.reshape(B, 1, E)

    # final LN (row-wise, so LN(cat(cls,x))[:,0] == LN(cls)) + head
    logits = ln_linear(cls.reshape(B, E), params['norm_g'], params['norm_b'],
                       params['head_w'], params['head_b'], eps=1e-6)
    return logits


# ----------------------------------------------------------------------------
# Pure-JAX reference (mirrors the PyTorch forward; GELU tanh approximation)
# ----------------------------------------------------------------------------
def _ref_layernorm(x, g, b, eps):
    m = jnp.mean(x, axis=-1, keepdims=True)
    v = jnp.mean(jnp.square(x - m), axis=-1, keepdims=True)
    return (x - m) / jnp.sqrt(v + eps) * g + b


def reference_cait_forward(params, x, *, patch_size, num_heads):
    B = x.shape[0]
    E = params['cls_token'].shape[-1]
    hd = E // num_heads
    scale = hd ** -0.5

    y = lax.conv_general_dilated(
        x, params['patch_w'], (patch_size, patch_size), 'VALID',
        dimension_numbers=('NCHW', 'OIHW', 'NCHW')) + params['patch_b'][None, :, None, None]
    _, _, Hp, Wp = y.shape
    N = Hp * Wp
    y = y.reshape(B, E, N).transpose(0, 2, 1)
    y = _ref_layernorm(y, params['patch_ln_g'], params['patch_ln_b'], 1e-5)
    y = y + params['pos_embed']

    for blk in params['blocks']:
        h = _ref_layernorm(y, blk['n1_g'], blk['n1_b'], 1e-6)
        qkv = (h @ blk['qkv_w'] + blk['qkv_b']).reshape(B, N, 3, num_heads, hd)
        qkv = qkv.transpose(2, 0, 3, 1, 4)
        q, k, v = qkv[0] * scale, qkv[1], qkv[2]
        attn = jnp.einsum('bhnd,bhmd->bhnm', q, k)
        attn = jnp.einsum('bhnm,gh->bgnm', attn, blk['pl_w']) + blk['pl_b'][None, :, None, None]
        attn = jax.nn.softmax(attn, axis=-1)
        attn = jnp.einsum('bhnm,gh->bgnm', attn, blk['pw_w']) + blk['pw_b'][None, :, None, None]
        o = jnp.einsum('bhnm,bhmd->bhnd', attn, v).transpose(0, 2, 1, 3).reshape(B, N, E)
        o = o @ blk['proj_w'] + blk['proj_b']
        y = y + blk['gamma1'] * o
        h = _ref_layernorm(y, blk['n2_g'], blk['n2_b'], 1e-6)
        m = jax.nn.gelu(h @ blk['fc1_w'] + blk['fc1_b'], approximate=True)
        m = m @ blk['fc2_w'] + blk['fc2_b']
        y = y + blk['gamma2'] * m

    cls = jnp.broadcast_to(params['cls_token'], (B, 1, E))
    for blk in params['ca_blocks']:
        u = jnp.concatenate([cls, y], axis=1)
        Nk = u.shape[1]
        hu = _ref_layernorm(u, blk['n1_g'], blk['n1_b'], 1e-6)
        q = (hu[:, 0] @ blk['q_w'] + blk['q_b']).reshape(B, 1, num_heads, hd).transpose(0, 2, 1, 3) * scale
        k = (hu @ blk['k_w'] + blk['k_b']).reshape(B, Nk, num_heads, hd).transpose(0, 2, 1, 3)
        v = (hu @ blk['v_w'] + blk['v_b']).reshape(B, Nk, num_heads, hd).transpose(0, 2, 1, 3)
        attn = jnp.einsum('bhqd,bhkd->bhqk', q, k)
        attn = jax.nn.softmax(attn, axis=-1)
        o = jnp.einsum('bhqk,bhkd->bhqd', attn, v).transpose(0, 2, 1, 3).reshape(B, 1, E)
        o = o @ blk['proj_w'] + blk['proj_b']
        cls = cls + blk['gamma1'] * o
        h2 = _ref_layernorm(cls, blk['n2_g'], blk['n2_b'], 1e-6)
        m = jax.nn.gelu(h2 @ blk['fc1_w'] + blk['fc1_b'], approximate=True)
        m = m @ blk['fc2_w'] + blk['fc2_b']
        cls = cls + blk['gamma2'] * m

    u = jnp.concatenate([cls, y], axis=1)
    u = _ref_layernorm(u, params['norm_g'], params['norm_b'], 1e-6)
    feat = u[:, 0]
    return feat @ params['head_w'] + params['head_b']


# ----------------------------------------------------------------------------
# Parameter initialization (deterministic, PRNGKey(0) derived)
# ----------------------------------------------------------------------------
def _block_params(key, E, hidden, num_heads):
    ks = jax.random.split(key, 17)
    eye = jnp.eye(num_heads, dtype=jnp.float32)
    return dict(
        n1_g=1.0 + 0.1 * jax.random.normal(ks[0], (E,)),
        n1_b=0.02 * jax.random.normal(ks[1], (E,)),
        qkv_w=0.2 * jax.random.normal(ks[2], (E, 3 * E)),
        qkv_b=0.02 * jax.random.normal(ks[3], (3 * E,)),
        pl_w=eye + 0.1 * jax.random.normal(ks[4], (num_heads, num_heads)),
        pl_b=0.02 * jax.random.normal(ks[5], (num_heads,)),
        pw_w=eye + 0.1 * jax.random.normal(ks[6], (num_heads, num_heads)),
        pw_b=0.02 * jax.random.normal(ks[7], (num_heads,)),
        proj_w=0.1 * jax.random.normal(ks[8], (E, E)),
        proj_b=0.02 * jax.random.normal(ks[9], (E,)),
        n2_g=1.0 + 0.1 * jax.random.normal(ks[10], (E,)),
        n2_b=0.02 * jax.random.normal(ks[11], (E,)),
        fc1_w=0.1 * jax.random.normal(ks[12], (E, hidden)),
        fc1_b=0.02 * jax.random.normal(ks[13], (hidden,)),
        fc2_w=0.1 * jax.random.normal(ks[14], (hidden, E)),
        fc2_b=jnp.zeros((E,), jnp.float32),
        gamma1=jax.random.uniform(ks[15], (E,), minval=0.5, maxval=1.5),
        gamma2=jax.random.uniform(ks[16], (E,), minval=0.5, maxval=1.5),
    )


def _ca_block_params(key, E, hidden, num_heads):
    ks = jax.random.split(key, 17)
    return dict(
        n1_g=1.0 + 0.1 * jax.random.normal(ks[0], (E,)),
        n1_b=0.02 * jax.random.normal(ks[1], (E,)),
        q_w=0.2 * jax.random.normal(ks[2], (E, E)),
        q_b=0.02 * jax.random.normal(ks[3], (E,)),
        k_w=0.2 * jax.random.normal(ks[4], (E, E)),
        k_b=0.02 * jax.random.normal(ks[5], (E,)),
        v_w=0.2 * jax.random.normal(ks[6], (E, E)),
        v_b=0.02 * jax.random.normal(ks[7], (E,)),
        proj_w=0.1 * jax.random.normal(ks[8], (E, E)),
        proj_b=0.02 * jax.random.normal(ks[9], (E,)),
        n2_g=1.0 + 0.1 * jax.random.normal(ks[10], (E,)),
        n2_b=0.02 * jax.random.normal(ks[11], (E,)),
        fc1_w=0.1 * jax.random.normal(ks[12], (E, hidden)),
        fc1_b=0.02 * jax.random.normal(ks[13], (hidden,)),
        fc2_w=0.1 * jax.random.normal(ks[14], (hidden, E)),
        fc2_b=jnp.zeros((E,), jnp.float32),
        gamma1=jax.random.uniform(ks[15], (E,), minval=0.5, maxval=1.5),
        gamma2=jax.random.uniform(ks[16], (E,), minval=0.5, maxval=1.5),
    )


def init_params(key, *, img_size, patch_size, in_chans, embed_dim, depth, depth_ca,
                num_heads, mlp_ratio, num_classes):
    E = embed_dim
    hidden = int(E * mlp_ratio)
    N = (img_size // patch_size) ** 2
    ks = jax.random.split(key, 6 + depth + depth_ca)
    blocks = [_block_params(ks[6 + i], E, hidden, num_heads) for i in range(depth)]
    ca_blocks = [_ca_block_params(ks[6 + depth + i], E, hidden, num_heads)
                 for i in range(depth_ca)]
    return dict(
        patch_w=0.1 * jax.random.normal(ks[0], (E, in_chans, patch_size, patch_size)),
        patch_b=0.02 * jax.random.normal(ks[1], (E,)),
        patch_ln_g=jnp.ones((E,), jnp.float32),
        patch_ln_b=jnp.zeros((E,), jnp.float32),
        pos_embed=0.02 * jax.random.normal(ks[2], (1, N, E)),
        cls_token=0.02 * jax.random.normal(ks[3], (1, 1, E)),
        norm_g=1.0 + 0.1 * jax.random.normal(ks[4], (E,)),
        norm_b=jnp.zeros((E,), jnp.float32),
        head_w=0.05 * jax.random.normal(ks[5], (E, num_classes)),
        head_b=jnp.zeros((num_classes,), jnp.float32),
        blocks=blocks,
        ca_blocks=ca_blocks,
    )


# ----------------------------------------------------------------------------
if __name__ == "__main__":
    B, C_in, H, W = 2, 4, 16, 16
    patch_size = 4
    embed_dim = 32
    num_heads = 8
    depth = 2            # TODO(synk): real CaiT-S24 uses depth=24; demo uses 2.
    depth_ca = 2
    mlp_ratio = 4
    num_classes = 3

    key = jax.random.PRNGKey(0)
    kp, kx = jax.random.split(key)
    params = init_params(kp, img_size=H, patch_size=patch_size, in_chans=C_in,
                         embed_dim=embed_dim, depth=depth, depth_ca=depth_ca,
                         num_heads=num_heads, mlp_ratio=mlp_ratio,
                         num_classes=num_classes)
    x = jax.random.normal(kx, (B, C_in, H, W), jnp.float32)

    forward = jax.jit(functools.partial(cait_forward, patch_size=patch_size,
                                        num_heads=num_heads))
    ref_forward = jax.jit(functools.partial(reference_cait_forward,
                                            patch_size=patch_size,
                                            num_heads=num_heads))

    out = jax.block_until_ready(forward(params, x))
    ref = jax.block_until_ready(ref_forward(params, x))

    assert out.shape == (B, num_classes)
    max_err = float(jnp.max(jnp.abs(out - ref)))
    assert jnp.allclose(out, ref, atol=5e-3, rtol=5e-3), (
        f"Pallas output mismatch vs reference (max abs err {max_err})")
    print("KERNEL_OK")
</pallas_src>

<mosaic_0001>
module attributes {stable_mosaic.version = 11 : i64} {
  func.func @_patch_embed_kernel(%arg0: i32, %arg1: memref<32x128xf32, #tpu.memory_space<vmem>>, %arg2: memref<128x128xf32, #tpu.memory_space<vmem>>, %arg3: memref<3x128xf32, #tpu.memory_space<vmem>>, %arg4: memref<32x128xf32, #tpu.memory_space<vmem>>) attributes {dimension_semantics = [#tpu.dimension_semantics<parallel>], iteration_bounds = array<i64: 1>, scalar_prefetch = 0 : i64, scratch_operands = 0 : i64, tpu.core_type = #tpu.core_type<tc>, window_params = [{transform_indices = @transform_0, window_bounds = array<i64: 32, 128>}, {pipeline_mode = #tpu.pipeline_mode<synchronous>, transform_indices = @transform_1, window_bounds = array<i64: 128, 128>}, {pipeline_mode = #tpu.pipeline_mode<synchronous>, transform_indices = @transform_2, window_bounds = array<i64: 3, 128>}, {transform_indices = @transform_3, window_bounds = array<i64: 32, 128>}]} {
    %c0 = arith.constant 0 : index
    %c0_0 = arith.constant 0 : index
    %0 = vector.load %arg1[%c0, %c0_0] : memref<32x128xf32, #tpu.memory_space<vmem>>, vector<32x128xf32>
    %c0_1 = arith.constant 0 : index
    %c0_2 = arith.constant 0 : index
    %1 = vector.load %arg2[%c0_1, %c0_2] : memref<128x128xf32, #tpu.memory_space<vmem>>, vector<128x128xf32>
    %cst = arith.constant dense<0.000000e+00> : vector<32x128xf32>
    %2 = tpu.matmul %0, %1, %cst {dimension_numbers = #tpu.dot_dimension_numbers<[1], [0], [0], [1], [0, 0, 1, 1], [], []>} : vector<32x128xf32>, vector<128x128xf32>, vector<32x128xf32> -> vector<32x128xf32>
    %c0_3 = arith.constant 0 : index
    %c0_4 = arith.constant 0 : index
    %3 = vector.load %arg3[%c0_3, %c0_4] : memref<3x128xf32, #tpu.memory_space<vmem>>, vector<1x128xf32>
    %c1 = arith.constant 1 : index
    %c0_5 = arith.constant 0 : index
    %4 = vector.load %arg3[%c1, %c0_5] : memref<3x128xf32, #tpu.memory_space<vmem>>, vector<1x128xf32>
    %c2 = arith.constant 2 : index
    %c0_6 = arith.constant 0 : index
    %5 = vector.load %arg3[%c2, %c0_6] : memref<3x128xf32, #tpu.memory_space<vmem>>, vector<1x128xf32>
    %6 = vector.broadcast %3 : vector<1x128xf32> to vector<32x128xf32>
    %7 = arith.addf %2, %6 : vector<32x128xf32>
    %cst_7 = arith.constant dense<0.000000e+00> : vector<32xf32>
    %8 = vector.multi_reduction <add>, %7, %cst_7 [1] : vector<32x128xf32> to vector<32xf32>
    %9 = vector.shape_cast %8 : vector<32xf32> to vector<32x1xf32>
    %10 = arith.mulf %7, %7 : vector<32x128xf32>
    %cst_8 = arith.constant dense<0.000000e+00> : vector<32xf32>
    %11 = vector.multi_reduction <add>, %10, %cst_8 [1] : vector<32x128xf32> to vector<32xf32>
    %12 = vector.shape_cast %11 : vector<32xf32> to vector<32x1xf32>
    %cst_9 = arith.constant 3.125000e-02 : f32
    %13 = vector.broadcast %cst_9 : f32 to vector<32x1xf32>
    %14 = arith.mulf %9, %13 : vector<32x1xf32>
    %cst_10 = arith.constant 3.125000e-02 : f32
    %15 = vector.broadcast %cst_10 : f32 to vector<32x1xf32>
    %16 = arith.mulf %12, %15 : vector<32x1xf32>
    %17 = arith.mulf %14, %14 : vector<32x1xf32>
    %18 = arith.subf %16, %17 : vector<32x1xf32>
    %cst_11 = arith.constant 0.000000e+00 : f32
    %19 = vector.broadcast %cst_11 : f32 to vector<32x1xf32>
    %20 = arith.maximumf %18, %19 : vector<32x1xf32>
    %21 = vector.broadcast %14 : vector<32x1xf32> to vector<32x128xf32>
    %22 = arith.subf %7, %21 : vector<32x128xf32>
    %cst_12 = arith.constant 9.99999974E-6 : f32
    %23 = vector.broadcast %cst_12 : f32 to vector<32x1xf32>
    %24 = arith.addf %20, %23 : vector<32x1xf32>
    %25 = math.rsqrt %24 : vector<32x1xf32>
    %26 = vector.broadcast %25 : vector<32x1xf32> to vector<32x128xf32>
    %27 = arith.mulf %22, %26 : vector<32x128xf32>
    %28 = vector.broadcast %4 : vector<1x128xf32> to vector<32x128xf32>
    %29 = arith.mulf %27, %28 : vector<32x128xf32>
    %30 = vector.broadcast %5 : vector<1x128xf32> to vector<32x128xf32>
    %31 = arith.addf %29, %30 : vector<32x128xf32>
    %c0_13 = arith.constant 0 : index
    %c0_14 = arith.constant 0 : index
    %32 = vector.load %arg4[%c0_13, %c0_14] : memref<32x128xf32, #tpu.memory_space<vmem>>, vector<32x128xf32>
    tpu.vector_store %arg4[%c0_13, %c0_14], %31 {strides = array<i32>} : memref<32x128xf32, #tpu.memory_space<vmem>>, vector<32x128xf32>,
    return
  }
  func.func @transform_0(%arg0: i32) -> (i32, i32) {
    %c0_i32 = arith.constant 0 : i32
    %c0_i32_0 = arith.constant 0 : i32
    return %arg0, %c0_i32 : i32, i32
  }
  func.func @transform_1(%arg0: i32) -> (i32, i32) {
    %c0_i32 = arith.constant 0 : i32
    %c0_i32_0 = arith.constant 0 : i32
    %c0_i32_1 = arith.constant 0 : i32
    return %c0_i32, %c0_i32_0 : i32, i32
  }
  func.func @transform_2(%arg0: i32) -> (i32, i32) {
    %c0_i32 = arith.constant 0 : i32
    %c0_i32_0 = arith.constant 0 : i32
    %c0_i32_1 = arith.constant 0 : i32
    return %c0_i32, %c0_i32_0 : i32, i32
  }
  func.func @transform_3(%arg0: i32) -> (i32, i32) {
    %c0_i32 = arith.constant 0 : i32
    %c0_i32_0 = arith.constant 0 : i32
    return %arg0, %c0_i32 : i32, i32
  }
}

module attributes {stable_mosaic.version = 11 : i64} {
  func.func @_ln_linear_kernel(%arg0: i32, %arg1: memref<32x128xf32, #tpu.memory_space<vmem>>, %arg2: memref<2x128xf32, #tpu.memory_space<vmem>>, %arg3: memref<128x128xf32, #tpu.memory_space<vmem>>, %arg4: memref<1x128xf32, #tpu.memory_space<vmem>>, %arg5: memref<32x128xf32, #tpu.memory_space<vmem>>) attributes {dimension_semantics = [#tpu.dimension_semantics<parallel>], iteration_bounds = array<i64: 1>, scalar_prefetch = 0 : i64, scratch_operands = 0 : i64, tpu.core_type = #tpu.core_type<tc>, window_params = [{transform_indices = @transform_0, window_bounds = array<i64: 32, 128>}, {pipeline_mode = #tpu.pipeline_mode<synchronous>, transform_indices = @transform_1, window_bounds = array<i64: 2, 128>}, {pipeline_mode = #tpu.pipeline_mode<synchronous>, transform_indices = @transform_2, window_bounds = array<i64: 128, 128>}, {pipeline_mode = #tpu.pipeline_mode<synchronous>, transform_indices = @transform_3, window_bounds = array<i64: 1, 128>}, {transform_indices = @transform_4, window_bounds = array<i64: 32, 128>}]} {
    %c0 = arith.constant 0 : index
    %c0_0 = arith.constant 0 : index
    %0 = vector.load %arg1[%c0, %c0_0] : memref<32x128xf32, #tpu.memory_space<vmem>>, vector<32x128xf32>
    %c0_1 = arith.constant 0 : index
    %c0_2 = arith.constant 0 : index
    %1 = vector.load %arg2[%c0_1, %c0_2] : memref<2x128xf32, #tpu.memory_space<vmem>>, vector<1x128xf32>
    %c1 = arith.constant 1 : index
    %c0_3 = arith.constant 0 : index
    %2 = vector.load %arg2[%c1, %c0_3] : memref<2x128xf32, #tpu.memory_space<vmem>>, vector<1x128xf32>
    %cst = arith.constant dense<0.000000e+00> : vector<32xf32>
    %3 = vector.multi_reduction <add>, %0, %cst [1] : vector<32x128xf32> to vector<32xf32>
    %4 = vector.shape_cast %3 : vector<32xf32> to vector<32x1xf32>
    %5 = arith.mulf %0, %0 : vector<32x128xf32>
    %cst_4 = arith.constant dense<0.000000e+00> : vector<32xf32>
    %6 = vector.multi_reduction <add>, %5, %cst_4 [1] : vector<32x128xf32> to vector<32xf32>
    %7 = vector.shape_cast %6 : vector<32xf32> to vector<32x1xf32>
    %cst_5 = arith.constant 3.125000e-02 : f32
    %8 = vector.broadcast %cst_5 : f32 to vector<32x1xf32>
    %9 = arith.mulf %4, %8 : vector<32x1xf32>
    %cst_6 = arith.constant 3.125000e-02 : f32
    %10 = vector.broadcast %cst_6 : f32 to vector<32x1xf32>
    %11 = arith.mulf %7, %10 : vector<32x1xf32>
    %12 = arith.mulf %9, %9 : vector<32x1xf32>
    %13 = arith.subf %11, %12 : vector<32x1xf32>
    %cst_7 = arith.constant 0.000000e+00 : f32
    %14 = vector.broadcast %cst_7 : f32 to vector<32x1xf32>
    %15 = arith.maximumf %13, %14 : vector<32x1xf32>
    %16 = vector.broadcast %9 : vector<32x1xf32> to vector<32x128xf32>
    %17 = arith.subf %0, %16 : vector<32x128xf32>
    %cst_8 = arith.constant 9.99999997E-7 : f32
    %18 = vector.broadcast %cst_8 : f32 to vector<32x1xf32>
    %19 = arith.addf %15, %18 : vector<32x1xf32>
    %20 = math.rsqrt %19 : vector<32x1xf32>
    %21 = vector.broadcast %20 : vector<32x1xf32> to vector<32x128xf32>
    %22 = arith.mulf %17, %21 : vector<32x128xf32>
    %23 = vector.broadcast %1 : vector<1x128xf32> to vector<32x128xf32>
    %24 = arith.mulf %22, %23 : vector<32x128xf32>
    %25 = vector.broadcast %2 : vector<1x128xf32> to vector<32x128xf32>
    %26 = arith.addf %24, %25 : vector<32x128xf32>
    %c0_9 = arith.constant 0 : index
    %c0_10 = arith.constant 0 : index
    %27 = vector.load %arg3[%c0_9, %c0_10] : memref<128x128xf32, #tpu.memory_space<vmem>>, vector<128x128xf32>
    %cst_11 = arith.constant dense<0.000000e+00> : vector<32x128xf32>
    %28 = tpu.matmul %26, %27, %cst_11 {dimension_numbers = #tpu.dot_dimension_numbers<[1], [0], [0], [1], [0, 0, 1, 1], [], []>} : vector<32x128xf32>, vector<128x128xf32>, vector<32x128xf32> -> vector<32x128xf32>
    %c0_12 = arith.constant 0 : index
    %c0_13 = arith.constant 0 : index
    %29 = vector.load %arg4[%c0_12, %c0_13] : memref<1x128xf32, #tpu.memory_space<vmem>>, vector<1x128xf32>
    %30 = vector.broadcast %29 : vector<1x128xf32> to vector<32x128xf32>
    %31 = arith.addf %28, %30 : vector<32x128xf32>
    %c0_14 = arith.constant 0 : index
    %c0_15 = arith.constant 0 : index
    %32 = vector.load %arg5[%c0_14, %c0_15] : memref<32x128xf32, #tpu.memory_space<vmem>>, vector<32x128xf32>
    tpu.vector_store %arg5[%c0_14, %c0_15], %31 {strides = array<i32>} : memref<32x128xf32, #tpu.memory_space<vmem>>, vector<32x128xf32>,
    return
  }
  func.func @transform_0(%arg0: i32) -> (i32, i32) {
    %c0_i32 = arith.constant 0 : i32
    %c0_i32_0 = arith.constant 0 : i32
    return %arg0, %c0_i32 : i32, i32
  }
  func.func @transform_1(%arg0: i32) -> (i32, i32) {
    %c0_i32 = arith.constant 0 : i32
    %c0_i32_0 = arith.constant 0 : i32
    %c0_i32_1 = arith.constant 0 : i32
    return %c0_i32, %c0_i32_0 : i32, i32
  }
  func.func @transform_2(%arg0: i32) -> (i32, i32) {
    %c0_i32 = arith.constant 0 : i32
    %c0_i32_0 = arith.constant 0 : i32
    %c0_i32_1 = arith.constant 0 : i32
    return %c0_i32, %c0_i32_0 : i32, i32
  }
  func.func @transform_3(%arg0: i32) -> (i32, i32) {
    %c0_i32 = arith.constant 0 : i32
    %c0_i32_0 = arith.constant 0 : i32
    %c0_i32_1 = arith.constant 0 : i32
    return %c0_i32, %c0_i32_0 : i32, i32
  }
  func.func @transform_4(%arg0: i32) -> (i32, i32) {
    %c0_i32 = arith.constant 0 : i32
    %c0_i32_0 = arith.constant 0 : i32
    return %arg0, %c0_i32 : i32, i32
  }
}

module attributes {stable_mosaic.version = 11 : i64} {
  func.func @_talking_head_attn_kernel(%arg0: i32, %arg1: memref<1x8x16x4xf32, #tpu.memory_space<vmem>>, %arg2: memref<1x8x4x16xf32, #tpu.memory_space<vmem>>, %arg3: memref<1x8x16x4xf32, #tpu.memory_space<vmem>>, %arg4: memref<8x8xf32, #tpu.memory_space<smem>>, %arg5: memref<1x8xf32, #tpu.memory_space<smem>>, %arg6: memref<8x8xf32, #tpu.memory_space<smem>>, %arg7: memref<1x8xf32, #tpu.memory_space<smem>>, %arg8: memref<1x16x32xf32, #tpu.memory_space<vmem>>) attributes {dimension_semantics = [#tpu.dimension_semantics<parallel>], iteration_bounds = array<i64: 2>, scalar_prefetch = 0 : i64, scratch_operands = 0 : i64, tpu.core_type = #tpu.core_type<tc>, window_params = [{transform_indices = @transform_0, window_bounds = array<i64: 1, 8, 16, 4>}, {transform_indices = @transform_1, window_bounds = array<i64: 1, 8, 4, 16>}, {transform_indices = @transform_2, window_bounds = array<i64: 1, 8, 16, 4>}, {transform_indices = @transform_3, window_bounds = array<i64: 8, 8>}, {transform_indices = @transform_4, window_bounds = array<i64: 1, 8>}, {transform_indices = @transform_5, window_bounds = array<i64: 8, 8>}, {transform_indices = @transform_6, window_bounds = array<i64: 1, 8>}, {transform_indices = @transform_7, window_bounds = array<i64: 1, 16, 32>}]} {
    %c0 = arith.constant 0 : index
    %c0_0 = arith.constant 0 : index
    %c0_1 = arith.constant 0 : index
    %c0_2 = arith.constant 0 : index
    %0 = vector.load %arg1[%c0, %c0_0, %c0_1, %c0_2] : memref<1x8x16x4xf32, #tpu.memory_space<vmem>>, vector<1x1x16x4xf32>
    %1 = vector.shape_cast %0 : vector<1x1x16x4xf32> to vector<16x4xf32>
    %cst = arith.constant 5.000000e-01 : f32
    %2 = vector.broadcast %cst : f32 to vector<16x4xf32>
    %3 = arith.mulf %1, %2 : vector<16x4xf32>
    %c0_3 = arith.constant 0 : index
    %c0_4 = arith.constant 0 : index
    %c0_5 = arith.constant 0 : index
    %c0_6 = arith.constant 0 : index
    %4 = vector.load %arg2[%c0_3, %c0_4, %c0_5, %c0_6] : memref<1x8x4x16xf32, #tpu.memory_space<vmem>>, vector<1x1x4x16xf32>
    %5 = vector.shape_cast %4 : vector<1x1x4x16xf32> to vector<4x16xf32>
    %cst_7 = arith.constant dense<0.000000e+00> : vector<16x16xf32>
    %6 = tpu.matmul %3, %5, %cst_7 {dimension_numbers = #tpu.dot_dimension_numbers<[1], [0], [0], [1], [0, 0, 1, 1], [], []>} : vector<16x4xf32>, vector<4x16xf32>, vector<16x16xf32> -> vector<16x16xf32>
    %c0_8 = arith.constant 0 : index
    %c1 = arith.constant 1 : index
    %c0_9 = arith.constant 0 : index
    %c0_10 = arith.constant 0 : index
    %7 = vector.load %arg1[%c0_8, %c1, %c0_9, %c0_10] : memref<1x8x16x4xf32, #tpu.memory_space<vmem>>, vector<1x1x16x4xf32>
    %8 = vector.shape_cast %7 : vector<1x1x16x4xf32> to vector<16x4xf32>
    %cst_11 = arith.constant 5.000000e-01 : f32
    %9 = vector.broadcast %cst_11 : f32 to vector<16x4xf32>
    %10 = arith.mulf %8, %9 : vector<16x4xf32>
    %c0_12 = arith.constant 0 : index
    %c1_13 = arith.constant 1 : index
    %c0_14 = arith.constant 0 : index
    %c0_15 = arith.constant 0 : index
    %11 = vector.load %arg2[%c0_12, %c1_13, %c0_14, %c0_15] : memref<1x8x4x16xf32, #tpu.memory_space<vmem>>, vector<1x1x4x16xf32>
    %12 = vector.shape_cast %11 : vector<1x1x4x16xf32> to vector<4x16xf32>
    %cst_16 = arith.constant dense<0.000000e+00> : vector<16x16xf32>
    %13 = tpu.matmul %10, %12, %cst_16 {dimension_numbers = #tpu.dot_dimension_numbers<[1], [0], [0], [1], [0, 0, 1, 1], [], []>} : vector<16x4xf32>, vector<4x16xf32>, vector<16x16xf32> -> vector<16x16xf32>
    %c0_17 = arith.constant 0 : index
    %c2 = arith.constant 2 : index
    %c0_18 = arith.constant 0 : index
    %c0_19 = arith.constant 0 : index
    %14 = vector.load %arg1[%c0_17, %c2, %c0_18, %c0_19] : memref<1x8x16x4xf32, #tpu.memory_space<vmem>>, vector<1x1x16x4xf32>
    %15 = vector.shape_cast %14 : vector<1x1x16x4xf32> to vector<16x4xf32>
    %cst_20 = arith.constant 5.000000e-01 : f32
    %16 = vector.broadcast %cst_20 : f32 to vector<16x4xf32>
    %17 = arith.mulf %15, %16 : vector<16x4xf32>
    %c0_21 = arith.constant 0 : index
    %c2_22 = arith.constant 2 : index
    %c0_23 = arith.constant 0 : index
    %c0_24 = arith.constant 0 : index
    %18 = vector.load %arg2[%c0_21, %c2_22, %c0_23, %c0_24] : memref<1x8x4x16xf32, #tpu.memory_space<vmem>>, vector<1x1x4x16xf32>
    %19 = vector.shape_cast %18 : vector<1x1x4x16xf32> to vector<4x16xf32>
    %cst_25 = arith.constant dense<0.000000e+00> : vector<16x16xf32>
    %20 = tpu.matmul %17, %19, %cst_25 {dimension_numbers = #tpu.dot_dimension_numbers<[1], [0], [0], [1], [0, 0, 1, 1], [], []>} : vector<16x4xf32>, vector<4x16xf32>, vector<16x16xf32> -> vector<16x16xf32>
    %c0_26 = arith.constant 0 : index
    %c3 = arith.constant 3 : index
    %c0_27 = arith.constant 0 : index
    %c0_28 = arith.constant 0 : index
    %21 = vector.load %arg1[%c0_26, %c3, %c0_27, %c0_28] : memref<1x8x16x4xf32, #tpu.memory_space<vmem>>, vector<1x1x16x4xf32>
    %22 = vector.shape_cast %21 : vector<1x1x16x4xf32> to vector<16x4xf32>
    %cst_29 = arith.constant 5.000000e-01 : f32
    %23 = vector.broadcast %cst_29 : f32 to vector<16x4xf32>
    %24 = arith.mulf %22, %23 : vector<16x4xf32>
    %c0_30 = arith.constant 0 : index
    %c3_31 = arith.constant 3 : index
    %c0_32 = arith.constant 0 : index
    %c0_33 = arith.constant 0 : index
    %25 = vector.load %arg2[%c0_30, %c3_31, %c0_32, %c0_33] : memref<1x8x4x16xf32, #tpu.memory_space<vmem>>, vector<1x1x4x16xf32>
    %26 = vector.shape_cast %25 : vector<1x1x4x16xf32> to vector<4x16xf32>
    %cst_34 = arith.constant dense<0.000000e+00> : vector<16x16xf32>
    %27 = tpu.matmul %24, %26, %cst_34 {dimension_numbers = #tpu.dot_dimension_numbers<[1], [0], [0], [1], [0, 0, 1, 1], [], []>} : vector<16x4xf32>, vector<4x16xf32>, vector<16x16xf32> -> vector<16x16xf32>
    %c0_35 = arith.constant 0 : index
    %c4 = arith.constant 4 : index
    %c0_36 = arith.constant 0 : index
    %c0_37 = arith.constant 0 : index
    %28 = vector.load %arg1[%c0_35, %c4, %c0_36, %c0_37] : memref<1x8x16x4xf32, #tpu.memory_space<vmem>>, vector<1x1x16x4xf32>
    %29 = vector.shape_cast %28 : vector<1x1x16x4xf32> to vector<16x4xf32>
    %cst_38 = arith.constant 5.000000e-01 : f32
    %30 = vector.broadcast %cst_38 : f32 to vector<16x4xf32>
    %31 = arith.mulf %29, %30 : vector<16x4xf32>
    %c0_39 = arith.constant 0 : index
    %c4_40 = arith.constant 4 : index
    %c0_41 = arith.constant 0 : index
    %c0_42 = arith.constant 0 : index
    %32 = vector.load %arg2[%c0_39, %c4_40, %c0_41, %c0_42] : memref<1x8x4x16xf32, #tpu.memory_space<vmem>>, vector<1x1x4x16xf32>
    %33 = vector.shape_cast %32 : vector<1x1x4x16xf32> to vector<4x16xf32>
    %cst_43 = arith.constant dense<0.000000e+00> : vector<16x16xf32>
    %34 = tpu.matmul %31, %33, %cst_43 {dimension_numbers = #tpu.dot_dimension_numbers<[1], [0], [0], [1], [0, 0, 1, 1], [], []>} : vector<16x4xf32>, vector<4x16xf32>, vector<16x16xf32> -> vector<16x16xf32>
    %c0_44 = arith.constant 0 : index
    %c5 = arith.constant 5 : index
    %c0_45 = arith.constant 0 : index
    %c0_46 = arith.constant 0 : index
    %35 = vector.load %arg1[%c0_44, %c5, %c0_45, %c0_46] : memref<1x8x16x4xf32, #tpu.memory_space<vmem>>, vector<1x1x16x4xf32>
    %36 = vector.shape_cast %35 : vector<1x1x16x4xf32> to vector<16x4xf32>
    %cst_47 = arith.constant 5.000000e-01 : f32
    %37 = vector.broadcast %cst_47 : f32 to vector<16x4xf32>
    %38 = arith.mulf %36, %37 : vector<16x4xf32>
    %c0_48 = arith.constant 0 : index
    %c5_49 = arith.constant 5 : index
    %c0_50 = arith.constant 0 : index
    %c0_51 = arith.constant 0 : index
    %39 = vector.load %arg2[%c0_48, %c5_49, %c0_50, %c0_51] : memref<1x8x4x16xf32, #tpu.memory_space<vmem>>, vector<1x1x4x16xf32>
    %40 = vector.shape_cast %39 : vector<1x1x4x16xf32> to vector<4x16xf32>
    %cst_52 = arith.constant dense<0.000000e+00> : vector<16x16xf32>
    %41 = tpu.matmul %38, %40, %cst_52 {dimension_numbers = #tpu.dot_dimension_numbers<[1], [0], [0], [1], [0, 0, 1, 1], [], []>} : vector<16x4xf32>, vector<4x16xf32>, vector<16x16xf32> -> vector<16x16xf32>
    %c0_53 = arith.constant 0 : index
    %c6 = arith.constant 6 : index
    %c0_54 = arith.constant 0 : index
    %c0_55 = arith.constant 0 : index
    %42 = vector.load %arg1[%c0_53, %c6, %c0_54, %c0_55] : memref<1x8x16x4xf32, #tpu.memory_space<vmem>>, vector<1x1x16x4xf32>
    %43 = vector.shape_cast %42 : vector<1x1x16x4xf32> to vector<16x4xf32>
    %cst_56 = arith.constant 5.000000e-01 : f32
    %44 = vector.broadcast %cst_56 : f32 to vector<16x4xf32>
    %45 = arith.mulf %43, %44 : vector<16x4xf32>
    %c0_57 = arith.constant 0 : index
    %c6_58 = arith.constant 6 : index
    %c0_59 = arith.constant 0 : index
    %c0_60 = arith.constant 0 : index
    %46 = vector.load %arg2[%c0_57, %c6_58, %c0_59, %c0_60] : memref<1x8x4x16xf32, #tpu.memory_space<vmem>>, vector<1x1x4x16xf32>
    %47 = vector.shape_cast %46 : vector<1x1x4x16xf32> to vector<4x16xf32>
    %cst_61 = arith.constant dense<0.000000e+00> : vector<16x16xf32>
    %48 = tpu.matmul %45, %47, %cst_61 {dimension_numbers = #tpu.dot_dimension_numbers<[1], [0], [0], [1], [0, 0, 1, 1], [], []>} : vector<16x4xf32>, vector<4x16xf32>, vector<16x16xf32> -> vector<16x16xf32>
    %c0_62 = arith.constant 0 : index
    %c7 = arith.constant 7 : index
    %c0_63 = arith.constant 0 : index
    %c0_64 = arith.constant 0 : index
    %49 = vector.load %arg1[%c0_62, %c7, %c0_63, %c0_64] : memref<1x8x16x4xf32, #tpu.memory_space<vmem>>, vector<1x1x16x4xf32>
    %50 = vector.shape_cast %49 : vector<1x1x16x4xf32> to vector<16x4xf32>
    %cst_65 = arith.constant 5.000000e-01 : f32
    %51 = vector.broadcast %cst_65 : f32 to vector<16x4xf32>
    %52 = arith.mulf %50, %51 : vector<16x4xf32>
    %c0_66 = arith.constant 0 : index
    %c7_67 = arith.constant 7 : index
    %c0_68 = arith.constant 0 : index
    %c0_69 = arith.constant 0 : index
    %53 = vector.load %arg2[%c0_66, %c7_67, %c0_68, %c0_69] : memref<1x8x4x16xf32, #tpu.memory_space<vmem>>, vector<1x1x4x16xf32>
    %54 = vector.shape_cast %53 : vector<1x1x4x16xf32> to vector<4x16xf32>
    %cst_70 = arith.constant dense<0.000000e+00> : vector<16x16xf32>
    %55 = tpu.matmul %52, %54, %cst_70 {dimension_numbers = #tpu.dot_dimension_numbers<[1], [0], [0], [1], [0, 0, 1, 1], [], []>} : vector<16x4xf32>, vector<4x16xf32>, vector<16x16xf32> -> vector<16x16xf32>
    %c0_71 = arith.constant 0 : index
    %c0_72 = arith.constant 0 : index
    %56 = memref.load %arg4[%c0_71, %c0_72] : memref<8x8xf32, #tpu.memory_space<smem>>
    %57 = vector.broadcast %56 : f32 to vector<16x16xf32>
    %58 = arith.mulf %6, %57 : vector<16x16xf32>
    %c0_73 = arith.constant 0 : index
    %c1_74 = arith.constant 1 : index
    %59 = memref.load %arg4[%c0_73, %c1_74] : memref<8x8xf32, #tpu.memory_space<smem>>
    %60 = vector.broadcast %59 : f32 to vector<16x16xf32>
    %61 = arith.mulf %13, %60 : vector<16x16xf32>
    %62 = arith.addf %58, %61 : vector<16x16xf32>
    %c0_75 = arith.constant 0 : index
    %c2_76 = arith.constant 2 : index
    %63 = memref.load %arg4[%c0_75, %c2_76] : memref<8x8xf32, #tpu.memory_space<smem>>
    %64 = vector.broadcast %63 : f32 to vector<16x16xf32>
    %65 = arith.mulf %20, %64 : vector<16x16xf32>
    %66 = arith.addf %62, %65 : vector<16x16xf32>
    %c0_77 = arith.constant 0 : index
    %c3_78 = arith.constant 3 : index
    %67 = memref.load %arg4[%c0_77, %c3_78] : memref<8x8xf32, #tpu.memory_space<smem>>
    %68 = vector.broadcast %67 : f32 to vector<16x16xf32>
    %69 = arith.mulf %27, %68 : vector<16x16xf32>
    %70 = arith.addf %66, %69 : vector<16x16xf32>
    %c0_79 = arith.constant 0 : index
    %c4_80 = arith.constant 4 : index
    %71 = memref.load %arg4[%c0_79, %c4_80] : memref<8x8xf32, #tpu.memory_space<smem>>
    %72 = vector.broadcast %71 : f32 to vector<16x16xf32>
    %73 = arith.mulf %34, %72 : vector<16x16xf32>
    %74 = arith.addf %70, %73 : vector<16x16xf32>
    %c0_81 = arith.constant 0 : index
    %c5_82 = arith.constant 5 : index
    %75 = memref.load %arg4[%c0_81, %c5_82] : memref<8x8xf32, #tpu.memory_space<smem>>
    %76 = vector.broadcast %75 : f32 to vector<16x16xf32>
    %77 = arith.mulf %41, %76 : vector<16x16xf32>
    %78 = arith.addf %74, %77 : vector<16x16xf32>
    %c0_83 = arith.constant 0 : index
    %c6_84 = arith.constant 6 : index
    %79 = memref.load %arg4[%c0_83, %c6_84] : memref<8x8xf32, #tpu.memory_space<smem>>
    %80 = vector.broadcast %79 : f32 to vector<16x16xf32>
    %81 = arith.mulf %48, %80 : vector<16x16xf32>
    %82 = arith.addf %78, %81 : vector<16x16xf32>
    %c0_85 = arith.constant 0 : index
    %c7_86 = arith.constant 7 : index
    %83 = memref.load %arg4[%c0_85, %c7_86] : memref<8x8xf32, #tpu.memory_space<smem>>
    %84 = vector.broadcast %83 : f32 to vector<16x16xf32>
    %85 = arith.mulf %55, %84 : vector<16x16xf32>
    %86 = arith.addf %82, %85 : vector<16x16xf32>
    %c0_87 = arith.constant 0 : index
    %c0_88 = arith.constant 0 : index
    %87 = memref.load %arg5[%c0_87, %c0_88] : memref<1x8xf32, #tpu.memory_space<smem>>
    %88 = vector.broadcast %87 : f32 to vector<16x16xf32>
    %89 = arith.addf %86, %88 : vector<16x16xf32>
    %c1_89 = arith.constant 1 : index
    %c0_90 = arith.constant 0 : index
    %90 = memref.load %arg4[%c1_89, %c0_90] : memref<8x8xf32, #tpu.memory_space<smem>>
    %91 = vector.broadcast %90 : f32 to vector<16x16xf32>
    %92 = arith.mulf %6, %91 : vector<16x16xf32>
    %c1_91 = arith.constant 1 : index
    %c1_92 = arith.constant 1 : index
    %93 = memref.load %arg4[%c1_91, %c1_92] : memref<8x8xf32, #tpu.memory_space<smem>>
    %94 = vector.broadcast %93 : f32 to vector<16x16xf32>
    %95 = arith.mulf %13, %94 : vector<16x16xf32>
    %96 = arith.addf %92, %95 : vector<16x16xf32>
    %c1_93 = arith.constant 1 : index
    %c2_94 = arith.constant 2 : index
    %97 = memref.load %arg4[%c1_93, %c2_94] : memref<8x8xf32, #tpu.memory_space<smem>>
    %98 = vector.broadcast %97 : f32 to vector<16x16xf32>
    %99 = arith.mulf %20, %98 : vector<16x16xf32>
    %100 = arith.addf %96, %99 : vector<16x16xf32>
    %c1_95 = arith.constant 1 : index
    %c3_96 = arith.constant 3 : index
    %101 = memref.load %arg4[%c1_95, %c3_96] : memref<8x8xf32, #tpu.memory_space<smem>>
    %102 = vector.broadcast %101 : f32 to vector<16x16xf32>
    %103 = arith.mulf %27, %102 : vector<16x16xf32>
    %104 = arith.addf %100, %103 : vector<16x16xf32>
    %c1_97 = arith.constant 1 : index
    %c4_98 = arith.constant 4 : index
    %105 = memref.load %arg4[%c1_97, %c4_98] : memref<8x8xf32, #tpu.memory_space<smem>>
    %106 = vector.broadcast %105 : f32 to vector<16x16xf32>
    %107 = arith.mulf %34, %106 : vector<16x16xf32>
    %108 = arith.addf %104, %107 : vector<16x16xf32>
    %c1_99 = arith.constant 1 : index
    %c5_100 = arith.constant 5 : index
    %109 = memref.load %arg4[%c1_99, %c5_100] : memref<8x8xf32, #tpu.memory_space<smem>>
    %110 = vector.broadcast %109 : f32 to vector<16x16xf32>
    %111 = arith.mulf %41, %110 : vector<16x16xf32>
    %112 = arith.addf %108, %111 : vector<16x16xf32>
    %c1_101 = arith.constant 1 : index
    %c6_102 = arith.constant 6 : index
    %113 = memref.load %arg4[%c1_101, %c6_102] : memref<8x8xf32, #tpu.memory_space<smem>>
    %114 = vector.broadcast %113 : f32 to vector<16x16xf32>
    %115 = arith.mulf %48, %114 : vector<16x16xf32>
    %116 = arith.addf %112, %115 : vector<16x16xf32>
    %c1_103 = arith.constant 1 : index
    %c7_104 = arith.constant 7 : index
    %117 = memref.load %arg4[%c1_103, %c7_104] : memref<8x8xf32, #tpu.memory_space<smem>>
    %118 = vector.broadcast %117 : f32 to vector<16x16xf32>
    %119 = arith.mulf %55, %118 : vector<16x16xf32>
    %120 = arith.addf %116, %119 : vector<16x16xf32>
    %c0_105 = arith.constant 0 : index
    %c1_106 = arith.constant 1 : index
    %121 = memref.load %arg5[%c0_105, %c1_106] : memref<1x8xf32, #tpu.memory_space<smem>>
    %122 = vector.broadcast %121 : f32 to vector<16x16xf32>
    %123 = arith.addf %120, %122 : vector<16x16xf32>
    %c2_107 = arith.constant 2 : index
    %c0_108 = arith.constant 0 : index
    %124 = memref.load %arg4[%c2_107, %c0_108] : memref<8x8xf32, #tpu.memory_space<smem>>
    %125 = vector.broadcast %124 : f32 to vector<16x16xf32>
    %126 = arith.mulf %6, %125 : vector<16x16xf32>
    %c2_109 = arith.constant 2 : index
    %c1_110 = arith.constant 1 : index
    %127 = memref.load %arg4[%c2_109, %c1_110] : memref<8x8xf32, #tpu.memory_space<smem>>
    %128 = vector.broadcast %127 : f32 to vector<16x16xf32>
    %129 = arith.mulf %13, %128 : vector<16x16xf32>
    %130 = arith.addf %126, %129 : vector<16x16xf32>
    %c2_111 = arith.constant 2 : index
    %c2_112 = arith.constant 2 : index
    %131 = memref.load %arg4[%c2_111, %c2_112] : memref<8x8xf32, #tpu.memory_space<smem>>
    %132 = vector.broadcast %131 : f32 to vector<16x16xf32>
    %133 = arith.mulf %20, %132 : vector<16x16xf32>
    %134 = arith.addf %130, %133 : vector<16x16xf32>
    %c2_113 = arith.constant 2 : index
    %c3_114 = arith.constant 3 : index
    %135 = memref.load %arg4[%c2_113, %c3_114] : memref<8x8xf32, #tpu.memory_space<smem>>
    %136 = vector.broadcast %135 : f32 to vector<16x16xf32>
    %137 = arith.mulf %27, %136 : vector<16x16xf32>
    %138 = arith.addf %134, %137 : vector<16x16xf32>
    %c2_115 = arith.constant 2 : index
    %c4_116 = arith.constant 4 : index
    %139 = memref.load %arg4[%c2_115, %c4_116] : memref<8x8xf32, #tpu.memory_space<smem>>
    %140 = vector.broadcast %139 : f32 to vector<16x16xf32>
    %141 = arith.mulf %34, %140 : vector<16x16xf32>
    %142 = arith.addf %138, %141 : vector<16x16xf32>
    %c2_117 = arith.constant 2 : index
    %c5_118 = arith.constant 5 : index
    %143 = memref.load %arg4[%c2_117, %c5_118] : memref<8x8xf32, #tpu.memory_space<smem>>
    %144 = vector.broadcast %143 : f32 to vector<16x16xf32>
    %145 = arith.mulf %41, %144 : vector<16x16xf32>
    %146 = arith.addf %142, %145 : vector<16x16xf32>
    %c2_119 = arith.constant 2 : index
    %c6_120 = arith.constant 6 : index
    %147 = memref.load %arg4[%c2_119, %c6_120] : memref<8x8xf32, #tpu.memory_space<smem>>
    %148 = vector.broadcast %147 : f32 to vector<16x16xf32>
    %149 = arith.mulf %48, %148 : vector<16x16xf32>
    %150 = arith.addf %146, %149 : vector<16x16xf32>
    %c2_121 = arith.constant 2 : index
    %c7_122 = arith.constant 7 : index
    %151 = memref.load %arg4[%c2_121, %c7_122] : memref<8x8xf32, #tpu.memory_space<smem>>
    %152 = vector.broadcast %151 : f32 to vector<16x16xf32>
    %153 = arith.mulf %55, %152 : vector<16x16xf32>
    %154 = arith.addf %150, %153 : vector<16x16xf32>
    %c0_123 = arith.constant 0 : index
    %c2_124 = arith.constant 2 : index
    %155 = memref.load %arg5[%c0_123, %c2_124] : memref<1x8xf32, #tpu.memory_space<smem>>
    %156 = vector.broadcast %155 : f32 to vector<16x16xf32>
    %157 = arith.addf %154, %156 : vector<16x16xf32>
    %c3_125 = arith.constant 3 : index
    %c0_126 = arith.constant 0 : index
    %158 = memref.load %arg4[%c3_125, %c0_126] : memref<8x8xf32, #tpu.memory_space<smem>>
    %159 = vector.broadcast %158 : f32 to vector<16x16xf32>
    %160 = arith.mulf %6, %159 : vector<16x16xf32>
    %c3_127 = arith.constant 3 : index
    %c1_128 = arith.constant 1 : index
    %161 = memref.load %arg4[%c3_127, %c1_128] : memref<8x8xf32, #tpu.memory_space<smem>>
    %162 = vector.broadcast %161 : f32 to vector<16x16xf32>
    %163 = arith.mulf %13, %162 : vector<16x16xf32>
    %164 = arith.addf %160, %163 : vector<16x16xf32>
    %c3_129 = arith.constant 3 : index
    %c2_130 = arith.constant 2 : index
    %165 = memref.load %arg4[%c3_129, %c2_130] : memref<8x8xf32, #tpu.memory_space<smem>>
    %166 = vector.broadcast %165 : f32 to vector<16x16xf32>
    %167 = arith.mulf %20, %166 : vector<16x16xf32>
    %168 = arith.addf %164, %167 : vector<16x16xf32>
    %c3_131 = arith.constant 3 : index
    %c3_132 = arith.constant 3 : index
    %169 = memref.load %arg4[%c3_131, %c3_132] : memref<8x8xf32, #tpu.memory_space<smem>>
    %170 = vector.broadcast %169 : f32 to vector<16x16xf32>
    %171 = arith.mulf %27, %170 : vector<16x16xf32>
    %172 = arith.addf %168, %171 : vector<16x16xf32>
    %c3_133 = arith.constant 3 : index
    %c4_134 = arith.constant 4 : index
    %173 = memref.load %arg4[%c3_133, %c4_134] : memref<8x8xf32, #tpu.memory_space<smem>>
    %174 = vector.broadcast %173 : f32 to vector<16x16xf32>
    %175 = arith.mulf %34, %174 : vector<16x16xf32>
    %176 = arith.addf %172, %175 : vector<16x16xf32>
    %c3_135 = arith.constant 3 : index
    %c5_136 = arith.constant 5 : index
    %177 = memref.load %arg4[%c3_135, %c5_136] : memref<8x8xf32, #tpu.memory_space<smem>>
    %178 = vector.broadcast %177 : f32 to vector<16x16xf32>
    %179 = arith.mulf %41, %178 : vector<16x16xf32>
    %180 = arith.addf %176, %179 : vector<16x16xf32>
    %c3_137 = arith.constant 3 : index
    %c6_138 = arith.constant 6 : index
    %181 = memref.load %arg4[%c3_137, %c6_138] : memref<8x8xf32, #tpu.memory_space<smem>>
    %182 = vector.broadcast %181 : f32 to vector<16x16xf32>
    %183 = arith.mulf %48, %182 : vector<16x16xf32>
    %184 = arith.addf %180, %183 : vector<16x16xf32>
    %c3_139 = arith.constant 3 : index
    %c7_140 = arith.constant 7 : index
    %185 = memref.load %arg4[%c3_139, %c7_140] : memref<8x8xf32, #tpu.memory_space<smem>>
    %186 = vector.broadcast %185 : f32 to vector<16x16xf32>
    %187 = arith.mulf %55, %186 : vector<16x16xf32>
    %188 = arith.addf %184, %187 : vector<16x16xf32>
    %c0_141 = arith.constant 0 : index
    %c3_142 = arith.constant 3 : index
    %189 = memref.load %arg5[%c0_141, %c3_142] : memref<1x8xf32, #tpu.memory_space<smem>>
    %190 = vector.broadcast %189 : f32 to vector<16x16xf32>
    %191 = arith.addf %188, %190 : vector<16x16xf32>
    %c4_143 = arith.constant 4 : index
    %c0_144 = arith.constant 0 : index
    %192 = memref.load %arg4[%c4_143, %c0_144] : memref<8x8xf32, #tpu.memory_space<smem>>
    %193 = vector.broadcast %192 : f32 to vector<16x16xf32>
    %194 = arith.mulf %6, %193 : vector<16x16xf32>
    %c4_145 = arith.constant 4 : index
    %c1_146 = arith.constant 1 : index
    %195 = memref.load %arg4[%c4_145, %c1_146] : memref<8x8xf32, #tpu.memory_space<smem>>
    %196 = vector.broadcast %195 : f32 to vector<16x16xf32>
    %197 = arith.mulf %13, %196 : vector<16x16xf32>
    %198 = arith.addf %194, %197 : vector<16x16xf32>
    %c4_147 = arith.constant 4 : index
    %c2_148 = arith.constant 2 : index
    %199 = memref.load %arg4[%c4_147, %c2_148] : memref<8x8xf32, #tpu.memory_space<smem>>
    %200 = vector.broadcast %199 : f32 to vector<16x16xf32>
    %201 = arith.mulf %20, %200 : vector<16x16xf32>
    %202 = arith.addf %198, %201 : vector<16x16xf32>
    %c4_149 = arith.constant 4 : index
    %c3_150 = arith.constant 3 : index
    %203 = memref.load %arg4[%c4_149, %c3_150] : memref<8x8xf32, #tpu.memory_space<smem>>
    %204 = vector.broadcast %203 : f32 to vector<16x16xf32>
    %205 = arith.mulf %27, %204 : vector<16x16xf32>
    %206 = arith.addf %202, %205 : vector<16x16xf32>
    %c4_151 = arith.constant 4 : index
    %c4_152 = arith.constant 4 : index
    %207 = memref.load %arg4[%c4_151, %c4_152] : memref<8x8xf32, #tpu.memory_space<smem>>
    %208 = vector.broadcast %207 : f32 to vector<16x16xf32>
    %209 = arith.mulf %34, %208 : vector<16x16xf32>
    %210 = arith.addf %206, %209 : vector<16x16xf32>
    %c4_153 = arith.constant 4 : index
    %c5_154 = arith.constant 5 : index
    %211 = memref.load %arg4[%c4_153, %c5_154] : memref<8x8xf32, #tpu.memory_space<smem>>
    %212 = vector.broadcast %211 : f32 to vector<16x16xf32>
    %213 = arith.mulf %41, %212 : vector<16x16xf32>
    %214 = arith.addf %210, %213 : vector<16x16xf32>
    %c4_155 = arith.constant 4 : index
    %c6_156 = arith.constant 6 : index
    %215 = memref.load %arg4[%c4_155, %c6_156] : memref<8x8xf32, #tpu.memory_space<smem>>
    %216 = vector.broadcast %215 : f32 to vector<16x16xf32>
    %217 = arith.mulf %48, %216 : vector<16x16xf32>
    %218 = arith.addf %214, %217 : vector<16x16xf32>
    %c4_157 = arith.constant 4 : index
    %c7_158 = arith.constant 7 : index
    %219 = memref.load %arg4[%c4_157, %c7_158] : memref<8x8xf32, #tpu.memory_space<smem>>
    %220 = vector.broadcast %219 : f32 to vector<16x16xf32>
    %221 = arith.mulf %55, %220 : vector<16x16xf32>
    %222 = arith.addf %218, %221 : vector<16x16xf32>
    %c0_159 = arith.constant 0 : index
    %c4_160 = arith.constant 4 : index
    %223 = memref.load %arg5[%c0_159, %c4_160] : memref<1x8xf32, #tpu.memory_space<smem>>
    %224 = vector.broadcast %223 : f32 to vector<16x16xf32>
    %225 = arith.addf %222, %224 : vector<16x16xf32>
    %c5_161 = arith.constant 5 : index
    %c0_162 = arith.constant 0 : index
    %226 = memref.load %arg4[%c5_161, %c0_162] : memref<8x8xf32, #tpu.memory_space<smem>>
    %227 = vector.broadcast %226 : f32 to vector<16x16xf32>
    %228 = arith.mulf %6, %227 : vector<16x16xf32>
    %c5_163 = arith.constant 5 : index
    %c1_164 = arith.constant 1 : index
    %229 = memref.load %arg4[%c5_163, %c1_164] : memref<8x8xf32, #tpu.memory_space<smem>>
    %230 = vector.broadcast %229 : f32 to vector<16x16xf32>
    %231 = arith.mulf %13, %230 : vector<16x16xf32>
    %232 = arith.addf %228, %231 : vector<16x16xf32>
    %c5_165 = arith.constant 5 : index
    %c2_166 = arith.constant 2 : index
    %233 = memref.load %arg4[%c5_165, %c2_166] : memref<8x8xf32, #tpu.memory_space<smem>>
    %234 = vector.broadcast %233 : f32 to vector<16x16xf32>
    %235 = arith.mulf %20, %234 : vector<16x16xf32>
    %236 = arith.addf %232, %235 : vector<16x16xf32>
    %c5_167 = arith.constant 5 : index
    %c3_168 = arith.constant 3 : index
    %237 = memref.load %arg4[%c5_167, %c3_168] : memref<8x8xf32, #tpu.memory_space<smem>>
    %238 = vector.broadcast %237 : f32 to vector<16x16xf32>
    %239 = arith.mulf %27, %238 : vector<16x16xf32>
    %240 = arith.addf %236, %239 : vector<16x16xf32>
    %c5_169 = arith.constant 5 : index
    %c4_170 = arith.constant 4 : index
    %241 = memref.load %arg4[%c5_169, %c4_170] : memref<8x8xf32, #tpu.memory_space<smem>>
    %242 = vector.broadcast %241 : f32 to vector<16x16xf32>
    %243 = arith.mulf %34, %242 : vector<16x16xf32>
    %244 = arith.addf %240, %243 : vector<16x16xf32>
    %c5_171 = arith.constant 5 : index
    %c5_172 = arith.constant 5 : index
    %245 = memref.load %arg4[%c5_171, %c5_172] : memref<8x8xf32, #tpu.memory_space<smem>>
    %246 = vector.broadcast %245 : f32 to vector<16x16xf32>
    %247 = arith.mulf %41, %246 : vector<16x16xf32>
    %248 = arith.addf %244, %247 : vector<16x16xf32>
    %c5_173 = arith.constant 5 : index
    %c6_174 = arith.constant 6 : index
    %249 = memref.load %arg4[%c5_173, %c6_174] : memref<8x8xf32, #tpu.memory_space<smem>>
    %250 = vector.broadcast %249 : f32 to vector<16x16xf32>
    %251 = arith.mulf %48, %250 : vector<16x16xf32>
    %252 = arith.addf %248, %251 : vector<16x16xf32>
    %c5_175 = arith.constant 5 : index
    %c7_176 = arith.constant 7 : index
    %253 = memref.load %arg4[%c5_175, %c7_176] : memref<8x8xf32, #tpu.memory_space<smem>>
    %254 = vector.broadcast %253 : f32 to vector<16x16xf32>
    %255 = arith.mulf %55, %254 : vector<16x16xf32>
    %256 = arith.addf %252, %255 : vector<16x16xf32>
    %c0_177 = arith.constant 0 : index
    %c5_178 = arith.constant 5 : index
    %257 = memref.load %arg5[%c0_177, %c5_178] : memref<1x8xf32, #tpu.memory_space<smem>>
    %258 = vector.broadcast %257 : f32 to vector<16x16xf32>
    %259 = arith.addf %256, %258 : vector<16x16xf32>
    %c6_179 = arith.constant 6 : index
    %c0_180 = arith.constant 0 : index
    %260 = memref.load %arg4[%c6_179, %c0_180] : memref<8x8xf32, #tpu.memory_space<smem>>
    %261 = vector.broadcast %260 : f32 to vector<16x16xf32>
    %262 = arith.mulf %6, %261 : vector<16x16xf32>
    %c6_181 = arith.constant 6 : index
    %c1_182 = arith.constant 1 : index
    %263 = memref.load %arg4[%c6_181, %c1_182] : memref<8x8xf32, #tpu.memory_space<smem>>
    %264 = vector.broadcast %263 : f32 to vector<16x16xf32>
    %265 = arith.mulf %13, %264 : vector<16x16xf32>
    %266 = arith.addf %262, %265 : vector<16x16xf32>
    %c6_183 = arith.constant 6 : index
    %c2_184 = arith.constant 2 : index
    %267 = memref.load %arg4[%c6_183, %c2_184] : memref<8x8xf32, #tpu.memory_space<smem>>
    %268 = vector.broadcast %267 : f32 to vector<16x16xf32>
    %269 = arith.mulf %20, %268 : vector<16x16xf32>
    %270 = arith.addf %266, %269 : vector<16x16xf32>
    %c6_185 = arith.constant 6 : index
    %c3_186 = arith.constant 3 : index
    %271 = memref.load %arg4[%c6_185, %c3_186] : memref<8x8xf32, #tpu.memory_space<smem>>
    %272 = vector.broadcast %271 : f32 to vector<16x16xf32>
    %273 = arith.mulf %27, %272 : vector<16x16xf32>
    %274 = arith.addf %270, %273 : vector<16x16xf32>
    %c6_187 = arith.constant 6 : index
    %c4_188 = arith.constant 4 : index
    %275 = memref.load %arg4[%c6_187, %c4_188] : memref<8x8xf32, #tpu.memory_space<smem>>
    %276 = vector.broadcast %275 : f32 to vector<16x16xf32>
    %277 = arith.mulf %34, %276 : vector<16x16xf32>
    %278 = arith.addf %274, %277 : vector<16x16xf32>
    %c6_189 = arith.constant 6 : index
    %c5_190 = arith.constant 5 : index
    %279 = memref.load %arg4[%c6_189, %c5_190] : memref<8x8xf32, #tpu.memory_space<smem>>
    %280 = vector.broadcast %279 : f32 to vector<16x16xf32>
    %281 = arith.mulf %41, %280 : vector<16x16xf32>
    %282 = arith.addf %278, %281 : vector<16x16xf32>
    %c6_191 = arith.constant 6 : index
    %c6_192 = arith.constant 6 : index
    %283 = memref.load %arg4[%c6_191, %c6_192] : memref<8x8xf32, #tpu.memory_space<smem>>
    %284 = vector.broadcast %283 : f32 to vector<16x16xf32>
    %285 = arith.mulf %48, %284 : vector<16x16xf32>
    %286 = arith.addf %282, %285 : vector<16x16xf32>
    %c6_193 = arith.constant 6 : index
    %c7_194 = arith.constant 7 : index
    %287 = memref.load %arg4[%c6_193, %c7_194] : memref<8x8xf32, #tpu.memory_space<smem>>
    %288 = vector.broadcast %287 : f32 to vector<16x16xf32>
    %289 = arith.mulf %55, %288 : vector<16x16xf32>
    %290 = arith.addf %286, %289 : vector<16x16xf32>
    %c0_195 = arith.constant 0 : index
    %c6_196 = arith.constant 6 : index
    %291 = memref.load %arg5[%c0_195, %c6_196] : memref<1x8xf32, #tpu.memory_space<smem>>
    %292 = vector.broadcast %291 : f32 to vector<16x16xf32>
    %293 = arith.addf %290, %292 : vector<16x16xf32>
    %c7_197 = arith.constant 7 : index
    %c0_198 = arith.constant 0 : index
    %294 = memref.load %arg4[%c7_197, %c0_198] : memref<8x8xf32, #tpu.memory_space<smem>>
    %295 = vector.broadcast %294 : f32 to vector<16x16xf32>
    %296 = arith.mulf %6, %295 : vector<16x16xf32>
    %c7_199 = arith.constant 7 : index
    %c1_200 = arith.constant 1 : index
    %297 = memref.load %arg4[%c7_199, %c1_200] : memref<8x8xf32, #tpu.memory_space<smem>>
    %298 = vector.broadcast %297 : f32 to vector<16x16xf32>
    %299 = arith.mulf %13, %298 : vector<16x16xf32>
    %300 = arith.addf %296, %299 : vector<16x16xf32>
    %c7_201 = arith.constant 7 : index
    %c2_202 = arith.constant 2 : index
    %301 = memref.load %arg4[%c7_201, %c2_202] : memref<8x8xf32, #tpu.memory_space<smem>>
    %302 = vector.broadcast %301 : f32 to vector<16x16xf32>
    %303 = arith.mulf %20, %302 : vector<16x16xf32>
    %304 = arith.addf %300, %303 : vector<16x16xf32>
    %c7_203 = arith.constant 7 : index
    %c3_204 = arith.constant 3 : index
    %305 = memref.load %arg4[%c7_203, %c3_204] : memref<8x8xf32, #tpu.memory_space<smem>>
    %306 = vector.broadcast %305 : f32 to vector<16x16xf32>
    %307 = arith.mulf %27, %306 : vector<16x16xf32>
    %308 = arith.addf %304, %307 : vector<16x16xf32>
    %c7_205 = arith.constant 7 : index
    %c4_206 = arith.constant 4 : index
    %309 = memref.load %arg4[%c7_205, %c4_206] : memref<8x8xf32, #tpu.memory_space<smem>>
    %310 = vector.broadcast %309 : f32 to vector<16x16xf32>
    %311 = arith.mulf %34, %310 : vector<16x16xf32>
    %312 = arith.addf %308, %311 : vector<16x16xf32>
    %c7_207 = arith.constant 7 : index
    %c5_208 = arith.constant 5 : index
    %313 = memref.load %arg4[%c7_207, %c5_208] : memref<8x8xf32, #tpu.memory_space<smem>>
    %314 = vector.broadcast %313 : f32 to vector<16x16xf32>
    %315 = arith.mulf %41, %314 : vector<16x16xf32>
    %316 = arith.addf %312, %315 : vector<16x16xf32>
    %c7_209 = arith.constant 7 : index
    %c6_210 = arith.constant 6 : index
    %317 = memref.load %arg4[%c7_209, %c6_210] : memref<8x8xf32, #tpu.memory_space<smem>>
    %318 = vector.broadcast %317 : f32 to vector<16x16xf32>
    %319 = arith.mulf %48, %318 : vector<16x16xf32>
    %320 = arith.addf %316, %319 : vector<16x16xf32>
    %c7_211 = arith.constant 7 : index
    %c7_212 = arith.constant 7 : index
    %321 = memref.load %arg4[%c7_211, %c7_212] : memref<8x8xf32, #tpu.memory_space<smem>>
    %322 = vector.broadcast %321 : f32 to vector<16x16xf32>
    %323 = arith.mulf %55, %322 : vector<16x16xf32>
    %324 = arith.addf %320, %323 : vector<16x16xf32>
    %c0_213 = arith.constant 0 : index
    %c7_214 = arith.constant 7 : index
    %325 = memref.load %arg5[%c0_213, %c7_214] : memref<1x8xf32, #tpu.memory_space<smem>>
    %326 = vector.broadcast %325 : f32 to vector<16x16xf32>
    %327 = arith.addf %324, %326 : vector<16x16xf32>
    %cst_215 = arith.constant dense<0xFF800000> : vector<16xf32>
    %328 = vector.multi_reduction <maximumf>, %89, %cst_215 [1] : vector<16x16xf32> to vector<16xf32>
    %329 = vector.shape_cast %328 : vector<16xf32> to vector<16x1xf32>
    %330 = vector.broadcast %329 : vector<16x1xf32> to vector<16x16xf32>
    %331 = arith.subf %89, %330 : vector<16x16xf32>
    %332 = math.exp %331 : vector<16x16xf32>
    %cst_216 = arith.constant dense<0.000000e+00> : vector<16xf32>
    %333 = vector.multi_reduction <add>, %332, %cst_216 [1] : vector<16x16xf32> to vector<16xf32>
    %334 = vector.shape_cast %333 : vector<16xf32> to vector<16x1xf32>
    %335 = vector.broadcast %334 : vector<16x1xf32> to vector<16x16xf32>
    %336 = arith.divf %332, %335 : vector<16x16xf32>
    %cst_217 = arith.constant dense<0xFF800000> : vector<16xf32>
    %337 = vector.multi_reduction <maximumf>, %123, %cst_217 [1] : vector<16x16xf32> to vector<16xf32>
    %338 = vector.shape_cast %337 : vector<16xf32> to vector<16x1xf32>
    %339 = vector.broadcast %338 : vector<16x1xf32> to vector<16x16xf32>
    %340 = arith.subf %123, %339 : vector<16x16xf32>
    %341 = math.exp %340 : vector<16x16xf32>
    %cst_218 = arith.constant dense<0.000000e+00> : vector<16xf32>
    %342 = vector.multi_reduction <add>, %341, %cst_218 [1] : vector<16x16xf32> to vector<16xf32>
    %343 = vector.shape_cast %342 : vector<16xf32> to vector<16x1xf32>
    %344 = vector.broadcast %343 : vector<16x1xf32> to vector<16x16xf32>
    %345 = arith.divf %341, %344 : vector<16x16xf32>
    %cst_219 = arith.constant dense<0xFF800000> : vector<16xf32>
    %346 = vector.multi_reduction <maximumf>, %157, %cst_219 [1] : vector<16x16xf32> to vector<16xf32>
    %347 = vector.shape_cast %346 : vector<16xf32> to vector<16x1xf32>
    %348 = vector.broadcast %347 : vector<16x1xf32> to vector<16x16xf32>
    %349 = arith.subf %157, %348 : vector<16x16xf32>
    %350 = math.exp %349 : vector<16x16xf32>
    %cst_220 = arith.constant dense<0.000000e+00> : vector<16xf32>
    %351 = vector.multi_reduction <add>, %350, %cst_220 [1] : vector<16x16xf32> to vector<16xf32>
    %352 = vector.shape_cast %351 : vector<16xf32> to vector<16x1xf32>
    %353 = vector.broadcast %352 : vector<16x1xf32> to vector<16x16xf32>
    %354 = arith.divf %350, %353 : vector<16x16xf32>
    %cst_221 = arith.constant dense<0xFF800000> : vector<16xf32>
    %355 = vector.multi_reduction <maximumf>, %191, %cst_221 [1] : vector<16x16xf32> to vector<16xf32>
    %356 = vector.shape_cast %355 : vector<16xf32> to vector<16x1xf32>
    %357 = vector.broadcast %356 : vector<16x1xf32> to vector<16x16xf32>
    %358 = arith.subf %191, %357 : vector<16x16xf32>
    %359 = math.exp %358 : vector<16x16xf32>
    %cst_222 = arith.constant dense<0.000000e+00> : vector<16xf32>
    %360 = vector.multi_reduction <add>, %359, %cst_222 [1] : vector<16x16xf32> to vector<16xf32>
    %361 = vector.shape_cast %360 : vector<16xf32> to vector<16x1xf32>
    %362 = vector.broadcast %361 : vector<16x1xf32> to vector<16x16xf32>
    %363 = arith.divf %359, %362 : vector<16x16xf32>
    %cst_223 = arith.constant dense<0xFF800000> : vector<16xf32>
    %364 = vector.multi_reduction <maximumf>, %225, %cst_223 [1] : vector<16x16xf32> to vector<16xf32>
    %365 = vector.shape_cast %364 : vector<16xf32> to vector<16x1xf32>
    %366 = vector.broadcast %365 : vector<16x1xf32> to vector<16x16xf32>
    %367 = arith.subf %225, %366 : vector<16x16xf32>
    %368 = math.exp %367 : vector<16x16xf32>
    %cst_224 = arith.constant dense<0.000000e+00> : vector<16xf32>
    %369 = vector.multi_reduction <add>, %368, %cst_224 [1] : vector<16x16xf32> to vector<16xf32>
    %370 = vector.shape_cast %369 : vector<16xf32> to vector<16x1xf32>
    %371 = vector.broadcast %370 : vector<16x1xf32> to vector<16x16xf32>
    %372 = arith.divf %368, %371 : vector<16x16xf32>
    %cst_225 = arith.constant dense<0xFF800000> : vector<16xf32>
    %373 = vector.multi_reduction <maximumf>, %259, %cst_225 [1] : vector<16x16xf32> to vector<16xf32>
    %374 = vector.shape_cast %373 : vector<16xf32> to vector<16x1xf32>
    %375 = vector.broadcast %374 : vector<16x1xf32> to vector<16x16xf32>
    %376 = arith.subf %259, %375 : vector<16x16xf32>
    %377 = math.exp %376 : vector<16x16xf32>
    %cst_226 = arith.constant dense<0.000000e+00> : vector<16xf32>
    %378 = vector.multi_reduction <add>, %377, %cst_226 [1] : vector<16x16xf32> to vector<16xf32>
    %379 = vector.shape_cast %378 : vector<16xf32> to vector<16x1xf32>
    %380 = vector.broadcast %379 : vector<16x1xf32> to vector<16x16xf32>
    %381 = arith.divf %377, %380 : vector<16x16xf32>
    %cst_227 = arith.constant dense<0xFF800000> : vector<16xf32>
    %382 = vector.multi_reduction <maximumf>, %293, %cst_227 [1] : vector<16x16xf32> to vector<16xf32>
    %383 = vector.shape_cast %382 : vector<16xf32> to vector<16x1xf32>
    %384 = vector.broadcast %383 : vector<16x1xf32> to vector<16x16xf32>
    %385 = arith.subf %293, %384 : vector<16x16xf32>
    %386 = math.exp %385 : vector<16x16xf32>
    %cst_228 = arith.constant dense<0.000000e+00> : vector<16xf32>
    %387 = vector.multi_reduction <add>, %386, %cst_228 [1] : vector<16x16xf32> to vector<16xf32>
    %388 = vector.shape_cast %387 : vector<16xf32> to vector<16x1xf32>
    %389 = vector.broadcast %388 : vector<16x1xf32> to vector<16x16xf32>
    %390 = arith.divf %386, %389 : vector<16x16xf32>
    %cst_229 = arith.constant dense<0xFF800000> : vector<16xf32>
    %391 = vector.multi_reduction <maximumf>, %327, %cst_229 [1] : vector<16x16xf32> to vector<16xf32>
    %392 = vector.shape_cast %391 : vector<16xf32> to vector<16x1xf32>
    %393 = vector.broadcast %392 : vector<16x1xf32> to vector<16x16xf32>
    %394 = arith.subf %327, %393 : vector<16x16xf32>
    %395 = math.exp %394 : vector<16x16xf32>
    %cst_230 = arith.constant dense<0.000000e+00> : vector<16xf32>
    %396 = vector.multi_reduction <add>, %395, %cst_230 [1] : vector<16x16xf32> to vector<16xf32>
    %397 = vector.shape_cast %396 : vector<16xf32> to vector<16x1xf32>
    %398 = vector.broadcast %397 : vector<16x1xf32> to vector<16x16xf32>
    %399 = arith.divf %395, %398 : vector<16x16xf32>
    %c0_231 = arith.constant 0 : index
    %c0_232 = arith.constant 0 : index
    %400 = memref.load %arg6[%c0_231, %c0_232] : memref<8x8xf32, #tpu.memory_space<smem>>
    %401 = vector.broadcast %400 : f32 to vector<16x16xf32>
    %402 = arith.mulf %336, %401 : vector<16x16xf32>
    %c0_233 = arith.constant 0 : index
    %c1_234 = arith.constant 1 : index
    %403 = memref.load %arg6[%c0_233, %c1_234] : memref<8x8xf32, #tpu.memory_space<smem>>
    %404 = vector.broadcast %403 : f32 to vector<16x16xf32>
    %405 = arith.mulf %345, %404 : vector<16x16xf32>
    %406 = arith.addf %402, %405 : vector<16x16xf32>
    %c0_235 = arith.constant 0 : index
    %c2_236 = arith.constant 2 : index
    %407 = memref.load %arg6[%c0_235, %c2_236] : memref<8x8xf32, #tpu.memory_space<smem>>
    %408 = vector.broadcast %407 : f32 to vector<16x16xf32>
    %409 = arith.mulf %354, %408 : vector<16x16xf32>
    %410 = arith.addf %406, %409 : vector<16x16xf32>
    %c0_237 = arith.constant 0 : index
    %c3_238 = arith.constant 3 : index
    %411 = memref.load %arg6[%c0_237, %c3_238] : memref<8x8xf32, #tpu.memory_space<smem>>
    %412 = vector.broadcast %411 : f32 to vector<16x16xf32>
    %413 = arith.mulf %363, %412 : vector<16x16xf32>
    %414 = arith.addf %410, %413 : vector<16x16xf32>
    %c0_239 = arith.constant 0 : index
    %c4_240 = arith.constant 4 : index
    %415 = memref.load %arg6[%c0_239, %c4_240] : memref<8x8xf32, #tpu.memory_space<smem>>
    %416 = vector.broadcast %415 : f32 to vector<16x16xf32>
    %417 = arith.mulf %372, %416 : vector<16x16xf32>
    %418 = arith.addf %414, %417 : vector<16x16xf32>
    %c0_241 = arith.constant 0 : index
    %c5_242 = arith.constant 5 : index
    %419 = memref.load %arg6[%c0_241, %c5_242] : memref<8x8xf32, #tpu.memory_space<smem>>
    %420 = vector.broadcast %419 : f32 to vector<16x16xf32>
    %421 = arith.mulf %381, %420 : vector<16x16xf32>
    %422 = arith.addf %418, %421 : vector<16x16xf32>
    %c0_243 = arith.constant 0 : index
    %c6_244 = arith.constant 6 : index
    %423 = memref.load %arg6[%c0_243, %c6_244] : memref<8x8xf32, #tpu.memory_space<smem>>
    %424 = vector.broadcast %423 : f32 to vector<16x16xf32>
    %425 = arith.mulf %390, %424 : vector<16x16xf32>
    %426 = arith.addf %422, %425 : vector<16x16xf32>
    %c0_245 = arith.constant 0 : index
    %c7_246 = arith.constant 7 : index
    %427 = memref.load %arg6[%c0_245, %c7_246] : memref<8x8xf32, #tpu.memory_space<smem>>
    %428 = vector.broadcast %427 : f32 to vector<16x16xf32>
    %429 = arith.mulf %399, %428 : vector<16x16xf32>
    %430 = arith.addf %426, %429 : vector<16x16xf32>
    %c0_247 = arith.constant 0 : index
    %c0_248 = arith.constant 0 : index
    %431 = memref.load %arg7[%c0_247, %c0_248] : memref<1x8xf32, #tpu.memory_space<smem>>
    %432 = vector.broadcast %431 : f32 to vector<16x16xf32>
    %433 = arith.addf %430, %432 : vector<16x16xf32>
    %c0_249 = arith.constant 0 : index
    %c0_250 = arith.constant 0 : index
    %c0_251 = arith.constant 0 : index
    %c0_252 = arith.constant 0 : index
    %434 = vector.load %arg3[%c0_249, %c0_250, %c0_251, %c0_252] : memref<1x8x16x4xf32, #tpu.memory_space<vmem>>, vector<1x1x16x4xf32>
    %435 = vector.shape_cast %434 : vector<1x1x16x4xf32> to vector<16x4xf32>
    %cst_253 = arith.constant dense<0.000000e+00> : vector<16x4xf32>
    %436 = tpu.matmul %433, %435, %cst_253 {dimension_numbers = #tpu.dot_dimension_numbers<[1], [0], [0], [1], [0, 0, 1, 1], [], []>} : vector<16x16xf32>, vector<16x4xf32>, vector<16x4xf32> -> vector<16x4xf32>
    %c0_254 = arith.constant 0 : index
    %c0_255 = arith.constant 0 : index
    %c0_256 = arith.constant 0 : index
    %437 = vector.load %arg8[%c0_254, %c0_255, %c0_256] : memref<1x16x32xf32, #tpu.memory_space<vmem>>, vector<1x16x4xf32>
    %438 = vector.shape_cast %437 : vector<1x16x4xf32> to vector<16x4xf32>
    %439 = vector.shape_cast %436 : vector<16x4xf32> to vector<1x16x4xf32>
    tpu.vector_store %arg8[%c0_254, %c0_255, %c0_256], %439 {strides = array<i32>} : memref<1x16x32xf32, #tpu.memory_space<vmem>>, vector<1x16x4xf32>,
    %c1_257 = arith.constant 1 : index
    %c0_258 = arith.constant 0 : index
    %440 = memref.load %arg6[%c1_257, %c0_258] : memref<8x8xf32, #tpu.memory_space<smem>>
    %441 = vector.broadcast %440 : f32 to vector<16x16xf32>
    %442 = arith.mulf %336, %441 : vector<16x16xf32>
    %c1_259 = arith.constant 1 : index
    %c1_260 = arith.constant 1 : index
    %443 = memref.load %arg6[%c1_259, %c1_260] : memref<8x8xf32, #tpu.memory_space<smem>>
    %444 = vector.broadcast %443 : f32 to vector<16x16xf32>
    %445 = arith.mulf %345, %444 : vector<16x16xf32>
    %446 = arith.addf %442, %445 : vector<16x16xf32>
    %c1_261 = arith.constant 1 : index
    %c2_262 = arith.constant 2 : index
    %447 = memref.load %arg6[%c1_261, %c2_262] : memref<8x8xf32, #tpu.memory_space<smem>>
    %448 = vector.broadcast %447 : f32 to vector<16x16xf32>
    %449 = arith.mulf %354, %448 : vector<16x16xf32>
    %450 = arith.addf %446, %449 : vector<16x16xf32>
    %c1_263 = arith.constant 1 : index
    %c3_264 = arith.constant 3 : index
    %451 = memref.load %arg6[%c1_263, %c3_264] : memref<8x8xf32, #tpu.memory_space<smem>>
    %452 = vector.broadcast %451 : f32 to vector<16x16xf32>
    %453 = arith.mulf %363, %452 : vector<16x16xf32>
    %454 = arith.addf %450, %453 : vector<16x16xf32>
    %c1_265 = arith.constant 1 : index
    %c4_266 = arith.constant 4 : index
    %455 = memref.load %arg6[%c1_265, %c4_266] : memref<8x8xf32, #tpu.memory_space<smem>>
    %456 = vector.broadcast %455 : f32 to vector<16x16xf32>
    %457 = arith.mulf %372, %456 : vector<16x16xf32>
    %458 = arith.addf %454, %457 : vector<16x16xf32>
    %c1_267 = arith.constant 1 : index
    %c5_268 = arith.constant 5 : index
    %459 = memref.load %arg6[%c1_267, %c5_268] : memref<8x8xf32, #tpu.memory_space<smem>>
    %460 = vector.broadcast %459 : f32 to vector<16x16xf32>
    %461 = arith.mulf %381, %460 : vector<16x16xf32>
    %462 = arith.addf %458, %461 : vector<16x16xf32>
    %c1_269 = arith.constant 1 : index
    %c6_270 = arith.constant 6 : index
    %463 = memref.load %arg6[%c1_269, %c6_270] : memref<8x8xf32, #tpu.memory_space<smem>>
    %464 = vector.broadcast %463 : f32 to vector<16x16xf32>
    %465 = arith.mulf %390, %464 : vector<16x16xf32>
    %466 = arith.addf %462, %465 : vector<16x16xf32>
    %c1_271 = arith.constant 1 : index
    %c7_272 = arith.constant 7 : index
    %467 = memref.load %arg6[%c1_271, %c7_272] : memref<8x8xf32, #tpu.memory_space<smem>>
    %468 = vector.broadcast %467 : f32 to vector<16x16xf32>
    %469 = arith.mulf %399, %468 : vector<16x16xf32>
    %470 = arith.addf %466, %469 : vector<16x16xf32>
    %c0_273 = arith.constant 0 : index
    %c1_274 = arith.constant 1 : index
    %471 = memref.load %arg7[%c0_273, %c1_274] : memref<1x8xf32, #tpu.memory_space<smem>>
    %472 = vector.broadcast %471 : f32 to vector<16x16xf32>
    %473 = arith.addf %470, %472 : vector<16x16xf32>
    %c0_275 = arith.constant 0 : index
    %c1_276 = arith.constant 1 : index
    %c0_277 = arith.constant 0 : index
    %c0_278 = arith.constant 0 : index
    %474 = vector.load %arg3[%c0_275, %c1_276, %c0_277, %c0_278] : memref<1x8x16x4xf32, #tpu.memory_space<vmem>>, vector<1x1x16x4xf32>
    %475 = vector.shape_cast %474 : vector<1x1x16x4xf32> to vector<16x4xf32>
    %cst_279 = arith.constant dense<0.000000e+00> : vector<16x4xf32>
    %476 = tpu.matmul %473, %475, %cst_279 {dimension_numbers = #tpu.dot_dimension_numbers<[1], [0], [0], [1], [0, 0, 1, 1], [], []>} : vector<16x16xf32>, vector<16x4xf32>, vector<16x4xf32> -> vector<16x4xf32>
    %c0_280 = arith.constant 0 : index
    %c0_281 = arith.constant 0 : index
    %c4_282 = arith.constant 4 : index
    %477 = vector.load %arg8[%c0_280, %c0_281, %c4_282] : memref<1x16x32xf32, #tpu.memory_space<vmem>>, vector<1x16x4xf32>
    %478 = vector.shape_cast %477 : vector<1x16x4xf32> to vector<16x4xf32>
    %479 = vector.shape_cast %476 : vector<16x4xf32> to vector<1x16x4xf32>
    tpu.vector_store %arg8[%c0_280, %c0_281, %c4_282], %479 {strides = array<i32>} : memref<1x16x32xf32, #tpu.memory_space<vmem>>, vector<1x16x4xf32>,
    %c2_283 = arith.constant 2 : index
    %c0_284 = arith.constant 0 : index
    %480 = memref.load %arg6[%c2_283, %c0_284] : memref<8x8xf32, #tpu.memory_space<smem>>
    %481 = vector.broadcast %480 : f32 to vector<16x16xf32>
    %482 = arith.mulf %336, %481 : vector<16x16xf32>
    %c2_285 = arith.constant 2 : index
    %c1_286 = arith.constant 1 : index
    %483 = memref.load %arg6[%c2_285, %c1_286] : memref<8x8xf32, #tpu.memory_space<smem>>
    %484 = vector.broadcast %483 : f32 to vector<16x16xf32>
    %485 = arith.mulf %345, %484 : vector<16x16xf32>
    %486 = arith.addf %482, %485 : vector<16x16xf32>
    %c2_287 = arith.constant 2 : index
    %c2_288 = arith.constant 2 : index
    %487 = memref.load %arg6[%c2_287, %c2_288] : memref<8x8xf32, #tpu.memory_space<smem>>
    %488 = vector.broadcast %487 : f32 to vector<16x16xf32>
    %489 = arith.mulf %354, %488 : vector<16x16xf32>
    %490 = arith.addf %486, %489 : vector<16x16xf32>
    %c2_289 = arith.constant 2 : index
    %c3_290 = arith.constant 3 : index
    %491 = memref.load %arg6[%c2_289, %c3_290] : memref<8x8xf32, #tpu.memory_space<smem>>
    %492 = vector.broadcast %491 : f32 to vector<16x16xf32>
    %493 = arith.mulf %363, %492 : vector<16x16xf32>
    %494 = arith.addf %490, %493 : vector<16x16xf32>
    %c2_291 = arith.constant 2 : index
    %c4_292 = arith.constant 4 : index
    %495 = memref.load %arg6[%c2_291, %c4_292] : memref<8x8xf32, #tpu.memory_space<smem>>
    %496 = vector.broadcast %495 : f32 to vector<16x16xf32>
    %497 = arith.mulf %372, %496 : vector<16x16xf32>
    %498 = arith.addf %494, %497 : vector<16x16xf32>
    %c2_293 = arith.constant 2 : index
    %c5_294 = arith.constant 5 : index
    %499 = memref.load %arg6[%c2_293, %c5_294] : memref<8x8xf32, #tpu.memory_space<smem>>
    %500 = vector.broadcast %499 : f32 to vector<16x16xf32>
    %501 = arith.mulf %381, %500 : vector<16x16xf32>
    %502 = arith.addf %498, %501 : vector<16x16xf32>
    %c2_295 = arith.constant 2 : index
    %c6_296 = arith.constant 6 : index
    %503 = memref.load %arg6[%c2_295, %c6_296] : memref<8x8xf32, #tpu.memory_space<smem>>
    %504 = vector.broadcast %503 : f32 to vector<16x16xf32>
    %505 = arith.mulf %390, %504 : vector<16x16xf32>
    %506 = arith.addf %502, %505 : vector<16x16xf32>
    %c2_297 = arith.constant 2 : index
    %c7_298 = arith.constant 7 : index
    %507 = memref.load %arg6[%c2_297, %c7_298] : memref<8x8xf32, #tpu.memory_space<smem>>
    %508 = vector.broadcast %507 : f32 to vector<16x16xf32>
    %509 = arith.mulf %399, %508 : vector<16x16xf32>
    %510 = arith.addf %506, %509 : vector<16x16xf32>
    %c0_299 = arith.constant 0 : index
    %c2_300 = arith.constant 2 : index
    %511 = memref.load %arg7[%c0_299, %c2_300] : memref<1x8xf32, #tpu.memory_space<smem>>
    %512 = vector.broadcast %511 : f32 to vector<16x16xf32>
    %513 = arith.addf %510, %512 : vector<16x16xf32>
    %c0_301 = arith.constant 0 : index
    %c2_302 = arith.constant 2 : index
    %c0_303 = arith.constant 0 : index
    %c0_304 = arith.constant 0 : index
    %514 = vector.load %arg3[%c0_301, %c2_302, %c0_303, %c0_304] : memref<1x8x16x4xf32, #tpu.memory_space<vmem>>, vector<1x1x16x4xf32>
    %515 = vector.shape_cast %514 : vector<1x1x16x4xf32> to vector<16x4xf32>
    %cst_305 = arith.constant dense<0.000000e+00> : vector<16x4xf32>
    %516 = tpu.matmul %513, %515, %cst_305 {dimension_numbers = #tpu.dot_dimension_numbers<[1], [0], [0], [1], [0, 0, 1, 1], [], []>} : vector<16x16xf32>, vector<16x4xf32>, vector<16x4xf32> -> vector<16x4xf32>
    %c0_306 = arith.constant 0 : index
    %c0_307 = arith.constant 0 : index
    %c8 = arith.constant 8 : index
    %517 = vector.load %arg8[%c0_306, %c0_307, %c8] : memref<1x16x32xf32, #tpu.memory_space<vmem>>, vector<1x16x4xf32>
    %518 = vector.shape_cast %517 : vector<1x16x4xf32> to vector<16x4xf32>
    %519 = vector.shape_cast %516 : vector<16x4xf32> to vector<1x16x4xf32>
    tpu.vector_store %arg8[%c0_306, %c0_307, %c8], %519 {strides = array<i32>} : memref<1x16x32xf32, #tpu.memory_space<vmem>>, vector<1x16x4xf32>,
    %c3_308 = arith.constant 3 : index
    %c0_309 = arith.constant 0 : index
    %520 = memref.load %arg6[%c3_308, %c0_309] : memref<8x8xf32, #tpu.memory_space<smem>>
    %521 = vector.broadcast %520 : f32 to vector<16x16xf32>
    %522 = arith.mulf %336, %521 : vector<16x16xf32>
    %c3_310 = arith.constant 3 : index
    %c1_311 = arith.constant 1 : index
    %523 = memref.load %arg6[%c3_310, %c1_311] : memref<8x8xf32, #tpu.memory_space<smem>>
    %524 = vector.broadcast %523 : f32 to vector<16x16xf32>
    %525 = arith.mulf %345, %524 : vector<16x16xf32>
    %526 = arith.addf %522, %525 : vector<16x16xf32>
    %c3_312 = arith.constant 3 : index
    %c2_313 = arith.constant 2 : index
    %527 = memref.load %arg6[%c3_312, %c2_313] : memref<8x8xf32, #tpu.memory_space<smem>>
    %528 = vector.broadcast %527 : f32 to vector<16x16xf32>
    %529 = arith.mulf %354, %528 : vector<16x16xf32>
    %530 = arith.addf %526, %529 : vector<16x16xf32>
    %c3_314 = arith.constant 3 : index
    %c3_315 = arith.constant 3 : index
    %531 = memref.load %arg6[%c3_314, %c3_315] : memref<8x8xf32, #tpu.memory_space<smem>>
    %532 = vector.broadcast %531 : f32 to vector<16x16xf32>
    %533 = arith.mulf %363, %532 : vector<16x16xf32>
    %534 = arith.addf %530, %533 : vector<16x16xf32>
    %c3_316 = arith.constant 3 : index
    %c4_317 = arith.constant 4 : index
    %535 = memref.load %arg6[%c3_316, %c4_317] : memref<8x8xf32, #tpu.memory_space<smem>>
    %536 = vector.broadcast %535 : f32 to vector<16x16xf32>
    %537 = arith.mulf %372, %536 : vector<16x16xf32>
    %538 = arith.addf %534, %537 : vector<16x16xf32>
    %c3_318 = arith.constant 3 : index
    %c5_319 = arith.constant 5 : index
    %539 = memref.load %arg6[%c3_318, %c5_319] : memref<8x8xf32, #tpu.memory_space<smem>>
    %540 = vector.broadcast %539 : f32 to vector<16x16xf32>
    %541 = arith.mulf %381, %540 : vector<16x16xf32>
    %542 = arith.addf %538, %541 : vector<16x16xf32>
    %c3_320 = arith.constant 3 : index
    %c6_321 = arith.constant 6 : index
    %543 = memref.load %arg6[%c3_320, %c6_321] : memref<8x8xf32, #tpu.memory_space<smem>>
    %544 = vector.broadcast %543 : f32 to vector<16x16xf32>
    %545 = arith.mulf %390, %544 : vector<16x16xf32>
    %546 = arith.addf %542, %545 : vector<16x16xf32>
    %c3_322 = arith.constant 3 : index
    %c7_323 = arith.constant 7 : index
    %547 = memref.load %arg6[%c3_322, %c7_323] : memref<8x8xf32, #tpu.memory_space<smem>>
    %548 = vector.broadcast %547 : f32 to vector<16x16xf32>
    %549 = arith.mulf %399, %548 : vector<16x16xf32>
    %550 = arith.addf %546, %549 : vector<16x16xf32>
    %c0_324 = arith.constant 0 : index
    %c3_325 = arith.constant 3 : index
    %551 = memref.load %arg7[%c0_324, %c3_325] : memref<1x8xf32, #tpu.memory_space<smem>>
    %552 = vector.broadcast %551 : f32 to vector<16x16xf32>
    %553 = arith.addf %550, %552 : vector<16x16xf32>
    %c0_326 = arith.constant 0 : index
    %c3_327 = arith.constant 3 : index
    %c0_328 = arith.constant 0 : index
    %c0_329 = arith.constant 0 : index
    %554 = vector.load %arg3[%c0_326, %c3_327, %c0_328, %c0_329] : memref<1x8x16x4xf32, #tpu.memory_space<vmem>>, vector<1x1x16x4xf32>
    %555 = vector.shape_cast %554 : vector<1x1x16x4xf32> to vector<16x4xf32>
    %cst_330 = arith.constant dense<0.000000e+00> : vector<16x4xf32>
    %556 = tpu.matmul %553, %555, %cst_330 {dimension_numbers = #tpu.dot_dimension_numbers<[1], [0], [0], [1], [0, 0, 1, 1], [], []>} : vector<16x16xf32>, vector<16x4xf32>, vector<16x4xf32> -> vector<16x4xf32>
    %c0_331 = arith.constant 0 : index
    %c0_332 = arith.constant 0 : index
    %c12 = arith.constant 12 : index
    %557 = vector.load %arg8[%c0_331, %c0_332, %c12] : memref<1x16x32xf32, #tpu.memory_space<vmem>>, vector<1x16x4xf32>
    %558 = vector.shape_cast %557 : vector<1x16x4xf32> to vector<16x4xf32>
    %559 = vector.shape_cast %556 : vector<16x4xf32> to vector<1x16x4xf32>
    tpu.vector_store %arg8[%c0_331, %c0_332, %c12], %559 {strides = array<i32>} : memref<1x16x32xf32, #tpu.memory_space<vmem>>, vector<1x16x4xf32>,
    %c4_333 = arith.constant 4 : index
    %c0_334 = arith.constant 0 : index
    %560 = memref.load %arg6[%c4_333, %c0_334] : memref<8x8xf32, #tpu.memory_space<smem>>
    %561 = vector.broadcast %560 : f32 to vector<16x16xf32>
    %562 = arith.mulf %336, %561 : vector<16x16xf32>
    %c4_335 = arith.constant 4 : index
    %c1_336 = arith.constant 1 : index
    %563 = memref.load %arg6[%c4_335, %c1_336] : memref<8x8xf32, #tpu.memory_space<smem>>
    %564 = vector.broadcast %563 : f32 to vector<16x16xf32>
    %565 = arith.mulf %345, %564 : vector<16x16xf32>
    %566 = arith.addf %562, %565 : vector<16x16xf32>
    %c4_337 = arith.constant 4 : index
    %c2_338 = arith.constant 2 : index
    %567 = memref.load %arg6[%c4_337, %c2_338] : memref<8x8xf32, #tpu.memory_space<smem>>
    %568 = vector.broadcast %567 : f32 to vector<16x16xf32>
    %569 = arith.mulf %354, %568 : vector<16x16xf32>
    %570 = arith.addf %566, %569 : vector<16x16xf32>
    %c4_339 = arith.constant 4 : index
    %c3_340 = arith.constant 3 : index
    %571 = memref.load %arg6[%c4_339, %c3_340] : memref<8x8xf32, #tpu.memory_space<smem>>
    %572 = vector.broadcast %571 : f32 to vector<16x16xf32>
    %573 = arith.mulf %363, %572 : vector<16x16xf32>
    %574 = arith.addf %570, %573 : vector<16x16xf32>
    %c4_341 = arith.constant 4 : index
    %c4_342 = arith.constant 4 : index
    %575 = memref.load %arg6[%c4_341, %c4_342] : memref<8x8xf32, #tpu.memory_space<smem>>
    %576 = vector.broadcast %575 : f32 to vector<16x16xf32>
    %577 = arith.mulf %372, %576 : vector<16x16xf32>
    %578 = arith.addf %574, %577 : vector<16x16xf32>
    %c4_343 = arith.constant 4 : index
    %c5_344 = arith.constant 5 : index
    %579 = memref.load %arg6[%c4_343, %c5_344] : memref<8x8xf32, #tpu.memory_space<smem>>
    %580 = vector.broadcast %579 : f32 to vector<16x16xf32>
    %581 = arith.mulf %381, %580 : vector<16x16xf32>
    %582 = arith.addf %578, %581 : vector<16x16xf32>
    %c4_345 = arith.constant 4 : index
    %c6_346 = arith.constant 6 : index
    %583 = memref.load %arg6[%c4_345, %c6_346] : memref<8x8xf32, #tpu.memory_space<smem>>
    %584 = vector.broadcast %583 : f32 to vector<16x16xf32>
    %585 = arith.mulf %390, %584 : vector<16x16xf32>
    %586 = arith.addf %582, %585 : vector<16x16xf32>
    %c4_347 = arith.constant 4 : index
    %c7_348 = arith.constant 7 : index
    %587 = memref.load %arg6[%c4_347, %c7_348] : memref<8x8xf32, #tpu.memory_space<smem>>
    %588 = vector.broadcast %587 : f32 to vector<16x16xf32>
    %589 = arith.mulf %399, %588 : vector<16x16xf32>
    %590 = arith.addf %586, %589 : vector<16x16xf32>
    %c0_349 = arith.constant 0 : index
    %c4_350 = arith.constant 4 : index
    %591 = memref.load %arg7[%c0_349, %c4_350] : memref<1x8xf32, #tpu.memory_space<smem>>
    %592 = vector.broadcast %591 : f32 to vector<16x16xf32>
    %593 = arith.addf %590, %592 : vector<16x16xf32>
    %c0_351 = arith.constant 0 : index
    %c4_352 = arith.constant 4 : index
    %c0_353 = arith.constant 0 : index
    %c0_354 = arith.constant 0 : index
    %594 = vector.load %arg3[%c0_351, %c4_352, %c0_353, %c0_354] : memref<1x8x16x4xf32, #tpu.memory_space<vmem>>, vector<1x1x16x4xf32>
    %595 = vector.shape_cast %594 : vector<1x1x16x4xf32> to vector<16x4xf32>
    %cst_355 = arith.constant dense<0.000000e+00> : vector<16x4xf32>
    %596 = tpu.matmul %593, %595, %cst_355 {dimension_numbers = #tpu.dot_dimension_numbers<[1], [0], [0], [1], [0, 0, 1, 1], [], []>} : vector<16x16xf32>, vector<16x4xf32>, vector<16x4xf32> -> vector<16x4xf32>
    %c0_356 = arith.constant 0 : index
    %c0_357 = arith.constant 0 : index
    %c16 = arith.constant 16 : index
    %597 = vector.load %arg8[%c0_356, %c0_357, %c16] : memref<1x16x32xf32, #tpu.memory_space<vmem>>, vector<1x16x4xf32>
    %598 = vector.shape_cast %597 : vector<1x16x4xf32> to vector<16x4xf32>
    %599 = vector.shape_cast %596 : vector<16x4xf32> to vector<1x16x4xf32>
    tpu.vector_store %arg8[%c0_356, %c0_357, %c16], %599 {strides = array<i32>} : memref<1x16x32xf32, #tpu.memory_space<vmem>>, vector<1x16x4xf32>,
    %c5_358 = arith.constant 5 : index
    %c0_359 = arith.constant 0 : index
    %600 = memref.load %arg6[%c5_358, %c0_359] : memref<8x8xf32, #tpu.memory_space<smem>>
    %601 = vector.broadcast %600 : f32 to vector<16x16xf32>
    %602 = arith.mulf %336, %601 : vector<16x16xf32>
    %c5_360 = arith.constant 5 : index
    %c1_361 = arith.constant 1 : index
    %603 = memref.load %arg6[%c5_360, %c1_361] : memref<8x8xf32, #tpu.memory_space<smem>>
    %604 = vector.broadcast %603 : f32 to vector<16x16xf32>
    %605 = arith.mulf %345, %604 : vector<16x16xf32>
    %606 = arith.addf %602, %605 : vector<16x16xf32>
    %c5_362 = arith.constant 5 : index
    %c2_363 = arith.constant 2 : index
    %607 = memref.load %arg6[%c5_362, %c2_363] : memref<8x8xf32, #tpu.memory_space<smem>>
    %608 = vector.broadcast %607 : f32 to vector<16x16xf32>
    %609 = arith.mulf %354, %608 : vector<16x16xf32>
    %610 = arith.addf %606, %609 : vector<16x16xf32>
    %c5_364 = arith.constant 5 : index
    %c3_365 = arith.constant 3 : index
    %611 = memref.load %arg6[%c5_364, %c3_365] : memref<8x8xf32, #tpu.memory_space<smem>>
    %612 = vector.broadcast %611 : f32 to vector<16x16xf32>
    %613 = arith.mulf %363, %612 : vector<16x16xf32>
    %614 = arith.addf %610, %613 : vector<16x16xf32>
    %c5_366 = arith.constant 5 : index
    %c4_367 = arith.constant 4 : index
    %615 = memref.load %arg6[%c5_366, %c4_367] : memref<8x8xf32, #tpu.memory_space<smem>>
    %616 = vector.broadcast %615 : f32 to vector<16x16xf32>
    %617 = arith.mulf %372, %616 : vector<16x16xf32>
    %618 = arith.addf %614, %617 : vector<16x16xf32>
    %c5_368 = arith.constant 5 : index
    %c5_369 = arith.constant 5 : index
    %619 = memref.load %arg6[%c5_368, %c5_369] : memref<8x8xf32, #tpu.memory_space<smem>>
    %620 = vector.broadcast %619 : f32 to vector<16x16xf32>
    %621 = arith.mulf %381, %620 : vector<16x16xf32>
    %622 = arith.addf %618, %621 : vector<16x16xf32>
    %c5_370 = arith.constant 5 : index
    %c6_371 = arith.constant 6 : index
    %623 = memref.load %arg6[%c5_370, %c6_371] : memref<8x8xf32, #tpu.memory_space<smem>>
    %624 = vector.broadcast %623 : f32 to vector<16x16xf32>
    %625 = arith.mulf %390, %624 : vector<16x16xf32>
    %626 = arith.addf %622, %625 : vector<16x16xf32>
    %c5_372 = arith.constant 5 : index
    %c7_373 = arith.constant 7 : index
    %627 = memref.load %arg6[%c5_372, %c7_373] : memref<8x8xf32, #tpu.memory_space<smem>>
    %628 = vector.broadcast %627 : f32 to vector<16x16xf32>
    %629 = arith.mulf %399, %628 : vector<16x16xf32>
    %630 = arith.addf %626, %629 : vector<16x16xf32>
    %c0_374 = arith.constant 0 : index
    %c5_375 = arith.constant 5 : index
    %631 = memref.load %arg7[%c0_374, %c5_375] : memref<1x8xf32, #tpu.memory_space<smem>>
    %632 = vector.broadcast %631 : f32 to vector<16x16xf32>
    %633 = arith.addf %630, %632 : vector<16x16xf32>
    %c0_376 = arith.constant 0 : index
    %c5_377 = arith.constant 5 : index
    %c0_378 = arith.constant 0 : index
    %c0_379 = arith.constant 0 : index
    %634 = vector.load %arg3[%c0_376, %c5_377, %c0_378, %c0_379] : memref<1x8x16x4xf32, #tpu.memory_space<vmem>>, vector<1x1x16x4xf32>
    %635 = vector.shape_cast %634 : vector<1x1x16x4xf32> to vector<16x4xf32>
    %cst_380 = arith.constant dense<0.000000e+00> : vector<16x4xf32>
    %636 = tpu.matmul %633, %635, %cst_380 {dimension_numbers = #tpu.dot_dimension_numbers<[1], [0], [0], [1], [0, 0, 1, 1], [], []>} : vector<16x16xf32>, vector<16x4xf32>, vector<16x4xf32> -> vector<16x4xf32>
    %c0_381 = arith.constant 0 : index
    %c0_382 = arith.constant 0 : index
    %c20 = arith.constant 20 : index
    %637 = vector.load %arg8[%c0_381, %c0_382, %c20] : memref<1x16x32xf32, #tpu.memory_space<vmem>>, vector<1x16x4xf32>
    %638 = vector.shape_cast %637 : vector<1x16x4xf32> to vector<16x4xf32>
    %639 = vector.shape_cast %636 : vector<16x4xf32> to vector<1x16x4xf32>
    tpu.vector_store %arg8[%c0_381, %c0_382, %c20], %639 {strides = array<i32>} : memref<1x16x32xf32, #tpu.memory_space<vmem>>, vector<1x16x4xf32>,
    %c6_383 = arith.constant 6 : index
    %c0_384 = arith.constant 0 : index
    %640 = memref.load %arg6[%c6_383, %c0_384] : memref<8x8xf32, #tpu.memory_space<smem>>
    %641 = vector.broadcast %640 : f32 to vector<16x16xf32>
    %642 = arith.mulf %336, %641 : vector<16x16xf32>
    %c6_385 = arith.constant 6 : index
    %c1_386 = arith.constant 1 : index
    %643 = memref.load %arg6[%c6_385, %c1_386] : memref<8x8xf32, #tpu.memory_space<smem>>
    %644 = vector.broadcast %643 : f32 to vector<16x16xf32>
    %645 = arith.mulf %345, %644 : vector<16x16xf32>
    %646 = arith.addf %642, %645 : vector<16x16xf32>
    %c6_387 = arith.constant 6 : index
    %c2_388 = arith.constant 2 : index
    %647 = memref.load %arg6[%c6_387, %c2_388] : memref<8x8xf32, #tpu.memory_space<smem>>
    %648 = vector.broadcast %647 : f32 to vector<16x16xf32>
    %649 = arith.mulf %354, %648 : vector<16x16xf32>
    %650 = arith.addf %646, %649 : vector<16x16xf32>
    %c6_389 = arith.constant 6 : index
    %c3_390 = arith.constant 3 : index
    %651 = memref.load %arg6[%c6_389, %c3_390] : memref<8x8xf32, #tpu.memory_space<smem>>
    %652 = vector.broadcast %651 : f32 to vector<16x16xf32>
    %653 = arith.mulf %363, %652 : vector<16x16xf32>
    %654 = arith.addf %650, %653 : vector<16x16xf32>
    %c6_391 = arith.constant 6 : index
    %c4_392 = arith.constant 4 : index
    %655 = memref.load %arg6[%c6_391, %c4_392] : memref<8x8xf32, #tpu.memory_space<smem>>
    %656 = vector.broadcast %655 : f32 to vector<16x16xf32>
    %657 = arith.mulf %372, %656 : vector<16x16xf32>
    %658 = arith.addf %654, %657 : vector<16x16xf32>
    %c6_393 = arith.constant 6 : index
    %c5_394 = arith.constant 5 : index
    %659 = memref.load %arg6[%c6_393, %c5_394] : memref<8x8xf32, #tpu.memory_space<smem>>
    %660 = vector.broadcast %659 : f32 to vector<16x16xf32>
    %661 = arith.mulf %381, %660 : vector<16x16xf32>
    %662 = arith.addf %658, %661 : vector<16x16xf32>
    %c6_395 = arith.constant 6 : index
    %c6_396 = arith.constant 6 : index
    %663 = memref.load %arg6[%c6_395, %c6_396] : memref<8x8xf32, #tpu.memory_space<smem>>
    %664 = vector.broadcast %663 : f32 to vector<16x16xf32>
    %665 = arith.mulf %390, %664 : vector<16x16xf32>
    %666 = arith.addf %662, %665 : vector<16x16xf32>
    %c6_397 = arith.constant 6 : index
    %c7_398 = arith.constant 7 : index
    %667 = memref.load %arg6[%c6_397, %c7_398] : memref<8x8xf32, #tpu.memory_space<smem>>
    %668 = vector.broadcast %667 : f32 to vector<16x16xf32>
    %669 = arith.mulf %399, %668 : vector<16x16xf32>
    %670 = arith.addf %666, %669 : vector<16x16xf32>
    %c0_399 = arith.constant 0 : index
    %c6_400 = arith.constant 6 : index
    %671 = memref.load %arg7[%c0_399, %c6_400] : memref<1x8xf32, #tpu.memory_space<smem>>
    %672 = vector.broadcast %671 : f32 to vector<16x16xf32>
    %673 = arith.addf %670, %672 : vector<16x16xf32>
    %c0_401 = arith.constant 0 : index
    %c6_402 = arith.constant 6 : index
    %c0_403 = arith.constant 0 : index
    %c0_404 = arith.constant 0 : index
    %674 = vector.load %arg3[%c0_401, %c6_402, %c0_403, %c0_404] : memref<1x8x16x4xf32, #tpu.memory_space<vmem>>, vector<1x1x16x4xf32>
    %675 = vector.shape_cast %674 : vector<1x1x16x4xf32> to vector<16x4xf32>
    %cst_405 = arith.constant dense<0.000000e+00> : vector<16x4xf32>
    %676 = tpu.matmul %673, %675, %cst_405 {dimension_numbers = #tpu.dot_dimension_numbers<[1], [0], [0], [1], [0, 0, 1, 1], [], []>} : vector<16x16xf32>, vector<16x4xf32>, vector<16x4xf32> -> vector<16x4xf32>
    %c0_406 = arith.constant 0 : index
    %c0_407 = arith.constant 0 : index
    %c24 = arith.constant 24 : index
    %677 = vector.load %arg8[%c0_406, %c0_407, %c24] : memref<1x16x32xf32, #tpu.memory_space<vmem>>, vector<1x16x4xf32>
    %678 = vector.shape_cast %677 : vector<1x16x4xf32> to vector<16x4xf32>
    %679 = vector.shape_cast %676 : vector<16x4xf32> to vector<1x16x4xf32>
    tpu.vector_store %arg8[%c0_406, %c0_407, %c24], %679 {strides = array<i32>} : memref<1x16x32xf32, #tpu.memory_space<vmem>>, vector<1x16x4xf32>,
    %c7_408 = arith.constant 7 : index
    %c0_409 = arith.constant 0 : index
    %680 = memref.load %arg6[%c7_408, %c0_409] : memref<8x8xf32, #tpu.memory_space<smem>>
    %681 = vector.broadcast %680 : f32 to vector<16x16xf32>
    %682 = arith.mulf %336, %681 : vector<16x16xf32>
    %c7_410 = arith.constant 7 : index
    %c1_411 = arith.constant 1 : index
    %683 = memref.load %arg6[%c7_410, %c1_411] : memref<8x8xf32, #tpu.memory_space<smem>>
    %684 = vector.broadcast %683 : f32 to vector<16x16xf32>
    %685 = arith.mulf %345, %684 : vector<16x16xf32>
    %686 = arith.addf %682, %685 : vector<16x16xf32>
    %c7_412 = arith.constant 7 : index
    %c2_413 = arith.constant 2 : index
    %687 = memref.load %arg6[%c7_412, %c2_413] : memref<8x8xf32, #tpu.memory_space<smem>>
    %688 = vector.broadcast %687 : f32 to vector<16x16xf32>
    %689 = arith.mulf %354, %688 : vector<16x16xf32>
    %690 = arith.addf %686, %689 : vector<16x16xf32>
    %c7_414 = arith.constant 7 : index
    %c3_415 = arith.constant 3 : index
    %691 = memref.load %arg6[%c7_414, %c3_415] : memref<8x8xf32, #tpu.memory_space<smem>>
    %692 = vector.broadcast %691 : f32 to vector<16x16xf32>
    %693 = arith.mulf %363, %692 : vector<16x16xf32>
    %694 = arith.addf %690, %693 : vector<16x16xf32>
    %c7_416 = arith.constant 7 : index
    %c4_417 = arith.constant 4 : index
    %695 = memref.load %arg6[%c7_416, %c4_417] : memref<8x8xf32, #tpu.memory_space<smem>>
    %696 = vector.broadcast %695 : f32 to vector<16x16xf32>
    %697 = arith.mulf %372, %696 : vector<16x16xf32>
    %698 = arith.addf %694, %697 : vector<16x16xf32>
    %c7_418 = arith.constant 7 : index
    %c5_419 = arith.constant 5 : index
    %699 = memref.load %arg6[%c7_418, %c5_419] : memref<8x8xf32, #tpu.memory_space<smem>>
    %700 = vector.broadcast %699 : f32 to vector<16x16xf32>
    %701 = arith.mulf %381, %700 : vector<16x16xf32>
    %702 = arith.addf %698, %701 : vector<16x16xf32>
    %c7_420 = arith.constant 7 : index
    %c6_421 = arith.constant 6 : index
    %703 = memref.load %arg6[%c7_420, %c6_421] : memref<8x8xf32, #tpu.memory_space<smem>>
    %704 = vector.broadcast %703 : f32 to vector<16x16xf32>
    %705 = arith.mulf %390, %704 : vector<16x16xf32>
    %706 = arith.addf %702, %705 : vector<16x16xf32>
    %c7_422 = arith.constant 7 : index
    %c7_423 = arith.constant 7 : index
    %707 = memref.load %arg6[%c7_422, %c7_423] : memref<8x8xf32, #tpu.memory_space<smem>>
    %708 = vector.broadcast %707 : f32 to vector<16x16xf32>
    %709 = arith.mulf %399, %708 : vector<16x16xf32>
    %710 = arith.addf %706, %709 : vector<16x16xf32>
    %c0_424 = arith.constant 0 : index
    %c7_425 = arith.constant 7 : index
    %711 = memref.load %arg7[%c0_424, %c7_425] : memref<1x8xf32, #tpu.memory_space<smem>>
    %712 = vector.broadcast %711 : f32 to vector<16x16xf32>
    %713 = arith.addf %710, %712 : vector<16x16xf32>
    %c0_426 = arith.constant 0 : index
    %c7_427 = arith.constant 7 : index
    %c0_428 = arith.constant 0 : index
    %c0_429 = arith.constant 0 : index
    %714 = vector.load %arg3[%c0_426, %c7_427, %c0_428, %c0_429] : memref<1x8x16x4xf32, #tpu.memory_space<vmem>>, vector<1x1x16x4xf32>
    %715 = vector.shape_cast %714 : vector<1x1x16x4xf32> to vector<16x4xf32>
    %cst_430 = arith.constant dense<0.000000e+00> : vector<16x4xf32>
    %716 = tpu.matmul %713, %715, %cst_430 {dimension_numbers = #tpu.dot_dimension_numbers<[1], [0], [0], [1], [0, 0, 1, 1], [], []>} : vector<16x16xf32>, vector<16x4xf32>, vector<16x4xf32> -> vector<16x4xf32>
    %c0_431 = arith.constant 0 : index
    %c0_432 = arith.constant 0 : index
    %c28 = arith.constant 28 : index
    %717 = vector.load %arg8[%c0_431, %c0_432, %c28] : memref<1x16x32xf32, #tpu.memory_space<vmem>>, vector<1x16x4xf32>
    %718 = vector.shape_cast %717 : vector<1x16x4xf32> to vector<16x4xf32>
    %719 = vector.shape_cast %716 : vector<16x4xf32> to vector<1x16x4xf32>
    tpu.vector_store %arg8[%c0_431, %c0_432, %c28], %719 {strides = array<i32>} : memref<1x16x32xf32, #tpu.memory_space<vmem>>, vector<1x16x4xf32>,
    return
  }
  func.func @transform_0(%arg0: i32) -> (i32, i32, i32, i32) {
    %c0_i32 = arith.constant 0 : i32
    %c0_i32_0 = arith.constant 0 : i32
    %c0_i32_1 = arith.constant 0 : i32
    %c0_i32_2 = arith.constant 0 : i32
    return %arg0, %c0_i32, %c0_i32_0, %c0_i32_1 : i32, i32, i32, i32
  }
  func.func @transform_1(%arg0: i32) -> (i32, i32, i32, i32) {
    %c0_i32 = arith.constant 0 : i32
    %c0_i32_0 = arith.constant 0 : i32
    %c0_i32_1 = arith.constant 0 : i32
    %c0_i32_2 = arith.constant 0 : i32
    return %arg0, %c0_i32, %c0_i32_0, %c0_i32_1 : i32, i32, i32, i32
  }
  func.func @transform_2(%arg0: i32) -> (i32, i32, i32, i32) {
    %c0_i32 = arith.constant 0 : i32
    %c0_i32_0 = arith.constant 0 : i32
    %c0_i32_1 = arith.constant 0 : i32
    %c0_i32_2 = arith.constant 0 : i32
    return %arg0, %c0_i32, %c0_i32_0, %c0_i32_1 : i32, i32, i32, i32
  }
  func.func @transform_3(%arg0: i32) -> (i32, i32) {
    %c0_i32 = arith.constant 0 : i32
    %c0_i32_0 = arith.constant 0 : i32
    %c0_i32_1 = arith.constant 0 : i32
    return %c0_i32, %c0_i32_0 : i32, i32
  }
  func.func @transform_4(%arg0: i32) -> (i32, i32) {
    %c0_i32 = arith.constant 0 : i32
    %c0_i32_0 = arith.constant 0 : i32
    %c0_i32_1 = arith.constant 0 : i32
    return %c0_i32, %c0_i32_0 : i32, i32
  }
  func.func @transform_5(%arg0: i32) -> (i32, i32) {
    %c0_i32 = arith.constant 0 : i32
    %c0_i32_0 = arith.constant 0 : i32
    %c0_i32_1 = arith.constant 0 : i32
    return %c0_i32, %c0_i32_0 : i32, i32
  }
  func.func @transform_6(%arg0: i32) -> (i32, i32) {
    %c0_i32 = arith.constant 0 : i32
    %c0_i32_0 = arith.constant 0 : i32
    %c0_i32_1 = arith.constant 0 : i32
    return %c0_i32, %c0_i32_0 : i32, i32
  }
  func.func @transform_7(%arg0: i32) -> (i32, i32, i32) {
    %c0_i32 = arith.constant 0 : i32
    %c0_i32_0 = arith.constant 0 : i32
    %c0_i32_1 = arith.constant 0 : i32
    return %arg0, %c0_i32, %c0_i32_0 : i32, i32, i32
  }
}

module attributes {stable_mosaic.version = 11 : i64} {
  func.func @_ln_linear_kernel(%arg0: i32, %arg1: memref<32x128xf32, #tpu.memory_space<vmem>>, %arg2: memref<2x128xf32, #tpu.memory_space<vmem>>, %arg3: memref<128x128xf32, #tpu.memory_space<vmem>>, %arg4: memref<1x128xf32, #tpu.memory_space<vmem>>, %arg5: memref<32x128xf32, #tpu.memory_space<vmem>>) attributes {dimension_semantics = [#tpu.dimension_semantics<parallel>], iteration_bounds = array<i64: 1>, scalar_prefetch = 0 : i64, scratch_operands = 0 : i64, tpu.core_type = #tpu.core_type<tc>, window_params = [{transform_indices = @transform_0, window_bounds = array<i64: 32, 128>}, {pipeline_mode = #tpu.pipeline_mode<synchronous>, transform_indices = @transform_1, window_bounds = array<i64: 2, 128>}, {pipeline_mode = #tpu.pipeline_mode<synchronous>, transform_indices = @transform_2, window_bounds = array<i64: 128, 128>}, {pipeline_mode = #tpu.pipeline_mode<synchronous>, transform_indices = @transform_3, window_bounds = array<i64: 1, 128>}, {transform_indices = @transform_4, window_bounds = array<i64: 32, 128>}]} {
    %c0 = arith.constant 0 : index
    %c0_0 = arith.constant 0 : index
    %0 = vector.load %arg1[%c0, %c0_0] : memref<32x128xf32, #tpu.memory_space<vmem>>, vector<32x128xf32>
    %c0_1 = arith.constant 0 : index
    %c0_2 = arith.constant 0 : index
    %1 = vector.load %arg2[%c0_1, %c0_2] : memref<2x128xf32, #tpu.memory_space<vmem>>, vector<1x128xf32>
    %c1 = arith.constant 1 : index
    %c0_3 = arith.constant 0 : index
    %2 = vector.load %arg2[%c1, %c0_3] : memref<2x128xf32, #tpu.memory_space<vmem>>, vector<1x128xf32>
    %cst = arith.constant dense<0.000000e+00> : vector<32xf32>
    %3 = vector.multi_reduction <add>, %0, %cst [1] : vector<32x128xf32> to vector<32xf32>
    %4 = vector.shape_cast %3 : vector<32xf32> to vector<32x1xf32>
    %5 = arith.mulf %0, %0 : vector<32x128xf32>
    %cst_4 = arith.constant dense<0.000000e+00> : vector<32xf32>
    %6 = vector.multi_reduction <add>, %5, %cst_4 [1] : vector<32x128xf32> to vector<32xf32>
    %7 = vector.shape_cast %6 : vector<32xf32> to vector<32x1xf32>
    %cst_5 = arith.constant 3.125000e-02 : f32
    %8 = vector.broadcast %cst_5 : f32 to vector<32x1xf32>
    %9 = arith.mulf %4, %8 : vector<32x1xf32>
    %cst_6 = arith.constant 3.125000e-02 : f32
    %10 = vector.broadcast %cst_6 : f32 to vector<32x1xf32>
    %11 = arith.mulf %7, %10 : vector<32x1xf32>
    %12 = arith.mulf %9, %9 : vector<32x1xf32>
    %13 = arith.subf %11, %12 : vector<32x1xf32>
    %cst_7 = arith.constant 0.000000e+00 : f32
    %14 = vector.broadcast %cst_7 : f32 to vector<32x1xf32>
    %15 = arith.maximumf %13, %14 : vector<32x1xf32>
    %16 = vector.broadcast %9 : vector<32x1xf32> to vector<32x128xf32>
    %17 = arith.subf %0, %16 : vector<32x128xf32>
    %cst_8 = arith.constant 9.99999997E-7 : f32
    %18 = vector.broadcast %cst_8 : f32 to vector<32x1xf32>
    %19 = arith.addf %15, %18 : vector<32x1xf32>
    %20 = math.rsqrt %19 : vector<32x1xf32>
    %21 = vector.broadcast %20 : vector<32x1xf32> to vector<32x128xf32>
    %22 = arith.mulf %17, %21 : vector<32x128xf32>
    %23 = vector.broadcast %1 : vector<1x128xf32> to vector<32x128xf32>
    %24 = arith.mulf %22, %23 : vector<32x128xf32>
    %25 = vector.broadcast %2 : vector<1x128xf32> to vector<32x128xf32>
    %26 = arith.addf %24, %25 : vector<32x128xf32>
    %c0_9 = arith.constant 0 : index
    %c0_10 = arith.constant 0 : index
    %27 = vector.load %arg3[%c0_9, %c0_10] : memref<128x128xf32, #tpu.memory_space<vmem>>, vector<128x128xf32>
    %cst_11 = arith.constant dense<0.000000e+00> : vector<32x128xf32>
    %28 = tpu.matmul %26, %27, %cst_11 {dimension_numbers = #tpu.dot_dimension_numbers<[1], [0], [0], [1], [0, 0, 1, 1], [], []>} : vector<32x128xf32>, vector<128x128xf32>, vector<32x128xf32> -> vector<32x128xf32>
    %c0_12 = arith.constant 0 : index
    %c0_13 = arith.constant 0 : index
    %29 = vector.load %arg4[%c0_12, %c0_13] : memref<1x128xf32, #tpu.memory_space<vmem>>, vector<1x128xf32>
    %30 = vector.broadcast %29 : vector<1x128xf32> to vector<32x128xf32>
    %31 = arith.addf %28, %30 : vector<32x128xf32>
    %32 = arith.mulf %31, %31 : vector<32x128xf32>
    %33 = arith.mulf %31, %32 : vector<32x128xf32>
    %cst_14 = arith.constant 4.471500e-02 : f32
    %34 = vector.broadcast %cst_14 : f32 to vector<32x128xf32>
    %35 = arith.mulf %34, %33 : vector<32x128xf32>
    %36 = arith.addf %31, %35 : vector<32x128xf32>
    %cst_15 = arith.constant 0.797884583 : f32
    %37 = vector.broadcast %cst_15 : f32 to vector<32x128xf32>
    %38 = arith.mulf %37, %36 : vector<32x128xf32>
    %39 = math.tanh %38 : vector<32x128xf32>
    %cst_16 = arith.constant 1.000000e+00 : f32
    %40 = vector.broadcast %cst_16 : f32 to vector<32x128xf32>
    %41 = arith.addf %40, %39 : vector<32x128xf32>
    %cst_17 = arith.constant 5.000000e-01 : f32
    %42 = vector.broadcast %cst_17 : f32 to vector<32x128xf32>
    %43 = arith.mulf %42, %41 : vector<32x128xf32>
    %44 = arith.mulf %31, %43 : vector<32x128xf32>
    %c0_18 = arith.constant 0 : index
    %c0_19 = arith.constant 0 : index
    %45 = vector.load %arg5[%c0_18, %c0_19] : memref<32x128xf32, #tpu.memory_space<vmem>>, vector<32x128xf32>
    tpu.vector_store %arg5[%c0_18, %c0_19], %44 {strides = array<i32>} : memref<32x128xf32, #tpu.memory_space<vmem>>, vector<32x128xf32>,
    return
  }
  func.func @transform_0(%arg0: i32) -> (i32, i32) {
    %c0_i32 = arith.constant 0 : i32
    %c0_i32_0 = arith.constant 0 : i32
    return %arg0, %c0_i32 : i32, i32
  }
  func.func @transform_1(%arg0: i32) -> (i32, i32) {
    %c0_i32 = arith.constant 0 : i32
    %c0_i32_0 = arith.constant 0 : i32
    %c0_i32_1 = arith.constant 0 : i32
    return %c0_i32, %c0_i32_0 : i32, i32
  }
  func.func @transform_2(%arg0: i32) -> (i32, i32) {
    %c0_i32 = arith.constant 0 : i32
    %c0_i32_0 = arith.constant 0 : i32
    %c0_i32_1 = arith.constant 0 : i32
    return %c0_i32, %c0_i32_0 : i32, i32
  }
  func.func @transform_3(%arg0: i32) -> (i32, i32) {
    %c0_i32 = arith.constant 0 : i32
    %c0_i32_0 = arith.constant 0 : i32
    %c0_i32_1 = arith.constant 0 : i32
    return %c0_i32, %c0_i32_0 : i32, i32
  }
  func.func @transform_4(%arg0: i32) -> (i32, i32) {
    %c0_i32 = arith.constant 0 : i32
    %c0_i32_0 = arith.constant 0 : i32
    return %arg0, %c0_i32 : i32, i32
  }
}

module attributes {stable_mosaic.version = 11 : i64} {
  func.func @_linear_scale_res_kernel(%arg0: i32, %arg1: memref<32x128xf32, #tpu.memory_space<vmem>>, %arg2: memref<128x128xf32, #tpu.memory_space<vmem>>, %arg3: memref<2x128xf32, #tpu.memory_space<vmem>>, %arg4: memref<32x128xf32, #tpu.memory_space<vmem>>, %arg5: memref<32x128xf32, #tpu.memory_space<vmem>>) attributes {dimension_semantics = [#tpu.dimension_semantics<parallel>], iteration_bounds = array<i64: 1>, scalar_prefetch = 0 : i64, scratch_operands = 0 : i64, tpu.core_type = #tpu.core_type<tc>, window_params = [{transform_indices = @transform_0, window_bounds = array<i64: 32, 128>}, {pipeline_mode = #tpu.pipeline_mode<synchronous>, transform_indices = @transform_1, window_bounds = array<i64: 128, 128>}, {pipeline_mode = #tpu.pipeline_mode<synchronous>, transform_indices = @transform_2, window_bounds = array<i64: 2, 128>}, {transform_indices = @transform_3, window_bounds = array<i64: 32, 128>}, {transform_indices = @transform_4, window_bounds = array<i64: 32, 128>}]} {
    %c0 = arith.constant 0 : index
    %c0_0 = arith.constant 0 : index
    %0 = vector.load %arg1[%c0, %c0_0] : memref<32x128xf32, #tpu.memory_space<vmem>>, vector<32x128xf32>
    %c0_1 = arith.constant 0 : index
    %c0_2 = arith.constant 0 : index
    %1 = vector.load %arg2[%c0_1, %c0_2] : memref<128x128xf32, #tpu.memory_space<vmem>>, vector<128x128xf32>
    %cst = arith.constant dense<0.000000e+00> : vector<32x128xf32>
    %2 = tpu.matmul %0, %1, %cst {dimension_numbers = #tpu.dot_dimension_numbers<[1], [0], [0], [1], [0, 0, 1, 1], [], []>} : vector<32x128xf32>, vector<128x128xf32>, vector<32x128xf32> -> vector<32x128xf32>
    %c0_3 = arith.constant 0 : index
    %c0_4 = arith.constant 0 : index
    %3 = vector.load %arg3[%c0_3, %c0_4] : memref<2x128xf32, #tpu.memory_space<vmem>>, vector<1x128xf32>
    %c1 = arith.constant 1 : index
    %c0_5 = arith.constant 0 : index
    %4 = vector.load %arg3[%c1, %c0_5] : memref<2x128xf32, #tpu.memory_space<vmem>>, vector<1x128xf32>
    %c0_6 = arith.constant 0 : index
    %c0_7 = arith.constant 0 : index
    %5 = vector.load %arg4[%c0_6, %c0_7] : memref<32x128xf32, #tpu.memory_space<vmem>>, vector<32x128xf32>
    %6 = vector.broadcast %3 : vector<1x128xf32> to vector<32x128xf32>
    %7 = arith.addf %2, %6 : vector<32x128xf32>
    %8 = vector.broadcast %4 : vector<1x128xf32> to vector<32x128xf32>
    %9 = arith.mulf %8, %7 : vector<32x128xf32>
    %10 = arith.addf %5, %9 : vector<32x128xf32>
    %c0_8 = arith.constant 0 : index
    %c0_9 = arith.constant 0 : index
    %11 = vector.load %arg5[%c0_8, %c0_9] : memref<32x128xf32, #tpu.memory_space<vmem>>, vector<32x128xf32>
    tpu.vector_store %arg5[%c0_8, %c0_9], %10 {strides = array<i32>} : memref<32x128xf32, #tpu.memory_space<vmem>>, vector<32x128xf32>,
    return
  }
  func.func @transform_0(%arg0: i32) -> (i32, i32) {
    %c0_i32 = arith.constant 0 : i32
    %c0_i32_0 = arith.constant 0 : i32
    return %arg0, %c0_i32 : i32, i32
  }
  func.func @transform_1(%arg0: i32) -> (i32, i32) {
    %c0_i32 = arith.constant 0 : i32
    %c0_i32_0 = arith.constant 0 : i32
    %c0_i32_1 = arith.constant 0 : i32
    return %c0_i32, %c0_i32_0 : i32, i32
  }
  func.func @transform_2(%arg0: i32) -> (i32, i32) {
    %c0_i32 = arith.constant 0 : i32
    %c0_i32_0 = arith.constant 0 : i32
    %c0_i32_1 = arith.constant 0 : i32
    return %c0_i32, %c0_i32_0 : i32, i32
  }
  func.func @transform_3(%arg0: i32) -> (i32, i32) {
    %c0_i32 = arith.constant 0 : i32
    %c0_i32_0 = arith.constant 0 : i32
    return %arg0, %c0_i32 : i32, i32
  }
  func.func @transform_4(%arg0: i32) -> (i32, i32) {
    %c0_i32 = arith.constant 0 : i32
    %c0_i32_0 = arith.constant 0 : i32
    return %arg0, %c0_i32 : i32, i32
  }
}

module attributes {stable_mosaic.version = 11 : i64} {
  func.func @_ln_linear_kernel(%arg0: i32, %arg1: memref<40x128xf32, #tpu.memory_space<vmem>>, %arg2: memref<2x128xf32, #tpu.memory_space<vmem>>, %arg3: memref<128x128xf32, #tpu.memory_space<vmem>>, %arg4: memref<1x128xf32, #tpu.memory_space<vmem>>, %arg5: memref<40x128xf32, #tpu.memory_space<vmem>>) attributes {dimension_semantics = [#tpu.dimension_semantics<parallel>], iteration_bounds = array<i64: 1>, scalar_prefetch = 0 : i64, scratch_operands = 0 : i64, tpu.core_type = #tpu.core_type<tc>, window_params = [{transform_indices = @transform_0, window_bounds = array<i64: 40, 128>}, {pipeline_mode = #tpu.pipeline_mode<synchronous>, transform_indices = @transform_1, window_bounds = array<i64: 2, 128>}, {pipeline_mode = #tpu.pipeline_mode<synchronous>, transform_indices = @transform_2, window_bounds = array<i64: 128, 128>}, {pipeline_mode = #tpu.pipeline_mode<synchronous>, transform_indices = @transform_3, window_bounds = array<i64: 1, 128>}, {transform_indices = @transform_4, window_bounds = array<i64: 40, 128>}]} {
    %c0 = arith.constant 0 : index
    %c0_0 = arith.constant 0 : index
    %0 = vector.load %arg1[%c0, %c0_0] : memref<40x128xf32, #tpu.memory_space<vmem>>, vector<40x128xf32>
    %c0_1 = arith.constant 0 : index
    %c0_2 = arith.constant 0 : index
    %1 = vector.load %arg2[%c0_1, %c0_2] : memref<2x128xf32, #tpu.memory_space<vmem>>, vector<1x128xf32>
    %c1 = arith.constant 1 : index
    %c0_3 = arith.constant 0 : index
    %2 = vector.load %arg2[%c1, %c0_3] : memref<2x128xf32, #tpu.memory_space<vmem>>, vector<1x128xf32>
    %cst = arith.constant dense<0.000000e+00> : vector<40xf32>
    %3 = vector.multi_reduction <add>, %0, %cst [1] : vector<40x128xf32> to vector<40xf32>
    %4 = vector.shape_cast %3 : vector<40xf32> to vector<40x1xf32>
    %5 = arith.mulf %0, %0 : vector<40x128xf32>
    %cst_4 = arith.constant dense<0.000000e+00> : vector<40xf32>
    %6 = vector.multi_reduction <add>, %5, %cst_4 [1] : vector<40x128xf32> to vector<40xf32>
    %7 = vector.shape_cast %6 : vector<40xf32> to vector<40x1xf32>
    %cst_5 = arith.constant 3.125000e-02 : f32
    %8 = vector.broadcast %cst_5 : f32 to vector<40x1xf32>
    %9 = arith.mulf %4, %8 : vector<40x1xf32>
    %cst_6 = arith.constant 3.125000e-02 : f32
    %10 = vector.broadcast %cst_6 : f32 to vector<40x1xf32>
    %11 = arith.mulf %7, %10 : vector<40x1xf32>
    %12 = arith.mulf %9, %9 : vector<40x1xf32>
    %13 = arith.subf %11, %12 : vector<40x1xf32>
    %cst_7 = arith.constant 0.000000e+00 : f32
    %14 = vector.broadcast %cst_7 : f32 to vector<40x1xf32>
    %15 = arith.maximumf %13, %14 : vector<40x1xf32>
    %16 = vector.broadcast %9 : vector<40x1xf32> to vector<40x128xf32>
    %17 = arith.subf %0, %16 : vector<40x128xf32>
    %cst_8 = arith.constant 9.99999997E-7 : f32
    %18 = vector.broadcast %cst_8 : f32 to vector<40x1xf32>
    %19 = arith.addf %15, %18 : vector<40x1xf32>
    %20 = math.rsqrt %19 : vector<40x1xf32>
    %21 = vector.broadcast %20 : vector<40x1xf32> to vector<40x128xf32>
    %22 = arith.mulf %17, %21 : vector<40x128xf32>
    %23 = vector.broadcast %1 : vector<1x128xf32> to vector<40x128xf32>
    %24 = arith.mulf %22, %23 : vector<40x128xf32>
    %25 = vector.broadcast %2 : vector<1x128xf32> to vector<40x128xf32>
    %26 = arith.addf %24, %25 : vector<40x128xf32>
    %c0_9 = arith.constant 0 : index
    %c0_10 = arith.constant 0 : index
    %27 = vector.load %arg3[%c0_9, %c0_10] : memref<128x128xf32, #tpu.memory_space<vmem>>, vector<128x128xf32>
    %cst_11 = arith.constant dense<0.000000e+00> : vector<40x128xf32>
    %28 = tpu.matmul %26, %27, %cst_11 {dimension_numbers = #tpu.dot_dimension_numbers<[1], [0], [0], [1], [0, 0, 1, 1], [], []>} : vector<40x128xf32>, vector<128x128xf32>, vector<40x128xf32> -> vector<40x128xf32>
    %c0_12 = arith.constant 0 : index
    %c0_13 = arith.constant 0 : index
    %29 = vector.load %arg4[%c0_12, %c0_13] : memref<1x128xf32, #tpu.memory_space<vmem>>, vector<1x128xf32>
    %30 = vector.broadcast %29 : vector<1x128xf32> to vector<40x128xf32>
    %31 = arith.addf %28, %30 : vector<40x128xf32>
    %c0_14 = arith.constant 0 : index
    %c0_15 = arith.constant 0 : index
    %32 = vector.load %arg5[%c0_14, %c0_15] : memref<40x128xf32, #tpu.memory_space<vmem>>, vector<40x128xf32>
    tpu.vector_store %arg5[%c0_14, %c0_15], %31 {strides = array<i32>} : memref<40x128xf32, #tpu.memory_space<vmem>>, vector<40x128xf32>,
    return
  }
  func.func @transform_0(%arg0: i32) -> (i32, i32) {
    %c0_i32 = arith.constant 0 : i32
    %c0_i32_0 = arith.constant 0 : i32
    return %arg0, %c0_i32 : i32, i32
  }
  func.func @transform_1(%arg0: i32) -> (i32, i32) {
    %c0_i32 = arith.constant 0 : i32
    %c0_i32_0 = arith.constant 0 : i32
    %c0_i32_1 = arith.constant 0 : i32
    return %c0_i32, %c0_i32_0 : i32, i32
  }
  func.func @transform_2(%arg0: i32) -> (i32, i32) {
    %c0_i32 = arith.constant 0 : i32
    %c0_i32_0 = arith.constant 0 : i32
    %c0_i32_1 = arith.constant 0 : i32
    return %c0_i32, %c0_i32_0 : i32, i32
  }
  func.func @transform_3(%arg0: i32) -> (i32, i32) {
    %c0_i32 = arith.constant 0 : i32
    %c0_i32_0 = arith.constant 0 : i32
    %c0_i32_1 = arith.constant 0 : i32
    return %c0_i32, %c0_i32_0 : i32, i32
  }
  func.func @transform_4(%arg0: i32) -> (i32, i32) {
    %c0_i32 = arith.constant 0 : i32
    %c0_i32_0 = arith.constant 0 : i32
    return %arg0, %c0_i32 : i32, i32
  }
}

module attributes {stable_mosaic.version = 11 : i64} {
  func.func @_class_attn_kernel(%arg0: i32, %arg1: memref<1x8x1x4xf32, #tpu.memory_space<vmem>>, %arg2: memref<1x8x4x17xf32, #tpu.memory_space<vmem>>, %arg3: memref<1x8x17x4xf32, #tpu.memory_space<vmem>>, %arg4: memref<1x1x32xf32, #tpu.memory_space<vmem>>) attributes {dimension_semantics = [#tpu.dimension_semantics<parallel>], iteration_bounds = array<i64: 2>, scalar_prefetch = 0 : i64, scratch_operands = 0 : i64, tpu.core_type = #tpu.core_type<tc>, window_params = [{transform_indices = @transform_0, window_bounds = array<i64: 1, 8, 1, 4>}, {transform_indices = @transform_1, window_bounds = array<i64: 1, 8, 4, 17>}, {transform_indices = @transform_2, window_bounds = array<i64: 1, 8, 17, 4>}, {transform_indices = @transform_3, window_bounds = array<i64: 1, 1, 32>}]} {
    %c0 = arith.constant 0 : index
    %c0_0 = arith.constant 0 : index
    %c0_1 = arith.constant 0 : index
    %c0_2 = arith.constant 0 : index
    %0 = vector.load %arg1[%c0, %c0_0, %c0_1, %c0_2] : memref<1x8x1x4xf32, #tpu.memory_space<vmem>>, vector<1x1x1x4xf32>
    %1 = vector.shape_cast %0 : vector<1x1x1x4xf32> to vector<1x4xf32>
    %cst = arith.constant 5.000000e-01 : f32
    %2 = vector.broadcast %cst : f32 to vector<1x4xf32>
    %3 = arith.mulf %1, %2 : vector<1x4xf32>
    %c0_3 = arith.constant 0 : index
    %c0_4 = arith.constant 0 : index
    %c0_5 = arith.constant 0 : index
    %c0_6 = arith.constant 0 : index
    %4 = vector.load %arg2[%c0_3, %c0_4, %c0_5, %c0_6] : memref<1x8x4x17xf32, #tpu.memory_space<vmem>>, vector<1x1x4x17xf32>
    %5 = vector.shape_cast %4 : vector<1x1x4x17xf32> to vector<4x17xf32>
    %cst_7 = arith.constant dense<0.000000e+00> : vector<1x17xf32>
    %6 = tpu.matmul %3, %5, %cst_7 {dimension_numbers = #tpu.dot_dimension_numbers<[1], [0], [0], [1], [0, 0, 1, 1], [], []>} : vector<1x4xf32>, vector<4x17xf32>, vector<1x17xf32> -> vector<1x17xf32>
    %cst_8 = arith.constant dense<0xFF800000> : vector<1xf32>
    %7 = vector.multi_reduction <maximumf>, %6, %cst_8 [1] : vector<1x17xf32> to vector<1xf32>
    %8 = vector.shape_cast %7 : vector<1xf32> to vector<1x1xf32>
    %9 = vector.broadcast %8 : vector<1x1xf32> to vector<1x17xf32>
    %10 = arith.subf %6, %9 : vector<1x17xf32>
    %11 = math.exp %10 : vector<1x17xf32>
    %cst_9 = arith.constant dense<0.000000e+00> : vector<1xf32>
    %12 = vector.multi_reduction <add>, %11, %cst_9 [1] : vector<1x17xf32> to vector<1xf32>
    %13 = vector.shape_cast %12 : vector<1xf32> to vector<1x1xf32>
    %14 = vector.broadcast %13 : vector<1x1xf32> to vector<1x17xf32>
    %15 = arith.divf %11, %14 : vector<1x17xf32>
    %c0_10 = arith.constant 0 : index
    %c0_11 = arith.constant 0 : index
    %c0_12 = arith.constant 0 : index
    %c0_13 = arith.constant 0 : index
    %16 = vector.load %arg3[%c0_10, %c0_11, %c0_12, %c0_13] : memref<1x8x17x4xf32, #tpu.memory_space<vmem>>, vector<1x1x17x4xf32>
    %17 = vector.shape_cast %16 : vector<1x1x17x4xf32> to vector<17x4xf32>
    %cst_14 = arith.constant dense<0.000000e+00> : vector<1x4xf32>
    %18 = tpu.matmul %15, %17, %cst_14 {dimension_numbers = #tpu.dot_dimension_numbers<[1], [0], [0], [1], [0, 0, 1, 1], [], []>} : vector<1x17xf32>, vector<17x4xf32>, vector<1x4xf32> -> vector<1x4xf32>
    %c0_15 = arith.constant 0 : index
    %c0_16 = arith.constant 0 : index
    %c0_17 = arith.constant 0 : index
    %19 = vector.load %arg4[%c0_15, %c0_16, %c0_17] : memref<1x1x32xf32, #tpu.memory_space<vmem>>, vector<1x1x4xf32>
    %20 = vector.shape_cast %19 : vector<1x1x4xf32> to vector<1x4xf32>
    %21 = vector.shape_cast %18 : vector<1x4xf32> to vector<1x1x4xf32>
    tpu.vector_store %arg4[%c0_15, %c0_16, %c0_17], %21 {strides = array<i32>} : memref<1x1x32xf32, #tpu.memory_space<vmem>>, vector<1x1x4xf32>,
    %c0_18 = arith.constant 0 : index
    %c1 = arith.constant 1 : index
    %c0_19 = arith.constant 0 : index
    %c0_20 = arith.constant 0 : index
    %22 = vector.load %arg1[%c0_18, %c1, %c0_19, %c0_20] : memref<1x8x1x4xf32, #tpu.memory_space<vmem>>, vector<1x1x1x4xf32>
    %23 = vector.shape_cast %22 : vector<1x1x1x4xf32> to vector<1x4xf32>
    %cst_21 = arith.constant 5.000000e-01 : f32
    %24 = vector.broadcast %cst_21 : f32 to vector<1x4xf32>
    %25 = arith.mulf %23, %24 : vector<1x4xf32>
    %c0_22 = arith.constant 0 : index
    %c1_23 = arith.constant 1 : index
    %c0_24 = arith.constant 0 : index
    %c0_25 = arith.constant 0 : index
    %26 = vector.load %arg2[%c0_22, %c1_23, %c0_24, %c0_25] : memref<1x8x4x17xf32, #tpu.memory_space<vmem>>, vector<1x1x4x17xf32>
    %27 = vector.shape_cast %26 : vector<1x1x4x17xf32> to vector<4x17xf32>
    %cst_26 = arith.constant dense<0.000000e+00> : vector<1x17xf32>
    %28 = tpu.matmul %25, %27, %cst_26 {dimension_numbers = #tpu.dot_dimension_numbers<[1], [0], [0], [1], [0, 0, 1, 1], [], []>} : vector<1x4xf32>, vector<4x17xf32>, vector<1x17xf32> -> vector<1x17xf32>
    %cst_27 = arith.constant dense<0xFF800000> : vector<1xf32>
    %29 = vector.multi_reduction <maximumf>, %28, %cst_27 [1] : vector<1x17xf32> to vector<1xf32>
    %30 = vector.shape_cast %29 : vector<1xf32> to vector<1x1xf32>
    %31 = vector.broadcast %30 : vector<1x1xf32> to vector<1x17xf32>
    %32 = arith.subf %28, %31 : vector<1x17xf32>
    %33 = math.exp %32 : vector<1x17xf32>
    %cst_28 = arith.constant dense<0.000000e+00> : vector<1xf32>
    %34 = vector.multi_reduction <add>, %33, %cst_28 [1] : vector<1x17xf32> to vector<1xf32>
    %35 = vector.shape_cast %34 : vector<1xf32> to vector<1x1xf32>
    %36 = vector.broadcast %35 : vector<1x1xf32> to vector<1x17xf32>
    %37 = arith.divf %33, %36 : vector<1x17xf32>
    %c0_29 = arith.constant 0 : index
    %c1_30 = arith.constant 1 : index
    %c0_31 = arith.constant 0 : index
    %c0_32 = arith.constant 0 : index
    %38 = vector.load %arg3[%c0_29, %c1_30, %c0_31, %c0_32] : memref<1x8x17x4xf32, #tpu.memory_space<vmem>>, vector<1x1x17x4xf32>
    %39 = vector.shape_cast %38 : vector<1x1x17x4xf32> to vector<17x4xf32>
    %cst_33 = arith.constant dense<0.000000e+00> : vector<1x4xf32>
    %40 = tpu.matmul %37, %39, %cst_33 {dimension_numbers = #tpu.dot_dimension_numbers<[1], [0], [0], [1], [0, 0, 1, 1], [], []>} : vector<1x17xf32>, vector<17x4xf32>, vector<1x4xf32> -> vector<1x4xf32>
    %c0_34 = arith.constant 0 : index
    %c0_35 = arith.constant 0 : index
    %c4 = arith.constant 4 : index
    %41 = vector.load %arg4[%c0_34, %c0_35, %c4] : memref<1x1x32xf32, #tpu.memory_space<vmem>>, vector<1x1x4xf32>
    %42 = vector.shape_cast %41 : vector<1x1x4xf32> to vector<1x4xf32>
    %43 = vector.shape_cast %40 : vector<1x4xf32> to vector<1x1x4xf32>
    tpu.vector_store %arg4[%c0_34, %c0_35, %c4], %43 {strides = array<i32>} : memref<1x1x32xf32, #tpu.memory_space<vmem>>, vector<1x1x4xf32>,
    %c0_36 = arith.constant 0 : index
    %c2 = arith.constant 2 : index
    %c0_37 = arith.constant 0 : index
    %c0_38 = arith.constant 0 : index
    %44 = vector.load %arg1[%c0_36, %c2, %c0_37, %c0_38] : memref<1x8x1x4xf32, #tpu.memory_space<vmem>>, vector<1x1x1x4xf32>
    %45 = vector.shape_cast %44 : vector<1x1x1x4xf32> to vector<1x4xf32>
    %cst_39 = arith.constant 5.000000e-01 : f32
    %46 = vector.broadcast %cst_39 : f32 to vector<1x4xf32>
    %47 = arith.mulf %45, %46 : vector<1x4xf32>
    %c0_40 = arith.constant 0 : index
    %c2_41 = arith.constant 2 : index
    %c0_42 = arith.constant 0 : index
    %c0_43 = arith.constant 0 : index
    %48 = vector.load %arg2[%c0_40, %c2_41, %c0_42, %c0_43] : memref<1x8x4x17xf32, #tpu.memory_space<vmem>>, vector<1x1x4x17xf32>
    %49 = vector.shape_cast %48 : vector<1x1x4x17xf32> to vector<4x17xf32>
    %cst_44 = arith.constant dense<0.000000e+00> : vector<1x17xf32>
    %50 = tpu.matmul %47, %49, %cst_44 {dimension_numbers = #tpu.dot_dimension_numbers<[1], [0], [0], [1], [0, 0, 1, 1], [], []>} : vector<1x4xf32>, vector<4x17xf32>, vector<1x17xf32> -> vector<1x17xf32>
    %cst_45 = arith.constant dense<0xFF800000> : vector<1xf32>
    %51 = vector.multi_reduction <maximumf>, %50, %cst_45 [1] : vector<1x17xf32> to vector<1xf32>
    %52 = vector.shape_cast %51 : vector<1xf32> to vector<1x1xf32>
    %53 = vector.broadcast %52 : vector<1x1xf32> to vector<1x17xf32>
    %54 = arith.subf %50, %53 : vector<1x17xf32>
    %55 = math.exp %54 : vector<1x17xf32>
    %cst_46 = arith.constant dense<0.000000e+00> : vector<1xf32>
    %56 = vector.multi_reduction <add>, %55, %cst_46 [1] : vector<1x17xf32> to vector<1xf32>
    %57 = vector.shape_cast %56 : vector<1xf32> to vector<1x1xf32>
    %58 = vector.broadcast %57 : vector<1x1xf32> to vector<1x17xf32>
    %59 = arith.divf %55, %58 : vector<1x17xf32>
    %c0_47 = arith.constant 0 : index
    %c2_48 = arith.constant 2 : index
    %c0_49 = arith.constant 0 : index
    %c0_50 = arith.constant 0 : index
    %60 = vector.load %arg3[%c0_47, %c2_48, %c0_49, %c0_50] : memref<1x8x17x4xf32, #tpu.memory_space<vmem>>, vector<1x1x17x4xf32>
    %61 = vector.shape_cast %60 : vector<1x1x17x4xf32> to vector<17x4xf32>
    %cst_51 = arith.constant dense<0.000000e+00> : vector<1x4xf32>
    %62 = tpu.matmul %59, %61, %cst_51 {dimension_numbers = #tpu.dot_dimension_numbers<[1], [0], [0], [1], [0, 0, 1, 1], [], []>} : vector<1x17xf32>, vector<17x4xf32>, vector<1x4xf32> -> vector<1x4xf32>
    %c0_52 = arith.constant 0 : index
    %c0_53 = arith.constant 0 : index
    %c8 = arith.constant 8 : index
    %63 = vector.load %arg4[%c0_52, %c0_53, %c8] : memref<1x1x32xf32, #tpu.memory_space<vmem>>, vector<1x1x4xf32>
    %64 = vector.shape_cast %63 : vector<1x1x4xf32> to vector<1x4xf32>
    %65 = vector.shape_cast %62 : vector<1x4xf32> to vector<1x1x4xf32>
    tpu.vector_store %arg4[%c0_52, %c0_53, %c8], %65 {strides = array<i32>} : memref<1x1x32xf32, #tpu.memory_space<vmem>>, vector<1x1x4xf32>,
    %c0_54 = arith.constant 0 : index
    %c3 = arith.constant 3 : index
    %c0_55 = arith.constant 0 : index
    %c0_56 = arith.constant 0 : index
    %66 = vector.load %arg1[%c0_54, %c3, %c0_55, %c0_56] : memref<1x8x1x4xf32, #tpu.memory_space<vmem>>, vector<1x1x1x4xf32>
    %67 = vector.shape_cast %66 : vector<1x1x1x4xf32> to vector<1x4xf32>
    %cst_57 = arith.constant 5.000000e-01 : f32
    %68 = vector.broadcast %cst_57 : f32 to vector<1x4xf32>
    %69 = arith.mulf %67, %68 : vector<1x4xf32>
    %c0_58 = arith.constant 0 : index
    %c3_59 = arith.constant 3 : index
    %c0_60 = arith.constant 0 : index
    %c0_61 = arith.constant 0 : index
    %70 = vector.load %arg2[%c0_58, %c3_59, %c0_60, %c0_61] : memref<1x8x4x17xf32, #tpu.memory_space<vmem>>, vector<1x1x4x17xf32>
    %71 = vector.shape_cast %70 : vector<1x1x4x17xf32> to vector<4x17xf32>
    %cst_62 = arith.constant dense<0.000000e+00> : vector<1x17xf32>
    %72 = tpu.matmul %69, %71, %cst_62 {dimension_numbers = #tpu.dot_dimension_numbers<[1], [0], [0], [1], [0, 0, 1, 1], [], []>} : vector<1x4xf32>, vector<4x17xf32>, vector<1x17xf32> -> vector<1x17xf32>
    %cst_63 = arith.constant dense<0xFF800000> : vector<1xf32>
    %73 = vector.multi_reduction <maximumf>, %72, %cst_63 [1] : vector<1x17xf32> to vector<1xf32>
    %74 = vector.shape_cast %73 : vector<1xf32> to vector<1x1xf32>
    %75 = vector.broadcast %74 : vector<1x1xf32> to vector<1x17xf32>
    %76 = arith.subf %72, %75 : vector<1x17xf32>
    %77 = math.exp %76 : vector<1x17xf32>
    %cst_64 = arith.constant dense<0.000000e+00> : vector<1xf32>
    %78 = vector.multi_reduction <add>, %77, %cst_64 [1] : vector<1x17xf32> to vector<1xf32>
    %79 = vector.shape_cast %78 : vector<1xf32> to vector<1x1xf32>
    %80 = vector.broadcast %79 : vector<1x1xf32> to vector<1x17xf32>
    %81 = arith.divf %77, %80 : vector<1x17xf32>
    %c0_65 = arith.constant 0 : index
    %c3_66 = arith.constant 3 : index
    %c0_67 = arith.constant 0 : index
    %c0_68 = arith.constant 0 : index
    %82 = vector.load %arg3[%c0_65, %c3_66, %c0_67, %c0_68] : memref<1x8x17x4xf32, #tpu.memory_space<vmem>>, vector<1x1x17x4xf32>
    %83 = vector.shape_cast %82 : vector<1x1x17x4xf32> to vector<17x4xf32>
    %cst_69 = arith.constant dense<0.000000e+00> : vector<1x4xf32>
    %84 = tpu.matmul %81, %83, %cst_69 {dimension_numbers = #tpu.dot_dimension_numbers<[1], [0], [0], [1], [0, 0, 1, 1], [], []>} : vector<1x17xf32>, vector<17x4xf32>, vector<1x4xf32> -> vector<1x4xf32>
    %c0_70 = arith.constant 0 : index
    %c0_71 = arith.constant 0 : index
    %c12 = arith.constant 12 : index
    %85 = vector.load %arg4[%c0_70, %c0_71, %c12] : memref<1x1x32xf32, #tpu.memory_space<vmem>>, vector<1x1x4xf32>
    %86 = vector.shape_cast %85 : vector<1x1x4xf32> to vector<1x4xf32>
    %87 = vector.shape_cast %84 : vector<1x4xf32> to vector<1x1x4xf32>
    tpu.vector_store %arg4[%c0_70, %c0_71, %c12], %87 {strides = array<i32>} : memref<1x1x32xf32, #tpu.memory_space<vmem>>, vector<1x1x4xf32>,
    %c0_72 = arith.constant 0 : index
    %c4_73 = arith.constant 4 : index
    %c0_74 = arith.constant 0 : index
    %c0_75 = arith.constant 0 : index
    %88 = vector.load %arg1[%c0_72, %c4_73, %c0_74, %c0_75] : memref<1x8x1x4xf32, #tpu.memory_space<vmem>>, vector<1x1x1x4xf32>
    %89 = vector.shape_cast %88 : vector<1x1x1x4xf32> to vector<1x4xf32>
    %cst_76 = arith.constant 5.000000e-01 : f32
    %90 = vector.broadcast %cst_76 : f32 to vector<1x4xf32>
    %91 = arith.mulf %89, %90 : vector<1x4xf32>
    %c0_77 = arith.constant 0 : index
    %c4_78 = arith.constant 4 : index
    %c0_79 = arith.constant 0 : index
    %c0_80 = arith.constant 0 : index
    %92 = vector.load %arg2[%c0_77, %c4_78, %c0_79, %c0_80] : memref<1x8x4x17xf32, #tpu.memory_space<vmem>>, vector<1x1x4x17xf32>
    %93 = vector.shape_cast %92 : vector<1x1x4x17xf32> to vector<4x17xf32>
    %cst_81 = arith.constant dense<0.000000e+00> : vector<1x17xf32>
    %94 = tpu.matmul %91, %93, %cst_81 {dimension_numbers = #tpu.dot_dimension_numbers<[1], [0], [0], [1], [0, 0, 1, 1], [], []>} : vector<1x4xf32>, vector<4x17xf32>, vector<1x17xf32> -> vector<1x17xf32>
    %cst_82 = arith.constant dense<0xFF800000> : vector<1xf32>
    %95 = vector.multi_reduction <maximumf>, %94, %cst_82 [1] : vector<1x17xf32> to vector<1xf32>
    %96 = vector.shape_cast %95 : vector<1xf32> to vector<1x1xf32>
    %97 = vector.broadcast %96 : vector<1x1xf32> to vector<1x17xf32>
    %98 = arith.subf %94, %97 : vector<1x17xf32>
    %99 = math.exp %98 : vector<1x17xf32>
    %cst_83 = arith.constant dense<0.000000e+00> : vector<1xf32>
    %100 = vector.multi_reduction <add>, %99, %cst_83 [1] : vector<1x17xf32> to vector<1xf32>
    %101 = vector.shape_cast %100 : vector<1xf32> to vector<1x1xf32>
    %102 = vector.broadcast %101 : vector<1x1xf32> to vector<1x17xf32>
    %103 = arith.divf %99, %102 : vector<1x17xf32>
    %c0_84 = arith.constant 0 : index
    %c4_85 = arith.constant 4 : index
    %c0_86 = arith.constant 0 : index
    %c0_87 = arith.constant 0 : index
    %104 = vector.load %arg3[%c0_84, %c4_85, %c0_86, %c0_87] : memref<1x8x17x4xf32, #tpu.memory_space<vmem>>, vector<1x1x17x4xf32>
    %105 = vector.shape_cast %104 : vector<1x1x17x4xf32> to vector<17x4xf32>
    %cst_88 = arith.constant dense<0.000000e+00> : vector<1x4xf32>
    %106 = tpu.matmul %103, %105, %cst_88 {dimension_numbers = #tpu.dot_dimension_numbers<[1], [0], [0], [1], [0, 0, 1, 1], [], []>} : vector<1x17xf32>, vector<17x4xf32>, vector<1x4xf32> -> vector<1x4xf32>
    %c0_89 = arith.constant 0 : index
    %c0_90 = arith.constant 0 : index
    %c16 = arith.constant 16 : index
    %107 = vector.load %arg4[%c0_89, %c0_90, %c16] : memref<1x1x32xf32, #tpu.memory_space<vmem>>, vector<1x1x4xf32>
    %108 = vector.shape_cast %107 : vector<1x1x4xf32> to vector<1x4xf32>
    %109 = vector.shape_cast %106 : vector<1x4xf32> to vector<1x1x4xf32>
    tpu.vector_store %arg4[%c0_89, %c0_90, %c16], %109 {strides = array<i32>} : memref<1x1x32xf32, #tpu.memory_space<vmem>>, vector<1x1x4xf32>,
    %c0_91 = arith.constant 0 : index
    %c5 = arith.constant 5 : index
    %c0_92 = arith.constant 0 : index
    %c0_93 = arith.constant 0 : index
    %110 = vector.load %arg1[%c0_91, %c5, %c0_92, %c0_93] : memref<1x8x1x4xf32, #tpu.memory_space<vmem>>, vector<1x1x1x4xf32>
    %111 = vector.shape_cast %110 : vector<1x1x1x4xf32> to vector<1x4xf32>
    %cst_94 = arith.constant 5.000000e-01 : f32
    %112 = vector.broadcast %cst_94 : f32 to vector<1x4xf32>
    %113 = arith.mulf %111, %112 : vector<1x4xf32>
    %c0_95 = arith.constant 0 : index
    %c5_96 = arith.constant 5 : index
    %c0_97 = arith.constant 0 : index
    %c0_98 = arith.constant 0 : index
    %114 = vector.load %arg2[%c0_95, %c5_96, %c0_97, %c0_98] : memref<1x8x4x17xf32, #tpu.memory_space<vmem>>, vector<1x1x4x17xf32>
    %115 = vector.shape_cast %114 : vector<1x1x4x17xf32> to vector<4x17xf32>
    %cst_99 = arith.constant dense<0.000000e+00> : vector<1x17xf32>
    %116 = tpu.matmul %113, %115, %cst_99 {dimension_numbers = #tpu.dot_dimension_numbers<[1], [0], [0], [1], [0, 0, 1, 1], [], []>} : vector<1x4xf32>, vector<4x17xf32>, vector<1x17xf32> -> vector<1x17xf32>
    %cst_100 = arith.constant dense<0xFF800000> : vector<1xf32>
    %117 = vector.multi_reduction <maximumf>, %116, %cst_100 [1] : vector<1x17xf32> to vector<1xf32>
    %118 = vector.shape_cast %117 : vector<1xf32> to vector<1x1xf32>
    %119 = vector.broadcast %118 : vector<1x1xf32> to vector<1x17xf32>
    %120 = arith.subf %116, %119 : vector<1x17xf32>
    %121 = math.exp %120 : vector<1x17xf32>
    %cst_101 = arith.constant dense<0.000000e+00> : vector<1xf32>
    %122 = vector.multi_reduction <add>, %121, %cst_101 [1] : vector<1x17xf32> to vector<1xf32>
    %123 = vector.shape_cast %122 : vector<1xf32> to vector<1x1xf32>
    %124 = vector.broadcast %123 : vector<1x1xf32> to vector<1x17xf32>
    %125 = arith.divf %121, %124 : vector<1x17xf32>
    %c0_102 = arith.constant 0 : index
    %c5_103 = arith.constant 5 : index
    %c0_104 = arith.constant 0 : index
    %c0_105 = arith.constant 0 : index
    %126 = vector.load %arg3[%c0_102, %c5_103, %c0_104, %c0_105] : memref<1x8x17x4xf32, #tpu.memory_space<vmem>>, vector<1x1x17x4xf32>
    %127 = vector.shape_cast %126 : vector<1x1x17x4xf32> to vector<17x4xf32>
    %cst_106 = arith.constant dense<0.000000e+00> : vector<1x4xf32>
    %128 = tpu.matmul %125, %127, %cst_106 {dimension_numbers = #tpu.dot_dimension_numbers<[1], [0], [0], [1], [0, 0, 1, 1], [], []>} : vector<1x17xf32>, vector<17x4xf32>, vector<1x4xf32> -> vector<1x4xf32>
    %c0_107 = arith.constant 0 : index
    %c0_108 = arith.constant 0 : index
    %c20 = arith.constant 20 : index
    %129 = vector.load %arg4[%c0_107, %c0_108, %c20] : memref<1x1x32xf32, #tpu.memory_space<vmem>>, vector<1x1x4xf32>
    %130 = vector.shape_cast %129 : vector<1x1x4xf32> to vector<1x4xf32>
    %131 = vector.shape_cast %128 : vector<1x4xf32> to vector<1x1x4xf32>
    tpu.vector_store %arg4[%c0_107, %c0_108, %c20], %131 {strides = array<i32>} : memref<1x1x32xf32, #tpu.memory_space<vmem>>, vector<1x1x4xf32>,
    %c0_109 = arith.constant 0 : index
    %c6 = arith.constant 6 : index
    %c0_110 = arith.constant 0 : index
    %c0_111 = arith.constant 0 : index
    %132 = vector.load %arg1[%c0_109, %c6, %c0_110, %c0_111] : memref<1x8x1x4xf32, #tpu.memory_space<vmem>>, vector<1x1x1x4xf32>
    %133 = vector.shape_cast %132 : vector<1x1x1x4xf32> to vector<1x4xf32>
    %cst_112 = arith.constant 5.000000e-01 : f32
    %134 = vector.broadcast %cst_112 : f32 to vector<1x4xf32>
    %135 = arith.mulf %133, %134 : vector<1x4xf32>
    %c0_113 = arith.constant 0 : index
    %c6_114 = arith.constant 6 : index
    %c0_115 = arith.constant 0 : index
    %c0_116 = arith.constant 0 : index
    %136 = vector.load %arg2[%c0_113, %c6_114, %c0_115, %c0_116] : memref<1x8x4x17xf32, #tpu.memory_space<vmem>>, vector<1x1x4x17xf32>
    %137 = vector.shape_cast %136 : vector<1x1x4x17xf32> to vector<4x17xf32>
    %cst_117 = arith.constant dense<0.000000e+00> : vector<1x17xf32>
    %138 = tpu.matmul %135, %137, %cst_117 {dimension_numbers = #tpu.dot_dimension_numbers<[1], [0], [0], [1], [0, 0, 1, 1], [], []>} : vector<1x4xf32>, vector<4x17xf32>, vector<1x17xf32> -> vector<1x17xf32>
    %cst_118 = arith.constant dense<0xFF800000> : vector<1xf32>
    %139 = vector.multi_reduction <maximumf>, %138, %cst_118 [1] : vector<1x17xf32> to vector<1xf32>
    %140 = vector.shape_cast %139 : vector<1xf32> to vector<1x1xf32>
    %141 = vector.broadcast %140 : vector<1x1xf32> to vector<1x17xf32>
    %142 = arith.subf %138, %141 : vector<1x17xf32>
    %143 = math.exp %142 : vector<1x17xf32>
    %cst_119 = arith.constant dense<0.000000e+00> : vector<1xf32>
    %144 = vector.multi_reduction <add>, %143, %cst_119 [1] : vector<1x17xf32> to vector<1xf32>
    %145 = vector.shape_cast %144 : vector<1xf32> to vector<1x1xf32>
    %146 = vector.broadcast %145 : vector<1x1xf32> to vector<1x17xf32>
    %147 = arith.divf %143, %146 : vector<1x17xf32>
    %c0_120 = arith.constant 0 : index
    %c6_121 = arith.constant 6 : index
    %c0_122 = arith.constant 0 : index
    %c0_123 = arith.constant 0 : index
    %148 = vector.load %arg3[%c0_120, %c6_121, %c0_122, %c0_123] : memref<1x8x17x4xf32, #tpu.memory_space<vmem>>, vector<1x1x17x4xf32>
    %149 = vector.shape_cast %148 : vector<1x1x17x4xf32> to vector<17x4xf32>
    %cst_124 = arith.constant dense<0.000000e+00> : vector<1x4xf32>
    %150 = tpu.matmul %147, %149, %cst_124 {dimension_numbers = #tpu.dot_dimension_numbers<[1], [0], [0], [1], [0, 0, 1, 1], [], []>} : vector<1x17xf32>, vector<17x4xf32>, vector<1x4xf32> -> vector<1x4xf32>
    %c0_125 = arith.constant 0 : index
    %c0_126 = arith.constant 0 : index
    %c24 = arith.constant 24 : index
    %151 = vector.load %arg4[%c0_125, %c0_126, %c24] : memref<1x1x32xf32, #tpu.memory_space<vmem>>, vector<1x1x4xf32>
    %152 = vector.shape_cast %151 : vector<1x1x4xf32> to vector<1x4xf32>
    %153 = vector.shape_cast %150 : vector<1x4xf32> to vector<1x1x4xf32>
    tpu.vector_store %arg4[%c0_125, %c0_126, %c24], %153 {strides = array<i32>} : memref<1x1x32xf32, #tpu.memory_space<vmem>>, vector<1x1x4xf32>,
    %c0_127 = arith.constant 0 : index
    %c7 = arith.constant 7 : index
    %c0_128 = arith.constant 0 : index
    %c0_129 = arith.constant 0 : index
    %154 = vector.load %arg1[%c0_127, %c7, %c0_128, %c0_129] : memref<1x8x1x4xf32, #tpu.memory_space<vmem>>, vector<1x1x1x4xf32>
    %155 = vector.shape_cast %154 : vector<1x1x1x4xf32> to vector<1x4xf32>
    %cst_130 = arith.constant 5.000000e-01 : f32
    %156 = vector.broadcast %cst_130 : f32 to vector<1x4xf32>
    %157 = arith.mulf %155, %156 : vector<1x4xf32>
    %c0_131 = arith.constant 0 : index
    %c7_132 = arith.constant 7 : index
    %c0_133 = arith.constant 0 : index
    %c0_134 = arith.constant 0 : index
    %158 = vector.load %arg2[%c0_131, %c7_132, %c0_133, %c0_134] : memref<1x8x4x17xf32, #tpu.memory_space<vmem>>, vector<1x1x4x17xf32>
    %159 = vector.shape_cast %158 : vector<1x1x4x17xf32> to vector<4x17xf32>
    %cst_135 = arith.constant dense<0.000000e+00> : vector<1x17xf32>
    %160 = tpu.matmul %157, %159, %cst_135 {dimension_numbers = #tpu.dot_dimension_numbers<[1], [0], [0], [1], [0, 0, 1, 1], [], []>} : vector<1x4xf32>, vector<4x17xf32>, vector<1x17xf32> -> vector<1x17xf32>
    %cst_136 = arith.constant dense<0xFF800000> : vector<1xf32>
    %161 = vector.multi_reduction <maximumf>, %160, %cst_136 [1] : vector<1x17xf32> to vector<1xf32>
    %162 = vector.shape_cast %161 : vector<1xf32> to vector<1x1xf32>
    %163 = vector.broadcast %162 : vector<1x1xf32> to vector<1x17xf32>
    %164 = arith.subf %160, %163 : vector<1x17xf32>
    %165 = math.exp %164 : vector<1x17xf32>
    %cst_137 = arith.constant dense<0.000000e+00> : vector<1xf32>
    %166 = vector.multi_reduction <add>, %165, %cst_137 [1] : vector<1x17xf32> to vector<1xf32>
    %167 = vector.shape_cast %166 : vector<1xf32> to vector<1x1xf32>
    %168 = vector.broadcast %167 : vector<1x1xf32> to vector<1x17xf32>
    %169 = arith.divf %165, %168 : vector<1x17xf32>
    %c0_138 = arith.constant 0 : index
    %c7_139 = arith.constant 7 : index
    %c0_140 = arith.constant 0 : index
    %c0_141 = arith.constant 0 : index
    %170 = vector.load %arg3[%c0_138, %c7_139, %c0_140, %c0_141] : memref<1x8x17x4xf32, #tpu.memory_space<vmem>>, vector<1x1x17x4xf32>
    %171 = vector.shape_cast %170 : vector<1x1x17x4xf32> to vector<17x4xf32>
    %cst_142 = arith.constant dense<0.000000e+00> : vector<1x4xf32>
    %172 = tpu.matmul %169, %171, %cst_142 {dimension_numbers = #tpu.dot_dimension_numbers<[1], [0], [0], [1], [0, 0, 1, 1], [], []>} : vector<1x17xf32>, vector<17x4xf32>, vector<1x4xf32> -> vector<1x4xf32>
    %c0_143 = arith.constant 0 : index
    %c0_144 = arith.constant 0 : index
    %c28 = arith.constant 28 : index
    %173 = vector.load %arg4[%c0_143, %c0_144, %c28] : memref<1x1x32xf32, #tpu.memory_space<vmem>>, vector<1x1x4xf32>
    %174 = vector.shape_cast %173 : vector<1x1x4xf32> to vector<1x4xf32>
    %175 = vector.shape_cast %172 : vector<1x4xf32> to vector<1x1x4xf32>
    tpu.vector_store %arg4[%c0_143, %c0_144, %c28], %175 {strides = array<i32>} : memref<1x1x32xf32, #tpu.memory_space<vmem>>, vector<1x1x4xf32>,
    return
  }
  func.func @transform_0(%arg0: i32) -> (i32, i32, i32, i32) {
    %c0_i32 = arith.constant 0 : i32
    %c0_i32_0 = arith.constant 0 : i32
    %c0_i32_1 = arith.constant 0 : i32
    %c0_i32_2 = arith.constant 0 : i32
    return %arg0, %c0_i32, %c0_i32_0, %c0_i32_1 : i32, i32, i32, i32
  }
  func.func @transform_1(%arg0: i32) -> (i32, i32, i32, i32) {
    %c0_i32 = arith.constant 0 : i32
    %c0_i32_0 = arith.constant 0 : i32
    %c0_i32_1 = arith.constant 0 : i32
    %c0_i32_2 = arith.constant 0 : i32
    return %arg0, %c0_i32, %c0_i32_0, %c0_i32_1 : i32, i32, i32, i32
  }
  func.func @transform_2(%arg0: i32) -> (i32, i32, i32, i32) {
    %c0_i32 = arith.constant 0 : i32
    %c0_i32_0 = arith.constant 0 : i32
    %c0_i32_1 = arith.constant 0 : i32
    %c0_i32_2 = arith.constant 0 : i32
    return %arg0, %c0_i32, %c0_i32_0, %c0_i32_1 : i32, i32, i32, i32
  }
  func.func @transform_3(%arg0: i32) -> (i32, i32, i32) {
    %c0_i32 = arith.constant 0 : i32
    %c0_i32_0 = arith.constant 0 : i32
    %c0_i32_1 = arith.constant 0 : i32
    return %arg0, %c0_i32, %c0_i32_0 : i32, i32, i32
  }
}

module attributes {stable_mosaic.version = 11 : i64} {
  func.func @_linear_scale_res_kernel(%arg0: i32, %arg1: memref<8x128xf32, #tpu.memory_space<vmem>>, %arg2: memref<128x128xf32, #tpu.memory_space<vmem>>, %arg3: memref<2x128xf32, #tpu.memory_space<vmem>>, %arg4: memref<8x128xf32, #tpu.memory_space<vmem>>, %arg5: memref<8x128xf32, #tpu.memory_space<vmem>>) attributes {dimension_semantics = [#tpu.dimension_semantics<parallel>], iteration_bounds = array<i64: 1>, scalar_prefetch = 0 : i64, scratch_operands = 0 : i64, tpu.core_type = #tpu.core_type<tc>, window_params = [{transform_indices = @transform_0, window_bounds = array<i64: 8, 128>}, {pipeline_mode = #tpu.pipeline_mode<synchronous>, transform_indices = @transform_1, window_bounds = array<i64: 128, 128>}, {pipeline_mode = #tpu.pipeline_mode<synchronous>, transform_indices = @transform_2, window_bounds = array<i64: 2, 128>}, {transform_indices = @transform_3, window_bounds = array<i64: 8, 128>}, {transform_indices = @transform_4, window_bounds = array<i64: 8, 128>}]} {
    %c0 = arith.constant 0 : index
    %c0_0 = arith.constant 0 : index
    %0 = vector.load %arg1[%c0, %c0_0] : memref<8x128xf32, #tpu.memory_space<vmem>>, vector<8x128xf32>
    %c0_1 = arith.constant 0 : index
    %c0_2 = arith.constant 0 : index
    %1 = vector.load %arg2[%c0_1, %c0_2] : memref<128x128xf32, #tpu.memory_space<vmem>>, vector<128x128xf32>
    %cst = arith.constant dense<0.000000e+00> : vector<8x128xf32>
    %2 = tpu.matmul %0, %1, %cst {dimension_numbers = #tpu.dot_dimension_numbers<[1], [0], [0], [1], [0, 0, 1, 1], [], []>} : vector<8x128xf32>, vector<128x128xf32>, vector<8x128xf32> -> vector<8x128xf32>
    %c0_3 = arith.constant 0 : index
    %c0_4 = arith.constant 0 : index
    %3 = vector.load %arg3[%c0_3, %c0_4] : memref<2x128xf32, #tpu.memory_space<vmem>>, vector<1x128xf32>
    %c1 = arith.constant 1 : index
    %c0_5 = arith.constant 0 : index
    %4 = vector.load %arg3[%c1, %c0_5] : memref<2x128xf32, #tpu.memory_space<vmem>>, vector<1x128xf32>
    %c0_6 = arith.constant 0 : index
    %c0_7 = arith.constant 0 : index
    %5 = vector.load %arg4[%c0_6, %c0_7] : memref<8x128xf32, #tpu.memory_space<vmem>>, vector<8x128xf32>
    %6 = vector.broadcast %3 : vector<1x128xf32> to vector<8x128xf32>
    %7 = arith.addf %2, %6 : vector<8x128xf32>
    %8 = vector.broadcast %4 : vector<1x128xf32> to vector<8x128xf32>
    %9 = arith.mulf %8, %7 : vector<8x128xf32>
    %10 = arith.addf %5, %9 : vector<8x128xf32>
    %c0_8 = arith.constant 0 : index
    %c0_9 = arith.constant 0 : index
    %11 = vector.load %arg5[%c0_8, %c0_9] : memref<8x128xf32, #tpu.memory_space<vmem>>, vector<8x128xf32>
    tpu.vector_store %arg5[%c0_8, %c0_9], %10 {strides = array<i32>} : memref<8x128xf32, #tpu.memory_space<vmem>>, vector<8x128xf32>,
    return
  }
  func.func @transform_0(%arg0: i32) -> (i32, i32) {
    %c0_i32 = arith.constant 0 : i32
    %c0_i32_0 = arith.constant 0 : i32
    return %arg0, %c0_i32 : i32, i32
  }
  func.func @transform_1(%arg0: i32) -> (i32, i32) {
    %c0_i32 = arith.constant 0 : i32
    %c0_i32_0 = arith.constant 0 : i32
    %c0_i32_1 = arith.constant 0 : i32
    return %c0_i32, %c0_i32_0 : i32, i32
  }
  func.func @transform_2(%arg0: i32) -> (i32, i32) {
    %c0_i32 = arith.constant 0 : i32
    %c0_i32_0 = arith.constant 0 : i32
    %c0_i32_1 = arith.constant 0 : i32
    return %c0_i32, %c0_i32_0 : i32, i32
  }
  func.func @transform_3(%arg0: i32) -> (i32, i32) {
    %c0_i32 = arith.constant 0 : i32
    %c0_i32_0 = arith.constant 0 : i32
    return %arg0, %c0_i32 : i32, i32
  }
  func.func @transform_4(%arg0: i32) -> (i32, i32) {
    %c0_i32 = arith.constant 0 : i32
    %c0_i32_0 = arith.constant 0 : i32
    return %arg0, %c0_i32 : i32, i32
  }
}

module attributes {stable_mosaic.version = 11 : i64} {
  func.func @_ln_linear_kernel(%arg0: i32, %arg1: memref<8x128xf32, #tpu.memory_space<vmem>>, %arg2: memref<2x128xf32, #tpu.memory_space<vmem>>, %arg3: memref<128x128xf32, #tpu.memory_space<vmem>>, %arg4: memref<1x128xf32, #tpu.memory_space<vmem>>, %arg5: memref<8x128xf32, #tpu.memory_space<vmem>>) attributes {dimension_semantics = [#tpu.dimension_semantics<parallel>], iteration_bounds = array<i64: 1>, scalar_prefetch = 0 : i64, scratch_operands = 0 : i64, tpu.core_type = #tpu.core_type<tc>, window_params = [{transform_indices = @transform_0, window_bounds = array<i64: 8, 128>}, {pipeline_mode = #tpu.pipeline_mode<synchronous>, transform_indices = @transform_1, window_bounds = array<i64: 2, 128>}, {pipeline_mode = #tpu.pipeline_mode<synchronous>, transform_indices = @transform_2, window_bounds = array<i64: 128, 128>}, {pipeline_mode = #tpu.pipeline_mode<synchronous>, transform_indices = @transform_3, window_bounds = array<i64: 1, 128>}, {transform_indices = @transform_4, window_bounds = array<i64: 8, 128>}]} {
    %c0 = arith.constant 0 : index
    %c0_0 = arith.constant 0 : index
    %0 = vector.load %arg1[%c0, %c0_0] : memref<8x128xf32, #tpu.memory_space<vmem>>, vector<8x128xf32>
    %c0_1 = arith.constant 0 : index
    %c0_2 = arith.constant 0 : index
    %1 = vector.load %arg2[%c0_1, %c0_2] : memref<2x128xf32, #tpu.memory_space<vmem>>, vector<1x128xf32>
    %c1 = arith.constant 1 : index
    %c0_3 = arith.constant 0 : index
    %2 = vector.load %arg2[%c1, %c0_3] : memref<2x128xf32, #tpu.memory_space<vmem>>, vector<1x128xf32>
    %cst = arith.constant dense<0.000000e+00> : vector<8xf32>
    %3 = vector.multi_reduction <add>, %0, %cst [1] : vector<8x128xf32> to vector<8xf32>
    %4 = vector.shape_cast %3 : vector<8xf32> to vector<8x1xf32>
    %5 = arith.mulf %0, %0 : vector<8x128xf32>
    %cst_4 = arith.constant dense<0.000000e+00> : vector<8xf32>
    %6 = vector.multi_reduction <add>, %5, %cst_4 [1] : vector<8x128xf32> to vector<8xf32>
    %7 = vector.shape_cast %6 : vector<8xf32> to vector<8x1xf32>
    %cst_5 = arith.constant 3.125000e-02 : f32
    %8 = vector.broadcast %cst_5 : f32 to vector<8x1xf32>
    %9 = arith.mulf %4, %8 : vector<8x1xf32>
    %cst_6 = arith.constant 3.125000e-02 : f32
    %10 = vector.broadcast %cst_6 : f32 to vector<8x1xf32>
    %11 = arith.mulf %7, %10 : vector<8x1xf32>
    %12 = arith.mulf %9, %9 : vector<8x1xf32>
    %13 = arith.subf %11, %12 : vector<8x1xf32>
    %cst_7 = arith.constant 0.000000e+00 : f32
    %14 = vector.broadcast %cst_7 : f32 to vector<8x1xf32>
    %15 = arith.maximumf %13, %14 : vector<8x1xf32>
    %16 = vector.broadcast %9 : vector<8x1xf32> to vector<8x128xf32>
    %17 = arith.subf %0, %16 : vector<8x128xf32>
    %cst_8 = arith.constant 9.99999997E-7 : f32
    %18 = vector.broadcast %cst_8 : f32 to vector<8x1xf32>
    %19 = arith.addf %15, %18 : vector<8x1xf32>
    %20 = math.rsqrt %19 : vector<8x1xf32>
    %21 = vector.broadcast %20 : vector<8x1xf32> to vector<8x128xf32>
    %22 = arith.mulf %17, %21 : vector<8x128xf32>
    %23 = vector.broadcast %1 : vector<1x128xf32> to vector<8x128xf32>
    %24 = arith.mulf %22, %23 : vector<8x128xf32>
    %25 = vector.broadcast %2 : vector<1x128xf32> to vector<8x128xf32>
    %26 = arith.addf %24, %25 : vector<8x128xf32>
    %c0_9 = arith.constant 0 : index
    %c0_10 = arith.constant 0 : index
    %27 = vector.load %arg3[%c0_9, %c0_10] : memref<128x128xf32, #tpu.memory_space<vmem>>, vector<128x128xf32>
    %cst_11 = arith.constant dense<0.000000e+00> : vector<8x128xf32>
    %28 = tpu.matmul %26, %27, %cst_11 {dimension_numbers = #tpu.dot_dimension_numbers<[1], [0], [0], [1], [0, 0, 1, 1], [], []>} : vector<8x128xf32>, vector<128x128xf32>, vector<8x128xf32> -> vector<8x128xf32>
    %c0_12 = arith.constant 0 : index
    %c0_13 = arith.constant 0 : index
    %29 = vector.load %arg4[%c0_12, %c0_13] : memref<1x128xf32, #tpu.memory_space<vmem>>, vector<1x128xf32>
    %30 = vector.broadcast %29 : vector<1x128xf32> to vector<8x128xf32>
    %31 = arith.addf %28, %30 : vector<8x128xf32>
    %c0_14 = arith.constant 0 : index
    %c0_15 = arith.constant 0 : index
    %32 = vector.load %arg5[%c0_14, %c0_15] : memref<8x128xf32, #tpu.memory_space<vmem>>, vector<8x128xf32>
    tpu.vector_store %arg5[%c0_14, %c0_15], %31 {strides = array<i32>} : memref<8x128xf32, #tpu.memory_space<vmem>>, vector<8x128xf32>,
    return
  }
  func.func @transform_0(%arg0: i32) -> (i32, i32) {
    %c0_i32 = arith.constant 0 : i32
    %c0_i32_0 = arith.constant 0 : i32
    return %arg0, %c0_i32 : i32, i32
  }
  func.func @transform_1(%arg0: i32) -> (i32, i32) {
    %c0_i32 = arith.constant 0 : i32
    %c0_i32_0 = arith.constant 0 : i32
    %c0_i32_1 = arith.constant 0 : i32
    return %c0_i32, %c0_i32_0 : i32, i32
  }
  func.func @transform_2(%arg0: i32) -> (i32, i32) {
    %c0_i32 = arith.constant 0 : i32
    %c0_i32_0 = arith.constant 0 : i32
    %c0_i32_1 = arith.constant 0 : i32
    return %c0_i32, %c0_i32_0 : i32, i32
  }
  func.func @transform_3(%arg0: i32) -> (i32, i32) {
    %c0_i32 = arith.constant 0 : i32
    %c0_i32_0 = arith.constant 0 : i32
    %c0_i32_1 = arith.constant 0 : i32
    return %c0_i32, %c0_i32_0 : i32, i32
  }
  func.func @transform_4(%arg0: i32) -> (i32, i32) {
    %c0_i32 = arith.constant 0 : i32
    %c0_i32_0 = arith.constant 0 : i32
    return %arg0, %c0_i32 : i32, i32
  }
}

module attributes {stable_mosaic.version = 11 : i64} {
  func.func @_ln_linear_kernel(%arg0: i32, %arg1: memref<8x128xf32, #tpu.memory_space<vmem>>, %arg2: memref<2x128xf32, #tpu.memory_space<vmem>>, %arg3: memref<128x128xf32, #tpu.memory_space<vmem>>, %arg4: memref<1x128xf32, #tpu.memory_space<vmem>>, %arg5: memref<8x128xf32, #tpu.memory_space<vmem>>) attributes {dimension_semantics = [#tpu.dimension_semantics<parallel>], iteration_bounds = array<i64: 1>, scalar_prefetch = 0 : i64, scratch_operands = 0 : i64, tpu.core_type = #tpu.core_type<tc>, window_params = [{transform_indices = @transform_0, window_bounds = array<i64: 8, 128>}, {pipeline_mode = #tpu.pipeline_mode<synchronous>, transform_indices = @transform_1, window_bounds = array<i64: 2, 128>}, {pipeline_mode = #tpu.pipeline_mode<synchronous>, transform_indices = @transform_2, window_bounds = array<i64: 128, 128>}, {pipeline_mode = #tpu.pipeline_mode<synchronous>, transform_indices = @transform_3, window_bounds = array<i64: 1, 128>}, {transform_indices = @transform_4, window_bounds = array<i64: 8, 128>}]} {
    %c0 = arith.constant 0 : index
    %c0_0 = arith.constant 0 : index
    %0 = vector.load %arg1[%c0, %c0_0] : memref<8x128xf32, #tpu.memory_space<vmem>>, vector<8x128xf32>
    %c0_1 = arith.constant 0 : index
    %c0_2 = arith.constant 0 : index
    %1 = vector.load %arg2[%c0_1, %c0_2] : memref<2x128xf32, #tpu.memory_space<vmem>>, vector<1x128xf32>
    %c1 = arith.constant 1 : index
    %c0_3 = arith.constant 0 : index
    %2 = vector.load %arg2[%c1, %c0_3] : memref<2x128xf32, #tpu.memory_space<vmem>>, vector<1x128xf32>
    %cst = arith.constant dense<0.000000e+00> : vector<8xf32>
    %3 = vector.multi_reduction <add>, %0, %cst [1] : vector<8x128xf32> to vector<8xf32>
    %4 = vector.shape_cast %3 : vector<8xf32> to vector<8x1xf32>
    %5 = arith.mulf %0, %0 : vector<8x128xf32>
    %cst_4 = arith.constant dense<0.000000e+00> : vector<8xf32>
    %6 = vector.multi_reduction <add>, %5, %cst_4 [1] : vector<8x128xf32> to vector<8xf32>
    %7 = vector.shape_cast %6 : vector<8xf32> to vector<8x1xf32>
    %cst_5 = arith.constant 3.125000e-02 : f32
    %8 = vector.broadcast %cst_5 : f32 to vector<8x1xf32>
    %9 = arith.mulf %4, %8 : vector<8x1xf32>
    %cst_6 = arith.constant 3.125000e-02 : f32
    %10 = vector.broadcast %cst_6 : f32 to vector<8x1xf32>
    %11 = arith.mulf %7, %10 : vector<8x1xf32>
    %12 = arith.mulf %9, %9 : vector<8x1xf32>
    %13 = arith.subf %11, %12 : vector<8x1xf32>
    %cst_7 = arith.constant 0.000000e+00 : f32
    %14 = vector.broadcast %cst_7 : f32 to vector<8x1xf32>
    %15 = arith.maximumf %13, %14 : vector<8x1xf32>
    %16 = vector.broadcast %9 : vector<8x1xf32> to vector<8x128xf32>
    %17 = arith.subf %0, %16 : vector<8x128xf32>
    %cst_8 = arith.constant 9.99999997E-7 : f32
    %18 = vector.broadcast %cst_8 : f32 to vector<8x1xf32>
    %19 = arith.addf %15, %18 : vector<8x1xf32>
    %20 = math.rsqrt %19 : vector<8x1xf32>
    %21 = vector.broadcast %20 : vector<8x1xf32> to vector<8x128xf32>
    %22 = arith.mulf %17, %21 : vector<8x128xf32>
    %23 = vector.broadcast %1 : vector<1x128xf32> to vector<8x128xf32>
    %24 = arith.mulf %22, %23 : vector<8x128xf32>
    %25 = vector.broadcast %2 : vector<1x128xf32> to vector<8x128xf32>
    %26 = arith.addf %24, %25 : vector<8x128xf32>
    %c0_9 = arith.constant 0 : index
    %c0_10 = arith.constant 0 : index
    %27 = vector.load %arg3[%c0_9, %c0_10] : memref<128x128xf32, #tpu.memory_space<vmem>>, vector<128x128xf32>
    %cst_11 = arith.constant dense<0.000000e+00> : vector<8x128xf32>
    %28 = tpu.matmul %26, %27, %cst_11 {dimension_numbers = #tpu.dot_dimension_numbers<[1], [0], [0], [1], [0, 0, 1, 1], [], []>} : vector<8x128xf32>, vector<128x128xf32>, vector<8x128xf32> -> vector<8x128xf32>
    %c0_12 = arith.constant 0 : index
    %c0_13 = arith.constant 0 : index
    %29 = vector.load %arg4[%c0_12, %c0_13] : memref<1x128xf32, #tpu.memory_space<vmem>>, vector<1x128xf32>
    %30 = vector.broadcast %29 : vector<1x128xf32> to vector<8x128xf32>
    %31 = arith.addf %28, %30 : vector<8x128xf32>
    %32 = arith.mulf %31, %31 : vector<8x128xf32>
    %33 = arith.mulf %31, %32 : vector<8x128xf32>
    %cst_14 = arith.constant 4.471500e-02 : f32
    %34 = vector.broadcast %cst_14 : f32 to vector<8x128xf32>
    %35 = arith.mulf %34, %33 : vector<8x128xf32>
    %36 = arith.addf %31, %35 : vector<8x128xf32>
    %cst_15 = arith.constant 0.797884583 : f32
    %37 = vector.broadcast %cst_15 : f32 to vector<8x128xf32>
    %38 = arith.mulf %37, %36 : vector<8x128xf32>
    %39 = math.tanh %38 : vector<8x128xf32>
    %cst_16 = arith.constant 1.000000e+00 : f32
    %40 = vector.broadcast %cst_16 : f32 to vector<8x128xf32>
    %41 = arith.addf %40, %39 : vector<8x128xf32>
    %cst_17 = arith.constant 5.000000e-01 : f32
    %42 = vector.broadcast %cst_17 : f32 to vector<8x128xf32>
    %43 = arith.mulf %42, %41 : vector<8x128xf32>
    %44 = arith.mulf %31, %43 : vector<8x128xf32>
    %c0_18 = arith.constant 0 : index
    %c0_19 = arith.constant 0 : index
    %45 = vector.load %arg5[%c0_18, %c0_19] : memref<8x128xf32, #tpu.memory_space<vmem>>, vector<8x128xf32>
    tpu.vector_store %arg5[%c0_18, %c0_19], %44 {strides = array<i32>} : memref<8x128xf32, #tpu.memory_space<vmem>>, vector<8x128xf32>,
    return
  }
  func.func @transform_0(%arg0: i32) -> (i32, i32) {
    %c0_i32 = arith.constant 0 : i32
    %c0_i32_0 = arith.constant 0 : i32
    return %arg0, %c0_i32 : i32, i32
  }
  func.func @transform_1(%arg0: i32) -> (i32, i32) {
    %c0_i32 = arith.constant 0 : i32
    %c0_i32_0 = arith.constant 0 : i32
    %c0_i32_1 = arith.constant 0 : i32
    return %c0_i32, %c0_i32_0 : i32, i32
  }
  func.func @transform_2(%arg0: i32) -> (i32, i32) {
    %c0_i32 = arith.constant 0 : i32
    %c0_i32_0 = arith.constant 0 : i32
    %c0_i32_1 = arith.constant 0 : i32
    return %c0_i32, %c0_i32_0 : i32, i32
  }
  func.func @transform_3(%arg0: i32) -> (i32, i32) {
    %c0_i32 = arith.constant 0 : i32
    %c0_i32_0 = arith.constant 0 : i32
    %c0_i32_1 = arith.constant 0 : i32
    return %c0_i32, %c0_i32_0 : i32, i32
  }
  func.func @transform_4(%arg0: i32) -> (i32, i32) {
    %c0_i32 = arith.constant 0 : i32
    %c0_i32_0 = arith.constant 0 : i32
    return %arg0, %c0_i32 : i32, i32
  }
}

</mosaic_0001>

<llo_original>
// kernel: cait_forward.25
$region0: #{cait_forward.25}
  #allocation0 [shape = 'u32[]', space=smem, size = 0x4, offset = 0x4, fixed_abs, tag = 'smem constant byte address 0x4 - core index']
  #allocation1 [shape = 'u32[72,128]{1,0:T(1,128)}', space=vmem, size = 0x9000, scoped, tag = 'internal scratch']
  %s0 = inlined_call_operand.vmem [shape: f32[32,128], index: 0, kind: input, shape index: {}]
  %s1 = inlined_call_operand.vmem [shape: f32[2,128], index: 1, kind: input, shape index: {}]
  %s2 = inlined_call_operand.vmem [shape: f32[128,128], index: 2, kind: input, shape index: {}]
  %s3 = inlined_call_operand.vmem [shape: f32[1,128], index: 3, kind: input, shape index: {}]
  %s4 = inlined_call_operand.vmem [shape: f32[32,128], index: 4, kind: output, shape index: {}]
  %s5 = sld [smem:[#allocation0]]
  $region26: #{cait_forward.25} parent=0
    _
  %s7 = ssub.s32 1, %s5
  %s8 = scalar_select 0, %s7, %s5
  // Predicated region
  $region2: #{cait_forward.25} parent=0 // pred_check
    _
  $region3: #{cait_forward.25} parent=0 // pred_check_branch
    %10 = sbr.rel (0) target = $region5
  $region4: #{cait_forward.25} parent=0 // pred_region
    _
  $region5: #{cait_forward.25} parent=0 // pred_fallthru
    _
  // Predicated region
  $region6: #{cait_forward.25} parent=0 // pred_check
    _
  $region7: #{cait_forward.25} parent=0 // pred_check_branch
    %12 = sbr.rel (0) target = $region9
  $region8: #{cait_forward.25} parent=0 // pred_region
    _
  $region9: #{cait_forward.25} parent=0 // pred_fallthru
    _
  // Predicated region
  $region10: #{cait_forward.25} parent=0 // pred_check
    _
  $region11: #{cait_forward.25} parent=0 // pred_check_branch
    %14 = sbr.rel (0) target = $region13
  $region12: #{cait_forward.25} parent=0 // pred_region
    _
  $region13: #{cait_forward.25} parent=0 // pred_fallthru
    _
  // Predicated region
  $region14: #{cait_forward.25} parent=0 // pred_check
    _
  $region15: #{cait_forward.25} parent=0 // pred_check_branch
    %16 = sbr.rel (0) target = $region17
  $region16: #{cait_forward.25} parent=0 // pred_region
    _
  $region17: #{cait_forward.25} parent=0 // pred_fallthru
    _
  %v17 = vld [vmem:[%s0] sm:$0xff]
  %v18 = vld [vmem:[%s0 + $0x8] sm:$0xff]
  %v19 = vld [vmem:[%s0 + $0x10] sm:$0xff]
  %v20 = vld [vmem:[%s0 + $0x18] sm:$0xff]
  %v21 = vld [vmem:[%s1] sm:$0x1]
  %v22 = vld [vmem:[%s1 + $0x1] sm:$0x1]
  %23 = vadd.xlane.f32.xlu0 %v17
  %v24 = vpop.xlane.xlu0 %23
  %25 = vadd.xlane.f32.xlu0 %v18
  %v26 = vpop.xlane.xlu0 %25
  %27 = vadd.xlane.f32.xlu0 %v19
  %v28 = vpop.xlane.xlu0 %27
  %29 = vadd.xlane.f32.xlu0 %v20
  %v30 = vpop.xlane.xlu0 %29
  %v31 = vmul.f32 %v17, %v17
  %v32 = vmul.f32 %v18, %v18
  %v33 = vmul.f32 %v19, %v19
  %v34 = vmul.f32 %v20, %v20
  %35 = vadd.xlane.f32.xlu0 %v31
  %v36 = vpop.xlane.xlu0 %35
  %37 = vadd.xlane.f32.xlu0 %v32
  %v38 = vpop.xlane.xlu0 %37
  %39 = vadd.xlane.f32.xlu0 %v33
  %v40 = vpop.xlane.xlu0 %39
  %41 = vadd.xlane.f32.xlu0 %v34
  %v42 = vpop.xlane.xlu0 %41
  %v43 = vmul.f32 %v24, 0.03125
  %v44 = vmul.f32 %v26, 0.03125
  %v45 = vmul.f32 %v28, 0.03125
  %v46 = vmul.f32 %v30, 0.03125
  %v47 = vmul.f32 %v36, 0.03125
  %v48 = vmul.f32 %v38, 0.03125
  %v49 = vmul.f32 %v40, 0.03125
  %v50 = vmul.f32 %v42, 0.03125
  %v51 = vmul.f32 %v43, %v43
  %v52 = vmul.f32 %v44, %v44
  %v53 = vmul.f32 %v45, %v45
  %v54 = vmul.f32 %v46, %v46
  %v55 = vsub.f32 %v47, %v51
  %v56 = vsub.f32 %v48, %v52
  %v57 = vsub.f32 %v49, %v53
  %v58 = vsub.f32 %v50, %v54
  %v59 = vmax.f32 %v55, 0.0
  %v60 = vmax.f32 %v56, 0.0
  %v61 = vmax.f32 %v57, 0.0
  %v62 = vmax.f32 %v58, 0.0
  %v63 = vsub.f32 %v17, %v43
  %v64 = vsub.f32 %v18, %v44
  %v65 = vsub.f32 %v19, %v45
  %v66 = vsub.f32 %v20, %v46
  %v67 = vadd.f32 %v59, 1e-06
  %v68 = vadd.f32 %v60, 1e-06
  %v69 = vadd.f32 %v61, 1e-06
  %v70 = vadd.f32 %v62, 1e-06
  %v71 = vrsqrt.pop %v67
  %v72 = vmul.f32 %v71, %v67
  %v73 = vmul.f32 %v72, %v71
  %v74 = vmul.f32 0.5, %v73
  %v75 = vsub.f32 1.5, %v74
  %v76 = vmul.f32 %v71, %v75
  %vm77 = vweird.f32 %v67
  %vm78 = vweird.f32 %v71
  %vm79 = vmor %vm77, %vm78
  %v80 = vsel %vm79, %v71, %v76
  %v81 = vrsqrt.pop %v68
  %v82 = vmul.f32 %v81, %v68
  %v83 = vmul.f32 %v82, %v81
  %v84 = vmul.f32 0.5, %v83
  %v85 = vsub.f32 1.5, %v84
  %v86 = vmul.f32 %v81, %v85
  %vm87 = vweird.f32 %v68
  %vm88 = vweird.f32 %v81
  %vm89 = vmor %vm87, %vm88
  %v90 = vsel %vm89, %v81, %v86
  %v91 = vrsqrt.pop %v69
  %v92 = vmul.f32 %v91, %v69
  %v93 = vmul.f32 %v92, %v91
  %v94 = vmul.f32 0.5, %v93
  %v95 = vsub.f32 1.5, %v94
  %v96 = vmul.f32 %v91, %v95
  %vm97 = vweird.f32 %v69
  %vm98 = vweird.f32 %v91
  %vm99 = vmor %vm97, %vm98
  %v100 = vsel %vm99, %v91, %v96
  %v101 = vrsqrt.pop %v70
  %v102 = vmul.f32 %v101, %v70
  %v103 = vmul.f32 %v102, %v101
  %v104 = vmul.f32 0.5, %v103
  %v105 = vsub.f32 1.5, %v104
  %v106 = vmul.f32 %v101, %v105
  %vm107 = vweird.f32 %v70
  %vm108 = vweird.f32 %v101
  %vm109 = vmor %vm107, %vm108
  %v110 = vsel %vm109, %v101, %v106
  %v111 = vmul.f32 %v63, %v80
  %v112 = vmul.f32 %v64, %v90
  %v113 = vmul.f32 %v65, %v100
  %v114 = vmul.f32 %v66, %v110
  %v115 = vperm.slane %v21, 0
  %v116 = vmul.f32 %v111, %v115
  %v117 = vmul.f32 %v112, %v115
  %v118 = vmul.f32 %v113, %v115
  %v119 = vmul.f32 %v114, %v115
  %v120 = vperm.slane %v22, 0
  %v121 = vadd.f32 %v116, %v120
  %v122 = vadd.f32 %v117, %v120
  %v123 = vadd.f32 %v118, %v120
  %v124 = vadd.f32 %v119, %v120
  %v125 = vld [vmem:[%s2] sm:$0xff]
  %v126 = vld [vmem:[%s2 + $0x8] sm:$0xff]
  %v127 = vld [vmem:[%s2 + $0x10] sm:$0xff]
  %v128 = vld [vmem:[%s2 + $0x18] sm:$0xff]
  %v129 = vld [vmem:[%s2 + $0x20] sm:$0xff]
  %v130 = vld [vmem:[%s2 + $0x28] sm:$0xff]
  %v131 = vld [vmem:[%s2 + $0x30] sm:$0xff]
  %v132 = vld [vmem:[%s2 + $0x38] sm:$0xff]
  %v133 = vld [vmem:[%s2 + $0x40] sm:$0xff]
  %v134 = vld [vmem:[%s2 + $0x48] sm:$0xff]
  %v135 = vld [vmem:[%s2 + $0x50] sm:$0xff]
  %v136 = vld [vmem:[%s2 + $0x58] sm:$0xff]
  %v137 = vld [vmem:[%s2 + $0x60] sm:$0xff]
  %v138 = vld [vmem:[%s2 + $0x68] sm:$0xff]
  %v139 = vld [vmem:[%s2 + $0x70] sm:$0xff]
  %v140 = vld [vmem:[%s2 + $0x78] sm:$0xff]
  %v141 = vld [vmem:[%s3] sm:$0x1]
  %v143 = vperm.slane %v141, 0
  %145 = vmatpush.msra.mxu0 %v140
  %146 = vmatpush.msra.mxu0 %v139
  %147 = vmatpush.msra.mxu0 %v138
  %148 = vmatpush.msra.mxu0 %v137
  %149 = vmatpush.msra.mxu0 %v136
  %150 = vmatpush.msra.mxu0 %v135
  %151 = vmatpush.msra.mxu0 %v134
  %152 = vmatpush.msra.mxu0 %v133
  %153 = vmatpush.msra.mxu0 %v132
  %154 = vmatpush.msra.mxu0 %v131
  %155 = vmatpush.msra.mxu0 %v130
  %156 = vmatpush.msra.mxu0 %v129
  %157 = vmatpush.msra.mxu0 %v128
  %158 = vmatpush.msra.mxu0 %v127
  %159 = vmatpush.msra.mxu0 %v126
  %160 = vmatpush.msra.mxu0 %v125
  %161 = vmatmul.f32.gmra.mxu0 %v121
  %v162 = vpop.f32.mrf.mxu0
  %v163 = vadd.f32 %v143, %v162
  %164 = vmatmul.f32.gmra.mxu0 %v122
  %v165 = vpop.f32.mrf.mxu0
  %v166 = vadd.f32 %v143, %v165
  %167 = vmatmul.f32.gmra.mxu0 %v123
  %v168 = vpop.f32.mrf.mxu0
  %v169 = vadd.f32 %v143, %v168
  %170 = vmatmul.f32.gmra.mxu0 %v124
  %v171 = vpop.f32.mrf.mxu0
  %v172 = vadd.f32 %v143, %v171
  %173 = vdwg.mxu0
  %174 = vst [vmem:[%s4] sm:$0xff] %v163
  %175 = vst [vmem:[%s4 + $0x8] sm:$0xff] %v166
  %176 = vst [vmem:[%s4 + $0x10] sm:$0xff] %v169
  %177 = vst [vmem:[%s4 + $0x18] sm:$0xff] %v172
  // Predicated region
  $region18: #{cait_forward.25} parent=0 // pred_check
    _
  $region19: #{cait_forward.25} parent=0 // pred_check_branch
    %179 = sbr.rel (0) target = $region21
  $region20: #{cait_forward.25} parent=0 // pred_region
    _
  $region21: #{cait_forward.25} parent=0 // pred_fallthru
    _
  // Predicated region
  $region22: #{cait_forward.25} parent=0 // pred_check
    _
  $region23: #{cait_forward.25} parent=0 // pred_check_branch
    %181 = sbr.rel (0) target = $region25
  $region24: #{cait_forward.25} parent=0 // pred_region
    _
  $region25: #{cait_forward.25} parent=0 // pred_fallthru
    _

// kernel: cait_forward.24
$region0: #{cait_forward.24}
  #allocation0 [shape = 'u32[]', space=smem, size = 0x4, offset = 0x4, fixed_abs, tag = 'smem constant byte address 0x4 - core index']
  #allocation1 [shape = 'u32[72,128]{1,0:T(1,128)}', space=vmem, size = 0x9000, scoped, tag = 'internal scratch']
  %s0 = inlined_call_operand.vmem [shape: f32[32,128], index: 0, kind: input, shape index: {}]
  %s1 = inlined_call_operand.vmem [shape: f32[128,128], index: 1, kind: input, shape index: {}]
  %s2 = inlined_call_operand.vmem [shape: f32[3,128], index: 2, kind: input, shape index: {}]
  %s3 = inlined_call_operand.vmem [shape: f32[32,128], index: 3, kind: output, shape index: {}]
  %s4 = sld [smem:[#allocation0]]
  $region22: #{cait_forward.24} parent=0
    _
  %s6 = ssub.s32 1, %s4
  %s7 = scalar_select 0, %s6, %s4
  // Predicated region
  $region2: #{cait_forward.24} parent=0 // pred_check
    _
  $region3: #{cait_forward.24} parent=0 // pred_check_branch
    %9 = sbr.rel (0) target = $region5
  $region4: #{cait_forward.24} parent=0 // pred_region
    _
  $region5: #{cait_forward.24} parent=0 // pred_fallthru
    _
  // Predicated region
  $region6: #{cait_forward.24} parent=0 // pred_check
    _
  $region7: #{cait_forward.24} parent=0 // pred_check_branch
    %11 = sbr.rel (0) target = $region9
  $region8: #{cait_forward.24} parent=0 // pred_region
    _
  $region9: #{cait_forward.24} parent=0 // pred_fallthru
    _
  // Predicated region
  $region10: #{cait_forward.24} parent=0 // pred_check
    _
  $region11: #{cait_forward.24} parent=0 // pred_check_branch
    %13 = sbr.rel (0) target = $region13
  $region12: #{cait_forward.24} parent=0 // pred_region
    _
  $region13: #{cait_forward.24} parent=0 // pred_fallthru
    _
  %v14 = vld [vmem:[%s0] sm:$0xff]
  %v15 = vld [vmem:[%s0 + $0x8] sm:$0xff]
  %v16 = vld [vmem:[%s0 + $0x10] sm:$0xff]
  %v17 = vld [vmem:[%s0 + $0x18] sm:$0xff]
  %v18 = vld [vmem:[%s1] sm:$0xff]
  %v19 = vld [vmem:[%s1 + $0x8] sm:$0xff]
  %v20 = vld [vmem:[%s1 + $0x10] sm:$0xff]
  %v21 = vld [vmem:[%s1 + $0x18] sm:$0xff]
  %v22 = vld [vmem:[%s1 + $0x20] sm:$0xff]
  %v23 = vld [vmem:[%s1 + $0x28] sm:$0xff]
  %v24 = vld [vmem:[%s1 + $0x30] sm:$0xff]
  %v25 = vld [vmem:[%s1 + $0x38] sm:$0xff]
  %v26 = vld [vmem:[%s1 + $0x40] sm:$0xff]
  %v27 = vld [vmem:[%s1 + $0x48] sm:$0xff]
  %v28 = vld [vmem:[%s1 + $0x50] sm:$0xff]
  %v29 = vld [vmem:[%s1 + $0x58] sm:$0xff]
  %v30 = vld [vmem:[%s1 + $0x60] sm:$0xff]
  %v31 = vld [vmem:[%s1 + $0x68] sm:$0xff]
  %v32 = vld [vmem:[%s1 + $0x70] sm:$0xff]
  %v33 = vld [vmem:[%s1 + $0x78] sm:$0xff]
  %v34 = vld [vmem:[%s2] sm:$0x1]
  %v35 = vld [vmem:[%s2 + $0x1] sm:$0x1]
  %v36 = vld [vmem:[%s2 + $0x2] sm:$0x1]
  %v37 = vperm.slane %v34, 0
  %38 = vmatpush.msra.mxu0 %v33
  %39 = vmatpush.msra.mxu0 %v32
  %40 = vmatpush.msra.mxu0 %v31
  %41 = vmatpush.msra.mxu0 %v30
  %42 = vmatpush.msra.mxu0 %v29
  %43 = vmatpush.msra.mxu0 %v28
  %44 = vmatpush.msra.mxu0 %v27
  %45 = vmatpush.msra.mxu0 %v26
  %46 = vmatpush.msra.mxu0 %v25
  %47 = vmatpush.msra.mxu0 %v24
  %48 = vmatpush.msra.mxu0 %v23
  %49 = vmatpush.msra.mxu0 %v22
  %50 = vmatpush.msra.mxu0 %v21
  %51 = vmatpush.msra.mxu0 %v20
  %52 = vmatpush.msra.mxu0 %v19
  %53 = vmatpush.msra.mxu0 %v18
  %54 = vmatmul.f32.gmra.mxu0 %v14
  %v55 = vpop.f32.mrf.mxu0
  %v56 = vadd.f32 %v37, %v55
  %57 = vmatmul.f32.gmra.mxu0 %v15
  %v58 = vpop.f32.mrf.mxu0
  %v59 = vadd.f32 %v37, %v58
  %60 = vmatmul.f32.gmra.mxu0 %v16
  %v61 = vpop.f32.mrf.mxu0
  %v62 = vadd.f32 %v37, %v61
  %63 = vmatmul.f32.gmra.mxu0 %v17
  %v64 = vpop.f32.mrf.mxu0
  %v65 = vadd.f32 %v37, %v64
  %66 = vdwg.mxu0
  %67 = vadd.xlane.f32.xlu0 %v56
  %v68 = vpop.xlane.xlu0 %67
  %69 = vadd.xlane.f32.xlu0 %v59
  %v70 = vpop.xlane.xlu0 %69
  %71 = vadd.xlane.f32.xlu0 %v62
  %v72 = vpop.xlane.xlu0 %71
  %73 = vadd.xlane.f32.xlu0 %v65
  %v74 = vpop.xlane.xlu0 %73
  %v75 = vmul.f32 %v56, %v56
  %v76 = vmul.f32 %v59, %v59
  %v77 = vmul.f32 %v62, %v62
  %v78 = vmul.f32 %v65, %v65
  %79 = vadd.xlane.f32.xlu0 %v75
  %v80 = vpop.xlane.xlu0 %79
  %81 = vadd.xlane.f32.xlu0 %v76
  %v82 = vpop.xlane.xlu0 %81
  %83 = vadd.xlane.f32.xlu0 %v77
  %v84 = vpop.xlane.xlu0 %83
  %85 = vadd.xlane.f32.xlu0 %v78
  %v86 = vpop.xlane.xlu0 %85
  %v87 = vmul.f32 %v68, 0.03125
  %v88 = vmul.f32 %v70, 0.03125
  %v89 = vmul.f32 %v72, 0.03125
  %v90 = vmul.f32 %v74, 0.03125
  %v91 = vmul.f32 %v80, 0.03125
  %v92 = vmul.f32 %v82, 0.03125
  %v93 = vmul.f32 %v84, 0.03125
  %v94 = vmul.f32 %v86, 0.03125
  %v95 = vmul.f32 %v87, %v87
  %v96 = vmul.f32 %v88, %v88
  %v97 = vmul.f32 %v89, %v89
  %v98 = vmul.f32 %v90, %v90
  %v99 = vsub.f32 %v91, %v95
  %v100 = vsub.f32 %v92, %v96
  %v101 = vsub.f32 %v93, %v97
  %v102 = vsub.f32 %v94, %v98
  %v103 = vmax.f32 %v99, 0.0
  %v104 = vmax.f32 %v100, 0.0
  %v105 = vmax.f32 %v101, 0.0
  %v106 = vmax.f32 %v102, 0.0
  %v107 = vsub.f32 %v56, %v87
  %v108 = vsub.f32 %v59, %v88
  %v109 = vsub.f32 %v62, %v89
  %v110 = vsub.f32 %v65, %v90
  %v111 = vadd.f32 %v103, 1e-05
  %v112 = vadd.f32 %v104, 1e-05
  %v113 = vadd.f32 %v105, 1e-05
  %v114 = vadd.f32 %v106, 1e-05
  %v115 = vrsqrt.pop %v111
  %v116 = vmul.f32 %v115, %v111
  %v117 = vmul.f32 %v116, %v115
  %v118 = vmul.f32 0.5, %v117
  %v119 = vsub.f32 1.5, %v118
  %v120 = vmul.f32 %v115, %v119
  %vm121 = vweird.f32 %v111
  %vm122 = vweird.f32 %v115
  %vm123 = vmor %vm121, %vm122
  %v124 = vsel %vm123, %v115, %v120
  %v125 = vrsqrt.pop %v112
  %v126 = vmul.f32 %v125, %v112
  %v127 = vmul.f32 %v126, %v125
  %v128 = vmul.f32 0.5, %v127
  %v129 = vsub.f32 1.5, %v128
  %v130 = vmul.f32 %v125, %v129
  %vm131 = vweird.f32 %v112
  %vm132 = vweird.f32 %v125
  %vm133 = vmor %vm131, %vm132
  %v134 = vsel %vm133, %v125, %v130
  %v135 = vrsqrt.pop %v113
  %v136 = vmul.f32 %v135, %v113
  %v137 = vmul.f32 %v136, %v135
  %v138 = vmul.f32 0.5, %v137
  %v139 = vsub.f32 1.5, %v138
  %v140 = vmul.f32 %v135, %v139
  %vm141 = vweird.f32 %v113
  %vm142 = vweird.f32 %v135
  %vm143 = vmor %vm141, %vm142
  %v144 = vsel %vm143, %v135, %v140
  %v145 = vrsqrt.pop %v114
  %v146 = vmul.f32 %v145, %v114
  %v147 = vmul.f32 %v146, %v145
  %v148 = vmul.f32 0.5, %v147
  %v149 = vsub.f32 1.5, %v148
  %v150 = vmul.f32 %v145, %v149
  %vm151 = vweird.f32 %v114
  %vm152 = vweird.f32 %v145
  %vm153 = vmor %vm151, %vm152
  %v154 = vsel %vm153, %v145, %v150
  %v155 = vmul.f32 %v107, %v124
  %v156 = vmul.f32 %v108, %v134
  %v157 = vmul.f32 %v109, %v144
  %v158 = vmul.f32 %v110, %v154
  %v159 = vperm.slane %v35, 0
  %v160 = vmul.f32 %v155, %v159
  %v161 = vmul.f32 %v156, %v159
  %v162 = vmul.f32 %v157, %v159
  %v163 = vmul.f32 %v158, %v159
  %v164 = vperm.slane %v36, 0
  %v165 = vadd.f32 %v160, %v164
  %v166 = vadd.f32 %v161, %v164
  %v167 = vadd.f32 %v162, %v164
  %v168 = vadd.f32 %v163, %v164
  %169 = vst [vmem:[%s3] sm:$0xff] %v165
  %170 = vst [vmem:[%s3 + $0x8] sm:$0xff] %v166
  %171 = vst [vmem:[%s3 + $0x10] sm:$0xff] %v167
  %172 = vst [vmem:[%s3 + $0x18] sm:$0xff] %v168
  // Predicated region
  $region14: #{cait_forward.24} parent=0 // pred_check
    _
  $region15: #{cait_forward.24} parent=0 // pred_check_branch
    %174 = sbr.rel (0) target = $region17
  $region16: #{cait_forward.24} parent=0 // pred_region
    _
  $region17: #{cait_forward.24} parent=0 // pred_fallthru
    _
  // Predicated region
  $region18: #{cait_forward.24} parent=0 // pred_check
    _
  $region19: #{cait_forward.24} parent=0 // pred_check_branch
    %176 = sbr.rel (0) target = $region21
  $region20: #{cait_forward.24} parent=0 // pred_region
    _
  $region21: #{cait_forward.24} parent=0 // pred_fallthru
    _

// kernel: cait_forward.28
$region0: #{cait_forward.28}
  #allocation0 [shape = 'u32[]', space=smem, size = 0x4, offset = 0x4, fixed_abs, tag = 'smem constant byte address 0x4 - core index']
  #allocation1 [shape = 'u32[72,128]{1,0:T(1,128)}', space=vmem, size = 0x9000, scoped, tag = 'internal scratch']
  %s0 = inlined_call_operand.vmem [shape: f32[32,128], index: 0, kind: input, shape index: {}]
  %s1 = inlined_call_operand.vmem [shape: f32[2,128], index: 1, kind: input, shape index: {}]
  %s2 = inlined_call_operand.vmem [shape: f32[128,128], index: 2, kind: input, shape index: {}]
  %s3 = inlined_call_operand.vmem [shape: f32[1,128], index: 3, kind: input, shape index: {}]
  %s4 = inlined_call_operand.vmem [shape: f32[32,128], index: 4, kind: output, shape index: {}]
  %s5 = sld [smem:[#allocation0]]
  $region26: #{cait_forward.28} parent=0
    _
  %s7 = ssub.s32 1, %s5
  %s8 = scalar_select 0, %s7, %s5
  // Predicated region
  $region2: #{cait_forward.28} parent=0 // pred_check
    _
  $region3: #{cait_forward.28} parent=0 // pred_check_branch
    %10 = sbr.rel (0) target = $region5
  $region4: #{cait_forward.28} parent=0 // pred_region
    _
  $region5: #{cait_forward.28} parent=0 // pred_fallthru
    _
  // Predicated region
  $region6: #{cait_forward.28} parent=0 // pred_check
    _
  $region7: #{cait_forward.28} parent=0 // pred_check_branch
    %12 = sbr.rel (0) target = $region9
  $region8: #{cait_forward.28} parent=0 // pred_region
    _
  $region9: #{cait_forward.28} parent=0 // pred_fallthru
    _
  // Predicated region
  $region10: #{cait_forward.28} parent=0 // pred_check
    _
  $region11: #{cait_forward.28} parent=0 // pred_check_branch
    %14 = sbr.rel (0) target = $region13
  $region12: #{cait_forward.28} parent=0 // pred_region
    _
  $region13: #{cait_forward.28} parent=0 // pred_fallthru
    _
  // Predicated region
  $region14: #{cait_forward.28} parent=0 // pred_check
    _
  $region15: #{cait_forward.28} parent=0 // pred_check_branch
    %16 = sbr.rel (0) target = $region17
  $region16: #{cait_forward.28} parent=0 // pred_region
    _
  $region17: #{cait_forward.28} parent=0 // pred_fallthru
    _
  %v17 = vld [vmem:[%s0] sm:$0xff]
  %v18 = vld [vmem:[%s0 + $0x8] sm:$0xff]
  %v19 = vld [vmem:[%s0 + $0x10] sm:$0xff]
  %v20 = vld [vmem:[%s0 + $0x18] sm:$0xff]
  %v21 = vld [vmem:[%s1] sm:$0x1]
  %v22 = vld [vmem:[%s1 + $0x1] sm:$0x1]
  %23 = vadd.xlane.f32.xlu0 %v17
  %v24 = vpop.xlane.xlu0 %23
  %25 = vadd.xlane.f32.xlu0 %v18
  %v26 = vpop.xlane.xlu0 %25
  %27 = vadd.xlane.f32.xlu0 %v19
  %v28 = vpop.xlane.xlu0 %27
  %29 = vadd.xlane.f32.xlu0 %v20
  %v30 = vpop.xlane.xlu0 %29
  %v31 = vmul.f32 %v17, %v17
  %v32 = vmul.f32 %v18, %v18
  %v33 = vmul.f32 %v19, %v19
  %v34 = vmul.f32 %v20, %v20
  %35 = vadd.xlane.f32.xlu0 %v31
  %v36 = vpop.xlane.xlu0 %35
  %37 = vadd.xlane.f32.xlu0 %v32
  %v38 = vpop.xlane.xlu0 %37
  %39 = vadd.xlane.f32.xlu0 %v33
  %v40 = vpop.xlane.xlu0 %39
  %41 = vadd.xlane.f32.xlu0 %v34
  %v42 = vpop.xlane.xlu0 %41
  %v43 = vmul.f32 %v24, 0.03125
  %v44 = vmul.f32 %v26, 0.03125
  %v45 = vmul.f32 %v28, 0.03125
  %v46 = vmul.f32 %v30, 0.03125
  %v47 = vmul.f32 %v36, 0.03125
  %v48 = vmul.f32 %v38, 0.03125
  %v49 = vmul.f32 %v40, 0.03125
  %v50 = vmul.f32 %v42, 0.03125
  %v51 = vmul.f32 %v43, %v43
  %v52 = vmul.f32 %v44, %v44
  %v53 = vmul.f32 %v45, %v45
  %v54 = vmul.f32 %v46, %v46
  %v55 = vsub.f32 %v47, %v51
  %v56 = vsub.f32 %v48, %v52
  %v57 = vsub.f32 %v49, %v53
  %v58 = vsub.f32 %v50, %v54
  %v59 = vmax.f32 %v55, 0.0
  %v60 = vmax.f32 %v56, 0.0
  %v61 = vmax.f32 %v57, 0.0
  %v62 = vmax.f32 %v58, 0.0
  %v63 = vsub.f32 %v17, %v43
  %v64 = vsub.f32 %v18, %v44
  %v65 = vsub.f32 %v19, %v45
  %v66 = vsub.f32 %v20, %v46
  %v67 = vadd.f32 %v59, 1e-06
  %v68 = vadd.f32 %v60, 1e-06
  %v69 = vadd.f32 %v61, 1e-06
  %v70 = vadd.f32 %v62, 1e-06
  %v71 = vrsqrt.pop %v67
  %v72 = vmul.f32 %v71, %v67
  %v73 = vmul.f32 %v72, %v71
  %v74 = vmul.f32 0.5, %v73
  %v75 = vsub.f32 1.5, %v74
  %v76 = vmul.f32 %v71, %v75
  %vm77 = vweird.f32 %v67
  %vm78 = vweird.f32 %v71
  %vm79 = vmor %vm77, %vm78
  %v80 = vsel %vm79, %v71, %v76
  %v81 = vrsqrt.pop %v68
  %v82 = vmul.f32 %v81, %v68
  %v83 = vmul.f32 %v82, %v81
  %v84 = vmul.f32 0.5, %v83
  %v85 = vsub.f32 1.5, %v84
  %v86 = vmul.f32 %v81, %v85
  %vm87 = vweird.f32 %v68
  %vm88 = vweird.f32 %v81
  %vm89 = vmor %vm87, %vm88
  %v90 = vsel %vm89, %v81, %v86
  %v91 = vrsqrt.pop %v69
  %v92 = vmul.f32 %v91, %v69
  %v93 = vmul.f32 %v92, %v91
  %v94 = vmul.f32 0.5, %v93
  %v95 = vsub.f32 1.5, %v94
  %v96 = vmul.f32 %v91, %v95
  %vm97 = vweird.f32 %v69
  %vm98 = vweird.f32 %v91
  %vm99 = vmor %vm97, %vm98
  %v100 = vsel %vm99, %v91, %v96
  %v101 = vrsqrt.pop %v70
  %v102 = vmul.f32 %v101, %v70
  %v103 = vmul.f32 %v102, %v101
  %v104 = vmul.f32 0.5, %v103
  %v105 = vsub.f32 1.5, %v104
  %v106 = vmul.f32 %v101, %v105
  %vm107 = vweird.f32 %v70
  %vm108 = vweird.f32 %v101
  %vm109 = vmor %vm107, %vm108
  %v110 = vsel %vm109, %v101, %v106
  %v111 = vmul.f32 %v63, %v80
  %v112 = vmul.f32 %v64, %v90
  %v113 = vmul.f32 %v65, %v100
  %v114 = vmul.f32 %v66, %v110
  %v115 = vperm.slane %v21, 0
  %v116 = vmul.f32 %v111, %v115
  %v117 = vmul.f32 %v112, %v115
  %v118 = vmul.f32 %v113, %v115
  %v119 = vmul.f32 %v114, %v115
  %v120 = vperm.slane %v22, 0
  %v121 = vadd.f32 %v116, %v120
  %v122 = vadd.f32 %v117, %v120
  %v123 = vadd.f32 %v118, %v120
  %v124 = vadd.f32 %v119, %v120
  %v125 = vld [vmem:[%s2] sm:$0xff]
  %v126 = vld [vmem:[%s2 + $0x8] sm:$0xff]
  %v127 = vld [vmem:[%s2 + $0x10] sm:$0xff]
  %v128 = vld [vmem:[%s2 + $0x18] sm:$0xff]
  %v129 = vld [vmem:[%s2 + $0x20] sm:$0xff]
  %v130 = vld [vmem:[%s2 + $0x28] sm:$0xff]
  %v131 = vld [vmem:[%s2 + $0x30] sm:$0xff]
  %v132 = vld [vmem:[%s2 + $0x38] sm:$0xff]
  %v133 = vld [vmem:[%s2 + $0x40] sm:$0xff]
  %v134 = vld [vmem:[%s2 + $0x48] sm:$0xff]
  %v135 = vld [vmem:[%s2 + $0x50] sm:$0xff]
  %v136 = vld [vmem:[%s2 + $0x58] sm:$0xff]
  %v137 = vld [vmem:[%s2 + $0x60] sm:$0xff]
  %v138 = vld [vmem:[%s2 + $0x68] sm:$0xff]
  %v139 = vld [vmem:[%s2 + $0x70] sm:$0xff]
  %v140 = vld [vmem:[%s2 + $0x78] sm:$0xff]
  %v141 = vld [vmem:[%s3] sm:$0x1]
  %v143 = vperm.slane %v141, 0
  %145 = vmatpush.msra.mxu0 %v140
  %146 = vmatpush.msra.mxu0 %v139
  %147 = vmatpush.msra.mxu0 %v138
  %148 = vmatpush.msra.mxu0 %v137
  %149 = vmatpush.msra.mxu0 %v136
  %150 = vmatpush.msra.mxu0 %v135
  %151 = vmatpush.msra.mxu0 %v134
  %152 = vmatpush.msra.mxu0 %v133
  %153 = vmatpush.msra.mxu0 %v132
  %154 = vmatpush.msra.mxu0 %v131
  %155 = vmatpush.msra.mxu0 %v130
  %156 = vmatpush.msra.mxu0 %v129
  %157 = vmatpush.msra.mxu0 %v128
  %158 = vmatpush.msra.mxu0 %v127
  %159 = vmatpush.msra.mxu0 %v126
  %160 = vmatpush.msra.mxu0 %v125
  %161 = vmatmul.f32.gmra.mxu0 %v121
  %v162 = vpop.f32.mrf.mxu0
  %v163 = vadd.f32 %v143, %v162
  %164 = vmatmul.f32.gmra.mxu0 %v122
  %v165 = vpop.f32.mrf.mxu0
  %v166 = vadd.f32 %v143, %v165
  %167 = vmatmul.f32.gmra.mxu0 %v123
  %v168 = vpop.f32.mrf.mxu0
  %v169 = vadd.f32 %v143, %v168
  %170 = vmatmul.f32.gmra.mxu0 %v124
  %v171 = vpop.f32.mrf.mxu0
  %v172 = vadd.f32 %v143, %v171
  %173 = vdwg.mxu0
  %v174 = vmul.f32 %v163, %v163
  %v175 = vmul.f32 %v166, %v166
  %v176 = vmul.f32 %v169, %v169
  %v177 = vmul.f32 %v172, %v172
  %v178 = vmul.f32 %v163, %v174
  %v179 = vmul.f32 %v166, %v175
  %v180 = vmul.f32 %v169, %v176
  %v181 = vmul.f32 %v172, %v177
  %v182 = vmul.f32 %v178, 0.044715
  %v183 = vmul.f32 %v179, 0.044715
  %v184 = vmul.f32 %v180, 0.044715
  %v185 = vmul.f32 %v181, 0.044715
  %v186 = vadd.f32 %v163, %v182
  %v187 = vadd.f32 %v166, %v183
  %v188 = vadd.f32 %v169, %v184
  %v189 = vadd.f32 %v172, %v185
  %v190 = vmul.f32 %v186, 0.7978846
  %v191 = vmul.f32 %v187, 0.7978846
  %v192 = vmul.f32 %v188, 0.7978846
  %v193 = vmul.f32 %v189, 0.7978846
  %v194 = vtanh.pop %v190
  %v195 = vtanh.pop %v191
  %v196 = vtanh.pop %v192
  %v197 = vtanh.pop %v193
  %v198 = vadd.f32 %v194, 1.0
  %v199 = vadd.f32 %v195, 1.0
  %v200 = vadd.f32 %v196, 1.0
  %v201 = vadd.f32 %v197, 1.0
  %v202 = vmul.f32 %v198, 0.5
  %v203 = vmul.f32 %v199, 0.5
  %v204 = vmul.f32 %v200, 0.5
  %v205 = vmul.f32 %v201, 0.5
  %v206 = vmul.f32 %v163, %v202
  %v207 = vmul.f32 %v166, %v203
  %v208 = vmul.f32 %v169, %v204
  %v209 = vmul.f32 %v172, %v205
  %210 = vst [vmem:[%s4] sm:$0xff] %v206
  %211 = vst [vmem:[%s4 + $0x8] sm:$0xff] %v207
  %212 = vst [vmem:[%s4 + $0x10] sm:$0xff] %v208
  %213 = vst [vmem:[%s4 + $0x18] sm:$0xff] %v209
  // Predicated region
  $region18: #{cait_forward.28} parent=0 // pred_check
    _
  $region19: #{cait_forward.28} parent=0 // pred_check_branch
    %215 = sbr.rel (0) target = $region21
  $region20: #{cait_forward.28} parent=0 // pred_region
    _
  $region21: #{cait_forward.28} parent=0 // pred_fallthru
    _
  // Predicated region
  $region22: #{cait_forward.28} parent=0 // pred_check
    _
  $region23: #{cait_forward.28} parent=0 // pred_check_branch
    %217 = sbr.rel (0) target = $region25
  $region24: #{cait_forward.28} parent=0 // pred_region
    _
  $region25: #{cait_forward.28} parent=0 // pred_fallthru
    _

// kernel: cait_forward.27
$region0: #{cait_forward.27}
  #allocation0 [shape = 'u32[]', space=smem, size = 0x4, offset = 0x4, fixed_abs, tag = 'smem constant byte address 0x4 - core index']
  #allocation1 [shape = 'u32[72,128]{1,0:T(1,128)}', space=vmem, size = 0x9000, scoped, tag = 'internal scratch']
  %s0 = inlined_call_operand.vmem [shape: f32[32,128], index: 0, kind: input, shape index: {}]
  %s1 = inlined_call_operand.vmem [shape: f32[128,128], index: 1, kind: input, shape index: {}]
  %s2 = inlined_call_operand.vmem [shape: f32[2,128], index: 2, kind: input, shape index: {}]
  %s3 = inlined_call_operand.vmem [shape: f32[32,128], index: 3, kind: input, shape index: {}]
  %s4 = inlined_call_operand.vmem [shape: f32[32,128], index: 4, kind: output, shape index: {}]
  %s5 = sld [smem:[#allocation0]]
  $region26: #{cait_forward.27} parent=0
    _
  %s7 = ssub.s32 1, %s5
  %s8 = scalar_select 0, %s7, %s5
  // Predicated region
  $region2: #{cait_forward.27} parent=0 // pred_check
    _
  $region3: #{cait_forward.27} parent=0 // pred_check_branch
    %10 = sbr.rel (0) target = $region5
  $region4: #{cait_forward.27} parent=0 // pred_region
    _
  $region5: #{cait_forward.27} parent=0 // pred_fallthru
    _
  // Predicated region
  $region6: #{cait_forward.27} parent=0 // pred_check
    _
  $region7: #{cait_forward.27} parent=0 // pred_check_branch
    %12 = sbr.rel (0) target = $region9
  $region8: #{cait_forward.27} parent=0 // pred_region
    _
  $region9: #{cait_forward.27} parent=0 // pred_fallthru
    _
  // Predicated region
  $region10: #{cait_forward.27} parent=0 // pred_check
    _
  $region11: #{cait_forward.27} parent=0 // pred_check_branch
    %14 = sbr.rel (0) target = $region13
  $region12: #{cait_forward.27} parent=0 // pred_region
    _
  $region13: #{cait_forward.27} parent=0 // pred_fallthru
    _
  // Predicated region
  $region14: #{cait_forward.27} parent=0 // pred_check
    _
  $region15: #{cait_forward.27} parent=0 // pred_check_branch
    %16 = sbr.rel (0) target = $region17
  $region16: #{cait_forward.27} parent=0 // pred_region
    _
  $region17: #{cait_forward.27} parent=0 // pred_fallthru
    _
  %v17 = vld [vmem:[%s0] sm:$0xff]
  %v18 = vld [vmem:[%s0 + $0x8] sm:$0xff]
  %v19 = vld [vmem:[%s0 + $0x10] sm:$0xff]
  %v20 = vld [vmem:[%s0 + $0x18] sm:$0xff]
  %v21 = vld [vmem:[%s1] sm:$0xff]
  %v22 = vld [vmem:[%s1 + $0x8] sm:$0xff]
  %v23 = vld [vmem:[%s1 + $0x10] sm:$0xff]
  %v24 = vld [vmem:[%s1 + $0x18] sm:$0xff]
  %v25 = vld [vmem:[%s1 + $0x20] sm:$0xff]
  %v26 = vld [vmem:[%s1 + $0x28] sm:$0xff]
  %v27 = vld [vmem:[%s1 + $0x30] sm:$0xff]
  %v28 = vld [vmem:[%s1 + $0x38] sm:$0xff]
  %v29 = vld [vmem:[%s1 + $0x40] sm:$0xff]
  %v30 = vld [vmem:[%s1 + $0x48] sm:$0xff]
  %v31 = vld [vmem:[%s1 + $0x50] sm:$0xff]
  %v32 = vld [vmem:[%s1 + $0x58] sm:$0xff]
  %v33 = vld [vmem:[%s1 + $0x60] sm:$0xff]
  %v34 = vld [vmem:[%s1 + $0x68] sm:$0xff]
  %v35 = vld [vmem:[%s1 + $0x70] sm:$0xff]
  %v36 = vld [vmem:[%s1 + $0x78] sm:$0xff]
  %v37 = vld [vmem:[%s2] sm:$0x1]
  %v38 = vld [vmem:[%s2 + $0x1] sm:$0x1]
  %v39 = vld [vmem:[%s3] sm:$0xff]
  %v40 = vld [vmem:[%s3 + $0x8] sm:$0xff]
  %v41 = vld [vmem:[%s3 + $0x10] sm:$0xff]
  %v42 = vld [vmem:[%s3 + $0x18] sm:$0xff]
  %v43 = vperm.slane %v37, 0
  %44 = vmatpush.msra.mxu0 %v36
  %45 = vmatpush.msra.mxu0 %v35
  %46 = vmatpush.msra.mxu0 %v34
  %47 = vmatpush.msra.mxu0 %v33
  %48 = vmatpush.msra.mxu0 %v32
  %49 = vmatpush.msra.mxu0 %v31
  %50 = vmatpush.msra.mxu0 %v30
  %51 = vmatpush.msra.mxu0 %v29
  %52 = vmatpush.msra.mxu0 %v28
  %53 = vmatpush.msra.mxu0 %v27
  %54 = vmatpush.msra.mxu0 %v26
  %55 = vmatpush.msra.mxu0 %v25
  %56 = vmatpush.msra.mxu0 %v24
  %57 = vmatpush.msra.mxu0 %v23
  %58 = vmatpush.msra.mxu0 %v22
  %59 = vmatpush.msra.mxu0 %v21
  %60 = vmatmul.f32.gmra.mxu0 %v17
  %v61 = vpop.f32.mrf.mxu0
  %v62 = vadd.f32 %v43, %v61
  %63 = vmatmul.f32.gmra.mxu0 %v18
  %v64 = vpop.f32.mrf.mxu0
  %v65 = vadd.f32 %v43, %v64
  %66 = vmatmul.f32.gmra.mxu0 %v19
  %v67 = vpop.f32.mrf.mxu0
  %v68 = vadd.f32 %v43, %v67
  %69 = vmatmul.f32.gmra.mxu0 %v20
  %v70 = vpop.f32.mrf.mxu0
  %v71 = vadd.f32 %v43, %v70
  %72 = vdwg.mxu0
  %v73 = vperm.slane %v38, 0
  %v74 = vmul.f32 %v73, %v62
  %v75 = vmul.f32 %v73, %v65
  %v76 = vmul.f32 %v73, %v68
  %v77 = vmul.f32 %v73, %v71
  %v78 = vadd.f32 %v39, %v74
  %v79 = vadd.f32 %v40, %v75
  %v80 = vadd.f32 %v41, %v76
  %v81 = vadd.f32 %v42, %v77
  %82 = vst [vmem:[%s4] sm:$0xff] %v78
  %83 = vst [vmem:[%s4 + $0x8] sm:$0xff] %v79
  %84 = vst [vmem:[%s4 + $0x10] sm:$0xff] %v80
  %85 = vst [vmem:[%s4 + $0x18] sm:$0xff] %v81
  // Predicated region
  $region18: #{cait_forward.27} parent=0 // pred_check
    _
  $region19: #{cait_forward.27} parent=0 // pred_check_branch
    %87 = sbr.rel (0) target = $region21
  $region20: #{cait_forward.27} parent=0 // pred_region
    _
  $region21: #{cait_forward.27} parent=0 // pred_fallthru
    _
  // Predicated region
  $region22: #{cait_forward.27} parent=0 // pred_check
    _
  $region23: #{cait_forward.27} parent=0 // pred_check_branch
    %89 = sbr.rel (0) target = $region25
  $region24: #{cait_forward.27} parent=0 // pred_region
    _
  $region25: #{cait_forward.27} parent=0 // pred_fallthru
    _

// kernel: cait_forward.35
$region0: #{cait_forward.35}
  #allocation0 [shape = 'u32[]', space=smem, size = 0x4, offset = 0x4, fixed_abs, tag = 'smem constant byte address 0x4 - core index']
  #allocation1 [shape = 'u32[72,128]{1,0:T(1,128)}', space=vmem, size = 0x9000, scoped, tag = 'internal scratch']
  %s0 = inlined_call_operand.vmem [shape: f32[40,128], index: 0, kind: input, shape index: {}]
  %s1 = inlined_call_operand.vmem [shape: f32[2,128], index: 1, kind: input, shape index: {}]
  %s2 = inlined_call_operand.vmem [shape: f32[128,128], index: 2, kind: input, shape index: {}]
  %s3 = inlined_call_operand.vmem [shape: f32[1,128], index: 3, kind: input, shape index: {}]
  %s4 = inlined_call_operand.vmem [shape: f32[40,128], index: 4, kind: output, shape index: {}]
  %s5 = sld [smem:[#allocation0]]
  $region26: #{cait_forward.35} parent=0
    _
  %s7 = ssub.s32 1, %s5
  %s8 = scalar_select 0, %s7, %s5
  // Predicated region
  $region2: #{cait_forward.35} parent=0 // pred_check
    _
  $region3: #{cait_forward.35} parent=0 // pred_check_branch
    %10 = sbr.rel (0) target = $region5
  $region4: #{cait_forward.35} parent=0 // pred_region
    _
  $region5: #{cait_forward.35} parent=0 // pred_fallthru
    _
  // Predicated region
  $region6: #{cait_forward.35} parent=0 // pred_check
    _
  $region7: #{cait_forward.35} parent=0 // pred_check_branch
    %12 = sbr.rel (0) target = $region9
  $region8: #{cait_forward.35} parent=0 // pred_region
    _
  $region9: #{cait_forward.35} parent=0 // pred_fallthru
    _
  // Predicated region
  $region10: #{cait_forward.35} parent=0 // pred_check
    _
  $region11: #{cait_forward.35} parent=0 // pred_check_branch
    %14 = sbr.rel (0) target = $region13
  $region12: #{cait_forward.35} parent=0 // pred_region
    _
  $region13: #{cait_forward.35} parent=0 // pred_fallthru
    _
  // Predicated region
  $region14: #{cait_forward.35} parent=0 // pred_check
    _
  $region15: #{cait_forward.35} parent=0 // pred_check_branch
    %16 = sbr.rel (0) target = $region17
  $region16: #{cait_forward.35} parent=0 // pred_region
    _
  $region17: #{cait_forward.35} parent=0 // pred_fallthru
    _
  %v17 = vld [vmem:[%s0] sm:$0xff]
  %v18 = vld [vmem:[%s0 + $0x8] sm:$0xff]
  %v19 = vld [vmem:[%s0 + $0x10] sm:$0xff]
  %v20 = vld [vmem:[%s0 + $0x18] sm:$0xff]
  %v21 = vld [vmem:[%s0 + $0x20] sm:$0xff]
  %v22 = vld [vmem:[%s1] sm:$0x1]
  %v23 = vld [vmem:[%s1 + $0x1] sm:$0x1]
  %24 = vadd.xlane.f32.xlu0 %v17
  %v25 = vpop.xlane.xlu0 %24
  %26 = vadd.xlane.f32.xlu0 %v18
  %v27 = vpop.xlane.xlu0 %26
  %28 = vadd.xlane.f32.xlu0 %v19
  %v29 = vpop.xlane.xlu0 %28
  %30 = vadd.xlane.f32.xlu0 %v20
  %v31 = vpop.xlane.xlu0 %30
  %32 = vadd.xlane.f32.xlu0 %v21
  %v33 = vpop.xlane.xlu0 %32
  %v34 = vmul.f32 %v17, %v17
  %v35 = vmul.f32 %v18, %v18
  %v36 = vmul.f32 %v19, %v19
  %v37 = vmul.f32 %v20, %v20
  %v38 = vmul.f32 %v21, %v21
  %39 = vadd.xlane.f32.xlu0 %v34
  %v40 = vpop.xlane.xlu0 %39
  %41 = vadd.xlane.f32.xlu0 %v35
  %v42 = vpop.xlane.xlu0 %41
  %43 = vadd.xlane.f32.xlu0 %v36
  %v44 = vpop.xlane.xlu0 %43
  %45 = vadd.xlane.f32.xlu0 %v37
  %v46 = vpop.xlane.xlu0 %45
  %47 = vadd.xlane.f32.xlu0 %v38
  %v48 = vpop.xlane.xlu0 %47
  %v49 = vmul.f32 %v25, 0.03125
  %v50 = vmul.f32 %v27, 0.03125
  %v51 = vmul.f32 %v29, 0.03125
  %v52 = vmul.f32 %v31, 0.03125
  %v53 = vmul.f32 %v33, 0.03125
  %v54 = vmul.f32 %v40, 0.03125
  %v55 = vmul.f32 %v42, 0.03125
  %v56 = vmul.f32 %v44, 0.03125
  %v57 = vmul.f32 %v46, 0.03125
  %v58 = vmul.f32 %v48, 0.03125
  %v59 = vmul.f32 %v49, %v49
  %v60 = vmul.f32 %v50, %v50
  %v61 = vmul.f32 %v51, %v51
  %v62 = vmul.f32 %v52, %v52
  %v63 = vmul.f32 %v53, %v53
  %v64 = vsub.f32 %v54, %v59
  %v65 = vsub.f32 %v55, %v60
  %v66 = vsub.f32 %v56, %v61
  %v67 = vsub.f32 %v57, %v62
  %v68 = vsub.f32 %v58, %v63
  %v69 = vmax.f32 %v64, 0.0
  %v70 = vmax.f32 %v65, 0.0
  %v71 = vmax.f32 %v66, 0.0
  %v72 = vmax.f32 %v67, 0.0
  %v73 = vmax.f32 %v68, 0.0
  %v74 = vsub.f32 %v17, %v49
  %v75 = vsub.f32 %v18, %v50
  %v76 = vsub.f32 %v19, %v51
  %v77 = vsub.f32 %v20, %v52
  %v78 = vsub.f32 %v21, %v53
  %v79 = vadd.f32 %v69, 1e-06
  %v80 = vadd.f32 %v70, 1e-06
  %v81 = vadd.f32 %v71, 1e-06
  %v82 = vadd.f32 %v72, 1e-06
  %v83 = vadd.f32 %v73, 1e-06
  %v84 = vrsqrt.pop %v79
  %v85 = vmul.f32 %v84, %v79
  %v86 = vmul.f32 %v85, %v84
  %v87 = vmul.f32 0.5, %v86
  %v88 = vsub.f32 1.5, %v87
  %v89 = vmul.f32 %v84, %v88
  %vm90 = vweird.f32 %v79
  %vm91 = vweird.f32 %v84
  %vm92 = vmor %vm90, %vm91
  %v93 = vsel %vm92, %v84, %v89
  %v94 = vrsqrt.pop %v80
  %v95 = vmul.f32 %v94, %v80
  %v96 = vmul.f32 %v95, %v94
  %v97 = vmul.f32 0.5, %v96
  %v98 = vsub.f32 1.5, %v97
  %v99 = vmul.f32 %v94, %v98
  %vm100 = vweird.f32 %v80
  %vm101 = vweird.f32 %v94
  %vm102 = vmor %vm100, %vm101
  %v103 = vsel %vm102, %v94, %v99
  %v104 = vrsqrt.pop %v81
  %v105 = vmul.f32 %v104, %v81
  %v106 = vmul.f32 %v105, %v104
  %v107 = vmul.f32 0.5, %v106
  %v108 = vsub.f32 1.5, %v107
  %v109 = vmul.f32 %v104, %v108
  %vm110 = vweird.f32 %v81
  %vm111 = vweird.f32 %v104
  %vm112 = vmor %vm110, %vm111
  %v113 = vsel %vm112, %v104, %v109
  %v114 = vrsqrt.pop %v82
  %v115 = vmul.f32 %v114, %v82
  %v116 = vmul.f32 %v115, %v114
  %v117 = vmul.f32 0.5, %v116
  %v118 = vsub.f32 1.5, %v117
  %v119 = vmul.f32 %v114, %v118
  %vm120 = vweird.f32 %v82
  %vm121 = vweird.f32 %v114
  %vm122 = vmor %vm120, %vm121
  %v123 = vsel %vm122, %v114, %v119
  %v124 = vrsqrt.pop %v83
  %v125 = vmul.f32 %v124, %v83
  %v126 = vmul.f32 %v125, %v124
  %v127 = vmul.f32 0.5, %v126
  %v128 = vsub.f32 1.5, %v127
  %v129 = vmul.f32 %v124, %v128
  %vm130 = vweird.f32 %v83
  %vm131 = vweird.f32 %v124
  %vm132 = vmor %vm130, %vm131
  %v133 = vsel %vm132, %v124, %v129
  %v134 = vmul.f32 %v74, %v93
  %v135 = vmul.f32 %v75, %v103
  %v136 = vmul.f32 %v76, %v113
  %v137 = vmul.f32 %v77, %v123
  %v138 = vmul.f32 %v78, %v133
  %v139 = vperm.slane %v22, 0
  %v140 = vmul.f32 %v134, %v139
  %v141 = vmul.f32 %v135, %v139
  %v142 = vmul.f32 %v136, %v139
  %v143 = vmul.f32 %v137, %v139
  %v144 = vmul.f32 %v138, %v139
  %v145 = vperm.slane %v23, 0
  %v146 = vadd.f32 %v140, %v145
  %v147 = vadd.f32 %v141, %v145
  %v148 = vadd.f32 %v142, %v145
  %v149 = vadd.f32 %v143, %v145
  %v150 = vadd.f32 %v144, %v145
  %v151 = vld [vmem:[%s2] sm:$0xff]
  %v152 = vld [vmem:[%s2 + $0x8] sm:$0xff]
  %v153 = vld [vmem:[%s2 + $0x10] sm:$0xff]
  %v154 = vld [vmem:[%s2 + $0x18] sm:$0xff]
  %v155 = vld [vmem:[%s2 + $0x20] sm:$0xff]
  %v156 = vld [vmem:[%s2 + $0x28] sm:$0xff]
  %v157 = vld [vmem:[%s2 + $0x30] sm:$0xff]
  %v158 = vld [vmem:[%s2 + $0x38] sm:$0xff]
  %v159 = vld [vmem:[%s2 + $0x40] sm:$0xff]
  %v160 = vld [vmem:[%s2 + $0x48] sm:$0xff]
  %v161 = vld [vmem:[%s2 + $0x50] sm:$0xff]
  %v162 = vld [vmem:[%s2 + $0x58] sm:$0xff]
  %v163 = vld [vmem:[%s2 + $0x60] sm:$0xff]
  %v164 = vld [vmem:[%s2 + $0x68] sm:$0xff]
  %v165 = vld [vmem:[%s2 + $0x70] sm:$0xff]
  %v166 = vld [vmem:[%s2 + $0x78] sm:$0xff]
  %v167 = vld [vmem:[%s3] sm:$0x1]
  %v169 = vperm.slane %v167, 0
  %171 = vmatpush.msra.mxu0 %v166
  %172 = vmatpush.msra.mxu0 %v165
  %173 = vmatpush.msra.mxu0 %v164
  %174 = vmatpush.msra.mxu0 %v163
  %175 = vmatpush.msra.mxu0 %v162
  %176 = vmatpush.msra.mxu0 %v161
  %177 = vmatpush.msra.mxu0 %v160
  %178 = vmatpush.msra.mxu0 %v159
  %179 = vmatpush.msra.mxu0 %v158
  %180 = vmatpush.msra.mxu0 %v157
  %181 = vmatpush.msra.mxu0 %v156
  %182 = vmatpush.msra.mxu0 %v155
  %183 = vmatpush.msra.mxu0 %v154
  %184 = vmatpush.msra.mxu0 %v153
  %185 = vmatpush.msra.mxu0 %v152
  %186 = vmatpush.msra.mxu0 %v151
  %187 = vmatmul.f32.gmra.mxu0 %v146
  %v188 = vpop.f32.mrf.mxu0
  %v189 = vadd.f32 %v169, %v188
  %190 = vmatmul.f32.gmra.mxu0 %v147
  %v191 = vpop.f32.mrf.mxu0
  %v192 = vadd.f32 %v169, %v191
  %193 = vmatmul.f32.gmra.mxu0 %v148
  %v194 = vpop.f32.mrf.mxu0
  %v195 = vadd.f32 %v169, %v194
  %196 = vmatmul.f32.gmra.mxu0 %v149
  %v197 = vpop.f32.mrf.mxu0
  %v198 = vadd.f32 %v169, %v197
  %199 = vmatmul.f32.gmra.mxu0 %v150
  %v200 = vpop.f32.mrf.mxu0
  %v201 = vadd.f32 %v169, %v200
  %202 = vdwg.mxu0
  %203 = vst [vmem:[%s4] sm:$0xff] %v189
  %204 = vst [vmem:[%s4 + $0x8] sm:$0xff] %v192
  %205 = vst [vmem:[%s4 + $0x10] sm:$0xff] %v195
  %206 = vst [vmem:[%s4 + $0x18] sm:$0xff] %v198
  %207 = vst [vmem:[%s4 + $0x20] sm:$0xff] %v201
  // Predicated region
  $region18: #{cait_forward.35} parent=0 // pred_check
    _
  $region19: #{cait_forward.35} parent=0 // pred_check_branch
    %209 = sbr.rel (0) target = $region21
  $region20: #{cait_forward.35} parent=0 // pred_region
    _
  $region21: #{cait_forward.35} parent=0 // pred_fallthru
    _
  // Predicated region
  $region22: #{cait_forward.35} parent=0 // pred_check
    _
  $region23: #{cait_forward.35} parent=0 // pred_check_branch
    %211 = sbr.rel (0) target = $region25
  $region24: #{cait_forward.35} parent=0 // pred_region
    _
  $region25: #{cait_forward.35} parent=0 // pred_fallthru
    _

// kernel: cait_forward.26
$region0: #{cait_forward.26}
  #allocation0 [shape = 'u32[]', space=smem, size = 0x4, offset = 0x4, fixed_abs, tag = 'smem constant byte address 0x4 - core index']
  #allocation1 [shape = 'u32[72,128]{1,0:T(1,128)}', space=vmem, size = 0x9000, scoped, tag = 'internal scratch']
  %s0 = inlined_call_operand.vmem [shape: f32[2,8,16,4], index: 0, kind: input, shape index: {}]
  %s1 = inlined_call_operand.vmem [shape: f32[2,8,4,16], index: 1, kind: input, shape index: {}]
  %s2 = inlined_call_operand.vmem [shape: f32[2,8,16,4], index: 2, kind: input, shape index: {}]
  %s3 = inlined_call_operand.vmem [shape: f32[8,8], index: 3, kind: input, shape index: {}]
  %s4 = inlined_call_operand.vmem [shape: f32[1,8], index: 4, kind: input, shape index: {}]
  %s5 = inlined_call_operand.vmem [shape: f32[8,8], index: 5, kind: input, shape index: {}]
  %s6 = inlined_call_operand.vmem [shape: f32[1,8], index: 6, kind: input, shape index: {}]
  %s7 = inlined_call_operand.vmem [shape: f32[2,16,32], index: 7, kind: output, shape index: {}]
  %s8 = sld [smem:[#allocation0]]
  $region77: #{cait_forward.26} parent=0
    _
  %s10 = ssub.s32 1, %s8
  %s11 = scalar_select 0, %s10, %s8
  $region1: #{cait_forward.26} parent=0
    #allocation2 [shape = 'u8[4096]{0}', space=smem, size = 0x1000, scoped, tag = 'input window, operand 3, single buffered']
    #allocation3 [shape = 's32[2]{0}', space=sflag, size = 0x8, scoped, tag = 'scoped memory for cait_forward.26']
    #allocation4 [shape = 'u8[512]{0}', space=smem, size = 0x200, scoped, tag = 'input window, operand 4, single buffered']
    #allocation5 [shape = 's32[1]{0}', space=sflag, size = 0x4, scoped, tag = 'scoped memory for cait_forward.26']
    #allocation6 [shape = 'u8[4096]{0}', space=smem, size = 0x1000, scoped, tag = 'input window, operand 5, single buffered']
    #allocation7 [shape = 'u8[512]{0}', space=smem, size = 0x200, scoped, tag = 'input window, operand 6, single buffered']
    #allocation8 [shape = 's32[1]{0}', space=sflag, size = 0x4, scoped, tag = 'scoped memory for cait_forward.26']
    %12 = vsyncpa [#allocation3], 0
    %13 = vsyncpa [#allocation5], 0
    %14 = vsyncpa [#allocation8], 0
    loop: start=0, step=1, limit=4
    $region2: #{cait_forward.26} parent=1 // loop_pre_header
      _
    $region3: #{cait_forward.26} parent=1 // loop_header
      %s16 = sphi 0, %s20
      %p17 = scmp.ge.s32.totalorder %s16, 4
      %s26 = sphi 0, %s28
      %s29 = sphi 0, %s26
      %s30 = sphi 0, %s29
      %s46 = sphi 0, %s30
      %s52 = sphi 0, %s54
      %s55 = sphi 0, %s52
      %s56 = sphi 0, %s55
      %s72 = sphi 0, %s56
      %s78 = sphi 0, %s80
      %s81 = sphi 0, %s78
      %s82 = sphi 0, %s81
      %s98 = sphi 0, %s82
      %s102 = sphi 0, %s102
      %s104 = sphi 0, %s102
      %s105 = sphi 0, %s104
      %s119 = sphi 0, %s105
      %s123 = sphi 0, %s123
      %s125 = sphi 0, %s123
      %s126 = sphi 0, %s125
      %s140 = sphi 0, %s126
      %s144 = sphi 0, %s144
      %s146 = sphi 0, %s144
      %s147 = sphi 0, %s146
      %s161 = sphi 0, %s147
      %s165 = sphi 0, %s165
      %s167 = sphi 0, %s165
      %s168 = sphi 0, %s167
      %s182 = sphi 0, %s168
      %s188 = sphi 0, %s190
      %s191 = sphi 0, %s188
      %s192 = sphi 0, %s191
      %s208 = sphi 0, %s192
    $region4: #{cait_forward.26} parent=1 // loop_header_branch
      %19 = sbr.rel (%p17) target = $region8
    $region5: #{cait_forward.26} parent=1 // loop_body
      %s21 = ssub.s32 %s16, 1
      %s22 = ssub.s32 %s16, 2
      %s23 = sadd.s32 %s16, 1
      %s24 = ssub.s32 %s16, %s23
      %p25 = scmp.eq.s32.totalorder %s24, 0
      %s27 = sadd.s32 %s26, 1
      %s28 = scalar_select %p25, %s26, %s27
      %p31 = pneg %p25
      %p32 = scmp.eq.s32.totalorder %s16, 1
      %p33 = por %p31, %p32
      %p34 = scmp.ne.s32.totalorder %s26, %s29
      %p35 = scmp.eq.s32.totalorder %s16, 0
      %p36 = por %p34, %p35
      %p37 = scmp.ne.s32.totalorder %s26, %s29
      %p38 = scmp.eq.s32.totalorder %s21, 1
      %p39 = por %p37, %p38
      %p40 = scmp.ne.s32.totalorder %s29, %s30
      %p41 = scmp.eq.s32.totalorder %s21, 0
      %p42 = por %p40, %p41
      %p43 = scmp.ne.s32.totalorder %s29, %s30
      %p44 = scmp.eq.s32.totalorder %s22, 1
      %p45 = por %p43, %p44
      %p47 = scmp.ne.s32.totalorder %s30, %s46
      %p48 = scmp.eq.s32.totalorder %s22, 0
      %p49 = por %p47, %p48
      %s50 = ssub.s32 %s16, %s23
      %p51 = scmp.eq.s32.totalorder %s50, 0
      %s53 = sadd.s32 %s52, 1
      %s54 = scalar_select %p51, %s52, %s53
      %p57 = pneg %p51
      %p58 = scmp.eq.s32.totalorder %s16, 1
      %p59 = por %p57, %p58
      %p60 = scmp.ne.s32.totalorder %s52, %s55
      %p61 = scmp.eq.s32.totalorder %s16, 0
      %p62 = por %p60, %p61
      %p63 = scmp.ne.s32.totalorder %s52, %s55
      %p64 = scmp.eq.s32.totalorder %s21, 1
      %p65 = por %p63, %p64
      %p66 = scmp.ne.s32.totalorder %s55, %s56
      %p67 = scmp.eq.s32.totalorder %s21, 0
      %p68 = por %p66, %p67
      %p69 = scmp.ne.s32.totalorder %s55, %s56
      %p70 = scmp.eq.s32.totalorder %s22, 1
      %p71 = por %p69, %p70
      %p73 = scmp.ne.s32.totalorder %s56, %s72
      %p74 = scmp.eq.s32.totalorder %s22, 0
      %p75 = por %p73, %p74
      %s76 = ssub.s32 %s16, %s23
      %p77 = scmp.eq.s32.totalorder %s76, 0
      %s79 = sadd.s32 %s78, 1
      %s80 = scalar_select %p77, %s78, %s79
      %p83 = pneg %p77
      %p84 = scmp.eq.s32.totalorder %s16, 1
      %p85 = por %p83, %p84
      %p86 = scmp.ne.s32.totalorder %s78, %s81
      %p87 = scmp.eq.s32.totalorder %s16, 0
      %p88 = por %p86, %p87
      %p89 = scmp.ne.s32.totalorder %s78, %s81
      %p90 = scmp.eq.s32.totalorder %s21, 1
      %p91 = por %p89, %p90
      %p92 = scmp.ne.s32.totalorder %s81, %s82
      %p93 = scmp.eq.s32.totalorder %s21, 0
      %p94 = por %p92, %p93
      %p95 = scmp.ne.s32.totalorder %s81, %s82
      %p96 = scmp.eq.s32.totalorder %s22, 1
      %p97 = por %p95, %p96
      %p99 = scmp.ne.s32.totalorder %s82, %s98
      %p100 = scmp.eq.s32.totalorder %s22, 0
      %p101 = por %p99, %p100
      %s103 = sadd.s32 %s102, 1
      %p106 = scmp.eq.s32.totalorder %s16, 1
      %p107 = scmp.ne.s32.totalorder %s102, %s104
      %p108 = scmp.eq.s32.totalorder %s16, 0
      %p109 = por %p107, %p108
      %p110 = scmp.ne.s32.totalorder %s102, %s104
      %p111 = scmp.eq.s32.totalorder %s21, 1
      %p112 = por %p110, %p111
      %p113 = scmp.ne.s32.totalorder %s104, %s105
      %p114 = scmp.eq.s32.totalorder %s21, 0
      %p115 = por %p113, %p114
      %p116 = scmp.ne.s32.totalorder %s104, %s105
      %p117 = scmp.eq.s32.totalorder %s22, 1
      %p118 = por %p116, %p117
      %p120 = scmp.ne.s32.totalorder %s105, %s119
      %p121 = scmp.eq.s32.totalorder %s22, 0
      %p122 = por %p120, %p121
      %s124 = sadd.s32 %s123, 1
      %p127 = scmp.eq.s32.totalorder %s16, 1
      %p128 = scmp.ne.s32.totalorder %s123, %s125
      %p129 = scmp.eq.s32.totalorder %s16, 0
      %p130 = por %p128, %p129
      %p131 = scmp.ne.s32.totalorder %s123, %s125
      %p132 = scmp.eq.s32.totalorder %s21, 1
      %p133 = por %p131, %p132
      %p134 = scmp.ne.s32.totalorder %s125, %s126
      %p135 = scmp.eq.s32.totalorder %s21, 0
      %p136 = por %p134, %p135
      %p137 = scmp.ne.s32.totalorder %s125, %s126
      %p138 = scmp.eq.s32.totalorder %s22, 1
      %p139 = por %p137, %p138
      %p141 = scmp.ne.s32.totalorder %s126, %s140
      %p142 = scmp.eq.s32.totalorder %s22, 0
      %p143 = por %p141, %p142
      %s145 = sadd.s32 %s144, 1
      %p148 = scmp.eq.s32.totalorder %s16, 1
      %p149 = scmp.ne.s32.totalorder %s144, %s146
      %p150 = scmp.eq.s32.totalorder %s16, 0
      %p151 = por %p149, %p150
      %p152 = scmp.ne.s32.totalorder %s144, %s146
      %p153 = scmp.eq.s32.totalorder %s21, 1
      %p154 = por %p152, %p153
      %p155 = scmp.ne.s32.totalorder %s146, %s147
      %p156 = scmp.eq.s32.totalorder %s21, 0
      %p157 = por %p155, %p156
      %p158 = scmp.ne.s32.totalorder %s146, %s147
      %p159 = scmp.eq.s32.totalorder %s22, 1
      %p160 = por %p158, %p159
      %p162 = scmp.ne.s32.totalorder %s147, %s161
      %p163 = scmp.eq.s32.totalorder %s22, 0
      %p164 = por %p162, %p163
      %s166 = sadd.s32 %s165, 1
      %p169 = scmp.eq.s32.totalorder %s16, 1
      %p170 = scmp.ne.s32.totalorder %s165, %s167
      %p171 = scmp.eq.s32.totalorder %s16, 0
      %p172 = por %p170, %p171
      %p173 = scmp.ne.s32.totalorder %s165, %s167
      %p174 = scmp.eq.s32.totalorder %s21, 1
      %p175 = por %p173, %p174
      %p176 = scmp.ne.s32.totalorder %s167, %s168
      %p177 = scmp.eq.s32.totalorder %s21, 0
      %p178 = por %p176, %p177
      %p179 = scmp.ne.s32.totalorder %s167, %s168
      %p180 = scmp.eq.s32.totalorder %s22, 1
      %p181 = por %p179, %p180
      %p183 = scmp.ne.s32.totalorder %s168, %s182
      %p184 = scmp.eq.s32.totalorder %s22, 0
      %p185 = por %p183, %p184
      %s186 = ssub.s32 %s16, %s23
      %p187 = scmp.eq.s32.totalorder %s186, 0
      %s189 = sadd.s32 %s188, 1
      %s190 = scalar_select %p187, %s188, %s189
      %p193 = pneg %p187
      %p194 = scmp.eq.s32.totalorder %s16, 1
      %p195 = por %p193, %p194
      %p196 = scmp.ne.s32.totalorder %s188, %s191
      %p197 = scmp.eq.s32.totalorder %s16, 0
      %p198 = por %p196, %p197
      %p199 = scmp.ne.s32.totalorder %s188, %s191
      %p200 = scmp.eq.s32.totalorder %s21, 1
      %p201 = por %p199, %p200
      %p202 = scmp.ne.s32.totalorder %s191, %s192
      %p203 = scmp.eq.s32.totalorder %s21, 0
      %p204 = por %p202, %p203
      %p205 = scmp.ne.s32.totalorder %s191, %s192
      %p206 = scmp.eq.s32.totalorder %s22, 1
      %p207 = por %p205, %p206
      %p209 = scmp.ne.s32.totalorder %s192, %s208
      %p210 = scmp.eq.s32.totalorder %s22, 0
      %p211 = por %p209, %p210
      %p212 = scmp.le.s32.totalorder 1, %s16
      %p213 = scmp.lt.s32.totalorder %s16, 3
      %p214 = pnand %p212, %p213
      %p215 = pneg %p214
      // Predicated region
      $region9: #{cait_forward.26} parent=5 // pred_check
        _
      $region10: #{cait_forward.26} parent=5 // pred_check_branch
        %217 = sbr.rel (%p214) target = $region12
      $region11: #{cait_forward.26} parent=5 // pred_region
        %s218 = ssub.s32 %s16, 1
        // Predicated region
        $region13: #{cait_forward.26} parent=11 // pred_check
          %p219 = pneg %p115
        $region14: #{cait_forward.26} parent=11 // pred_check_branch
          %221 = sbr.rel (%p219) target = $region16
        $region15: #{cait_forward.26} parent=11 // pred_region
          %223 = vsyncadd [#allocation3], 0
          %s225 = sshll.u32 %s3, 4
          %s226 = int_to_ptr.vmem [resolvable:$true] %s225
          %228 = dma.vmem_to_smem %s226, 128, [#allocation2], [#allocation3]
        $region16: #{cait_forward.26} parent=11 // pred_fallthru
          _
        // Predicated region
        $region17: #{cait_forward.26} parent=11 // pred_check
          %p229 = pneg %p136
        $region18: #{cait_forward.26} parent=11 // pred_check_branch
          %231 = sbr.rel (%p229) target = $region20
        $region19: #{cait_forward.26} parent=11 // pred_region
          %233 = vsyncadd [#allocation5], 0
          %s235 = sshll.u32 %s4, 4
          %s236 = int_to_ptr.vmem [resolvable:$true] %s235
          %238 = dma.vmem_to_smem %s236, 16, [#allocation4], [#allocation5]
        $region20: #{cait_forward.26} parent=11 // pred_fallthru
          _
        // Predicated region
        $region21: #{cait_forward.26} parent=11 // pred_check
          %p239 = pneg %p157
        $region22: #{cait_forward.26} parent=11 // pred_check_branch
          %241 = sbr.rel (%p239) target = $region24
        $region23: #{cait_forward.26} parent=11 // pred_region
          %243 = vsyncadd [#allocation5], 0
          %s245 = sshll.u32 %s5, 4
          %s246 = int_to_ptr.vmem [resolvable:$true] %s245
          %248 = dma.vmem_to_smem %s246, 128, [#allocation6], [#allocation5]
        $region24: #{cait_forward.26} parent=11 // pred_fallthru
          _
        // Predicated region
        $region25: #{cait_forward.26} parent=11 // pred_check
          %p249 = pneg %p178
        $region26: #{cait_forward.26} parent=11 // pred_check_branch
          %251 = sbr.rel (%p249) target = $region28
        $region27: #{cait_forward.26} parent=11 // pred_region
          %253 = vsyncadd [#allocation8], 0
          %s255 = sshll.u32 %s6, 4
          %s256 = int_to_ptr.vmem [resolvable:$true] %s255
          %258 = dma.vmem_to_smem %s256, 16, [#allocation7], [#allocation8]
        $region28: #{cait_forward.26} parent=11 // pred_fallthru
          _
      $region12: #{cait_forward.26} parent=5 // pred_fallthru
        _
      %p259 = scmp.lt.s32.totalorder %s16, 2
      // Predicated region
      $region29: #{cait_forward.26} parent=5 // pred_check
        %p260 = pneg %p259
      $region30: #{cait_forward.26} parent=5 // pred_check_branch
        %262 = sbr.rel (%p260) target = $region32
      $region31: #{cait_forward.26} parent=5 // pred_region
        // Predicated region
        $region33: #{cait_forward.26} parent=31 // pred_check
          %p263 = pneg %p36
        $region34: #{cait_forward.26} parent=31 // pred_check_branch
          %265 = sbr.rel (%p263) target = $region36
        $region35: #{cait_forward.26} parent=31 // pred_region
          %p266 = scmp.lt.s32.totalorder %s16, 1
          %s267 = scalar_select %p266, %s16, 1
          %s268 = smul.addr %s267, 16
          %s269 = smul.addr %s268, 8
          %s270 = scalar_lea.vmem %s0, %s269
        $region36: #{cait_forward.26} parent=31 // pred_fallthru
          _
        // Predicated region
        $region37: #{cait_forward.26} parent=31 // pred_check
          %p271 = pneg %p62
        $region38: #{cait_forward.26} parent=31 // pred_check_branch
          %273 = sbr.rel (%p271) target = $region40
        $region39: #{cait_forward.26} parent=31 // pred_region
          %p274 = scmp.lt.s32.totalorder %s16, 1
          %s275 = scalar_select %p274, %s16, 1
          %s276 = smul.addr %s275, 8
          %s277 = smul.addr %s276, 4
          %s278 = scalar_lea.vmem %s1, %s277
        $region40: #{cait_forward.26} parent=31 // pred_fallthru
          _
        // Predicated region
        $region41: #{cait_forward.26} parent=31 // pred_check
          %p279 = pneg %p88
        $region42: #{cait_forward.26} parent=31 // pred_check_branch
          %281 = sbr.rel (%p279) target = $region44
        $region43: #{cait_forward.26} parent=31 // pred_region
          %p282 = scmp.lt.s32.totalorder %s16, 1
          %s283 = scalar_select %p282, %s16, 1
          %s284 = smul.addr %s283, 16
          %s285 = smul.addr %s284, 8
          %s286 = scalar_lea.vmem %s2, %s285
        $region44: #{cait_forward.26} parent=31 // pred_fallthru
          _
      $region32: #{cait_forward.26} parent=5 // pred_fallthru
        _
      %p287 = scmp.le.s32.totalorder 1, %s16
      %p288 = scmp.lt.s32.totalorder %s16, 3
      %p289 = pnand %p287, %p288
      %p290 = pneg %p289
      // Predicated region
      $region45: #{cait_forward.26} parent=5 // pred_check
        _
      $region46: #{cait_forward.26} parent=5 // pred_check_branch
        %292 = sbr.rel (%p289) target = $region48
      $region47: #{cait_forward.26} parent=5 // pred_region
        %s293 = ssub.s32 %s16, 1
        // Predicated region
        $region49: #{cait_forward.26} parent=47 // pred_check
          %p294 = pneg %p115
        $region50: #{cait_forward.26} parent=47 // pred_check_branch
          %296 = sbr.rel (%p294) target = $region52
        $region51: #{cait_forward.26} parent=47 // pred_region
          %298 = dma.done [#allocation3], 128
        $region52: #{cait_forward.26} parent=47 // pred_fallthru
          _
        // Predicated region
        $region53: #{cait_forward.26} parent=47 // pred_check
          %p299 = pneg %p136
        $region54: #{cait_forward.26} parent=47 // pred_check_branch
          %301 = sbr.rel (%p299) target = $region56
        $region55: #{cait_forward.26} parent=47 // pred_region
          %303 = dma.done [#allocation5], 16
        $region56: #{cait_forward.26} parent=47 // pred_fallthru
          _
        // Predicated region
        $region57: #{cait_forward.26} parent=47 // pred_check
          %p304 = pneg %p157
        $region58: #{cait_forward.26} parent=47 // pred_check_branch
          %306 = sbr.rel (%p304) target = $region60
        $region59: #{cait_forward.26} parent=47 // pred_region
          %308 = dma.done [#allocation5], 128
        $region60: #{cait_forward.26} parent=47 // pred_fallthru
          _
        // Predicated region
        $region61: #{cait_forward.26} parent=47 // pred_check
          %p309 = pneg %p178
        $region62: #{cait_forward.26} parent=47 // pred_check_branch
          %311 = sbr.rel (%p309) target = $region64
        $region63: #{cait_forward.26} parent=47 // pred_region
          %313 = dma.done [#allocation8], 16
        $region64: #{cait_forward.26} parent=47 // pred_fallthru
          _
        %314 = sfence
        %p315 = scmp.lt.s32.totalorder %s21, 1
        %s316 = scalar_select %p315, %s21, 1
        %s317 = smul.addr %s316, 16
        %s318 = smul.addr %s317, 8
        %s319 = scalar_lea.vmem %s0, %s318
        %p320 = pneg %p42
        %p321 = pneg %p39
        %p322 = scmp.lt.s32.totalorder %s21, 1
        %s323 = scalar_select %p322, %s21, 1
        %s324 = smul.addr %s323, 8
        %s325 = smul.addr %s324, 4
        %s326 = scalar_lea.vmem %s1, %s325
        %p327 = pneg %p68
        %p328 = pneg %p65
        %p329 = scmp.lt.s32.totalorder %s21, 1
        %s330 = scalar_select %p329, %s21, 1
        %s331 = smul.addr %s330, 16
        %s332 = smul.addr %s331, 8
        %s333 = scalar_lea.vmem %s2, %s332
        %p334 = pneg %p94
        %p335 = pneg %p91
        %p336 = pneg %p115
        %p337 = pneg %p112
        %p338 = pneg %p136
        %p339 = pneg %p133
        %p340 = pneg %p157
        %p341 = pneg %p154
        %p342 = pneg %p178
        %p343 = pneg %p175
        %p344 = pneg %p204
        %p345 = pneg %p201
        %p346 = scmp.lt.s32.totalorder %s21, 1
        %s347 = scalar_select %p346, %s21, 1
        %s348 = smul.addr %s347, 2
        %s349 = smul.addr %s348, 8
        %s350 = scalar_lea.vmem %s7, %s349
        %p351 = scmp.lt.s32.totalorder %s21, 1
        %s352 = scalar_select %p351, %s21, 1
        %s353 = smul.addr %s352, 16
        %s354 = smul.addr %s353, 8
        %s355 = scalar_lea.vmem %s0, %s354
        %p356 = scmp.lt.s32.totalorder %s21, 1
        %s357 = scalar_select %p356, %s21, 1
        %s358 = smul.addr %s357, 8
        %s359 = smul.addr %s358, 4
        %s360 = scalar_lea.vmem %s1, %s359
        %p361 = scmp.lt.s32.totalorder %s21, 1
        %s362 = scalar_select %p361, %s21, 1
        %s363 = smul.addr %s362, 16
        %s364 = smul.addr %s363, 8
        %s365 = scalar_lea.vmem %s2, %s364
        %p366 = scmp.lt.s32.totalorder %s21, 1
        %s367 = scalar_select %p366, %s21, 1
        %s368 = smul.addr %s367, 2
        %s369 = smul.addr %s368, 8
        %s370 = scalar_lea.vmem %s7, %s369
        %v371 = vld [vmem:[%s355] sm:$0xff]
        %v372 = vld [vmem:[%s355 + $0x8] sm:$0xff]
        %v373 = vmul.f32 %v371, 0.5
        %v374 = vmul.f32 %v372, 0.5
        %v375 = vld [vmem:[%s360] sm:$0xf]
        %vm376 = vcmask 31744
        %v378 = vsel %vm376, %v373, 0
        %v381 = vsel %vm376, %v374, 0
        %vm383 = vcmask 1043456
        %v385 = vsel %vm383, %v375, 0
        %387 = vmatpush.msra.mxu0 0.0
        %388 = vmatpush.msra.mxu0 0.0
        %389 = vmatpush.msra.mxu0 0.0
        %390 = vmatpush.msra.mxu0 0.0
        %391 = vmatpush.msra.mxu0 0.0
        %392 = vmatpush.msra.mxu0 0.0
        %393 = vmatpush.msra.mxu0 0.0
        %394 = vmatpush.msra.mxu0 0.0
        %395 = vmatpush.msra.mxu0 0.0
        %396 = vmatpush.msra.mxu0 0.0
        %397 = vmatpush.msra.mxu0 0.0
        %398 = vmatpush.msra.mxu0 0.0
        %399 = vmatpush.msra.mxu0 0.0
        %400 = vmatpush.msra.mxu0 0.0
        %401 = vmatpush.msra.mxu0 0.0
        %402 = vmatpush.msra.mxu0 %v385
        %403 = vmatmul.f32.gmra.mxu0 %v378
        %v404 = vpop.f32.mrf.mxu0
        %v405 = vadd.f32 0.0, %v404
        %406 = vmatmul.f32.gmra.mxu0 %v381
        %v407 = vpop.f32.mrf.mxu0
        %v408 = vadd.f32 0.0, %v407
        %409 = vdwg.mxu0
        %s410 = scalar_lea.vmem %s355, 16
        %v411 = vld [vmem:[%s410] sm:$0xff]
        %v412 = vld [vmem:[%s410 + $0x8] sm:$0xff]
        %v413 = vmul.f32 %v411, 0.5
        %v414 = vmul.f32 %v412, 0.5
        %s415 = scalar_lea.vmem %s360, 4
        %v416 = vld [vmem:[%s415] sm:$0xf]
        %v418 = vsel %vm376, %v413, 0
        %v421 = vsel %vm376, %v414, 0
        %v424 = vsel %vm383, %v416, 0
        %426 = vmatpush.msra.mxu0 0.0
        %427 = vmatpush.msra.mxu0 0.0
        %428 = vmatpush.msra.mxu0 0.0
        %429 = vmatpush.msra.mxu0 0.0
        %430 = vmatpush.msra.mxu0 0.0
        %431 = vmatpush.msra.mxu0 0.0
        %432 = vmatpush.msra.mxu0 0.0
        %433 = vmatpush.msra.mxu0 0.0
        %434 = vmatpush.msra.mxu0 0.0
        %435 = vmatpush.msra.mxu0 0.0
        %436 = vmatpush.msra.mxu0 0.0
        %437 = vmatpush.msra.mxu0 0.0
        %438 = vmatpush.msra.mxu0 0.0
        %439 = vmatpush.msra.mxu0 0.0
        %440 = vmatpush.msra.mxu0 0.0
        %441 = vmatpush.msra.mxu0 %v424
        %442 = vmatmul.f32.gmra.mxu0 %v418
        %v443 = vpop.f32.mrf.mxu0
        %v444 = vadd.f32 0.0, %v443
        %445 = vmatmul.f32.gmra.mxu0 %v421
        %v446 = vpop.f32.mrf.mxu0
        %v447 = vadd.f32 0.0, %v446
        %448 = vdwg.mxu0
        %s449 = scalar_lea.vmem %s355, 32
        %v450 = vld [vmem:[%s449] sm:$0xff]
        %v451 = vld [vmem:[%s449 + $0x8] sm:$0xff]
        %v452 = vmul.f32 %v450, 0.5
        %v453 = vmul.f32 %v451, 0.5
        %s454 = scalar_lea.vmem %s360, 8
        %v455 = vld [vmem:[%s454] sm:$0xf]
        %v457 = vsel %vm376, %v452, 0
        %v460 = vsel %vm376, %v453, 0
        %v463 = vsel %vm383, %v455, 0
        %465 = vmatpush.msra.mxu0 0.0
        %466 = vmatpush.msra.mxu0 0.0
        %467 = vmatpush.msra.mxu0 0.0
        %468 = vmatpush.msra.mxu0 0.0
        %469 = vmatpush.msra.mxu0 0.0
        %470 = vmatpush.msra.mxu0 0.0
        %471 = vmatpush.msra.mxu0 0.0
        %472 = vmatpush.msra.mxu0 0.0
        %473 = vmatpush.msra.mxu0 0.0
        %474 = vmatpush.msra.mxu0 0.0
        %475 = vmatpush.msra.mxu0 0.0
        %476 = vmatpush.msra.mxu0 0.0
        %477 = vmatpush.msra.mxu0 0.0
        %478 = vmatpush.msra.mxu0 0.0
        %479 = vmatpush.msra.mxu0 0.0
        %480 = vmatpush.msra.mxu0 %v463
        %481 = vmatmul.f32.gmra.mxu0 %v457
        %v482 = vpop.f32.mrf.mxu0
        %v483 = vadd.f32 0.0, %v482
        %484 = vmatmul.f32.gmra.mxu0 %v460
        %v485 = vpop.f32.mrf.mxu0
        %v486 = vadd.f32 0.0, %v485
        %487 = vdwg.mxu0
        %s488 = scalar_lea.vmem %s355, 48
        %v489 = vld [vmem:[%s488] sm:$0xff]
        %v490 = vld [vmem:[%s488 + $0x8] sm:$0xff]
        %v491 = vmul.f32 %v489, 0.5
        %v492 = vmul.f32 %v490, 0.5
        %s493 = scalar_lea.vmem %s360, 12
        %v494 = vld [vmem:[%s493] sm:$0xf]
        %v496 = vsel %vm376, %v491, 0
        %v499 = vsel %vm376, %v492, 0
        %v502 = vsel %vm383, %v494, 0
        %504 = vmatpush.msra.mxu0 0.0
        %505 = vmatpush.msra.mxu0 0.0
        %506 = vmatpush.msra.mxu0 0.0
        %507 = vmatpush.msra.mxu0 0.0
        %508 = vmatpush.msra.mxu0 0.0
        %509 = vmatpush.msra.mxu0 0.0
        %510 = vmatpush.msra.mxu0 0.0
        %511 = vmatpush.msra.mxu0 0.0
        %512 = vmatpush.msra.mxu0 0.0
        %513 = vmatpush.msra.mxu0 0.0
        %514 = vmatpush.msra.mxu0 0.0
        %515 = vmatpush.msra.mxu0 0.0
        %516 = vmatpush.msra.mxu0 0.0
        %517 = vmatpush.msra.mxu0 0.0
        %518 = vmatpush.msra.mxu0 0.0
        %519 = vmatpush.msra.mxu0 %v502
        %520 = vmatmul.f32.gmra.mxu0 %v496
        %v521 = vpop.f32.mrf.mxu0
        %v522 = vadd.f32 0.0, %v521
        %523 = vmatmul.f32.gmra.mxu0 %v499
        %v524 = vpop.f32.mrf.mxu0
        %v525 = vadd.f32 0.0, %v524
        %526 = vdwg.mxu0
        %s527 = scalar_lea.vmem %s355, 64
        %v528 = vld [vmem:[%s527] sm:$0xff]
        %v529 = vld [vmem:[%s527 + $0x8] sm:$0xff]
        %v530 = vmul.f32 %v528, 0.5
        %v531 = vmul.f32 %v529, 0.5
        %s532 = scalar_lea.vmem %s360, 16
        %v533 = vld [vmem:[%s532] sm:$0xf]
        %v535 = vsel %vm376, %v530, 0
        %v538 = vsel %vm376, %v531, 0
        %v541 = vsel %vm383, %v533, 0
        %543 = vmatpush.msra.mxu0 0.0
        %544 = vmatpush.msra.mxu0 0.0
        %545 = vmatpush.msra.mxu0 0.0
        %546 = vmatpush.msra.mxu0 0.0
        %547 = vmatpush.msra.mxu0 0.0
        %548 = vmatpush.msra.mxu0 0.0
        %549 = vmatpush.msra.mxu0 0.0
        %550 = vmatpush.msra.mxu0 0.0
        %551 = vmatpush.msra.mxu0 0.0
        %552 = vmatpush.msra.mxu0 0.0
        %553 = vmatpush.msra.mxu0 0.0
        %554 = vmatpush.msra.mxu0 0.0
        %555 = vmatpush.msra.mxu0 0.0
        %556 = vmatpush.msra.mxu0 0.0
        %557 = vmatpush.msra.mxu0 0.0
        %558 = vmatpush.msra.mxu0 %v541
        %559 = vmatmul.f32.gmra.mxu0 %v535
        %v560 = vpop.f32.mrf.mxu0
        %v561 = vadd.f32 0.0, %v560
        %562 = vmatmul.f32.gmra.mxu0 %v538
        %v563 = vpop.f32.mrf.mxu0
        %v564 = vadd.f32 0.0, %v563
        %565 = vdwg.mxu0
        %s566 = scalar_lea.vmem %s355, 80
        %v567 = vld [vmem:[%s566] sm:$0xff]
        %v568 = vld [vmem:[%s566 + $0x8] sm:$0xff]
        %v569 = vmul.f32 %v567, 0.5
        %v570 = vmul.f32 %v568, 0.5
        %s571 = scalar_lea.vmem %s360, 20
        %v572 = vld [vmem:[%s571] sm:$0xf]
        %v574 = vsel %vm376, %v569, 0
        %v577 = vsel %vm376, %v570, 0
        %v580 = vsel %vm383, %v572, 0
        %582 = vmatpush.msra.mxu0 0.0
        %583 = vmatpush.msra.mxu0 0.0
        %584 = vmatpush.msra.mxu0 0.0
        %585 = vmatpush.msra.mxu0 0.0
        %586 = vmatpush.msra.mxu0 0.0
        %587 = vmatpush.msra.mxu0 0.0
        %588 = vmatpush.msra.mxu0 0.0
        %589 = vmatpush.msra.mxu0 0.0
        %590 = vmatpush.msra.mxu0 0.0
        %591 = vmatpush.msra.mxu0 0.0
        %592 = vmatpush.msra.mxu0 0.0
        %593 = vmatpush.msra.mxu0 0.0
        %594 = vmatpush.msra.mxu0 0.0
        %595 = vmatpush.msra.mxu0 0.0
        %596 = vmatpush.msra.mxu0 0.0
        %597 = vmatpush.msra.mxu0 %v580
        %598 = vmatmul.f32.gmra.mxu0 %v574
        %v599 = vpop.f32.mrf.mxu0
        %v600 = vadd.f32 0.0, %v599
        %601 = vmatmul.f32.gmra.mxu0 %v577
        %v602 = vpop.f32.mrf.mxu0
        %v603 = vadd.f32 0.0, %v602
        %604 = vdwg.mxu0
        %s605 = scalar_lea.vmem %s355, 96
        %v606 = vld [vmem:[%s605] sm:$0xff]
        %v607 = vld [vmem:[%s605 + $0x8] sm:$0xff]
        %v608 = vmul.f32 %v606, 0.5
        %v609 = vmul.f32 %v607, 0.5
        %s610 = scalar_lea.vmem %s360, 24
        %v611 = vld [vmem:[%s610] sm:$0xf]
        %v613 = vsel %vm376, %v608, 0
        %v616 = vsel %vm376, %v609, 0
        %v619 = vsel %vm383, %v611, 0
        %621 = vmatpush.msra.mxu0 0.0
        %622 = vmatpush.msra.mxu0 0.0
        %623 = vmatpush.msra.mxu0 0.0
        %624 = vmatpush.msra.mxu0 0.0
        %625 = vmatpush.msra.mxu0 0.0
        %626 = vmatpush.msra.mxu0 0.0
        %627 = vmatpush.msra.mxu0 0.0
        %628 = vmatpush.msra.mxu0 0.0
        %629 = vmatpush.msra.mxu0 0.0
        %630 = vmatpush.msra.mxu0 0.0
        %631 = vmatpush.msra.mxu0 0.0
        %632 = vmatpush.msra.mxu0 0.0
        %633 = vmatpush.msra.mxu0 0.0
        %634 = vmatpush.msra.mxu0 0.0
        %635 = vmatpush.msra.mxu0 0.0
        %636 = vmatpush.msra.mxu0 %v619
        %637 = vmatmul.f32.gmra.mxu0 %v613
        %v638 = vpop.f32.mrf.mxu0
        %v639 = vadd.f32 0.0, %v638
        %640 = vmatmul.f32.gmra.mxu0 %v616
        %v641 = vpop.f32.mrf.mxu0
        %v642 = vadd.f32 0.0, %v641
        %643 = vdwg.mxu0
        %s644 = scalar_lea.vmem %s355, 112
        %v645 = vld [vmem:[%s644] sm:$0xff]
        %v646 = vld [vmem:[%s644 + $0x8] sm:$0xff]
        %v647 = vmul.f32 %v645, 0.5
        %v648 = vmul.f32 %v646, 0.5
        %s649 = scalar_lea.vmem %s360, 28
        %v650 = vld [vmem:[%s649] sm:$0xf]
        %v652 = vsel %vm376, %v647, 0
        %v655 = vsel %vm376, %v648, 0
        %v658 = vsel %vm383, %v650, 0
        %660 = vmatpush.msra.mxu0 0.0
        %661 = vmatpush.msra.mxu0 0.0
        %662 = vmatpush.msra.mxu0 0.0
        %663 = vmatpush.msra.mxu0 0.0
        %664 = vmatpush.msra.mxu0 0.0
        %665 = vmatpush.msra.mxu0 0.0
        %666 = vmatpush.msra.mxu0 0.0
        %667 = vmatpush.msra.mxu0 0.0
        %668 = vmatpush.msra.mxu0 0.0
        %669 = vmatpush.msra.mxu0 0.0
        %670 = vmatpush.msra.mxu0 0.0
        %671 = vmatpush.msra.mxu0 0.0
        %672 = vmatpush.msra.mxu0 0.0
        %673 = vmatpush.msra.mxu0 0.0
        %674 = vmatpush.msra.mxu0 0.0
        %675 = vmatpush.msra.mxu0 %v658
        %676 = vmatmul.f32.gmra.mxu0 %v652
        %v677 = vpop.f32.mrf.mxu0
        %v678 = vadd.f32 0.0, %v677
        %679 = vmatmul.f32.gmra.mxu0 %v655
        %v680 = vpop.f32.mrf.mxu0
        %v681 = vadd.f32 0.0, %v680
        %682 = vdwg.mxu0
        %s683 = sld [smem:[#allocation2]]
        %v684 = vstv %s683
        %v685 = vmul.f32 %v405, %v684
        %v686 = vmul.f32 %v408, %v684
        %s687 = sld [smem:[#allocation2 + $0x1]]
        %v688 = vstv %s687
        %v689 = vmul.f32 %v444, %v688
        %v690 = vmul.f32 %v447, %v688
        %v691 = vadd.f32 %v685, %v689
        %v692 = vadd.f32 %v686, %v690
        %s693 = sld [smem:[#allocation2 + $0x2]]
        %v694 = vstv %s693
        %v695 = vmul.f32 %v483, %v694
        %v696 = vmul.f32 %v486, %v694
        %v697 = vadd.f32 %v691, %v695
        %v698 = vadd.f32 %v692, %v696
        %s699 = sld [smem:[#allocation2 + $0x3]]
        %v700 = vstv %s699
        %v701 = vmul.f32 %v522, %v700
        %v702 = vmul.f32 %v525, %v700
        %v703 = vadd.f32 %v697, %v701
        %v704 = vadd.f32 %v698, %v702
        %s705 = sld [smem:[#allocation2 + $0x4]]
        %v706 = vstv %s705
        %v707 = vmul.f32 %v561, %v706
        %v708 = vmul.f32 %v564, %v706
        %v709 = vadd.f32 %v703, %v707
        %v710 = vadd.f32 %v704, %v708
        %s711 = sld [smem:[#allocation2 + $0x5]]
        %v712 = vstv %s711
        %v713 = vmul.f32 %v600, %v712
        %v714 = vmul.f32 %v603, %v712
        %v715 = vadd.f32 %v709, %v713
        %v716 = vadd.f32 %v710, %v714
        %s717 = sld [smem:[#allocation2 + $0x6]]
        %v718 = vstv %s717
        %v719 = vmul.f32 %v639, %v718
        %v720 = vmul.f32 %v642, %v718
        %v721 = vadd.f32 %v715, %v719
        %v722 = vadd.f32 %v716, %v720
        %s723 = sld [smem:[#allocation2 + $0x7]]
        %v724 = vstv %s723
        %v725 = vmul.f32 %v678, %v724
        %v726 = vmul.f32 %v681, %v724
        %v727 = vadd.f32 %v721, %v725
        %v728 = vadd.f32 %v722, %v726
        %s729 = sld [smem:[#allocation4]]
        %v730 = vstv %s729
        %v731 = vadd.f32 %v727, %v730
        %v732 = vadd.f32 %v728, %v730
        %s733 = sld [smem:[#allocation2 + $0x80]]
        %v734 = vstv %s733
        %v735 = vmul.f32 %v405, %v734
        %v736 = vmul.f32 %v408, %v734
        %s737 = sld [smem:[#allocation2 + $0x81]]
        %v738 = vstv %s737
        %v739 = vmul.f32 %v444, %v738
        %v740 = vmul.f32 %v447, %v738
        %v741 = vadd.f32 %v735, %v739
        %v742 = vadd.f32 %v736, %v740
        %s743 = sld [smem:[#allocation2 + $0x82]]
        %v744 = vstv %s743
        %v745 = vmul.f32 %v483, %v744
        %v746 = vmul.f32 %v486, %v744
        %v747 = vadd.f32 %v741, %v745
        %v748 = vadd.f32 %v742, %v746
        %s749 = sld [smem:[#allocation2 + $0x83]]
        %v750 = vstv %s749
        %v751 = vmul.f32 %v522, %v750
        %v752 = vmul.f32 %v525, %v750
        %v753 = vadd.f32 %v747, %v751
        %v754 = vadd.f32 %v748, %v752
        %s755 = sld [smem:[#allocation2 + $0x84]]
        %v756 = vstv %s755
        %v757 = vmul.f32 %v561, %v756
        %v758 = vmul.f32 %v564, %v756
        %v759 = vadd.f32 %v753, %v757
        %v760 = vadd.f32 %v754, %v758
        %s761 = sld [smem:[#allocation2 + $0x85]]
        %v762 = vstv %s761
        %v763 = vmul.f32 %v600, %v762
        %v764 = vmul.f32 %v603, %v762
        %v765 = vadd.f32 %v759, %v763
        %v766 = vadd.f32 %v760, %v764
        %s767 = sld [smem:[#allocation2 + $0x86]]
        %v768 = vstv %s767
        %v769 = vmul.f32 %v639, %v768
        %v770 = vmul.f32 %v642, %v768
        %v771 = vadd.f32 %v765, %v769
        %v772 = vadd.f32 %v766, %v770
        %s773 = sld [smem:[#allocation2 + $0x87]]
        %v774 = vstv %s773
        %v775 = vmul.f32 %v678, %v774
        %v776 = vmul.f32 %v681, %v774
        %v777 = vadd.f32 %v771, %v775
        %v778 = vadd.f32 %v772, %v776
        %s779 = sld [smem:[#allocation4 + $0x1]]
        %v780 = vstv %s779
        %v781 = vadd.f32 %v777, %v780
        %v782 = vadd.f32 %v778, %v780
        %s783 = sld [smem:[#allocation2 + $0x100]]
        %v784 = vstv %s783
        %v785 = vmul.f32 %v405, %v784
        %v786 = vmul.f32 %v408, %v784
        %s787 = sld [smem:[#allocation2 + $0x101]]
        %v788 = vstv %s787
        %v789 = vmul.f32 %v444, %v788
        %v790 = vmul.f32 %v447, %v788
        %v791 = vadd.f32 %v785, %v789
        %v792 = vadd.f32 %v786, %v790
        %s793 = sld [smem:[#allocation2 + $0x102]]
        %v794 = vstv %s793
        %v795 = vmul.f32 %v483, %v794
        %v796 = vmul.f32 %v486, %v794
        %v797 = vadd.f32 %v791, %v795
        %v798 = vadd.f32 %v792, %v796
        %s799 = sld [smem:[#allocation2 + $0x103]]
        %v800 = vstv %s799
        %v801 = vmul.f32 %v522, %v800
        %v802 = vmul.f32 %v525, %v800
        %v803 = vadd.f32 %v797, %v801
        %v804 = vadd.f32 %v798, %v802
        %s805 = sld [smem:[#allocation2 + $0x104]]
        %v806 = vstv %s805
        %v807 = vmul.f32 %v561, %v806
        %v808 = vmul.f32 %v564, %v806
        %v809 = vadd.f32 %v803, %v807
        %v810 = vadd.f32 %v804, %v808
        %s811 = sld [smem:[#allocation2 + $0x105]]
        %v812 = vstv %s811
        %v813 = vmul.f32 %v600, %v812
        %v814 = vmul.f32 %v603, %v812
        %v815 = vadd.f32 %v809, %v813
        %v816 = vadd.f32 %v810, %v814
        %s817 = sld [smem:[#allocation2 + $0x106]]
        %v818 = vstv %s817
        %v819 = vmul.f32 %v639, %v818
        %v820 = vmul.f32 %v642, %v818
        %v821 = vadd.f32 %v815, %v819
        %v822 = vadd.f32 %v816, %v820
        %s823 = sld [smem:[#allocation2 + $0x107]]
        %v824 = vstv %s823
        %v825 = vmul.f32 %v678, %v824
        %v826 = vmul.f32 %v681, %v824
        %v827 = vadd.f32 %v821, %v825
        %v828 = vadd.f32 %v822, %v826
        %s829 = sld [smem:[#allocation4 + $0x2]]
        %v830 = vstv %s829
        %v831 = vadd.f32 %v827, %v830
        %v832 = vadd.f32 %v828, %v830
        %s833 = sld [smem:[#allocation2 + $0x180]]
        %v834 = vstv %s833
        %v835 = vmul.f32 %v405, %v834
        %v836 = vmul.f32 %v408, %v834
        %s837 = sld [smem:[#allocation2 + $0x181]]
        %v838 = vstv %s837
        %v839 = vmul.f32 %v444, %v838
        %v840 = vmul.f32 %v447, %v838
        %v841 = vadd.f32 %v835, %v839
        %v842 = vadd.f32 %v836, %v840
        %s843 = sld [smem:[#allocation2 + $0x182]]
        %v844 = vstv %s843
        %v845 = vmul.f32 %v483, %v844
        %v846 = vmul.f32 %v486, %v844
        %v847 = vadd.f32 %v841, %v845
        %v848 = vadd.f32 %v842, %v846
        %s849 = sld [smem:[#allocation2 + $0x183]]
        %v850 = vstv %s849
        %v851 = vmul.f32 %v522, %v850
        %v852 = vmul.f32 %v525, %v850
        %v853 = vadd.f32 %v847, %v851
        %v854 = vadd.f32 %v848, %v852
        %s855 = sld [smem:[#allocation2 + $0x184]]
        %v856 = vstv %s855
        %v857 = vmul.f32 %v561, %v856
        %v858 = vmul.f32 %v564, %v856
        %v859 = vadd.f32 %v853, %v857
        %v860 = vadd.f32 %v854, %v858
        %s861 = sld [smem:[#allocation2 + $0x185]]
        %v862 = vstv %s861
        %v863 = vmul.f32 %v600, %v862
        %v864 = vmul.f32 %v603, %v862
        %v865 = vadd.f32 %v859, %v863
        %v866 = vadd.f32 %v860, %v864
        %s867 = sld [smem:[#allocation2 + $0x186]]
        %v868 = vstv %s867
        %v869 = vmul.f32 %v639, %v868
        %v870 = vmul.f32 %v642, %v868
        %v871 = vadd.f32 %v865, %v869
        %v872 = vadd.f32 %v866, %v870
        %s873 = sld [smem:[#allocation2 + $0x187]]
        %v874 = vstv %s873
        %v875 = vmul.f32 %v678, %v874
        %v876 = vmul.f32 %v681, %v874
        %v877 = vadd.f32 %v871, %v875
        %v878 = vadd.f32 %v872, %v876
        %s879 = sld [smem:[#allocation4 + $0x3]]
        %v880 = vstv %s879
        %v881 = vadd.f32 %v877, %v880
        %v882 = vadd.f32 %v878, %v880
        %s883 = sld [smem:[#allocation2 + $0x200]]
        %v884 = vstv %s883
        %v885 = vmul.f32 %v405, %v884
        %v886 = vmul.f32 %v408, %v884
        %s887 = sld [smem:[#allocation2 + $0x201]]
        %v888 = vstv %s887
        %v889 = vmul.f32 %v444, %v888
        %v890 = vmul.f32 %v447, %v888
        %v891 = vadd.f32 %v885, %v889
        %v892 = vadd.f32 %v886, %v890
        %s893 = sld [smem:[#allocation2 + $0x202]]
        %v894 = vstv %s893
        %v895 = vmul.f32 %v483, %v894
        %v896 = vmul.f32 %v486, %v894
        %v897 = vadd.f32 %v891, %v895
        %v898 = vadd.f32 %v892, %v896
        %s899 = sld [smem:[#allocation2 + $0x203]]
        %v900 = vstv %s899
        %v901 = vmul.f32 %v522, %v900
        %v902 = vmul.f32 %v525, %v900
        %v903 = vadd.f32 %v897, %v901
        %v904 = vadd.f32 %v898, %v902
        %s905 = sld [smem:[#allocation2 + $0x204]]
        %v906 = vstv %s905
        %v907 = vmul.f32 %v561, %v906
        %v908 = vmul.f32 %v564, %v906
        %v909 = vadd.f32 %v903, %v907
        %v910 = vadd.f32 %v904, %v908
        %s911 = sld [smem:[#allocation2 + $0x205]]
        %v912 = vstv %s911
        %v913 = vmul.f32 %v600, %v912
        %v914 = vmul.f32 %v603, %v912
        %v915 = vadd.f32 %v909, %v913
        %v916 = vadd.f32 %v910, %v914
        %s917 = sld [smem:[#allocation2 + $0x206]]
        %v918 = vstv %s917
        %v919 = vmul.f32 %v639, %v918
        %v920 = vmul.f32 %v642, %v918
        %v921 = vadd.f32 %v915, %v919
        %v922 = vadd.f32 %v916, %v920
        %s923 = sld [smem:[#allocation2 + $0x207]]
        %v924 = vstv %s923
        %v925 = vmul.f32 %v678, %v924
        %v926 = vmul.f32 %v681, %v924
        %v927 = vadd.f32 %v921, %v925
        %v928 = vadd.f32 %v922, %v926
        %s929 = sld [smem:[#allocation4 + $0x4]]
        %v930 = vstv %s929
        %v931 = vadd.f32 %v927, %v930
        %v932 = vadd.f32 %v928, %v930
        %s933 = sld [smem:[#allocation2 + $0x280]]
        %v934 = vstv %s933
        %v935 = vmul.f32 %v405, %v934
        %v936 = vmul.f32 %v408, %v934
        %s937 = sld [smem:[#allocation2 + $0x281]]
        %v938 = vstv %s937
        %v939 = vmul.f32 %v444, %v938
        %v940 = vmul.f32 %v447, %v938
        %v941 = vadd.f32 %v935, %v939
        %v942 = vadd.f32 %v936, %v940
        %s943 = sld [smem:[#allocation2 + $0x282]]
        %v944 = vstv %s943
        %v945 = vmul.f32 %v483, %v944
        %v946 = vmul.f32 %v486, %v944
        %v947 = vadd.f32 %v941, %v945
        %v948 = vadd.f32 %v942, %v946
        %s949 = sld [smem:[#allocation2 + $0x283]]
        %v950 = vstv %s949
        %v951 = vmul.f32 %v522, %v950
        %v952 = vmul.f32 %v525, %v950
        %v953 = vadd.f32 %v947, %v951
        %v954 = vadd.f32 %v948, %v952
        %s955 = sld [smem:[#allocation2 + $0x284]]
        %v956 = vstv %s955
        %v957 = vmul.f32 %v561, %v956
        %v958 = vmul.f32 %v564, %v956
        %v959 = vadd.f32 %v953, %v957
        %v960 = vadd.f32 %v954, %v958
        %s961 = sld [smem:[#allocation2 + $0x285]]
        %v962 = vstv %s961
        %v963 = vmul.f32 %v600, %v962
        %v964 = vmul.f32 %v603, %v962
        %v965 = vadd.f32 %v959, %v963
        %v966 = vadd.f32 %v960, %v964
        %s967 = sld [smem:[#allocation2 + $0x286]]
        %v968 = vstv %s967
        %v969 = vmul.f32 %v639, %v968
        %v970 = vmul.f32 %v642, %v968
        %v971 = vadd.f32 %v965, %v969
        %v972 = vadd.f32 %v966, %v970
        %s973 = sld [smem:[#allocation2 + $0x287]]
        %v974 = vstv %s973
        %v975 = vmul.f32 %v678, %v974
        %v976 = vmul.f32 %v681, %v974
        %v977 = vadd.f32 %v971, %v975
        %v978 = vadd.f32 %v972, %v976
        %s979 = sld [smem:[#allocation4 + $0x5]]
        %v980 = vstv %s979
        %v981 = vadd.f32 %v977, %v980
        %v982 = vadd.f32 %v978, %v980
        %s983 = sld [smem:[#allocation2 + $0x300]]
        %v984 = vstv %s983
        %v985 = vmul.f32 %v405, %v984
        %v986 = vmul.f32 %v408, %v984
        %s987 = sld [smem:[#allocation2 + $0x301]]
        %v988 = vstv %s987
        %v989 = vmul.f32 %v444, %v988
        %v990 = vmul.f32 %v447, %v988
        %v991 = vadd.f32 %v985, %v989
        %v992 = vadd.f32 %v986, %v990
        %s993 = sld [smem:[#allocation2 + $0x302]]
        %v994 = vstv %s993
        %v995 = vmul.f32 %v483, %v994
        %v996 = vmul.f32 %v486, %v994
        %v997 = vadd.f32 %v991, %v995
        %v998 = vadd.f32 %v992, %v996
        %s999 = sld [smem:[#allocation2 + $0x303]]
        %v1000 = vstv %s999
        %v1001 = vmul.f32 %v522, %v1000
        %v1002 = vmul.f32 %v525, %v1000
        %v1003 = vadd.f32 %v997, %v1001
        %v1004 = vadd.f32 %v998, %v1002
        %s1005 = sld [smem:[#allocation2 + $0x304]]
        %v1006 = vstv %s1005
        %v1007 = vmul.f32 %v561, %v1006
        %v1008 = vmul.f32 %v564, %v1006
        %v1009 = vadd.f32 %v1003, %v1007
        %v1010 = vadd.f32 %v1004, %v1008
        %s1011 = sld [smem:[#allocation2 + $0x305]]
        %v1012 = vstv %s1011
        %v1013 = vmul.f32 %v600, %v1012
        %v1014 = vmul.f32 %v603, %v1012
        %v1015 = vadd.f32 %v1009, %v1013
        %v1016 = vadd.f32 %v1010, %v1014
        %s1017 = sld [smem:[#allocation2 + $0x306]]
        %v1018 = vstv %s1017
        %v1019 = vmul.f32 %v639, %v1018
        %v1020 = vmul.f32 %v642, %v1018
        %v1021 = vadd.f32 %v1015, %v1019
        %v1022 = vadd.f32 %v1016, %v1020
        %s1023 = sld [smem:[#allocation2 + $0x307]]
        %v1024 = vstv %s1023
        %v1025 = vmul.f32 %v678, %v1024
        %v1026 = vmul.f32 %v681, %v1024
        %v1027 = vadd.f32 %v1021, %v1025
        %v1028 = vadd.f32 %v1022, %v1026
        %s1029 = sld [smem:[#allocation4 + $0x6]]
        %v1030 = vstv %s1029
        %v1031 = vadd.f32 %v1027, %v1030
        %v1032 = vadd.f32 %v1028, %v1030
        %s1033 = sld [smem:[#allocation2 + $0x380]]
        %v1034 = vstv %s1033
        %v1035 = vmul.f32 %v405, %v1034
        %v1036 = vmul.f32 %v408, %v1034
        %s1037 = sld [smem:[#allocation2 + $0x381]]
        %v1038 = vstv %s1037
        %v1039 = vmul.f32 %v444, %v1038
        %v1040 = vmul.f32 %v447, %v1038
        %v1041 = vadd.f32 %v1035, %v1039
        %v1042 = vadd.f32 %v1036, %v1040
        %s1043 = sld [smem:[#allocation2 + $0x382]]
        %v1044 = vstv %s1043
        %v1045 = vmul.f32 %v483, %v1044
        %v1046 = vmul.f32 %v486, %v1044
        %v1047 = vadd.f32 %v1041, %v1045
        %v1048 = vadd.f32 %v1042, %v1046
        %s1049 = sld [smem:[#allocation2 + $0x383]]
        %v1050 = vstv %s1049
        %v1051 = vmul.f32 %v522, %v1050
        %v1052 = vmul.f32 %v525, %v1050
        %v1053 = vadd.f32 %v1047, %v1051
        %v1054 = vadd.f32 %v1048, %v1052
        %s1055 = sld [smem:[#allocation2 + $0x384]]
        %v1056 = vstv %s1055
        %v1057 = vmul.f32 %v561, %v1056
        %v1058 = vmul.f32 %v564, %v1056
        %v1059 = vadd.f32 %v1053, %v1057
        %v1060 = vadd.f32 %v1054, %v1058
        %s1061 = sld [smem:[#allocation2 + $0x385]]
        %v1062 = vstv %s1061
        %v1063 = vmul.f32 %v600, %v1062
        %v1064 = vmul.f32 %v603, %v1062
        %v1065 = vadd.f32 %v1059, %v1063
        %v1066 = vadd.f32 %v1060, %v1064
        %s1067 = sld [smem:[#allocation2 + $0x386]]
        %v1068 = vstv %s1067
        %v1069 = vmul.f32 %v639, %v1068
        %v1070 = vmul.f32 %v642, %v1068
        %v1071 = vadd.f32 %v1065, %v1069
        %v1072 = vadd.f32 %v1066, %v1070
        %s1073 = sld [smem:[#allocation2 + $0x387]]
        %v1074 = vstv %s1073
        %v1075 = vmul.f32 %v678, %v1074
        %v1076 = vmul.f32 %v681, %v1074
        %v1077 = vadd.f32 %v1071, %v1075
        %v1078 = vadd.f32 %v1072, %v1076
        %s1079 = sld [smem:[#allocation4 + $0x7]]
        %v1080 = vstv %s1079
        %v1081 = vadd.f32 %v1077, %v1080
        %v1082 = vadd.f32 %v1078, %v1080
        %vm1083 = vcmask 130048
        %v1084 = vsel %vm1083, %v731, -inf
        %1085 = vmax.xlane.f32.xlu0 %v1084
        %v1086 = vpop.xlane.xlu0 %1085
        %v1087 = vsel %vm1083, %v732, -inf
        %1088 = vmax.xlane.f32.xlu0 %v1087
        %v1089 = vpop.xlane.xlu0 %1088
        %v1090 = vsub.f32 %v731, %v1086
        %v1091 = vsub.f32 %v732, %v1089
        %v1092 = vmul.f32 %v1090, 1.442695
        %v1093 = vpow.pop %v1092
        %v1094 = vmul.f32 %v1091, 1.442695
        %v1095 = vpow.pop %v1094
        %v1096 = vsel %vm1083, %v1093, 0.0
        %1097 = vadd.xlane.f32.xlu0 %v1096
        %v1098 = vpop.xlane.xlu0 %1097
        %v1099 = vsel %vm1083, %v1095, 0.0
        %1100 = vadd.xlane.f32.xlu0 %v1099
        %v1101 = vpop.xlane.xlu0 %1100
        %v1102 = vrcp.pop %v1098
        %v1103 = vmul.f32 %v1098, %v1102
        %v1104 = vsub.f32 1.0, %v1103
        %v1105 = vmul.f32 %v1102, %v1104
        %v1106 = vadd.f32 %v1102, %v1105
        %vm1107 = vweird.f32 %v1098
        %vm1108 = vweird.f32 %v1102
        %vm1109 = vmor %vm1107, %vm1108
        %v1110 = vsel %vm1109, %v1102, %v1106
        %v1111 = vand.u32 2147483647, %v1098
        %vm1112 = vcmp.eq.f32.partialorder %v1111, 8.507059e+37
        %v1113 = vand.u32 %v1098, 2147483648
        %v1114 = vor.u32 1.1754944e-38, %v1113
        %v1115 = vsel %vm1112, %v1114, %v1110
        %v1116 = vmul.f32 %v1093, %v1115
        %v1117 = vrcp.pop %v1101
        %v1118 = vmul.f32 %v1101, %v1117
        %v1119 = vsub.f32 1.0, %v1118
        %v1120 = vmul.f32 %v1117, %v1119
        %v1121 = vadd.f32 %v1117, %v1120
        %vm1122 = vweird.f32 %v1101
        %vm1123 = vweird.f32 %v1117
        %vm1124 = vmor %vm1122, %vm1123
        %v1125 = vsel %vm1124, %v1117, %v1121
        %v1126 = vand.u32 2147483647, %v1101
        %vm1127 = vcmp.eq.f32.partialorder %v1126, 8.507059e+37
        %v1128 = vand.u32 %v1101, 2147483648
        %v1129 = vor.u32 1.1754944e-38, %v1128
        %v1130 = vsel %vm1127, %v1129, %v1125
        %v1131 = vmul.f32 %v1095, %v1130
        %v1132 = vsel %vm1083, %v781, -inf
        %1133 = vmax.xlane.f32.xlu0 %v1132
        %v1134 = vpop.xlane.xlu0 %1133
        %v1135 = vsel %vm1083, %v782, -inf
        %1136 = vmax.xlane.f32.xlu0 %v1135
        %v1137 = vpop.xlane.xlu0 %1136
        %v1138 = vsub.f32 %v781, %v1134
        %v1139 = vsub.f32 %v782, %v1137
        %v1140 = vmul.f32 %v1138, 1.442695
        %v1141 = vpow.pop %v1140
        %v1142 = vmul.f32 %v1139, 1.442695
        %v1143 = vpow.pop %v1142
        %v1144 = vsel %vm1083, %v1141, 0.0
        %1145 = vadd.xlane.f32.xlu0 %v1144
        %v1146 = vpop.xlane.xlu0 %1145
        %v1147 = vsel %vm1083, %v1143, 0.0
        %1148 = vadd.xlane.f32.xlu0 %v1147
        %v1149 = vpop.xlane.xlu0 %1148
        %v1150 = vrcp.pop %v1146
        %v1151 = vmul.f32 %v1146, %v1150
        %v1152 = vsub.f32 1.0, %v1151
        %v1153 = vmul.f32 %v1150, %v1152
        %v1154 = vadd.f32 %v1150, %v1153
        %vm1155 = vweird.f32 %v1146
        %vm1156 = vweird.f32 %v1150
        %vm1157 = vmor %vm1155, %vm1156
        %v1158 = vsel %vm1157, %v1150, %v1154
        %v1159 = vand.u32 2147483647, %v1146
        %vm1160 = vcmp.eq.f32.partialorder %v1159, 8.507059e+37
        %v1161 = vand.u32 %v1146, 2147483648
        %v1162 = vor.u32 1.1754944e-38, %v1161
        %v1163 = vsel %vm1160, %v1162, %v1158
        %v1164 = vmul.f32 %v1141, %v1163
        %v1165 = vrcp.pop %v1149
        %v1166 = vmul.f32 %v1149, %v1165
        %v1167 = vsub.f32 1.0, %v1166
        %v1168 = vmul.f32 %v1165, %v1167
        %v1169 = vadd.f32 %v1165, %v1168
        %vm1170 = vweird.f32 %v1149
        %vm1171 = vweird.f32 %v1165
        %vm1172 = vmor %vm1170, %vm1171
        %v1173 = vsel %vm1172, %v1165, %v1169
        %v1174 = vand.u32 2147483647, %v1149
        %vm1175 = vcmp.eq.f32.partialorder %v1174, 8.507059e+37
        %v1176 = vand.u32 %v1149, 2147483648
        %v1177 = vor.u32 1.1754944e-38, %v1176
        %v1178 = vsel %vm1175, %v1177, %v1173
        %v1179 = vmul.f32 %v1143, %v1178
        %v1180 = vsel %vm1083, %v831, -inf
        %1181 = vmax.xlane.f32.xlu0 %v1180
        %v1182 = vpop.xlane.xlu0 %1181
        %v1183 = vsel %vm1083, %v832, -inf
        %1184 = vmax.xlane.f32.xlu0 %v1183
        %v1185 = vpop.xlane.xlu0 %1184
        %v1186 = vsub.f32 %v831, %v1182
        %v1187 = vsub.f32 %v832, %v1185
        %v1188 = vmul.f32 %v1186, 1.442695
        %v1189 = vpow.pop %v1188
        %v1190 = vmul.f32 %v1187, 1.442695
        %v1191 = vpow.pop %v1190
        %v1192 = vsel %vm1083, %v1189, 0.0
        %1193 = vadd.xlane.f32.xlu0 %v1192
        %v1194 = vpop.xlane.xlu0 %1193
        %v1195 = vsel %vm1083, %v1191, 0.0
        %1196 = vadd.xlane.f32.xlu0 %v1195
        %v1197 = vpop.xlane.xlu0 %1196
        %v1198 = vrcp.pop %v1194
        %v1199 = vmul.f32 %v1194, %v1198
        %v1200 = vsub.f32 1.0, %v1199
        %v1201 = vmul.f32 %v1198, %v1200
        %v1202 = vadd.f32 %v1198, %v1201
        %vm1203 = vweird.f32 %v1194
        %vm1204 = vweird.f32 %v1198
        %vm1205 = vmor %vm1203, %vm1204
        %v1206 = vsel %vm1205, %v1198, %v1202
        %v1207 = vand.u32 2147483647, %v1194
        %vm1208 = vcmp.eq.f32.partialorder %v1207, 8.507059e+37
        %v1209 = vand.u32 %v1194, 2147483648
        %v1210 = vor.u32 1.1754944e-38, %v1209
        %v1211 = vsel %vm1208, %v1210, %v1206
        %v1212 = vmul.f32 %v1189, %v1211
        %v1213 = vrcp.pop %v1197
        %v1214 = vmul.f32 %v1197, %v1213
        %v1215 = vsub.f32 1.0, %v1214
        %v1216 = vmul.f32 %v1213, %v1215
        %v1217 = vadd.f32 %v1213, %v1216
        %vm1218 = vweird.f32 %v1197
        %vm1219 = vweird.f32 %v1213
        %vm1220 = vmor %vm1218, %vm1219
        %v1221 = vsel %vm1220, %v1213, %v1217
        %v1222 = vand.u32 2147483647, %v1197
        %vm1223 = vcmp.eq.f32.partialorder %v1222, 8.507059e+37
        %v1224 = vand.u32 %v1197, 2147483648
        %v1225 = vor.u32 1.1754944e-38, %v1224
        %v1226 = vsel %vm1223, %v1225, %v1221
        %v1227 = vmul.f32 %v1191, %v1226
        %v1228 = vsel %vm1083, %v881, -inf
        %1229 = vmax.xlane.f32.xlu0 %v1228
        %v1230 = vpop.xlane.xlu0 %1229
        %v1231 = vsel %vm1083, %v882, -inf
        %1232 = vmax.xlane.f32.xlu0 %v1231
        %v1233 = vpop.xlane.xlu0 %1232
        %v1234 = vsub.f32 %v881, %v1230
        %v1235 = vsub.f32 %v882, %v1233
        %v1236 = vmul.f32 %v1234, 1.442695
        %v1237 = vpow.pop %v1236
        %v1238 = vmul.f32 %v1235, 1.442695
        %v1239 = vpow.pop %v1238
        %v1240 = vsel %vm1083, %v1237, 0.0
        %1241 = vadd.xlane.f32.xlu0 %v1240
        %v1242 = vpop.xlane.xlu0 %1241
        %v1243 = vsel %vm1083, %v1239, 0.0
        %1244 = vadd.xlane.f32.xlu0 %v1243
        %v1245 = vpop.xlane.xlu0 %1244
        %v1246 = vrcp.pop %v1242
        %v1247 = vmul.f32 %v1242, %v1246
        %v1248 = vsub.f32 1.0, %v1247
        %v1249 = vmul.f32 %v1246, %v1248
        %v1250 = vadd.f32 %v1246, %v1249
        %vm1251 = vweird.f32 %v1242
        %vm1252 = vweird.f32 %v1246
        %vm1253 = vmor %vm1251, %vm1252
        %v1254 = vsel %vm1253, %v1246, %v1250
        %v1255 = vand.u32 2147483647, %v1242
        %vm1256 = vcmp.eq.f32.partialorder %v1255, 8.507059e+37
        %v1257 = vand.u32 %v1242, 2147483648
        %v1258 = vor.u32 1.1754944e-38, %v1257
        %v1259 = vsel %vm1256, %v1258, %v1254
        %v1260 = vmul.f32 %v1237, %v1259
        %v1261 = vrcp.pop %v1245
        %v1262 = vmul.f32 %v1245, %v1261
        %v1263 = vsub.f32 1.0, %v1262
        %v1264 = vmul.f32 %v1261, %v1263
        %v1265 = vadd.f32 %v1261, %v1264
        %vm1266 = vweird.f32 %v1245
        %vm1267 = vweird.f32 %v1261
        %vm1268 = vmor %vm1266, %vm1267
        %v1269 = vsel %vm1268, %v1261, %v1265
        %v1270 = vand.u32 2147483647, %v1245
        %vm1271 = vcmp.eq.f32.partialorder %v1270, 8.507059e+37
        %v1272 = vand.u32 %v1245, 2147483648
        %v1273 = vor.u32 1.1754944e-38, %v1272
        %v1274 = vsel %vm1271, %v1273, %v1269
        %v1275 = vmul.f32 %v1239, %v1274
        %v1276 = vsel %vm1083, %v931, -inf
        %1277 = vmax.xlane.f32.xlu0 %v1276
        %v1278 = vpop.xlane.xlu0 %1277
        %v1279 = vsel %vm1083, %v932, -inf
        %1280 = vmax.xlane.f32.xlu0 %v1279
        %v1281 = vpop.xlane.xlu0 %1280
        %v1282 = vsub.f32 %v931, %v1278
        %v1283 = vsub.f32 %v932, %v1281
        %v1284 = vmul.f32 %v1282, 1.442695
        %v1285 = vpow.pop %v1284
        %v1286 = vmul.f32 %v1283, 1.442695
        %v1287 = vpow.pop %v1286
        %v1288 = vsel %vm1083, %v1285, 0.0
        %1289 = vadd.xlane.f32.xlu0 %v1288
        %v1290 = vpop.xlane.xlu0 %1289
        %v1291 = vsel %vm1083, %v1287, 0.0
        %1292 = vadd.xlane.f32.xlu0 %v1291
        %v1293 = vpop.xlane.xlu0 %1292
        %v1294 = vrcp.pop %v1290
        %v1295 = vmul.f32 %v1290, %v1294
        %v1296 = vsub.f32 1.0, %v1295
        %v1297 = vmul.f32 %v1294, %v1296
        %v1298 = vadd.f32 %v1294, %v1297
        %vm1299 = vweird.f32 %v1290
        %vm1300 = vweird.f32 %v1294
        %vm1301 = vmor %vm1299, %vm1300
        %v1302 = vsel %vm1301, %v1294, %v1298
        %v1303 = vand.u32 2147483647, %v1290
        %vm1304 = vcmp.eq.f32.partialorder %v1303, 8.507059e+37
        %v1305 = vand.u32 %v1290, 2147483648
        %v1306 = vor.u32 1.1754944e-38, %v1305
        %v1307 = vsel %vm1304, %v1306, %v1302
        %v1308 = vmul.f32 %v1285, %v1307
        %v1309 = vrcp.pop %v1293
        %v1310 = vmul.f32 %v1293, %v1309
        %v1311 = vsub.f32 1.0, %v1310
        %v1312 = vmul.f32 %v1309, %v1311
        %v1313 = vadd.f32 %v1309, %v1312
        %vm1314 = vweird.f32 %v1293
        %vm1315 = vweird.f32 %v1309
        %vm1316 = vmor %vm1314, %vm1315
        %v1317 = vsel %vm1316, %v1309, %v1313
        %v1318 = vand.u32 2147483647, %v1293
        %vm1319 = vcmp.eq.f32.partialorder %v1318, 8.507059e+37
        %v1320 = vand.u32 %v1293, 2147483648
        %v1321 = vor.u32 1.1754944e-38, %v1320
        %v1322 = vsel %vm1319, %v1321, %v1317
        %v1323 = vmul.f32 %v1287, %v1322
        %v1324 = vsel %vm1083, %v981, -inf
        %1325 = vmax.xlane.f32.xlu0 %v1324
        %v1326 = vpop.xlane.xlu0 %1325
        %v1327 = vsel %vm1083, %v982, -inf
        %1328 = vmax.xlane.f32.xlu0 %v1327
        %v1329 = vpop.xlane.xlu0 %1328
        %v1330 = vsub.f32 %v981, %v1326
        %v1331 = vsub.f32 %v982, %v1329
        %v1332 = vmul.f32 %v1330, 1.442695
        %v1333 = vpow.pop %v1332
        %v1334 = vmul.f32 %v1331, 1.442695
        %v1335 = vpow.pop %v1334
        %v1336 = vsel %vm1083, %v1333, 0.0
        %1337 = vadd.xlane.f32.xlu0 %v1336
        %v1338 = vpop.xlane.xlu0 %1337
        %v1339 = vsel %vm1083, %v1335, 0.0
        %1340 = vadd.xlane.f32.xlu0 %v1339
        %v1341 = vpop.xlane.xlu0 %1340
        %v1342 = vrcp.pop %v1338
        %v1343 = vmul.f32 %v1338, %v1342
        %v1344 = vsub.f32 1.0, %v1343
        %v1345 = vmul.f32 %v1342, %v1344
        %v1346 = vadd.f32 %v1342, %v1345
        %vm1347 = vweird.f32 %v1338
        %vm1348 = vweird.f32 %v1342
        %vm1349 = vmor %vm1347, %vm1348
        %v1350 = vsel %vm1349, %v1342, %v1346
        %v1351 = vand.u32 2147483647, %v1338
        %vm1352 = vcmp.eq.f32.partialorder %v1351, 8.507059e+37
        %v1353 = vand.u32 %v1338, 2147483648
        %v1354 = vor.u32 1.1754944e-38, %v1353
        %v1355 = vsel %vm1352, %v1354, %v1350
        %v1356 = vmul.f32 %v1333, %v1355
        %v1357 = vrcp.pop %v1341
        %v1358 = vmul.f32 %v1341, %v1357
        %v1359 = vsub.f32 1.0, %v1358
        %v1360 = vmul.f32 %v1357, %v1359
        %v1361 = vadd.f32 %v1357, %v1360
        %vm1362 = vweird.f32 %v1341
        %vm1363 = vweird.f32 %v1357
        %vm1364 = vmor %vm1362, %vm1363
        %v1365 = vsel %vm1364, %v1357, %v1361
        %v1366 = vand.u32 2147483647, %v1341
        %vm1367 = vcmp.eq.f32.partialorder %v1366, 8.507059e+37
        %v1368 = vand.u32 %v1341, 2147483648
        %v1369 = vor.u32 1.1754944e-38, %v1368
        %v1370 = vsel %vm1367, %v1369, %v1365
        %v1371 = vmul.f32 %v1335, %v1370
        %v1372 = vsel %vm1083, %v1031, -inf
        %1373 = vmax.xlane.f32.xlu0 %v1372
        %v1374 = vpop.xlane.xlu0 %1373
        %v1375 = vsel %vm1083, %v1032, -inf
        %1376 = vmax.xlane.f32.xlu0 %v1375
        %v1377 = vpop.xlane.xlu0 %1376
        %v1378 = vsub.f32 %v1031, %v1374
        %v1379 = vsub.f32 %v1032, %v1377
        %v1380 = vmul.f32 %v1378, 1.442695
        %v1381 = vpow.pop %v1380
        %v1382 = vmul.f32 %v1379, 1.442695
        %v1383 = vpow.pop %v1382
        %v1384 = vsel %vm1083, %v1381, 0.0
        %1385 = vadd.xlane.f32.xlu0 %v1384
        %v1386 = vpop.xlane.xlu0 %1385
        %v1387 = vsel %vm1083, %v1383, 0.0
        %1388 = vadd.xlane.f32.xlu0 %v1387
        %v1389 = vpop.xlane.xlu0 %1388
        %v1390 = vrcp.pop %v1386
        %v1391 = vmul.f32 %v1386, %v1390
        %v1392 = vsub.f32 1.0, %v1391
        %v1393 = vmul.f32 %v1390, %v1392
        %v1394 = vadd.f32 %v1390, %v1393
        %vm1395 = vweird.f32 %v1386
        %vm1396 = vweird.f32 %v1390
        %vm1397 = vmor %vm1395, %vm1396
        %v1398 = vsel %vm1397, %v1390, %v1394
        %v1399 = vand.u32 2147483647, %v1386
        %vm1400 = vcmp.eq.f32.partialorder %v1399, 8.507059e+37
        %v1401 = vand.u32 %v1386, 2147483648
        %v1402 = vor.u32 1.1754944e-38, %v1401
        %v1403 = vsel %vm1400, %v1402, %v1398
        %v1404 = vmul.f32 %v1381, %v1403
        %v1405 = vrcp.pop %v1389
        %v1406 = vmul.f32 %v1389, %v1405
        %v1407 = vsub.f32 1.0, %v1406
        %v1408 = vmul.f32 %v1405, %v1407
        %v1409 = vadd.f32 %v1405, %v1408
        %vm1410 = vweird.f32 %v1389
        %vm1411 = vweird.f32 %v1405
        %vm1412 = vmor %vm1410, %vm1411
        %v1413 = vsel %vm1412, %v1405, %v1409
        %v1414 = vand.u32 2147483647, %v1389
        %vm1415 = vcmp.eq.f32.partialorder %v1414, 8.507059e+37
        %v1416 = vand.u32 %v1389, 2147483648
        %v1417 = vor.u32 1.1754944e-38, %v1416
        %v1418 = vsel %vm1415, %v1417, %v1413
        %v1419 = vmul.f32 %v1383, %v1418
        %v1420 = vsel %vm1083, %v1081, -inf
        %1421 = vmax.xlane.f32.xlu0 %v1420
        %v1422 = vpop.xlane.xlu0 %1421
        %v1423 = vsel %vm1083, %v1082, -inf
        %1424 = vmax.xlane.f32.xlu0 %v1423
        %v1425 = vpop.xlane.xlu0 %1424
        %v1426 = vsub.f32 %v1081, %v1422
        %v1427 = vsub.f32 %v1082, %v1425
        %v1428 = vmul.f32 %v1426, 1.442695
        %v1429 = vpow.pop %v1428
        %v1430 = vmul.f32 %v1427, 1.442695
        %v1431 = vpow.pop %v1430
        %v1432 = vsel %vm1083, %v1429, 0.0
        %1433 = vadd.xlane.f32.xlu0 %v1432
        %v1434 = vpop.xlane.xlu0 %1433
        %v1435 = vsel %vm1083, %v1431, 0.0
        %1436 = vadd.xlane.f32.xlu0 %v1435
        %v1437 = vpop.xlane.xlu0 %1436
        %v1438 = vrcp.pop %v1434
        %v1439 = vmul.f32 %v1434, %v1438
        %v1440 = vsub.f32 1.0, %v1439
        %v1441 = vmul.f32 %v1438, %v1440
        %v1442 = vadd.f32 %v1438, %v1441
        %vm1443 = vweird.f32 %v1434
        %vm1444 = vweird.f32 %v1438
        %vm1445 = vmor %vm1443, %vm1444
        %v1446 = vsel %vm1445, %v1438, %v1442
        %v1447 = vand.u32 2147483647, %v1434
        %vm1448 = vcmp.eq.f32.partialorder %v1447, 8.507059e+37
        %v1449 = vand.u32 %v1434, 2147483648
        %v1450 = vor.u32 1.1754944e-38, %v1449
        %v1451 = vsel %vm1448, %v1450, %v1446
        %v1452 = vmul.f32 %v1429, %v1451
        %v1453 = vrcp.pop %v1437
        %v1454 = vmul.f32 %v1437, %v1453
        %v1455 = vsub.f32 1.0, %v1454
        %v1456 = vmul.f32 %v1453, %v1455
        %v1457 = vadd.f32 %v1453, %v1456
        %vm1458 = vweird.f32 %v1437
        %vm1459 = vweird.f32 %v1453
        %vm1460 = vmor %vm1458, %vm1459
        %v1461 = vsel %vm1460, %v1453, %v1457
        %v1462 = vand.u32 2147483647, %v1437
        %vm1463 = vcmp.eq.f32.partialorder %v1462, 8.507059e+37
        %v1464 = vand.u32 %v1437, 2147483648
        %v1465 = vor.u32 1.1754944e-38, %v1464
        %v1466 = vsel %vm1463, %v1465, %v1461
        %v1467 = vmul.f32 %v1431, %v1466
        %s1468 = sld [smem:[#allocation6]]
        %v1469 = vstv %s1468
        %v1470 = vmul.f32 %v1116, %v1469
        %v1471 = vmul.f32 %v1131, %v1469
        %s1472 = sld [smem:[#allocation6 + $0x1]]
        %v1473 = vstv %s1472
        %v1474 = vmul.f32 %v1164, %v1473
        %v1475 = vmul.f32 %v1179, %v1473
        %v1476 = vadd.f32 %v1470, %v1474
        %v1477 = vadd.f32 %v1471, %v1475
        %s1478 = sld [smem:[#allocation6 + $0x2]]
        %v1479 = vstv %s1478
        %v1480 = vmul.f32 %v1212, %v1479
        %v1481 = vmul.f32 %v1227, %v1479
        %v1482 = vadd.f32 %v1476, %v1480
        %v1483 = vadd.f32 %v1477, %v1481
        %s1484 = sld [smem:[#allocation6 + $0x3]]
        %v1485 = vstv %s1484
        %v1486 = vmul.f32 %v1260, %v1485
        %v1487 = vmul.f32 %v1275, %v1485
        %v1488 = vadd.f32 %v1482, %v1486
        %v1489 = vadd.f32 %v1483, %v1487
        %s1490 = sld [smem:[#allocation6 + $0x4]]
        %v1491 = vstv %s1490
        %v1492 = vmul.f32 %v1308, %v1491
        %v1493 = vmul.f32 %v1323, %v1491
        %v1494 = vadd.f32 %v1488, %v1492
        %v1495 = vadd.f32 %v1489, %v1493
        %s1496 = sld [smem:[#allocation6 + $0x5]]
        %v1497 = vstv %s1496
        %v1498 = vmul.f32 %v1356, %v1497
        %v1499 = vmul.f32 %v1371, %v1497
        %v1500 = vadd.f32 %v1494, %v1498
        %v1501 = vadd.f32 %v1495, %v1499
        %s1502 = sld [smem:[#allocation6 + $0x6]]
        %v1503 = vstv %s1502
        %v1504 = vmul.f32 %v1404, %v1503
        %v1505 = vmul.f32 %v1419, %v1503
        %v1506 = vadd.f32 %v1500, %v1504
        %v1507 = vadd.f32 %v1501, %v1505
        %s1508 = sld [smem:[#allocation6 + $0x7]]
        %v1509 = vstv %s1508
        %v1510 = vmul.f32 %v1452, %v1509
        %v1511 = vmul.f32 %v1467, %v1509
        %v1512 = vadd.f32 %v1506, %v1510
        %v1513 = vadd.f32 %v1507, %v1511
        %s1514 = sld [smem:[#allocation7]]
        %v1515 = vstv %s1514
        %v1516 = vadd.f32 %v1512, %v1515
        %v1517 = vadd.f32 %v1513, %v1515
        %v1518 = vld [vmem:[%s365] sm:$0xff]
        %v1519 = vld [vmem:[%s365 + $0x8] sm:$0xff]
        %v1521 = vsel %vm1083, %v1516, 0
        %v1524 = vsel %vm1083, %v1517, 0
        %1526 = vmatpush.msra.mxu0 0.0
        %1527 = vmatpush.msra.mxu0 0.0
        %1528 = vmatpush.msra.mxu0 0.0
        %1529 = vmatpush.msra.mxu0 0.0
        %1530 = vmatpush.msra.mxu0 0.0
        %1531 = vmatpush.msra.mxu0 0.0
        %1532 = vmatpush.msra.mxu0 0.0
        %1533 = vmatpush.msra.mxu0 0.0
        %1534 = vmatpush.msra.mxu0 0.0
        %1535 = vmatpush.msra.mxu0 0.0
        %1536 = vmatpush.msra.mxu0 0.0
        %1537 = vmatpush.msra.mxu0 0.0
        %1538 = vmatpush.msra.mxu0 0.0
        %1539 = vmatpush.msra.mxu0 0.0
        %1540 = vmatpush.msra.mxu0 %v1519
        %1541 = vmatpush.msra.mxu0 %v1518
        %1542 = vmatmul.f32.gmra.mxu0 %v1521
        %v1543 = vpop.f32.mrf.mxu0
        %v1544 = vadd.f32 0.0, %v1543
        %1545 = vmatmul.f32.gmra.mxu0 %v1524
        %v1546 = vpop.f32.mrf.mxu0
        %v1547 = vadd.f32 0.0, %v1546
        %1548 = vdwg.mxu0
        %1549 = vst.msk [vmem:[%s370] sm:$0xff] %vm376, %v1544
        %1550 = vst.msk [vmem:[%s370 + $0x8] sm:$0xff] %vm376, %v1547
        %s1551 = sld [smem:[#allocation6 + $0x80]]
        %v1552 = vstv %s1551
        %v1553 = vmul.f32 %v1116, %v1552
        %v1554 = vmul.f32 %v1131, %v1552
        %s1555 = sld [smem:[#allocation6 + $0x81]]
        %v1556 = vstv %s1555
        %v1557 = vmul.f32 %v1164, %v1556
        %v1558 = vmul.f32 %v1179, %v1556
        %v1559 = vadd.f32 %v1553, %v1557
        %v1560 = vadd.f32 %v1554, %v1558
        %s1561 = sld [smem:[#allocation6 + $0x82]]
        %v1562 = vstv %s1561
        %v1563 = vmul.f32 %v1212, %v1562
        %v1564 = vmul.f32 %v1227, %v1562
        %v1565 = vadd.f32 %v1559, %v1563
        %v1566 = vadd.f32 %v1560, %v1564
        %s1567 = sld [smem:[#allocation6 + $0x83]]
        %v1568 = vstv %s1567
        %v1569 = vmul.f32 %v1260, %v1568
        %v1570 = vmul.f32 %v1275, %v1568
        %v1571 = vadd.f32 %v1565, %v1569
        %v1572 = vadd.f32 %v1566, %v1570
        %s1573 = sld [smem:[#allocation6 + $0x84]]
        %v1574 = vstv %s1573
        %v1575 = vmul.f32 %v1308, %v1574
        %v1576 = vmul.f32 %v1323, %v1574
        %v1577 = vadd.f32 %v1571, %v1575
        %v1578 = vadd.f32 %v1572, %v1576
        %s1579 = sld [smem:[#allocation6 + $0x85]]
        %v1580 = vstv %s1579
        %v1581 = vmul.f32 %v1356, %v1580
        %v1582 = vmul.f32 %v1371, %v1580
        %v1583 = vadd.f32 %v1577, %v1581
        %v1584 = vadd.f32 %v1578, %v1582
        %s1585 = sld [smem:[#allocation6 + $0x86]]
        %v1586 = vstv %s1585
        %v1587 = vmul.f32 %v1404, %v1586
        %v1588 = vmul.f32 %v1419, %v1586
        %v1589 = vadd.f32 %v1583, %v1587
        %v1590 = vadd.f32 %v1584, %v1588
        %s1591 = sld [smem:[#allocation6 + $0x87]]
        %v1592 = vstv %s1591
        %v1593 = vmul.f32 %v1452, %v1592
        %v1594 = vmul.f32 %v1467, %v1592
        %v1595 = vadd.f32 %v1589, %v1593
        %v1596 = vadd.f32 %v1590, %v1594
        %s1597 = sld [smem:[#allocation7 + $0x1]]
        %v1598 = vstv %s1597
        %v1599 = vadd.f32 %v1595, %v1598
        %v1600 = vadd.f32 %v1596, %v1598
        %s1601 = scalar_lea.vmem %s365, 16
        %v1602 = vld [vmem:[%s1601] sm:$0xff]
        %v1603 = vld [vmem:[%s1601 + $0x8] sm:$0xff]
        %v1605 = vsel %vm1083, %v1599, 0
        %v1608 = vsel %vm1083, %v1600, 0
        %1610 = vmatpush.msra.mxu0 0.0
        %1611 = vmatpush.msra.mxu0 0.0
        %1612 = vmatpush.msra.mxu0 0.0
        %1613 = vmatpush.msra.mxu0 0.0
        %1614 = vmatpush.msra.mxu0 0.0
        %1615 = vmatpush.msra.mxu0 0.0
        %1616 = vmatpush.msra.mxu0 0.0
        %1617 = vmatpush.msra.mxu0 0.0
        %1618 = vmatpush.msra.mxu0 0.0
        %1619 = vmatpush.msra.mxu0 0.0
        %1620 = vmatpush.msra.mxu0 0.0
        %1621 = vmatpush.msra.mxu0 0.0
        %1622 = vmatpush.msra.mxu0 0.0
        %1623 = vmatpush.msra.mxu0 0.0
        %1624 = vmatpush.msra.mxu0 %v1603
        %1625 = vmatpush.msra.mxu0 %v1602
        %1626 = vmatmul.f32.gmra.mxu0 %v1605
        %v1627 = vpop.f32.mrf.mxu0
        %v1628 = vadd.f32 0.0, %v1627
        %1629 = vmatmul.f32.gmra.mxu0 %v1608
        %v1630 = vpop.f32.mrf.mxu0
        %v1631 = vadd.f32 0.0, %v1630
        %1632 = vdwg.mxu0
        %1635 = vrot.lane.b32.xlu0 %v1628, 4
        %v1636 = vpop.permute.xlu0 %1635
        %1637 = vrot.lane.b32.xlu0 %v1631, 4
        %v1638 = vpop.permute.xlu0 %1637
        %vm1641 = vcmask 64544
        %1642 = vst.msk [vmem:[%s370] sm:$0xff] %vm1641, %v1636
        %1643 = vst.msk [vmem:[%s370 + $0x8] sm:$0xff] %vm1641, %v1638
        %s1644 = sld [smem:[#allocation6 + $0x100]]
        %v1645 = vstv %s1644
        %v1646 = vmul.f32 %v1116, %v1645
        %v1647 = vmul.f32 %v1131, %v1645
        %s1648 = sld [smem:[#allocation6 + $0x101]]
        %v1649 = vstv %s1648
        %v1650 = vmul.f32 %v1164, %v1649
        %v1651 = vmul.f32 %v1179, %v1649
        %v1652 = vadd.f32 %v1646, %v1650
        %v1653 = vadd.f32 %v1647, %v1651
        %s1654 = sld [smem:[#allocation6 + $0x102]]
        %v1655 = vstv %s1654
        %v1656 = vmul.f32 %v1212, %v1655
        %v1657 = vmul.f32 %v1227, %v1655
        %v1658 = vadd.f32 %v1652, %v1656
        %v1659 = vadd.f32 %v1653, %v1657
        %s1660 = sld [smem:[#allocation6 + $0x103]]
        %v1661 = vstv %s1660
        %v1662 = vmul.f32 %v1260, %v1661
        %v1663 = vmul.f32 %v1275, %v1661
        %v1664 = vadd.f32 %v1658, %v1662
        %v1665 = vadd.f32 %v1659, %v1663
        %s1666 = sld [smem:[#allocation6 + $0x104]]
        %v1667 = vstv %s1666
        %v1668 = vmul.f32 %v1308, %v1667
        %v1669 = vmul.f32 %v1323, %v1667
        %v1670 = vadd.f32 %v1664, %v1668
        %v1671 = vadd.f32 %v1665, %v1669
        %s1672 = sld [smem:[#allocation6 + $0x105]]
        %v1673 = vstv %s1672
        %v1674 = vmul.f32 %v1356, %v1673
        %v1675 = vmul.f32 %v1371, %v1673
        %v1676 = vadd.f32 %v1670, %v1674
        %v1677 = vadd.f32 %v1671, %v1675
        %s1678 = sld [smem:[#allocation6 + $0x106]]
        %v1679 = vstv %s1678
        %v1680 = vmul.f32 %v1404, %v1679
        %v1681 = vmul.f32 %v1419, %v1679
        %v1682 = vadd.f32 %v1676, %v1680
        %v1683 = vadd.f32 %v1677, %v1681
        %s1684 = sld [smem:[#allocation6 + $0x107]]
        %v1685 = vstv %s1684
        %v1686 = vmul.f32 %v1452, %v1685
        %v1687 = vmul.f32 %v1467, %v1685
        %v1688 = vadd.f32 %v1682, %v1686
        %v1689 = vadd.f32 %v1683, %v1687
        %s1690 = sld [smem:[#allocation7 + $0x2]]
        %v1691 = vstv %s1690
        %v1692 = vadd.f32 %v1688, %v1691
        %v1693 = vadd.f32 %v1689, %v1691
        %s1694 = scalar_lea.vmem %s365, 32
        %v1695 = vld [vmem:[%s1694] sm:$0xff]
        %v1696 = vld [vmem:[%s1694 + $0x8] sm:$0xff]
        %v1698 = vsel %vm1083, %v1692, 0
        %v1701 = vsel %vm1083, %v1693, 0
        %1703 = vmatpush.msra.mxu0 0.0
        %1704 = vmatpush.msra.mxu0 0.0
        %1705 = vmatpush.msra.mxu0 0.0
        %1706 = vmatpush.msra.mxu0 0.0
        %1707 = vmatpush.msra.mxu0 0.0
        %1708 = vmatpush.msra.mxu0 0.0
        %1709 = vmatpush.msra.mxu0 0.0
        %1710 = vmatpush.msra.mxu0 0.0
        %1711 = vmatpush.msra.mxu0 0.0
        %1712 = vmatpush.msra.mxu0 0.0
        %1713 = vmatpush.msra.mxu0 0.0
        %1714 = vmatpush.msra.mxu0 0.0
        %1715 = vmatpush.msra.mxu0 0.0
        %1716 = vmatpush.msra.mxu0 0.0
        %1717 = vmatpush.msra.mxu0 %v1696
        %1718 = vmatpush.msra.mxu0 %v1695
        %1719 = vmatmul.f32.gmra.mxu0 %v1698
        %v1720 = vpop.f32.mrf.mxu0
        %v1721 = vadd.f32 0.0, %v1720
        %1722 = vmatmul.f32.gmra.mxu0 %v1701
        %v1723 = vpop.f32.mrf.mxu0
        %v1724 = vadd.f32 0.0, %v1723
        %1725 = vdwg.mxu0
        %1728 = vrot.lane.b32.xlu0 %v1721, 8
        %v1729 = vpop.permute.xlu0 %1728
        %1730 = vrot.lane.b32.xlu0 %v1724, 8
        %v1731 = vpop.permute.xlu0 %1730
        %vm1734 = vcmask 97344
        %1735 = vst.msk [vmem:[%s370] sm:$0xff] %vm1734, %v1729
        %1736 = vst.msk [vmem:[%s370 + $0x8] sm:$0xff] %vm1734, %v1731
        %s1737 = sld [smem:[#allocation6 + $0x180]]
        %v1738 = vstv %s1737
        %v1739 = vmul.f32 %v1116, %v1738
        %v1740 = vmul.f32 %v1131, %v1738
        %s1741 = sld [smem:[#allocation6 + $0x181]]
        %v1742 = vstv %s1741
        %v1743 = vmul.f32 %v1164, %v1742
        %v1744 = vmul.f32 %v1179, %v1742
        %v1745 = vadd.f32 %v1739, %v1743
        %v1746 = vadd.f32 %v1740, %v1744
        %s1747 = sld [smem:[#allocation6 + $0x182]]
        %v1748 = vstv %s1747
        %v1749 = vmul.f32 %v1212, %v1748
        %v1750 = vmul.f32 %v1227, %v1748
        %v1751 = vadd.f32 %v1745, %v1749
        %v1752 = vadd.f32 %v1746, %v1750
        %s1753 = sld [smem:[#allocation6 + $0x183]]
        %v1754 = vstv %s1753
        %v1755 = vmul.f32 %v1260, %v1754
        %v1756 = vmul.f32 %v1275, %v1754
        %v1757 = vadd.f32 %v1751, %v1755
        %v1758 = vadd.f32 %v1752, %v1756
        %s1759 = sld [smem:[#allocation6 + $0x184]]
        %v1760 = vstv %s1759
        %v1761 = vmul.f32 %v1308, %v1760
        %v1762 = vmul.f32 %v1323, %v1760
        %v1763 = vadd.f32 %v1757, %v1761
        %v1764 = vadd.f32 %v1758, %v1762
        %s1765 = sld [smem:[#allocation6 + $0x185]]
        %v1766 = vstv %s1765
        %v1767 = vmul.f32 %v1356, %v1766
        %v1768 = vmul.f32 %v1371, %v1766
        %v1769 = vadd.f32 %v1763, %v1767
        %v1770 = vadd.f32 %v1764, %v1768
        %s1771 = sld [smem:[#allocation6 + $0x186]]
        %v1772 = vstv %s1771
        %v1773 = vmul.f32 %v1404, %v1772
        %v1774 = vmul.f32 %v1419, %v1772
        %v1775 = vadd.f32 %v1769, %v1773
        %v1776 = vadd.f32 %v1770, %v1774
        %s1777 = sld [smem:[#allocation6 + $0x187]]
        %v1778 = vstv %s1777
        %v1779 = vmul.f32 %v1452, %v1778
        %v1780 = vmul.f32 %v1467, %v1778
        %v1781 = vadd.f32 %v1775, %v1779
        %v1782 = vadd.f32 %v1776, %v1780
        %s1783 = sld [smem:[#allocation7 + $0x3]]
        %v1784 = vstv %s1783
        %v1785 = vadd.f32 %v1781, %v1784
        %v1786 = vadd.f32 %v1782, %v1784
        %s1787 = scalar_lea.vmem %s365, 48
        %v1788 = vld [vmem:[%s1787] sm:$0xff]
        %v1789 = vld [vmem:[%s1787 + $0x8] sm:$0xff]
        %v1791 = vsel %vm1083, %v1785, 0
        %v1794 = vsel %vm1083, %v1786, 0
        %1796 = vmatpush.msra.mxu0 0.0
        %1797 = vmatpush.msra.mxu0 0.0
        %1798 = vmatpush.msra.mxu0 0.0
        %1799 = vmatpush.msra.mxu0 0.0
        %1800 = vmatpush.msra.mxu0 0.0
        %1801 = vmatpush.msra.mxu0 0.0
        %1802 = vmatpush.msra.mxu0 0.0
        %1803 = vmatpush.msra.mxu0 0.0
        %1804 = vmatpush.msra.mxu0 0.0
        %1805 = vmatpush.msra.mxu0 0.0
        %1806 = vmatpush.msra.mxu0 0.0
        %1807 = vmatpush.msra.mxu0 0.0
        %1808 = vmatpush.msra.mxu0 0.0
        %1809 = vmatpush.msra.mxu0 0.0
        %1810 = vmatpush.msra.mxu0 %v1789
        %1811 = vmatpush.msra.mxu0 %v1788
        %1812 = vmatmul.f32.gmra.mxu0 %v1791
        %v1813 = vpop.f32.mrf.mxu0
        %v1814 = vadd.f32 0.0, %v1813
        %1815 = vmatmul.f32.gmra.mxu0 %v1794
        %v1816 = vpop.f32.mrf.mxu0
        %v1817 = vadd.f32 0.0, %v1816
        %1818 = vdwg.mxu0
        %1821 = vrot.lane.b32.xlu0 %v1814, 12
        %v1822 = vpop.permute.xlu0 %1821
        %1823 = vrot.lane.b32.xlu0 %v1817, 12
        %v1824 = vpop.permute.xlu0 %1823
        %vm1827 = vcmask 130144
        %1828 = vst.msk [vmem:[%s370] sm:$0xff] %vm1827, %v1822
        %1829 = vst.msk [vmem:[%s370 + $0x8] sm:$0xff] %vm1827, %v1824
        %s1830 = sld [smem:[#allocation6 + $0x200]]
        %v1831 = vstv %s1830
        %v1832 = vmul.f32 %v1116, %v1831
        %v1833 = vmul.f32 %v1131, %v1831
        %s1834 = sld [smem:[#allocation6 + $0x201]]
        %v1835 = vstv %s1834
        %v1836 = vmul.f32 %v1164, %v1835
        %v1837 = vmul.f32 %v1179, %v1835
        %v1838 = vadd.f32 %v1832, %v1836
        %v1839 = vadd.f32 %v1833, %v1837
        %s1840 = sld [smem:[#allocation6 + $0x202]]
        %v1841 = vstv %s1840
        %v1842 = vmul.f32 %v1212, %v1841
        %v1843 = vmul.f32 %v1227, %v1841
        %v1844 = vadd.f32 %v1838, %v1842
        %v1845 = vadd.f32 %v1839, %v1843
        %s1846 = sld [smem:[#allocation6 + $0x203]]
        %v1847 = vstv %s1846
        %v1848 = vmul.f32 %v1260, %v1847
        %v1849 = vmul.f32 %v1275, %v1847
        %v1850 = vadd.f32 %v1844, %v1848
        %v1851 = vadd.f32 %v1845, %v1849
        %s1852 = sld [smem:[#allocation6 + $0x204]]
        %v1853 = vstv %s1852
        %v1854 = vmul.f32 %v1308, %v1853
        %v1855 = vmul.f32 %v1323, %v1853
        %v1856 = vadd.f32 %v1850, %v1854
        %v1857 = vadd.f32 %v1851, %v1855
        %s1858 = sld [smem:[#allocation6 + $0x205]]
        %v1859 = vstv %s1858
        %v1860 = vmul.f32 %v1356, %v1859
        %v1861 = vmul.f32 %v1371, %v1859
        %v1862 = vadd.f32 %v1856, %v1860
        %v1863 = vadd.f32 %v1857, %v1861
        %s1864 = sld [smem:[#allocation6 + $0x206]]
        %v1865 = vstv %s1864
        %v1866 = vmul.f32 %v1404, %v1865
        %v1867 = vmul.f32 %v1419, %v1865
        %v1868 = vadd.f32 %v1862, %v1866
        %v1869 = vadd.f32 %v1863, %v1867
        %s1870 = sld [smem:[#allocation6 + $0x207]]
        %v1871 = vstv %s1870
        %v1872 = vmul.f32 %v1452, %v1871
        %v1873 = vmul.f32 %v1467, %v1871
        %v1874 = vadd.f32 %v1868, %v1872
        %v1875 = vadd.f32 %v1869, %v1873
        %s1876 = sld [smem:[#allocation7 + $0x4]]
        %v1877 = vstv %s1876
        %v1878 = vadd.f32 %v1874, %v1877
        %v1879 = vadd.f32 %v1875, %v1877
        %s1880 = scalar_lea.vmem %s365, 64
        %v1881 = vld [vmem:[%s1880] sm:$0xff]
        %v1882 = vld [vmem:[%s1880 + $0x8] sm:$0xff]
        %v1884 = vsel %vm1083, %v1878, 0
        %v1887 = vsel %vm1083, %v1879, 0
        %1889 = vmatpush.msra.mxu0 0.0
        %1890 = vmatpush.msra.mxu0 0.0
        %1891 = vmatpush.msra.mxu0 0.0
        %1892 = vmatpush.msra.mxu0 0.0
        %1893 = vmatpush.msra.mxu0 0.0
        %1894 = vmatpush.msra.mxu0 0.0
        %1895 = vmatpush.msra.mxu0 0.0
        %1896 = vmatpush.msra.mxu0 0.0
        %1897 = vmatpush.msra.mxu0 0.0
        %1898 = vmatpush.msra.mxu0 0.0
        %1899 = vmatpush.msra.mxu0 0.0
        %1900 = vmatpush.msra.mxu0 0.0
        %1901 = vmatpush.msra.mxu0 0.0
        %1902 = vmatpush.msra.mxu0 0.0
        %1903 = vmatpush.msra.mxu0 %v1882
        %1904 = vmatpush.msra.mxu0 %v1881
        %1905 = vmatmul.f32.gmra.mxu0 %v1884
        %v1906 = vpop.f32.mrf.mxu0
        %v1907 = vadd.f32 0.0, %v1906
        %1908 = vmatmul.f32.gmra.mxu0 %v1887
        %v1909 = vpop.f32.mrf.mxu0
        %v1910 = vadd.f32 0.0, %v1909
        %1911 = vdwg.mxu0
        %1914 = vrot.lane.b32.xlu0 %v1907, 16
        %v1915 = vpop.permute.xlu0 %1914
        %1916 = vrot.lane.b32.xlu0 %v1910, 16
        %v1917 = vpop.permute.xlu0 %1916
        %vm1920 = vcmask 162944
        %1921 = vst.msk [vmem:[%s370] sm:$0xff] %vm1920, %v1915
        %1922 = vst.msk [vmem:[%s370 + $0x8] sm:$0xff] %vm1920, %v1917
        %s1923 = sld [smem:[#allocation6 + $0x280]]
        %v1924 = vstv %s1923
        %v1925 = vmul.f32 %v1116, %v1924
        %v1926 = vmul.f32 %v1131, %v1924
        %s1927 = sld [smem:[#allocation6 + $0x281]]
        %v1928 = vstv %s1927
        %v1929 = vmul.f32 %v1164, %v1928
        %v1930 = vmul.f32 %v1179, %v1928
        %v1931 = vadd.f32 %v1925, %v1929
        %v1932 = vadd.f32 %v1926, %v1930
        %s1933 = sld [smem:[#allocation6 + $0x282]]
        %v1934 = vstv %s1933
        %v1935 = vmul.f32 %v1212, %v1934
        %v1936 = vmul.f32 %v1227, %v1934
        %v1937 = vadd.f32 %v1931, %v1935
        %v1938 = vadd.f32 %v1932, %v1936
        %s1939 = sld [smem:[#allocation6 + $0x283]]
        %v1940 = vstv %s1939
        %v1941 = vmul.f32 %v1260, %v1940
        %v1942 = vmul.f32 %v1275, %v1940
        %v1943 = vadd.f32 %v1937, %v1941
        %v1944 = vadd.f32 %v1938, %v1942
        %s1945 = sld [smem:[#allocation6 + $0x284]]
        %v1946 = vstv %s1945
        %v1947 = vmul.f32 %v1308, %v1946
        %v1948 = vmul.f32 %v1323, %v1946
        %v1949 = vadd.f32 %v1943, %v1947
        %v1950 = vadd.f32 %v1944, %v1948
        %s1951 = sld [smem:[#allocation6 + $0x285]]
        %v1952 = vstv %s1951
        %v1953 = vmul.f32 %v1356, %v1952
        %v1954 = vmul.f32 %v1371, %v1952
        %v1955 = vadd.f32 %v1949, %v1953
        %v1956 = vadd.f32 %v1950, %v1954
        %s1957 = sld [smem:[#allocation6 + $0x286]]
        %v1958 = vstv %s1957
        %v1959 = vmul.f32 %v1404, %v1958
        %v1960 = vmul.f32 %v1419, %v1958
        %v1961 = vadd.f32 %v1955, %v1959
        %v1962 = vadd.f32 %v1956, %v1960
        %s1963 = sld [smem:[#allocation6 + $0x287]]
        %v1964 = vstv %s1963
        %v1965 = vmul.f32 %v1452, %v1964
        %v1966 = vmul.f32 %v1467, %v1964
        %v1967 = vadd.f32 %v1961, %v1965
        %v1968 = vadd.f32 %v1962, %v1966
        %s1969 = sld [smem:[#allocation7 + $0x5]]
        %v1970 = vstv %s1969
        %v1971 = vadd.f32 %v1967, %v1970
        %v1972 = vadd.f32 %v1968, %v1970
        %s1973 = scalar_lea.vmem %s365, 80
        %v1974 = vld [vmem:[%s1973] sm:$0xff]
        %v1975 = vld [vmem:[%s1973 + $0x8] sm:$0xff]
        %v1977 = vsel %vm1083, %v1971, 0
        %v1980 = vsel %vm1083, %v1972, 0
        %1982 = vmatpush.msra.mxu0 0.0
        %1983 = vmatpush.msra.mxu0 0.0
        %1984 = vmatpush.msra.mxu0 0.0
        %1985 = vmatpush.msra.mxu0 0.0
        %1986 = vmatpush.msra.mxu0 0.0
        %1987 = vmatpush.msra.mxu0 0.0
        %1988 = vmatpush.msra.mxu0 0.0
        %1989 = vmatpush.msra.mxu0 0.0
        %1990 = vmatpush.msra.mxu0 0.0
        %1991 = vmatpush.msra.mxu0 0.0
        %1992 = vmatpush.msra.mxu0 0.0
        %1993 = vmatpush.msra.mxu0 0.0
        %1994 = vmatpush.msra.mxu0 0.0
        %1995 = vmatpush.msra.mxu0 0.0
        %1996 = vmatpush.msra.mxu0 %v1975
        %1997 = vmatpush.msra.mxu0 %v1974
        %1998 = vmatmul.f32.gmra.mxu0 %v1977
        %v1999 = vpop.f32.mrf.mxu0
        %v2000 = vadd.f32 0.0, %v1999
        %2001 = vmatmul.f32.gmra.mxu0 %v1980
        %v2002 = vpop.f32.mrf.mxu0
        %v2003 = vadd.f32 0.0, %v2002
        %2004 = vdwg.mxu0
        %2007 = vrot.lane.b32.xlu0 %v2000, 20
        %v2008 = vpop.permute.xlu0 %2007
        %2009 = vrot.lane.b32.xlu0 %v2003, 20
        %v2010 = vpop.permute.xlu0 %2009
        %vm2013 = vcmask 195744
        %2014 = vst.msk [vmem:[%s370] sm:$0xff] %vm2013, %v2008
        %2015 = vst.msk [vmem:[%s370 + $0x8] sm:$0xff] %vm2013, %v2010
        %s2016 = sld [smem:[#allocation6 + $0x300]]
        %v2017 = vstv %s2016
        %v2018 = vmul.f32 %v1116, %v2017
        %v2019 = vmul.f32 %v1131, %v2017
        %s2020 = sld [smem:[#allocation6 + $0x301]]
        %v2021 = vstv %s2020
        %v2022 = vmul.f32 %v1164, %v2021
        %v2023 = vmul.f32 %v1179, %v2021
        %v2024 = vadd.f32 %v2018, %v2022
        %v2025 = vadd.f32 %v2019, %v2023
        %s2026 = sld [smem:[#allocation6 + $0x302]]
        %v2027 = vstv %s2026
        %v2028 = vmul.f32 %v1212, %v2027
        %v2029 = vmul.f32 %v1227, %v2027
        %v2030 = vadd.f32 %v2024, %v2028
        %v2031 = vadd.f32 %v2025, %v2029
        %s2032 = sld [smem:[#allocation6 + $0x303]]
        %v2033 = vstv %s2032
        %v2034 = vmul.f32 %v1260, %v2033
        %v2035 = vmul.f32 %v1275, %v2033
        %v2036 = vadd.f32 %v2030, %v2034
        %v2037 = vadd.f32 %v2031, %v2035
        %s2038 = sld [smem:[#allocation6 + $0x304]]
        %v2039 = vstv %s2038
        %v2040 = vmul.f32 %v1308, %v2039
        %v2041 = vmul.f32 %v1323, %v2039
        %v2042 = vadd.f32 %v2036, %v2040
        %v2043 = vadd.f32 %v2037, %v2041
        %s2044 = sld [smem:[#allocation6 + $0x305]]
        %v2045 = vstv %s2044
        %v2046 = vmul.f32 %v1356, %v2045
        %v2047 = vmul.f32 %v1371, %v2045
        %v2048 = vadd.f32 %v2042, %v2046
        %v2049 = vadd.f32 %v2043, %v2047
        %s2050 = sld [smem:[#allocation6 + $0x306]]
        %v2051 = vstv %s2050
        %v2052 = vmul.f32 %v1404, %v2051
        %v2053 = vmul.f32 %v1419, %v2051
        %v2054 = vadd.f32 %v2048, %v2052
        %v2055 = vadd.f32 %v2049, %v2053
        %s2056 = sld [smem:[#allocation6 + $0x307]]
        %v2057 = vstv %s2056
        %v2058 = vmul.f32 %v1452, %v2057
        %v2059 = vmul.f32 %v1467, %v2057
        %v2060 = vadd.f32 %v2054, %v2058
        %v2061 = vadd.f32 %v2055, %v2059
        %s2062 = sld [smem:[#allocation7 + $0x6]]
        %v2063 = vstv %s2062
        %v2064 = vadd.f32 %v2060, %v2063
        %v2065 = vadd.f32 %v2061, %v2063
        %s2066 = scalar_lea.vmem %s365, 96
        %v2067 = vld [vmem:[%s2066] sm:$0xff]
        %v2068 = vld [vmem:[%s2066 + $0x8] sm:$0xff]
        %v2070 = vsel %vm1083, %v2064, 0
        %v2073 = vsel %vm1083, %v2065, 0
        %2075 = vmatpush.msra.mxu0 0.0
        %2076 = vmatpush.msra.mxu0 0.0
        %2077 = vmatpush.msra.mxu0 0.0
        %2078 = vmatpush.msra.mxu0 0.0
        %2079 = vmatpush.msra.mxu0 0.0
        %2080 = vmatpush.msra.mxu0 0.0
        %2081 = vmatpush.msra.mxu0 0.0
        %2082 = vmatpush.msra.mxu0 0.0
        %2083 = vmatpush.msra.mxu0 0.0
        %2084 = vmatpush.msra.mxu0 0.0
        %2085 = vmatpush.msra.mxu0 0.0
        %2086 = vmatpush.msra.mxu0 0.0
        %2087 = vmatpush.msra.mxu0 0.0
        %2088 = vmatpush.msra.mxu0 0.0
        %2089 = vmatpush.msra.mxu0 %v2068
        %2090 = vmatpush.msra.mxu0 %v2067
        %2091 = vmatmul.f32.gmra.mxu0 %v2070
        %v2092 = vpop.f32.mrf.mxu0
        %v2093 = vadd.f32 0.0, %v2092
        %2094 = vmatmul.f32.gmra.mxu0 %v2073
        %v2095 = vpop.f32.mrf.mxu0
        %v2096 = vadd.f32 0.0, %v2095
        %2097 = vdwg.mxu0
        %2100 = vrot.lane.b32.xlu0 %v2093, 24
        %v2101 = vpop.permute.xlu0 %2100
        %2102 = vrot.lane.b32.xlu0 %v2096, 24
        %v2103 = vpop.permute.xlu0 %2102
        %vm2106 = vcmask 228544
        %2107 = vst.msk [vmem:[%s370] sm:$0xff] %vm2106, %v2101
        %2108 = vst.msk [vmem:[%s370 + $0x8] sm:$0xff] %vm2106, %v2103
        %s2109 = sld [smem:[#allocation6 + $0x380]]
        %v2110 = vstv %s2109
        %v2111 = vmul.f32 %v1116, %v2110
        %v2112 = vmul.f32 %v1131, %v2110
        %s2113 = sld [smem:[#allocation6 + $0x381]]
        %v2114 = vstv %s2113
        %v2115 = vmul.f32 %v1164, %v2114
        %v2116 = vmul.f32 %v1179, %v2114
        %v2117 = vadd.f32 %v2111, %v2115
        %v2118 = vadd.f32 %v2112, %v2116
        %s2119 = sld [smem:[#allocation6 + $0x382]]
        %v2120 = vstv %s2119
        %v2121 = vmul.f32 %v1212, %v2120
        %v2122 = vmul.f32 %v1227, %v2120
        %v2123 = vadd.f32 %v2117, %v2121
        %v2124 = vadd.f32 %v2118, %v2122
        %s2125 = sld [smem:[#allocation6 + $0x383]]
        %v2126 = vstv %s2125
        %v2127 = vmul.f32 %v1260, %v2126
        %v2128 = vmul.f32 %v1275, %v2126
        %v2129 = vadd.f32 %v2123, %v2127
        %v2130 = vadd.f32 %v2124, %v2128
        %s2131 = sld [smem:[#allocation6 + $0x384]]
        %v2132 = vstv %s2131
        %v2133 = vmul.f32 %v1308, %v2132
        %v2134 = vmul.f32 %v1323, %v2132
        %v2135 = vadd.f32 %v2129, %v2133
        %v2136 = vadd.f32 %v2130, %v2134
        %s2137 = sld [smem:[#allocation6 + $0x385]]
        %v2138 = vstv %s2137
        %v2139 = vmul.f32 %v1356, %v2138
        %v2140 = vmul.f32 %v1371, %v2138
        %v2141 = vadd.f32 %v2135, %v2139
        %v2142 = vadd.f32 %v2136, %v2140
        %s2143 = sld [smem:[#allocation6 + $0x386]]
        %v2144 = vstv %s2143
        %v2145 = vmul.f32 %v1404, %v2144
        %v2146 = vmul.f32 %v1419, %v2144
        %v2147 = vadd.f32 %v2141, %v2145
        %v2148 = vadd.f32 %v2142, %v2146
        %s2149 = sld [smem:[#allocation6 + $0x387]]
        %v2150 = vstv %s2149
        %v2151 = vmul.f32 %v1452, %v2150
        %v2152 = vmul.f32 %v1467, %v2150
        %v2153 = vadd.f32 %v2147, %v2151
        %v2154 = vadd.f32 %v2148, %v2152
        %s2155 = sld [smem:[#allocation7 + $0x7]]
        %v2156 = vstv %s2155
        %v2157 = vadd.f32 %v2153, %v2156
        %v2158 = vadd.f32 %v2154, %v2156
        %s2159 = scalar_lea.vmem %s365, 112
        %v2160 = vld [vmem:[%s2159] sm:$0xff]
        %v2161 = vld [vmem:[%s2159 + $0x8] sm:$0xff]
        %v2163 = vsel %vm1083, %v2157, 0
        %v2166 = vsel %vm1083, %v2158, 0
        %2168 = vmatpush.msra.mxu0 0.0
        %2169 = vmatpush.msra.mxu0 0.0
        %2170 = vmatpush.msra.mxu0 0.0
        %2171 = vmatpush.msra.mxu0 0.0
        %2172 = vmatpush.msra.mxu0 0.0
        %2173 = vmatpush.msra.mxu0 0.0
        %2174 = vmatpush.msra.mxu0 0.0
        %2175 = vmatpush.msra.mxu0 0.0
        %2176 = vmatpush.msra.mxu0 0.0
        %2177 = vmatpush.msra.mxu0 0.0
        %2178 = vmatpush.msra.mxu0 0.0
        %2179 = vmatpush.msra.mxu0 0.0
        %2180 = vmatpush.msra.mxu0 0.0
        %2181 = vmatpush.msra.mxu0 0.0
        %2182 = vmatpush.msra.mxu0 %v2161
        %2183 = vmatpush.msra.mxu0 %v2160
        %2184 = vmatmul.f32.gmra.mxu0 %v2163
        %v2185 = vpop.f32.mrf.mxu0
        %v2186 = vadd.f32 0.0, %v2185
        %2187 = vmatmul.f32.gmra.mxu0 %v2166
        %v2188 = vpop.f32.mrf.mxu0
        %v2189 = vadd.f32 0.0, %v2188
        %2190 = vdwg.mxu0
        %2193 = vrot.lane.b32.xlu0 %v2186, 28
        %v2194 = vpop.permute.xlu0 %2193
        %2195 = vrot.lane.b32.xlu0 %v2189, 28
        %v2196 = vpop.permute.xlu0 %2195
        %vm2199 = vcmask 261344
        %2200 = vst.msk [vmem:[%s370] sm:$0xff] %vm2199, %v2194
        %2201 = vst.msk [vmem:[%s370 + $0x8] sm:$0xff] %vm2199, %v2196
        %p2202 = scmp.lt.s32.totalorder %s21, 1
        %s2203 = scalar_select %p2202, %s21, 1
        %s2204 = smul.addr %s2203, 2
        %s2205 = smul.addr %s2204, 8
        %s2206 = scalar_lea.vmem %s7, %s2205
        // Predicated region
        $region65: #{cait_forward.26} parent=47 // pred_check
          %p2207 = pneg %p201
        $region66: #{cait_forward.26} parent=47 // pred_check_branch
          %2209 = sbr.rel (%p2207) target = $region68
        $region67: #{cait_forward.26} parent=47 // pred_region
          _
        $region68: #{cait_forward.26} parent=47 // pred_fallthru
          _
      $region48: #{cait_forward.26} parent=5 // pred_fallthru
        _
      %p2210 = scmp.le.s32.totalorder 2, %s16
      // Predicated region
      $region69: #{cait_forward.26} parent=5 // pred_check
        %p2211 = pneg %p2210
      $region70: #{cait_forward.26} parent=5 // pred_check_branch
        %2213 = sbr.rel (%p2211) target = $region72
      $region71: #{cait_forward.26} parent=5 // pred_region
        %s2214 = ssub.s32 %s16, 2
        // Predicated region
        $region73: #{cait_forward.26} parent=71 // pred_check
          %p2215 = pneg %p207
        $region74: #{cait_forward.26} parent=71 // pred_check_branch
          %2217 = sbr.rel (%p2215) target = $region76
        $region75: #{cait_forward.26} parent=71 // pred_region
          %p2218 = scmp.lt.s32.totalorder %s22, 1
          %s2219 = scalar_select %p2218, %s22, 1
          %s2220 = smul.addr %s2219, 2
          %s2221 = smul.addr %s2220, 8
          %s2222 = scalar_lea.vmem %s7, %s2221
        $region76: #{cait_forward.26} parent=71 // pred_fallthru
          _
      $region72: #{cait_forward.26} parent=5 // pred_fallthru
        _
    $region6: #{cait_forward.26} parent=1 // loop_footer
      %s20 = sadd.s32 1, %s16
    $region7: #{cait_forward.26} parent=1 // loop_footer_branch
      %15 = sbr.rel target = $region3
    $region8: #{cait_forward.26} parent=1 // loop_exit
      _
    %2223 = vsyncpa [#allocation3], 1
    %s2224 = scalar_lea.sflag [#allocation3], 1
    %2225 = vsyncpa %s2224, 1
    %2226 = vsyncpa [#allocation5], 1
    %2227 = vsyncpa [#allocation8], 1

// kernel: cait_forward.38
$region0: #{cait_forward.38}
  #allocation0 [shape = 'u32[]', space=smem, size = 0x4, offset = 0x4, fixed_abs, tag = 'smem constant byte address 0x4 - core index']
  #allocation1 [shape = 'u32[72,128]{1,0:T(1,128)}', space=vmem, size = 0x9000, scoped, tag = 'internal scratch']
  %s0 = inlined_call_operand.vmem [shape: f32[8,128], index: 0, kind: input, shape index: {}]
  %s1 = inlined_call_operand.vmem [shape: f32[128,128], index: 1, kind: input, shape index: {}]
  %s2 = inlined_call_operand.vmem [shape: f32[2,128], index: 2, kind: input, shape index: {}]
  %s3 = inlined_call_operand.vmem [shape: f32[8,128], index: 3, kind: input, shape index: {}]
  %s4 = inlined_call_operand.vmem [shape: f32[8,128], index: 4, kind: output, shape index: {}]
  %s5 = sld [smem:[#allocation0]]
  $region26: #{cait_forward.38} parent=0
    _
  %s7 = ssub.s32 1, %s5
  %s8 = scalar_select 0, %s7, %s5
  // Predicated region
  $region2: #{cait_forward.38} parent=0 // pred_check
    _
  $region3: #{cait_forward.38} parent=0 // pred_check_branch
    %10 = sbr.rel (0) target = $region5
  $region4: #{cait_forward.38} parent=0 // pred_region
    _
  $region5: #{cait_forward.38} parent=0 // pred_fallthru
    _
  // Predicated region
  $region6: #{cait_forward.38} parent=0 // pred_check
    _
  $region7: #{cait_forward.38} parent=0 // pred_check_branch
    %12 = sbr.rel (0) target = $region9
  $region8: #{cait_forward.38} parent=0 // pred_region
    _
  $region9: #{cait_forward.38} parent=0 // pred_fallthru
    _
  // Predicated region
  $region10: #{cait_forward.38} parent=0 // pred_check
    _
  $region11: #{cait_forward.38} parent=0 // pred_check_branch
    %14 = sbr.rel (0) target = $region13
  $region12: #{cait_forward.38} parent=0 // pred_region
    _
  $region13: #{cait_forward.38} parent=0 // pred_fallthru
    _
  // Predicated region
  $region14: #{cait_forward.38} parent=0 // pred_check
    _
  $region15: #{cait_forward.38} parent=0 // pred_check_branch
    %16 = sbr.rel (0) target = $region17
  $region16: #{cait_forward.38} parent=0 // pred_region
    _
  $region17: #{cait_forward.38} parent=0 // pred_fallthru
    _
  %v17 = vld [vmem:[%s0] sm:$0xff]
  %v18 = vld [vmem:[%s1] sm:$0xff]
  %v19 = vld [vmem:[%s1 + $0x8] sm:$0xff]
  %v20 = vld [vmem:[%s1 + $0x10] sm:$0xff]
  %v21 = vld [vmem:[%s1 + $0x18] sm:$0xff]
  %v22 = vld [vmem:[%s1 + $0x20] sm:$0xff]
  %v23 = vld [vmem:[%s1 + $0x28] sm:$0xff]
  %v24 = vld [vmem:[%s1 + $0x30] sm:$0xff]
  %v25 = vld [vmem:[%s1 + $0x38] sm:$0xff]
  %v26 = vld [vmem:[%s1 + $0x40] sm:$0xff]
  %v27 = vld [vmem:[%s1 + $0x48] sm:$0xff]
  %v28 = vld [vmem:[%s1 + $0x50] sm:$0xff]
  %v29 = vld [vmem:[%s1 + $0x58] sm:$0xff]
  %v30 = vld [vmem:[%s1 + $0x60] sm:$0xff]
  %v31 = vld [vmem:[%s1 + $0x68] sm:$0xff]
  %v32 = vld [vmem:[%s1 + $0x70] sm:$0xff]
  %v33 = vld [vmem:[%s1 + $0x78] sm:$0xff]
  %v34 = vld [vmem:[%s2] sm:$0x1]
  %v35 = vld [vmem:[%s2 + $0x1] sm:$0x1]
  %v36 = vld [vmem:[%s3] sm:$0xff]
  %v37 = vperm.slane %v34, 0
  %38 = vmatpush.msra.mxu0 %v33
  %39 = vmatpush.msra.mxu0 %v32
  %40 = vmatpush.msra.mxu0 %v31
  %41 = vmatpush.msra.mxu0 %v30
  %42 = vmatpush.msra.mxu0 %v29
  %43 = vmatpush.msra.mxu0 %v28
  %44 = vmatpush.msra.mxu0 %v27
  %45 = vmatpush.msra.mxu0 %v26
  %46 = vmatpush.msra.mxu0 %v25
  %47 = vmatpush.msra.mxu0 %v24
  %48 = vmatpush.msra.mxu0 %v23
  %49 = vmatpush.msra.mxu0 %v22
  %50 = vmatpush.msra.mxu0 %v21
  %51 = vmatpush.msra.mxu0 %v20
  %52 = vmatpush.msra.mxu0 %v19
  %53 = vmatpush.msra.mxu0 %v18
  %54 = vmatmul.f32.gmra.mxu0 %v17
  %v55 = vpop.f32.mrf.mxu0
  %v56 = vadd.f32 %v37, %v55
  %57 = vdwg.mxu0
  %v58 = vperm.slane %v35, 0
  %v59 = vmul.f32 %v58, %v56
  %v60 = vadd.f32 %v36, %v59
  %61 = vst [vmem:[%s4] sm:$0xff] %v60
  // Predicated region
  $region18: #{cait_forward.38} parent=0 // pred_check
    _
  $region19: #{cait_forward.38} parent=0 // pred_check_branch
    %63 = sbr.rel (0) target = $region21
  $region20: #{cait_forward.38} parent=0 // pred_region
    _
  $region21: #{cait_forward.38} parent=0 // pred_fallthru
    _
  // Predicated region
  $region22: #{cait_forward.38} parent=0 // pred_check
    _
  $region23: #{cait_forward.38} parent=0 // pred_check_branch
    %65 = sbr.rel (0) target = $region25
  $region24: #{cait_forward.38} parent=0 // pred_region
    _
  $region25: #{cait_forward.38} parent=0 // pred_fallthru
    _

// kernel: cait_forward.36
$region0: #{cait_forward.36}
  #allocation0 [shape = 'u32[]', space=smem, size = 0x4, offset = 0x4, fixed_abs, tag = 'smem constant byte address 0x4 - core index']
  #allocation1 [shape = 'u32[72,128]{1,0:T(1,128)}', space=vmem, size = 0x9000, scoped, tag = 'internal scratch']
  %s0 = inlined_call_operand.vmem [shape: f32[8,128], index: 0, kind: input, shape index: {}]
  %s1 = inlined_call_operand.vmem [shape: f32[2,128], index: 1, kind: input, shape index: {}]
  %s2 = inlined_call_operand.vmem [shape: f32[128,128], index: 2, kind: input, shape index: {}]
  %s3 = inlined_call_operand.vmem [shape: f32[1,128], index: 3, kind: input, shape index: {}]
  %s4 = inlined_call_operand.vmem [shape: f32[8,128], index: 4, kind: output, shape index: {}]
  %s5 = sld [smem:[#allocation0]]
  $region26: #{cait_forward.36} parent=0
    _
  %s7 = ssub.s32 1, %s5
  %s8 = scalar_select 0, %s7, %s5
  // Predicated region
  $region2: #{cait_forward.36} parent=0 // pred_check
    _
  $region3: #{cait_forward.36} parent=0 // pred_check_branch
    %10 = sbr.rel (0) target = $region5
  $region4: #{cait_forward.36} parent=0 // pred_region
    _
  $region5: #{cait_forward.36} parent=0 // pred_fallthru
    _
  // Predicated region
  $region6: #{cait_forward.36} parent=0 // pred_check
    _
  $region7: #{cait_forward.36} parent=0 // pred_check_branch
    %12 = sbr.rel (0) target = $region9
  $region8: #{cait_forward.36} parent=0 // pred_region
    _
  $region9: #{cait_forward.36} parent=0 // pred_fallthru
    _
  // Predicated region
  $region10: #{cait_forward.36} parent=0 // pred_check
    _
  $region11: #{cait_forward.36} parent=0 // pred_check_branch
    %14 = sbr.rel (0) target = $region13
  $region12: #{cait_forward.36} parent=0 // pred_region
    _
  $region13: #{cait_forward.36} parent=0 // pred_fallthru
    _
  // Predicated region
  $region14: #{cait_forward.36} parent=0 // pred_check
    _
  $region15: #{cait_forward.36} parent=0 // pred_check_branch
    %16 = sbr.rel (0) target = $region17
  $region16: #{cait_forward.36} parent=0 // pred_region
    _
  $region17: #{cait_forward.36} parent=0 // pred_fallthru
    _
  %v17 = vld [vmem:[%s0] sm:$0xff]
  %v18 = vld [vmem:[%s1] sm:$0x1]
  %v19 = vld [vmem:[%s1 + $0x1] sm:$0x1]
  %20 = vadd.xlane.f32.xlu0 %v17
  %v21 = vpop.xlane.xlu0 %20
  %v22 = vmul.f32 %v17, %v17
  %23 = vadd.xlane.f32.xlu0 %v22
  %v24 = vpop.xlane.xlu0 %23
  %v25 = vmul.f32 %v21, 0.03125
  %v26 = vmul.f32 %v24, 0.03125
  %v27 = vmul.f32 %v25, %v25
  %v28 = vsub.f32 %v26, %v27
  %v29 = vmax.f32 %v28, 0.0
  %v30 = vsub.f32 %v17, %v25
  %v31 = vadd.f32 %v29, 1e-06
  %v32 = vrsqrt.pop %v31
  %v33 = vmul.f32 %v32, %v31
  %v34 = vmul.f32 %v33, %v32
  %v35 = vmul.f32 0.5, %v34
  %v36 = vsub.f32 1.5, %v35
  %v37 = vmul.f32 %v32, %v36
  %vm38 = vweird.f32 %v31
  %vm39 = vweird.f32 %v32
  %vm40 = vmor %vm38, %vm39
  %v41 = vsel %vm40, %v32, %v37
  %v42 = vmul.f32 %v30, %v41
  %v43 = vperm.slane %v18, 0
  %v44 = vmul.f32 %v42, %v43
  %v45 = vperm.slane %v19, 0
  %v46 = vadd.f32 %v44, %v45
  %v47 = vld [vmem:[%s2] sm:$0xff]
  %v48 = vld [vmem:[%s2 + $0x8] sm:$0xff]
  %v49 = vld [vmem:[%s2 + $0x10] sm:$0xff]
  %v50 = vld [vmem:[%s2 + $0x18] sm:$0xff]
  %v51 = vld [vmem:[%s2 + $0x20] sm:$0xff]
  %v52 = vld [vmem:[%s2 + $0x28] sm:$0xff]
  %v53 = vld [vmem:[%s2 + $0x30] sm:$0xff]
  %v54 = vld [vmem:[%s2 + $0x38] sm:$0xff]
  %v55 = vld [vmem:[%s2 + $0x40] sm:$0xff]
  %v56 = vld [vmem:[%s2 + $0x48] sm:$0xff]
  %v57 = vld [vmem:[%s2 + $0x50] sm:$0xff]
  %v58 = vld [vmem:[%s2 + $0x58] sm:$0xff]
  %v59 = vld [vmem:[%s2 + $0x60] sm:$0xff]
  %v60 = vld [vmem:[%s2 + $0x68] sm:$0xff]
  %v61 = vld [vmem:[%s2 + $0x70] sm:$0xff]
  %v62 = vld [vmem:[%s2 + $0x78] sm:$0xff]
  %v63 = vld [vmem:[%s3] sm:$0x1]
  %v65 = vperm.slane %v63, 0
  %67 = vmatpush.msra.mxu0 %v62
  %68 = vmatpush.msra.mxu0 %v61
  %69 = vmatpush.msra.mxu0 %v60
  %70 = vmatpush.msra.mxu0 %v59
  %71 = vmatpush.msra.mxu0 %v58
  %72 = vmatpush.msra.mxu0 %v57
  %73 = vmatpush.msra.mxu0 %v56
  %74 = vmatpush.msra.mxu0 %v55
  %75 = vmatpush.msra.mxu0 %v54
  %76 = vmatpush.msra.mxu0 %v53
  %77 = vmatpush.msra.mxu0 %v52
  %78 = vmatpush.msra.mxu0 %v51
  %79 = vmatpush.msra.mxu0 %v50
  %80 = vmatpush.msra.mxu0 %v49
  %81 = vmatpush.msra.mxu0 %v48
  %82 = vmatpush.msra.mxu0 %v47
  %83 = vmatmul.f32.gmra.mxu0 %v46
  %v84 = vpop.f32.mrf.mxu0
  %v85 = vadd.f32 %v65, %v84
  %86 = vdwg.mxu0
  %87 = vst [vmem:[%s4] sm:$0xff] %v85
  // Predicated region
  $region18: #{cait_forward.36} parent=0 // pred_check
    _
  $region19: #{cait_forward.36} parent=0 // pred_check_branch
    %89 = sbr.rel (0) target = $region21
  $region20: #{cait_forward.36} parent=0 // pred_region
    _
  $region21: #{cait_forward.36} parent=0 // pred_fallthru
    _
  // Predicated region
  $region22: #{cait_forward.36} parent=0 // pred_check
    _
  $region23: #{cait_forward.36} parent=0 // pred_check_branch
    %91 = sbr.rel (0) target = $region25
  $region24: #{cait_forward.36} parent=0 // pred_region
    _
  $region25: #{cait_forward.36} parent=0 // pred_fallthru
    _

// kernel: cait_forward.37
$region0: #{cait_forward.37}
  #allocation0 [shape = 'u32[]', space=smem, size = 0x4, offset = 0x4, fixed_abs, tag = 'smem constant byte address 0x4 - core index']
  #allocation1 [shape = 'u32[72,128]{1,0:T(1,128)}', space=vmem, size = 0x9000, scoped, tag = 'internal scratch']
  %s0 = inlined_call_operand.vmem [shape: f32[2,8,1,4], index: 0, kind: input, shape index: {}]
  %s1 = inlined_call_operand.vmem [shape: f32[2,8,4,17], index: 1, kind: input, shape index: {}]
  %s2 = inlined_call_operand.vmem [shape: f32[2,8,17,4], index: 2, kind: input, shape index: {}]
  %s3 = inlined_call_operand.vmem [shape: f32[2,1,32], index: 3, kind: output, shape index: {}]
  %s4 = sld [smem:[#allocation0]]
  $region45: #{cait_forward.37} parent=0
    _
  %s6 = ssub.s32 1, %s4
  %s7 = scalar_select 0, %s6, %s4
  loop: start=0, step=1, limit=4
  $region2: #{cait_forward.37} parent=0 // loop_pre_header
    _
  $region3: #{cait_forward.37} parent=0 // loop_header
    %s9 = sphi 0, %s13
    %p10 = scmp.ge.s32.totalorder %s9, 4
    %s19 = sphi 0, %s21
    %s22 = sphi 0, %s19
    %s23 = sphi 0, %s22
    %s39 = sphi 0, %s23
    %s45 = sphi 0, %s47
    %s48 = sphi 0, %s45
    %s49 = sphi 0, %s48
    %s65 = sphi 0, %s49
    %s71 = sphi 0, %s73
    %s74 = sphi 0, %s71
    %s75 = sphi 0, %s74
    %s91 = sphi 0, %s75
    %s97 = sphi 0, %s99
    %s100 = sphi 0, %s97
    %s101 = sphi 0, %s100
    %s117 = sphi 0, %s101
  $region4: #{cait_forward.37} parent=0 // loop_header_branch
    %12 = sbr.rel (%p10) target = $region8
  $region5: #{cait_forward.37} parent=0 // loop_body
    %s14 = ssub.s32 %s9, 1
    %s15 = ssub.s32 %s9, 2
    %s16 = sadd.s32 %s9, 1
    %s17 = ssub.s32 %s9, %s16
    %p18 = scmp.eq.s32.totalorder %s17, 0
    %s20 = sadd.s32 %s19, 1
    %s21 = scalar_select %p18, %s19, %s20
    %p24 = pneg %p18
    %p25 = scmp.eq.s32.totalorder %s9, 1
    %p26 = por %p24, %p25
    %p27 = scmp.ne.s32.totalorder %s19, %s22
    %p28 = scmp.eq.s32.totalorder %s9, 0
    %p29 = por %p27, %p28
    %p30 = scmp.ne.s32.totalorder %s19, %s22
    %p31 = scmp.eq.s32.totalorder %s14, 1
    %p32 = por %p30, %p31
    %p33 = scmp.ne.s32.totalorder %s22, %s23
    %p34 = scmp.eq.s32.totalorder %s14, 0
    %p35 = por %p33, %p34
    %p36 = scmp.ne.s32.totalorder %s22, %s23
    %p37 = scmp.eq.s32.totalorder %s15, 1
    %p38 = por %p36, %p37
    %p40 = scmp.ne.s32.totalorder %s23, %s39
    %p41 = scmp.eq.s32.totalorder %s15, 0
    %p42 = por %p40, %p41
    %s43 = ssub.s32 %s9, %s16
    %p44 = scmp.eq.s32.totalorder %s43, 0
    %s46 = sadd.s32 %s45, 1
    %s47 = scalar_select %p44, %s45, %s46
    %p50 = pneg %p44
    %p51 = scmp.eq.s32.totalorder %s9, 1
    %p52 = por %p50, %p51
    %p53 = scmp.ne.s32.totalorder %s45, %s48
    %p54 = scmp.eq.s32.totalorder %s9, 0
    %p55 = por %p53, %p54
    %p56 = scmp.ne.s32.totalorder %s45, %s48
    %p57 = scmp.eq.s32.totalorder %s14, 1
    %p58 = por %p56, %p57
    %p59 = scmp.ne.s32.totalorder %s48, %s49
    %p60 = scmp.eq.s32.totalorder %s14, 0
    %p61 = por %p59, %p60
    %p62 = scmp.ne.s32.totalorder %s48, %s49
    %p63 = scmp.eq.s32.totalorder %s15, 1
    %p64 = por %p62, %p63
    %p66 = scmp.ne.s32.totalorder %s49, %s65
    %p67 = scmp.eq.s32.totalorder %s15, 0
    %p68 = por %p66, %p67
    %s69 = ssub.s32 %s9, %s16
    %p70 = scmp.eq.s32.totalorder %s69, 0
    %s72 = sadd.s32 %s71, 1
    %s73 = scalar_select %p70, %s71, %s72
    %p76 = pneg %p70
    %p77 = scmp.eq.s32.totalorder %s9, 1
    %p78 = por %p76, %p77
    %p79 = scmp.ne.s32.totalorder %s71, %s74
    %p80 = scmp.eq.s32.totalorder %s9, 0
    %p81 = por %p79, %p80
    %p82 = scmp.ne.s32.totalorder %s71, %s74
    %p83 = scmp.eq.s32.totalorder %s14, 1
    %p84 = por %p82, %p83
    %p85 = scmp.ne.s32.totalorder %s74, %s75
    %p86 = scmp.eq.s32.totalorder %s14, 0
    %p87 = por %p85, %p86
    %p88 = scmp.ne.s32.totalorder %s74, %s75
    %p89 = scmp.eq.s32.totalorder %s15, 1
    %p90 = por %p88, %p89
    %p92 = scmp.ne.s32.totalorder %s75, %s91
    %p93 = scmp.eq.s32.totalorder %s15, 0
    %p94 = por %p92, %p93
    %s95 = ssub.s32 %s9, %s16
    %p96 = scmp.eq.s32.totalorder %s95, 0
    %s98 = sadd.s32 %s97, 1
    %s99 = scalar_select %p96, %s97, %s98
    %p102 = pneg %p96
    %p103 = scmp.eq.s32.totalorder %s9, 1
    %p104 = por %p102, %p103
    %p105 = scmp.ne.s32.totalorder %s97, %s100
    %p106 = scmp.eq.s32.totalorder %s9, 0
    %p107 = por %p105, %p106
    %p108 = scmp.ne.s32.totalorder %s97, %s100
    %p109 = scmp.eq.s32.totalorder %s14, 1
    %p110 = por %p108, %p109
    %p111 = scmp.ne.s32.totalorder %s100, %s101
    %p112 = scmp.eq.s32.totalorder %s14, 0
    %p113 = por %p111, %p112
    %p114 = scmp.ne.s32.totalorder %s100, %s101
    %p115 = scmp.eq.s32.totalorder %s15, 1
    %p116 = por %p114, %p115
    %p118 = scmp.ne.s32.totalorder %s101, %s117
    %p119 = scmp.eq.s32.totalorder %s15, 0
    %p120 = por %p118, %p119
    %p121 = scmp.le.s32.totalorder 1, %s9
    %p122 = scmp.lt.s32.totalorder %s9, 3
    %p123 = pnand %p121, %p122
    %p124 = pneg %p123
    // Predicated region
    $region9: #{cait_forward.37} parent=5 // pred_check
      _
    $region10: #{cait_forward.37} parent=5 // pred_check_branch
      %126 = sbr.rel (%p123) target = $region12
    $region11: #{cait_forward.37} parent=5 // pred_region
      %s127 = ssub.s32 %s9, 1
    $region12: #{cait_forward.37} parent=5 // pred_fallthru
      _
    %p128 = scmp.lt.s32.totalorder %s9, 2
    // Predicated region
    $region13: #{cait_forward.37} parent=5 // pred_check
      %p129 = pneg %p128
    $region14: #{cait_forward.37} parent=5 // pred_check_branch
      %131 = sbr.rel (%p129) target = $region16
    $region15: #{cait_forward.37} parent=5 // pred_region
      // Predicated region
      $region17: #{cait_forward.37} parent=15 // pred_check
        %p132 = pneg %p29
      $region18: #{cait_forward.37} parent=15 // pred_check_branch
        %134 = sbr.rel (%p132) target = $region20
      $region19: #{cait_forward.37} parent=15 // pred_region
        %p135 = scmp.lt.s32.totalorder %s9, 1
        %s136 = scalar_select %p135, %s9, 1
        %s137 = smul.addr %s136, 8
        %s138 = scalar_lea.vmem %s0, %s137
      $region20: #{cait_forward.37} parent=15 // pred_fallthru
        _
      // Predicated region
      $region21: #{cait_forward.37} parent=15 // pred_check
        %p139 = pneg %p55
      $region22: #{cait_forward.37} parent=15 // pred_check_branch
        %141 = sbr.rel (%p139) target = $region24
      $region23: #{cait_forward.37} parent=15 // pred_region
        %p142 = scmp.lt.s32.totalorder %s9, 1
        %s143 = scalar_select %p142, %s9, 1
        %s144 = smul.addr %s143, 8
        %s145 = smul.addr %s144, 4
        %s146 = scalar_lea.vmem %s1, %s145
      $region24: #{cait_forward.37} parent=15 // pred_fallthru
        _
      // Predicated region
      $region25: #{cait_forward.37} parent=15 // pred_check
        %p147 = pneg %p81
      $region26: #{cait_forward.37} parent=15 // pred_check_branch
        %149 = sbr.rel (%p147) target = $region28
      $region27: #{cait_forward.37} parent=15 // pred_region
        %p150 = scmp.lt.s32.totalorder %s9, 1
        %s151 = scalar_select %p150, %s9, 1
        %s152 = smul.addr %s151, 24
        %s153 = smul.addr %s152, 8
        %s154 = scalar_lea.vmem %s2, %s153
      $region28: #{cait_forward.37} parent=15 // pred_fallthru
        _
    $region16: #{cait_forward.37} parent=5 // pred_fallthru
      _
    %p155 = scmp.le.s32.totalorder 1, %s9
    %p156 = scmp.lt.s32.totalorder %s9, 3
    %p157 = pnand %p155, %p156
    %p158 = pneg %p157
    // Predicated region
    $region29: #{cait_forward.37} parent=5 // pred_check
      _
    $region30: #{cait_forward.37} parent=5 // pred_check_branch
      %160 = sbr.rel (%p157) target = $region32
    $region31: #{cait_forward.37} parent=5 // pred_region
      %s161 = ssub.s32 %s9, 1
      %p162 = scmp.lt.s32.totalorder %s14, 1
      %s163 = scalar_select %p162, %s14, 1
      %s164 = smul.addr %s163, 8
      %s165 = scalar_lea.vmem %s0, %s164
      %p166 = pneg %p35
      %p167 = pneg %p32
      %p168 = scmp.lt.s32.totalorder %s14, 1
      %s169 = scalar_select %p168, %s14, 1
      %s170 = smul.addr %s169, 8
      %s171 = smul.addr %s170, 4
      %s172 = scalar_lea.vmem %s1, %s171
      %p173 = pneg %p61
      %p174 = pneg %p58
      %p175 = scmp.lt.s32.totalorder %s14, 1
      %s176 = scalar_select %p175, %s14, 1
      %s177 = smul.addr %s176, 24
      %s178 = smul.addr %s177, 8
      %s179 = scalar_lea.vmem %s2, %s178
      %p180 = pneg %p87
      %p181 = pneg %p84
      %p182 = pneg %p113
      %p183 = pneg %p110
      %p184 = scmp.lt.s32.totalorder %s14, 1
      %s185 = scalar_select %p184, %s14, 1
      %s186 = scalar_lea.vmem %s3, %s185
      %p187 = scmp.lt.s32.totalorder %s14, 1
      %s188 = scalar_select %p187, %s14, 1
      %s189 = smul.addr %s188, 8
      %s190 = scalar_lea.vmem %s0, %s189
      %p191 = scmp.lt.s32.totalorder %s14, 1
      %s192 = scalar_select %p191, %s14, 1
      %s193 = smul.addr %s192, 8
      %s194 = smul.addr %s193, 4
      %s195 = scalar_lea.vmem %s1, %s194
      %p196 = scmp.lt.s32.totalorder %s14, 1
      %s197 = scalar_select %p196, %s14, 1
      %s198 = smul.addr %s197, 24
      %s199 = smul.addr %s198, 8
      %s200 = scalar_lea.vmem %s2, %s199
      %p201 = scmp.lt.s32.totalorder %s14, 1
      %s202 = scalar_select %p201, %s14, 1
      %s203 = scalar_lea.vmem %s3, %s202
      %v204 = vld [vmem:[%s190] sm:$0x1]
      %v205 = vmul.f32 %v204, 0.5
      %v206 = vld [vmem:[%s195] sm:$0xf]
      %vm207 = vcmask 31744
      %v209 = vsel %vm207, %v205, 0
      %vm211 = vcmask 1043456
      %v213 = vsel %vm211, %v206, 0
      %215 = vmatpush.msra.mxu0 0.0
      %216 = vmatpush.msra.mxu0 0.0
      %217 = vmatpush.msra.mxu0 0.0
      %218 = vmatpush.msra.mxu0 0.0
      %219 = vmatpush.msra.mxu0 0.0
      %220 = vmatpush.msra.mxu0 0.0
      %221 = vmatpush.msra.mxu0 0.0
      %222 = vmatpush.msra.mxu0 0.0
      %223 = vmatpush.msra.mxu0 0.0
      %224 = vmatpush.msra.mxu0 0.0
      %225 = vmatpush.msra.mxu0 0.0
      %226 = vmatpush.msra.mxu0 0.0
      %227 = vmatpush.msra.mxu0 0.0
      %228 = vmatpush.msra.mxu0 0.0
      %229 = vmatpush.msra.mxu0 0.0
      %230 = vmatpush.msra.mxu0 %v213
      %231 = vmatmul.f32.gmra.mxu0 %v209
      %v232 = vpop.f32.mrf.mxu0
      %v233 = vadd.f32 0.0, %v232
      %234 = vdwg.mxu0
      %vm235 = vcmask 131072
      %v236 = vsel %vm235, %v233, -inf
      %237 = vmax.xlane.f32.xlu0 %v236
      %v238 = vpop.xlane.xlu0 %237
      %v239 = vsub.f32 %v233, %v238
      %v240 = vmul.f32 %v239, 1.442695
      %v241 = vpow.pop %v240
      %v242 = vsel %vm235, %v241, 0.0
      %243 = vadd.xlane.f32.xlu0 %v242
      %v244 = vpop.xlane.xlu0 %243
      %v245 = vrcp.pop %v244
      %v246 = vmul.f32 %v244, %v245
      %v247 = vsub.f32 1.0, %v246
      %v248 = vmul.f32 %v245, %v247
      %v249 = vadd.f32 %v245, %v248
      %vm250 = vweird.f32 %v244
      %vm251 = vweird.f32 %v245
      %vm252 = vmor %vm250, %vm251
      %v253 = vsel %vm252, %v245, %v249
      %v254 = vand.u32 2147483647, %v244
      %vm255 = vcmp.eq.f32.partialorder %v254, 8.507059e+37
      %v256 = vand.u32 %v244, 2147483648
      %v257 = vor.u32 1.1754944e-38, %v256
      %v258 = vsel %vm255, %v257, %v253
      %v259 = vmul.f32 %v241, %v258
      %v260 = vld [vmem:[%s200] sm:$0xff]
      %v261 = vld [vmem:[%s200 + $0x8] sm:$0xff]
      %v262 = vld [vmem:[%s200 + $0x10] sm:$0x1]
      %vm263 = vcmask 138240
      %v265 = vsel %vm263, %v259, 0
      %vm267 = vcmask 1040384
      %v269 = vsel %vm267, %v262, 0
      %271 = vmatpush.msra.mxu0 0.0
      %272 = vmatpush.msra.mxu0 0.0
      %273 = vmatpush.msra.mxu0 0.0
      %274 = vmatpush.msra.mxu0 0.0
      %275 = vmatpush.msra.mxu0 0.0
      %276 = vmatpush.msra.mxu0 0.0
      %277 = vmatpush.msra.mxu0 0.0
      %278 = vmatpush.msra.mxu0 0.0
      %279 = vmatpush.msra.mxu0 0.0
      %280 = vmatpush.msra.mxu0 0.0
      %281 = vmatpush.msra.mxu0 0.0
      %282 = vmatpush.msra.mxu0 0.0
      %283 = vmatpush.msra.mxu0 0.0
      %284 = vmatpush.msra.mxu0 %v269
      %285 = vmatpush.msra.mxu0 %v261
      %286 = vmatpush.msra.mxu0 %v260
      %287 = vmatmul.f32.gmra.mxu0 %v265
      %v288 = vpop.f32.mrf.mxu0
      %v289 = vadd.f32 0.0, %v288
      %290 = vdwg.mxu0
      %vm291 = vcmask 24576
      %292 = vst.msk [vmem:[%s203] sm:$0x1] %vm291, %v289
      %s293 = scalar_lea.vmem %s190, 1
      %v294 = vld [vmem:[%s293] sm:$0x1]
      %v295 = vmul.f32 %v294, 0.5
      %s296 = scalar_lea.vmem %s195, 4
      %v297 = vld [vmem:[%s296] sm:$0xf]
      %v299 = vsel %vm207, %v295, 0
      %v302 = vsel %vm211, %v297, 0
      %304 = vmatpush.msra.mxu0 0.0
      %305 = vmatpush.msra.mxu0 0.0
      %306 = vmatpush.msra.mxu0 0.0
      %307 = vmatpush.msra.mxu0 0.0
      %308 = vmatpush.msra.mxu0 0.0
      %309 = vmatpush.msra.mxu0 0.0
      %310 = vmatpush.msra.mxu0 0.0
      %311 = vmatpush.msra.mxu0 0.0
      %312 = vmatpush.msra.mxu0 0.0
      %313 = vmatpush.msra.mxu0 0.0
      %314 = vmatpush.msra.mxu0 0.0
      %315 = vmatpush.msra.mxu0 0.0
      %316 = vmatpush.msra.mxu0 0.0
      %317 = vmatpush.msra.mxu0 0.0
      %318 = vmatpush.msra.mxu0 0.0
      %319 = vmatpush.msra.mxu0 %v302
      %320 = vmatmul.f32.gmra.mxu0 %v299
      %v321 = vpop.f32.mrf.mxu0
      %v322 = vadd.f32 0.0, %v321
      %323 = vdwg.mxu0
      %v324 = vsel %vm235, %v322, -inf
      %325 = vmax.xlane.f32.xlu0 %v324
      %v326 = vpop.xlane.xlu0 %325
      %v327 = vsub.f32 %v322, %v326
      %v328 = vmul.f32 %v327, 1.442695
      %v329 = vpow.pop %v328
      %v330 = vsel %vm235, %v329, 0.0
      %331 = vadd.xlane.f32.xlu0 %v330
      %v332 = vpop.xlane.xlu0 %331
      %v333 = vrcp.pop %v332
      %v334 = vmul.f32 %v332, %v333
      %v335 = vsub.f32 1.0, %v334
      %v336 = vmul.f32 %v333, %v335
      %v337 = vadd.f32 %v333, %v336
      %vm338 = vweird.f32 %v332
      %vm339 = vweird.f32 %v333
      %vm340 = vmor %vm338, %vm339
      %v341 = vsel %vm340, %v333, %v337
      %v342 = vand.u32 2147483647, %v332
      %vm343 = vcmp.eq.f32.partialorder %v342, 8.507059e+37
      %v344 = vand.u32 %v332, 2147483648
      %v345 = vor.u32 1.1754944e-38, %v344
      %v346 = vsel %vm343, %v345, %v341
      %v347 = vmul.f32 %v329, %v346
      %s348 = scalar_lea.vmem %s200, 24
      %v349 = vld [vmem:[%s348] sm:$0xff]
      %v350 = vld [vmem:[%s348 + $0x8] sm:$0xff]
      %v351 = vld [vmem:[%s348 + $0x10] sm:$0x1]
      %v353 = vsel %vm263, %v347, 0
      %v356 = vsel %vm267, %v351, 0
      %358 = vmatpush.msra.mxu0 0.0
      %359 = vmatpush.msra.mxu0 0.0
      %360 = vmatpush.msra.mxu0 0.0
      %361 = vmatpush.msra.mxu0 0.0
      %362 = vmatpush.msra.mxu0 0.0
      %363 = vmatpush.msra.mxu0 0.0
      %364 = vmatpush.msra.mxu0 0.0
      %365 = vmatpush.msra.mxu0 0.0
      %366 = vmatpush.msra.mxu0 0.0
      %367 = vmatpush.msra.mxu0 0.0
      %368 = vmatpush.msra.mxu0 0.0
      %369 = vmatpush.msra.mxu0 0.0
      %370 = vmatpush.msra.mxu0 0.0
      %371 = vmatpush.msra.mxu0 %v356
      %372 = vmatpush.msra.mxu0 %v350
      %373 = vmatpush.msra.mxu0 %v349
      %374 = vmatmul.f32.gmra.mxu0 %v353
      %v375 = vpop.f32.mrf.mxu0
      %v376 = vadd.f32 0.0, %v375
      %377 = vdwg.mxu0
      %379 = vrot.lane.b32.xlu0 %v376, 4
      %v380 = vpop.permute.xlu0 %379
      %vm382 = vcmask 57376
      %383 = vst.msk [vmem:[%s203] sm:$0x1] %vm382, %v380
      %s384 = scalar_lea.vmem %s190, 2
      %v385 = vld [vmem:[%s384] sm:$0x1]
      %v386 = vmul.f32 %v385, 0.5
      %s387 = scalar_lea.vmem %s195, 8
      %v388 = vld [vmem:[%s387] sm:$0xf]
      %v390 = vsel %vm207, %v386, 0
      %v393 = vsel %vm211, %v388, 0
      %395 = vmatpush.msra.mxu0 0.0
      %396 = vmatpush.msra.mxu0 0.0
      %397 = vmatpush.msra.mxu0 0.0
      %398 = vmatpush.msra.mxu0 0.0
      %399 = vmatpush.msra.mxu0 0.0
      %400 = vmatpush.msra.mxu0 0.0
      %401 = vmatpush.msra.mxu0 0.0
      %402 = vmatpush.msra.mxu0 0.0
      %403 = vmatpush.msra.mxu0 0.0
      %404 = vmatpush.msra.mxu0 0.0
      %405 = vmatpush.msra.mxu0 0.0
      %406 = vmatpush.msra.mxu0 0.0
      %407 = vmatpush.msra.mxu0 0.0
      %408 = vmatpush.msra.mxu0 0.0
      %409 = vmatpush.msra.mxu0 0.0
      %410 = vmatpush.msra.mxu0 %v393
      %411 = vmatmul.f32.gmra.mxu0 %v390
      %v412 = vpop.f32.mrf.mxu0
      %v413 = vadd.f32 0.0, %v412
      %414 = vdwg.mxu0
      %v415 = vsel %vm235, %v413, -inf
      %416 = vmax.xlane.f32.xlu0 %v415
      %v417 = vpop.xlane.xlu0 %416
      %v418 = vsub.f32 %v413, %v417
      %v419 = vmul.f32 %v418, 1.442695
      %v420 = vpow.pop %v419
      %v421 = vsel %vm235, %v420, 0.0
      %422 = vadd.xlane.f32.xlu0 %v421
      %v423 = vpop.xlane.xlu0 %422
      %v424 = vrcp.pop %v423
      %v425 = vmul.f32 %v423, %v424
      %v426 = vsub.f32 1.0, %v425
      %v427 = vmul.f32 %v424, %v426
      %v428 = vadd.f32 %v424, %v427
      %vm429 = vweird.f32 %v423
      %vm430 = vweird.f32 %v424
      %vm431 = vmor %vm429, %vm430
      %v432 = vsel %vm431, %v424, %v428
      %v433 = vand.u32 2147483647, %v423
      %vm434 = vcmp.eq.f32.partialorder %v433, 8.507059e+37
      %v435 = vand.u32 %v423, 2147483648
      %v436 = vor.u32 1.1754944e-38, %v435
      %v437 = vsel %vm434, %v436, %v432
      %v438 = vmul.f32 %v420, %v437
      %s439 = scalar_lea.vmem %s200, 48
      %v440 = vld [vmem:[%s439] sm:$0xff]
      %v441 = vld [vmem:[%s439 + $0x8] sm:$0xff]
      %v442 = vld [vmem:[%s439 + $0x10] sm:$0x1]
      %v444 = vsel %vm263, %v438, 0
      %v447 = vsel %vm267, %v442, 0
      %449 = vmatpush.msra.mxu0 0.0
      %450 = vmatpush.msra.mxu0 0.0
      %451 = vmatpush.msra.mxu0 0.0
      %452 = vmatpush.msra.mxu0 0.0
      %453 = vmatpush.msra.mxu0 0.0
      %454 = vmatpush.msra.mxu0 0.0
      %455 = vmatpush.msra.mxu0 0.0
      %456 = vmatpush.msra.mxu0 0.0
      %457 = vmatpush.msra.mxu0 0.0
      %458 = vmatpush.msra.mxu0 0.0
      %459 = vmatpush.msra.mxu0 0.0
      %460 = vmatpush.msra.mxu0 0.0
      %461 = vmatpush.msra.mxu0 0.0
      %462 = vmatpush.msra.mxu0 %v447
      %463 = vmatpush.msra.mxu0 %v441
      %464 = vmatpush.msra.mxu0 %v440
      %465 = vmatmul.f32.gmra.mxu0 %v444
      %v466 = vpop.f32.mrf.mxu0
      %v467 = vadd.f32 0.0, %v466
      %468 = vdwg.mxu0
      %470 = vrot.lane.b32.xlu0 %v467, 8
      %v471 = vpop.permute.xlu0 %470
      %vm473 = vcmask 90176
      %474 = vst.msk [vmem:[%s203] sm:$0x1] %vm473, %v471
      %s475 = scalar_lea.vmem %s190, 3
      %v476 = vld [vmem:[%s475] sm:$0x1]
      %v477 = vmul.f32 %v476, 0.5
      %s478 = scalar_lea.vmem %s195, 12
      %v479 = vld [vmem:[%s478] sm:$0xf]
      %v481 = vsel %vm207, %v477, 0
      %v484 = vsel %vm211, %v479, 0
      %486 = vmatpush.msra.mxu0 0.0
      %487 = vmatpush.msra.mxu0 0.0
      %488 = vmatpush.msra.mxu0 0.0
      %489 = vmatpush.msra.mxu0 0.0
      %490 = vmatpush.msra.mxu0 0.0
      %491 = vmatpush.msra.mxu0 0.0
      %492 = vmatpush.msra.mxu0 0.0
      %493 = vmatpush.msra.mxu0 0.0
      %494 = vmatpush.msra.mxu0 0.0
      %495 = vmatpush.msra.mxu0 0.0
      %496 = vmatpush.msra.mxu0 0.0
      %497 = vmatpush.msra.mxu0 0.0
      %498 = vmatpush.msra.mxu0 0.0
      %499 = vmatpush.msra.mxu0 0.0
      %500 = vmatpush.msra.mxu0 0.0
      %501 = vmatpush.msra.mxu0 %v484
      %502 = vmatmul.f32.gmra.mxu0 %v481
      %v503 = vpop.f32.mrf.mxu0
      %v504 = vadd.f32 0.0, %v503
      %505 = vdwg.mxu0
      %v506 = vsel %vm235, %v504, -inf
      %507 = vmax.xlane.f32.xlu0 %v506
      %v508 = vpop.xlane.xlu0 %507
      %v509 = vsub.f32 %v504, %v508
      %v510 = vmul.f32 %v509, 1.442695
      %v511 = vpow.pop %v510
      %v512 = vsel %vm235, %v511, 0.0
      %513 = vadd.xlane.f32.xlu0 %v512
      %v514 = vpop.xlane.xlu0 %513
      %v515 = vrcp.pop %v514
      %v516 = vmul.f32 %v514, %v515
      %v517 = vsub.f32 1.0, %v516
      %v518 = vmul.f32 %v515, %v517
      %v519 = vadd.f32 %v515, %v518
      %vm520 = vweird.f32 %v514
      %vm521 = vweird.f32 %v515
      %vm522 = vmor %vm520, %vm521
      %v523 = vsel %vm522, %v515, %v519
      %v524 = vand.u32 2147483647, %v514
      %vm525 = vcmp.eq.f32.partialorder %v524, 8.507059e+37
      %v526 = vand.u32 %v514, 2147483648
      %v527 = vor.u32 1.1754944e-38, %v526
      %v528 = vsel %vm525, %v527, %v523
      %v529 = vmul.f32 %v511, %v528
      %s530 = scalar_lea.vmem %s200, 72
      %v531 = vld [vmem:[%s530] sm:$0xff]
      %v532 = vld [vmem:[%s530 + $0x8] sm:$0xff]
      %v533 = vld [vmem:[%s530 + $0x10] sm:$0x1]
      %v535 = vsel %vm263, %v529, 0
      %v538 = vsel %vm267, %v533, 0
      %540 = vmatpush.msra.mxu0 0.0
      %541 = vmatpush.msra.mxu0 0.0
      %542 = vmatpush.msra.mxu0 0.0
      %543 = vmatpush.msra.mxu0 0.0
      %544 = vmatpush.msra.mxu0 0.0
      %545 = vmatpush.msra.mxu0 0.0
      %546 = vmatpush.msra.mxu0 0.0
      %547 = vmatpush.msra.mxu0 0.0
      %548 = vmatpush.msra.mxu0 0.0
      %549 = vmatpush.msra.mxu0 0.0
      %550 = vmatpush.msra.mxu0 0.0
      %551 = vmatpush.msra.mxu0 0.0
      %552 = vmatpush.msra.mxu0 0.0
      %553 = vmatpush.msra.mxu0 %v538
      %554 = vmatpush.msra.mxu0 %v532
      %555 = vmatpush.msra.mxu0 %v531
      %556 = vmatmul.f32.gmra.mxu0 %v535
      %v557 = vpop.f32.mrf.mxu0
      %v558 = vadd.f32 0.0, %v557
      %559 = vdwg.mxu0
      %561 = vrot.lane.b32.xlu0 %v558, 12
      %v562 = vpop.permute.xlu0 %561
      %vm564 = vcmask 122976
      %565 = vst.msk [vmem:[%s203] sm:$0x1] %vm564, %v562
      %s566 = scalar_lea.vmem %s190, 4
      %v567 = vld [vmem:[%s566] sm:$0x1]
      %v568 = vmul.f32 %v567, 0.5
      %s569 = scalar_lea.vmem %s195, 16
      %v570 = vld [vmem:[%s569] sm:$0xf]
      %v572 = vsel %vm207, %v568, 0
      %v575 = vsel %vm211, %v570, 0
      %577 = vmatpush.msra.mxu0 0.0
      %578 = vmatpush.msra.mxu0 0.0
      %579 = vmatpush.msra.mxu0 0.0
      %580 = vmatpush.msra.mxu0 0.0
      %581 = vmatpush.msra.mxu0 0.0
      %582 = vmatpush.msra.mxu0 0.0
      %583 = vmatpush.msra.mxu0 0.0
      %584 = vmatpush.msra.mxu0 0.0
      %585 = vmatpush.msra.mxu0 0.0
      %586 = vmatpush.msra.mxu0 0.0
      %587 = vmatpush.msra.mxu0 0.0
      %588 = vmatpush.msra.mxu0 0.0
      %589 = vmatpush.msra.mxu0 0.0
      %590 = vmatpush.msra.mxu0 0.0
      %591 = vmatpush.msra.mxu0 0.0
      %592 = vmatpush.msra.mxu0 %v575
      %593 = vmatmul.f32.gmra.mxu0 %v572
      %v594 = vpop.f32.mrf.mxu0
      %v595 = vadd.f32 0.0, %v594
      %596 = vdwg.mxu0
      %v597 = vsel %vm235, %v595, -inf
      %598 = vmax.xlane.f32.xlu0 %v597
      %v599 = vpop.xlane.xlu0 %598
      %v600 = vsub.f32 %v595, %v599
      %v601 = vmul.f32 %v600, 1.442695
      %v602 = vpow.pop %v601
      %v603 = vsel %vm235, %v602, 0.0
      %604 = vadd.xlane.f32.xlu0 %v603
      %v605 = vpop.xlane.xlu0 %604
      %v606 = vrcp.pop %v605
      %v607 = vmul.f32 %v605, %v606
      %v608 = vsub.f32 1.0, %v607
      %v609 = vmul.f32 %v606, %v608
      %v610 = vadd.f32 %v606, %v609
      %vm611 = vweird.f32 %v605
      %vm612 = vweird.f32 %v606
      %vm613 = vmor %vm611, %vm612
      %v614 = vsel %vm613, %v606, %v610
      %v615 = vand.u32 2147483647, %v605
      %vm616 = vcmp.eq.f32.partialorder %v615, 8.507059e+37
      %v617 = vand.u32 %v605, 2147483648
      %v618 = vor.u32 1.1754944e-38, %v617
      %v619 = vsel %vm616, %v618, %v614
      %v620 = vmul.f32 %v602, %v619
      %s621 = scalar_lea.vmem %s200, 96
      %v622 = vld [vmem:[%s621] sm:$0xff]
      %v623 = vld [vmem:[%s621 + $0x8] sm:$0xff]
      %v624 = vld [vmem:[%s621 + $0x10] sm:$0x1]
      %v626 = vsel %vm263, %v620, 0
      %v629 = vsel %vm267, %v624, 0
      %631 = vmatpush.msra.mxu0 0.0
      %632 = vmatpush.msra.mxu0 0.0
      %633 = vmatpush.msra.mxu0 0.0
      %634 = vmatpush.msra.mxu0 0.0
      %635 = vmatpush.msra.mxu0 0.0
      %636 = vmatpush.msra.mxu0 0.0
      %637 = vmatpush.msra.mxu0 0.0
      %638 = vmatpush.msra.mxu0 0.0
      %639 = vmatpush.msra.mxu0 0.0
      %640 = vmatpush.msra.mxu0 0.0
      %641 = vmatpush.msra.mxu0 0.0
      %642 = vmatpush.msra.mxu0 0.0
      %643 = vmatpush.msra.mxu0 0.0
      %644 = vmatpush.msra.mxu0 %v629
      %645 = vmatpush.msra.mxu0 %v623
      %646 = vmatpush.msra.mxu0 %v622
      %647 = vmatmul.f32.gmra.mxu0 %v626
      %v648 = vpop.f32.mrf.mxu0
      %v649 = vadd.f32 0.0, %v648
      %650 = vdwg.mxu0
      %652 = vrot.lane.b32.xlu0 %v649, 16
      %v653 = vpop.permute.xlu0 %652
      %vm655 = vcmask 155776
      %656 = vst.msk [vmem:[%s203] sm:$0x1] %vm655, %v653
      %s657 = scalar_lea.vmem %s190, 5
      %v658 = vld [vmem:[%s657] sm:$0x1]
      %v659 = vmul.f32 %v658, 0.5
      %s660 = scalar_lea.vmem %s195, 20
      %v661 = vld [vmem:[%s660] sm:$0xf]
      %v663 = vsel %vm207, %v659, 0
      %v666 = vsel %vm211, %v661, 0
      %668 = vmatpush.msra.mxu0 0.0
      %669 = vmatpush.msra.mxu0 0.0
      %670 = vmatpush.msra.mxu0 0.0
      %671 = vmatpush.msra.mxu0 0.0
      %672 = vmatpush.msra.mxu0 0.0
      %673 = vmatpush.msra.mxu0 0.0
      %674 = vmatpush.msra.mxu0 0.0
      %675 = vmatpush.msra.mxu0 0.0
      %676 = vmatpush.msra.mxu0 0.0
      %677 = vmatpush.msra.mxu0 0.0
      %678 = vmatpush.msra.mxu0 0.0
      %679 = vmatpush.msra.mxu0 0.0
      %680 = vmatpush.msra.mxu0 0.0
      %681 = vmatpush.msra.mxu0 0.0
      %682 = vmatpush.msra.mxu0 0.0
      %683 = vmatpush.msra.mxu0 %v666
      %684 = vmatmul.f32.gmra.mxu0 %v663
      %v685 = vpop.f32.mrf.mxu0
      %v686 = vadd.f32 0.0, %v685
      %687 = vdwg.mxu0
      %v688 = vsel %vm235, %v686, -inf
      %689 = vmax.xlane.f32.xlu0 %v688
      %v690 = vpop.xlane.xlu0 %689
      %v691 = vsub.f32 %v686, %v690
      %v692 = vmul.f32 %v691, 1.442695
      %v693 = vpow.pop %v692
      %v694 = vsel %vm235, %v693, 0.0
      %695 = vadd.xlane.f32.xlu0 %v694
      %v696 = vpop.xlane.xlu0 %695
      %v697 = vrcp.pop %v696
      %v698 = vmul.f32 %v696, %v697
      %v699 = vsub.f32 1.0, %v698
      %v700 = vmul.f32 %v697, %v699
      %v701 = vadd.f32 %v697, %v700
      %vm702 = vweird.f32 %v696
      %vm703 = vweird.f32 %v697
      %vm704 = vmor %vm702, %vm703
      %v705 = vsel %vm704, %v697, %v701
      %v706 = vand.u32 2147483647, %v696
      %vm707 = vcmp.eq.f32.partialorder %v706, 8.507059e+37
      %v708 = vand.u32 %v696, 2147483648
      %v709 = vor.u32 1.1754944e-38, %v708
      %v710 = vsel %vm707, %v709, %v705
      %v711 = vmul.f32 %v693, %v710
      %s712 = scalar_lea.vmem %s200, 120
      %v713 = vld [vmem:[%s712] sm:$0xff]
      %v714 = vld [vmem:[%s712 + $0x8] sm:$0xff]
      %v715 = vld [vmem:[%s712 + $0x10] sm:$0x1]
      %v717 = vsel %vm263, %v711, 0
      %v720 = vsel %vm267, %v715, 0
      %722 = vmatpush.msra.mxu0 0.0
      %723 = vmatpush.msra.mxu0 0.0
      %724 = vmatpush.msra.mxu0 0.0
      %725 = vmatpush.msra.mxu0 0.0
      %726 = vmatpush.msra.mxu0 0.0
      %727 = vmatpush.msra.mxu0 0.0
      %728 = vmatpush.msra.mxu0 0.0
      %729 = vmatpush.msra.mxu0 0.0
      %730 = vmatpush.msra.mxu0 0.0
      %731 = vmatpush.msra.mxu0 0.0
      %732 = vmatpush.msra.mxu0 0.0
      %733 = vmatpush.msra.mxu0 0.0
      %734 = vmatpush.msra.mxu0 0.0
      %735 = vmatpush.msra.mxu0 %v720
      %736 = vmatpush.msra.mxu0 %v714
      %737 = vmatpush.msra.mxu0 %v713
      %738 = vmatmul.f32.gmra.mxu0 %v717
      %v739 = vpop.f32.mrf.mxu0
      %v740 = vadd.f32 0.0, %v739
      %741 = vdwg.mxu0
      %743 = vrot.lane.b32.xlu0 %v740, 20
      %v744 = vpop.permute.xlu0 %743
      %vm746 = vcmask 188576
      %747 = vst.msk [vmem:[%s203] sm:$0x1] %vm746, %v744
      %s748 = scalar_lea.vmem %s190, 6
      %v749 = vld [vmem:[%s748] sm:$0x1]
      %v750 = vmul.f32 %v749, 0.5
      %s751 = scalar_lea.vmem %s195, 24
      %v752 = vld [vmem:[%s751] sm:$0xf]
      %v754 = vsel %vm207, %v750, 0
      %v757 = vsel %vm211, %v752, 0
      %759 = vmatpush.msra.mxu0 0.0
      %760 = vmatpush.msra.mxu0 0.0
      %761 = vmatpush.msra.mxu0 0.0
      %762 = vmatpush.msra.mxu0 0.0
      %763 = vmatpush.msra.mxu0 0.0
      %764 = vmatpush.msra.mxu0 0.0
      %765 = vmatpush.msra.mxu0 0.0
      %766 = vmatpush.msra.mxu0 0.0
      %767 = vmatpush.msra.mxu0 0.0
      %768 = vmatpush.msra.mxu0 0.0
      %769 = vmatpush.msra.mxu0 0.0
      %770 = vmatpush.msra.mxu0 0.0
      %771 = vmatpush.msra.mxu0 0.0
      %772 = vmatpush.msra.mxu0 0.0
      %773 = vmatpush.msra.mxu0 0.0
      %774 = vmatpush.msra.mxu0 %v757
      %775 = vmatmul.f32.gmra.mxu0 %v754
      %v776 = vpop.f32.mrf.mxu0
      %v777 = vadd.f32 0.0, %v776
      %778 = vdwg.mxu0
      %v779 = vsel %vm235, %v777, -inf
      %780 = vmax.xlane.f32.xlu0 %v779
      %v781 = vpop.xlane.xlu0 %780
      %v782 = vsub.f32 %v777, %v781
      %v783 = vmul.f32 %v782, 1.442695
      %v784 = vpow.pop %v783
      %v785 = vsel %vm235, %v784, 0.0
      %786 = vadd.xlane.f32.xlu0 %v785
      %v787 = vpop.xlane.xlu0 %786
      %v788 = vrcp.pop %v787
      %v789 = vmul.f32 %v787, %v788
      %v790 = vsub.f32 1.0, %v789
      %v791 = vmul.f32 %v788, %v790
      %v792 = vadd.f32 %v788, %v791
      %vm793 = vweird.f32 %v787
      %vm794 = vweird.f32 %v788
      %vm795 = vmor %vm793, %vm794
      %v796 = vsel %vm795, %v788, %v792
      %v797 = vand.u32 2147483647, %v787
      %vm798 = vcmp.eq.f32.partialorder %v797, 8.507059e+37
      %v799 = vand.u32 %v787, 2147483648
      %v800 = vor.u32 1.1754944e-38, %v799
      %v801 = vsel %vm798, %v800, %v796
      %v802 = vmul.f32 %v784, %v801
      %s803 = scalar_lea.vmem %s200, 144
      %v804 = vld [vmem:[%s803] sm:$0xff]
      %v805 = vld [vmem:[%s803 + $0x8] sm:$0xff]
      %v806 = vld [vmem:[%s803 + $0x10] sm:$0x1]
      %v808 = vsel %vm263, %v802, 0
      %v811 = vsel %vm267, %v806, 0
      %813 = vmatpush.msra.mxu0 0.0
      %814 = vmatpush.msra.mxu0 0.0
      %815 = vmatpush.msra.mxu0 0.0
      %816 = vmatpush.msra.mxu0 0.0
      %817 = vmatpush.msra.mxu0 0.0
      %818 = vmatpush.msra.mxu0 0.0
      %819 = vmatpush.msra.mxu0 0.0
      %820 = vmatpush.msra.mxu0 0.0
      %821 = vmatpush.msra.mxu0 0.0
      %822 = vmatpush.msra.mxu0 0.0
      %823 = vmatpush.msra.mxu0 0.0
      %824 = vmatpush.msra.mxu0 0.0
      %825 = vmatpush.msra.mxu0 0.0
      %826 = vmatpush.msra.mxu0 %v811
      %827 = vmatpush.msra.mxu0 %v805
      %828 = vmatpush.msra.mxu0 %v804
      %829 = vmatmul.f32.gmra.mxu0 %v808
      %v830 = vpop.f32.mrf.mxu0
      %v831 = vadd.f32 0.0, %v830
      %832 = vdwg.mxu0
      %834 = vrot.lane.b32.xlu0 %v831, 24
      %v835 = vpop.permute.xlu0 %834
      %vm837 = vcmask 221376
      %838 = vst.msk [vmem:[%s203] sm:$0x1] %vm837, %v835
      %s839 = scalar_lea.vmem %s190, 7
      %v840 = vld [vmem:[%s839] sm:$0x1]
      %v841 = vmul.f32 %v840, 0.5
      %s842 = scalar_lea.vmem %s195, 28
      %v843 = vld [vmem:[%s842] sm:$0xf]
      %v845 = vsel %vm207, %v841, 0
      %v848 = vsel %vm211, %v843, 0
      %850 = vmatpush.msra.mxu0 0.0
      %851 = vmatpush.msra.mxu0 0.0
      %852 = vmatpush.msra.mxu0 0.0
      %853 = vmatpush.msra.mxu0 0.0
      %854 = vmatpush.msra.mxu0 0.0
      %855 = vmatpush.msra.mxu0 0.0
      %856 = vmatpush.msra.mxu0 0.0
      %857 = vmatpush.msra.mxu0 0.0
      %858 = vmatpush.msra.mxu0 0.0
      %859 = vmatpush.msra.mxu0 0.0
      %860 = vmatpush.msra.mxu0 0.0
      %861 = vmatpush.msra.mxu0 0.0
      %862 = vmatpush.msra.mxu0 0.0
      %863 = vmatpush.msra.mxu0 0.0
      %864 = vmatpush.msra.mxu0 0.0
      %865 = vmatpush.msra.mxu0 %v848
      %866 = vmatmul.f32.gmra.mxu0 %v845
      %v867 = vpop.f32.mrf.mxu0
      %v868 = vadd.f32 0.0, %v867
      %869 = vdwg.mxu0
      %v870 = vsel %vm235, %v868, -inf
      %871 = vmax.xlane.f32.xlu0 %v870
      %v872 = vpop.xlane.xlu0 %871
      %v873 = vsub.f32 %v868, %v872
      %v874 = vmul.f32 %v873, 1.442695
      %v875 = vpow.pop %v874
      %v876 = vsel %vm235, %v875, 0.0
      %877 = vadd.xlane.f32.xlu0 %v876
      %v878 = vpop.xlane.xlu0 %877
      %v879 = vrcp.pop %v878
      %v880 = vmul.f32 %v878, %v879
      %v881 = vsub.f32 1.0, %v880
      %v882 = vmul.f32 %v879, %v881
      %v883 = vadd.f32 %v879, %v882
      %vm884 = vweird.f32 %v878
      %vm885 = vweird.f32 %v879
      %vm886 = vmor %vm884, %vm885
      %v887 = vsel %vm886, %v879, %v883
      %v888 = vand.u32 2147483647, %v878
      %vm889 = vcmp.eq.f32.partialorder %v888, 8.507059e+37
      %v890 = vand.u32 %v878, 2147483648
      %v891 = vor.u32 1.1754944e-38, %v890
      %v892 = vsel %vm889, %v891, %v887
      %v893 = vmul.f32 %v875, %v892
      %s894 = scalar_lea.vmem %s200, 168
      %v895 = vld [vmem:[%s894] sm:$0xff]
      %v896 = vld [vmem:[%s894 + $0x8] sm:$0xff]
      %v897 = vld [vmem:[%s894 + $0x10] sm:$0x1]
      %v899 = vsel %vm263, %v893, 0
      %v902 = vsel %vm267, %v897, 0
      %904 = vmatpush.msra.mxu0 0.0
      %905 = vmatpush.msra.mxu0 0.0
      %906 = vmatpush.msra.mxu0 0.0
      %907 = vmatpush.msra.mxu0 0.0
      %908 = vmatpush.msra.mxu0 0.0
      %909 = vmatpush.msra.mxu0 0.0
      %910 = vmatpush.msra.mxu0 0.0
      %911 = vmatpush.msra.mxu0 0.0
      %912 = vmatpush.msra.mxu0 0.0
      %913 = vmatpush.msra.mxu0 0.0
      %914 = vmatpush.msra.mxu0 0.0
      %915 = vmatpush.msra.mxu0 0.0
      %916 = vmatpush.msra.mxu0 0.0
      %917 = vmatpush.msra.mxu0 %v902
      %918 = vmatpush.msra.mxu0 %v896
      %919 = vmatpush.msra.mxu0 %v895
      %920 = vmatmul.f32.gmra.mxu0 %v899
      %v921 = vpop.f32.mrf.mxu0
      %v922 = vadd.f32 0.0, %v921
      %923 = vdwg.mxu0
      %925 = vrot.lane.b32.xlu0 %v922, 28
      %v926 = vpop.permute.xlu0 %925
      %vm928 = vcmask 254176
      %929 = vst.msk [vmem:[%s203] sm:$0x1] %vm928, %v926
      %p930 = scmp.lt.s32.totalorder %s14, 1
      %s931 = scalar_select %p930, %s14, 1
      %s932 = scalar_lea.vmem %s3, %s931
      // Predicated region
      $region33: #{cait_forward.37} parent=31 // pred_check
        %p933 = pneg %p110
      $region34: #{cait_forward.37} parent=31 // pred_check_branch
        %935 = sbr.rel (%p933) target = $region36
      $region35: #{cait_forward.37} parent=31 // pred_region
        _
      $region36: #{cait_forward.37} parent=31 // pred_fallthru
        _
    $region32: #{cait_forward.37} parent=5 // pred_fallthru
      _
    %p936 = scmp.le.s32.totalorder 2, %s9
    // Predicated region
    $region37: #{cait_forward.37} parent=5 // pred_check
      %p937 = pneg %p936
    $region38: #{cait_forward.37} parent=5 // pred_check_branch
      %939 = sbr.rel (%p937) target = $region40
    $region39: #{cait_forward.37} parent=5 // pred_region
      %s940 = ssub.s32 %s9, 2
      // Predicated region
      $region41: #{cait_forward.37} parent=39 // pred_check
        %p941 = pneg %p116
      $region42: #{cait_forward.37} parent=39 // pred_check_branch
        %943 = sbr.rel (%p941) target = $region44
      $region43: #{cait_forward.37} parent=39 // pred_region
        %p944 = scmp.lt.s32.totalorder %s15, 1
        %s945 = scalar_select %p944, %s15, 1
        %s946 = scalar_lea.vmem %s3, %s945
      $region44: #{cait_forward.37} parent=39 // pred_fallthru
        _
    $region40: #{cait_forward.37} parent=5 // pred_fallthru
      _
  $region6: #{cait_forward.37} parent=0 // loop_footer
    %s13 = sadd.s32 1, %s9
  $region7: #{cait_forward.37} parent=0 // loop_footer_branch
    %8 = sbr.rel target = $region3
  $region8: #{cait_forward.37} parent=0 // loop_exit
    _

// kernel: cait_forward.39
$region0: #{cait_forward.39}
  #allocation0 [shape = 'u32[]', space=smem, size = 0x4, offset = 0x4, fixed_abs, tag = 'smem constant byte address 0x4 - core index']
  #allocation1 [shape = 'u32[72,128]{1,0:T(1,128)}', space=vmem, size = 0x9000, scoped, tag = 'internal scratch']
  %s0 = inlined_call_operand.vmem [shape: f32[8,128], index: 0, kind: input, shape index: {}]
  %s1 = inlined_call_operand.vmem [shape: f32[2,128], index: 1, kind: input, shape index: {}]
  %s2 = inlined_call_operand.vmem [shape: f32[128,128], index: 2, kind: input, shape index: {}]
  %s3 = inlined_call_operand.vmem [shape: f32[1,128], index: 3, kind: input, shape index: {}]
  %s4 = inlined_call_operand.vmem [shape: f32[8,128], index: 4, kind: output, shape index: {}]
  %s5 = sld [smem:[#allocation0]]
  $region26: #{cait_forward.39} parent=0
    _
  %s7 = ssub.s32 1, %s5
  %s8 = scalar_select 0, %s7, %s5
  // Predicated region
  $region2: #{cait_forward.39} parent=0 // pred_check
    _
  $region3: #{cait_forward.39} parent=0 // pred_check_branch
    %10 = sbr.rel (0) target = $region5
  $region4: #{cait_forward.39} parent=0 // pred_region
    _
  $region5: #{cait_forward.39} parent=0 // pred_fallthru
    _
  // Predicated region
  $region6: #{cait_forward.39} parent=0 // pred_check
    _
  $region7: #{cait_forward.39} parent=0 // pred_check_branch
    %12 = sbr.rel (0) target = $region9
  $region8: #{cait_forward.39} parent=0 // pred_region
    _
  $region9: #{cait_forward.39} parent=0 // pred_fallthru
    _
  // Predicated region
  $region10: #{cait_forward.39} parent=0 // pred_check
    _
  $region11: #{cait_forward.39} parent=0 // pred_check_branch
    %14 = sbr.rel (0) target = $region13
  $region12: #{cait_forward.39} parent=0 // pred_region
    _
  $region13: #{cait_forward.39} parent=0 // pred_fallthru
    _
  // Predicated region
  $region14: #{cait_forward.39} parent=0 // pred_check
    _
  $region15: #{cait_forward.39} parent=0 // pred_check_branch
    %16 = sbr.rel (0) target = $region17
  $region16: #{cait_forward.39} parent=0 // pred_region
    _
  $region17: #{cait_forward.39} parent=0 // pred_fallthru
    _
  %v17 = vld [vmem:[%s0] sm:$0xff]
  %v18 = vld [vmem:[%s1] sm:$0x1]
  %v19 = vld [vmem:[%s1 + $0x1] sm:$0x1]
  %20 = vadd.xlane.f32.xlu0 %v17
  %v21 = vpop.xlane.xlu0 %20
  %v22 = vmul.f32 %v17, %v17
  %23 = vadd.xlane.f32.xlu0 %v22
  %v24 = vpop.xlane.xlu0 %23
  %v25 = vmul.f32 %v21, 0.03125
  %v26 = vmul.f32 %v24, 0.03125
  %v27 = vmul.f32 %v25, %v25
  %v28 = vsub.f32 %v26, %v27
  %v29 = vmax.f32 %v28, 0.0
  %v30 = vsub.f32 %v17, %v25
  %v31 = vadd.f32 %v29, 1e-06
  %v32 = vrsqrt.pop %v31
  %v33 = vmul.f32 %v32, %v31
  %v34 = vmul.f32 %v33, %v32
  %v35 = vmul.f32 0.5, %v34
  %v36 = vsub.f32 1.5, %v35
  %v37 = vmul.f32 %v32, %v36
  %vm38 = vweird.f32 %v31
  %vm39 = vweird.f32 %v32
  %vm40 = vmor %vm38, %vm39
  %v41 = vsel %vm40, %v32, %v37
  %v42 = vmul.f32 %v30, %v41
  %v43 = vperm.slane %v18, 0
  %v44 = vmul.f32 %v42, %v43
  %v45 = vperm.slane %v19, 0
  %v46 = vadd.f32 %v44, %v45
  %v47 = vld [vmem:[%s2] sm:$0xff]
  %v48 = vld [vmem:[%s2 + $0x8] sm:$0xff]
  %v49 = vld [vmem:[%s2 + $0x10] sm:$0xff]
  %v50 = vld [vmem:[%s2 + $0x18] sm:$0xff]
  %v51 = vld [vmem:[%s2 + $0x20] sm:$0xff]
  %v52 = vld [vmem:[%s2 + $0x28] sm:$0xff]
  %v53 = vld [vmem:[%s2 + $0x30] sm:$0xff]
  %v54 = vld [vmem:[%s2 + $0x38] sm:$0xff]
  %v55 = vld [vmem:[%s2 + $0x40] sm:$0xff]
  %v56 = vld [vmem:[%s2 + $0x48] sm:$0xff]
  %v57 = vld [vmem:[%s2 + $0x50] sm:$0xff]
  %v58 = vld [vmem:[%s2 + $0x58] sm:$0xff]
  %v59 = vld [vmem:[%s2 + $0x60] sm:$0xff]
  %v60 = vld [vmem:[%s2 + $0x68] sm:$0xff]
  %v61 = vld [vmem:[%s2 + $0x70] sm:$0xff]
  %v62 = vld [vmem:[%s2 + $0x78] sm:$0xff]
  %v63 = vld [vmem:[%s3] sm:$0x1]
  %v65 = vperm.slane %v63, 0
  %67 = vmatpush.msra.mxu0 %v62
  %68 = vmatpush.msra.mxu0 %v61
  %69 = vmatpush.msra.mxu0 %v60
  %70 = vmatpush.msra.mxu0 %v59
  %71 = vmatpush.msra.mxu0 %v58
  %72 = vmatpush.msra.mxu0 %v57
  %73 = vmatpush.msra.mxu0 %v56
  %74 = vmatpush.msra.mxu0 %v55
  %75 = vmatpush.msra.mxu0 %v54
  %76 = vmatpush.msra.mxu0 %v53
  %77 = vmatpush.msra.mxu0 %v52
  %78 = vmatpush.msra.mxu0 %v51
  %79 = vmatpush.msra.mxu0 %v50
  %80 = vmatpush.msra.mxu0 %v49
  %81 = vmatpush.msra.mxu0 %v48
  %82 = vmatpush.msra.mxu0 %v47
  %83 = vmatmul.f32.gmra.mxu0 %v46
  %v84 = vpop.f32.mrf.mxu0
  %v85 = vadd.f32 %v65, %v84
  %86 = vdwg.mxu0
  %v87 = vmul.f32 %v85, %v85
  %v88 = vmul.f32 %v85, %v87
  %v89 = vmul.f32 %v88, 0.044715
  %v90 = vadd.f32 %v85, %v89
  %v91 = vmul.f32 %v90, 0.7978846
  %v92 = vtanh.pop %v91
  %v93 = vadd.f32 %v92, 1.0
  %v94 = vmul.f32 %v93, 0.5
  %v95 = vmul.f32 %v85, %v94
  %96 = vst [vmem:[%s4] sm:$0xff] %v95
  // Predicated region
  $region18: #{cait_forward.39} parent=0 // pred_check
    _
  $region19: #{cait_forward.39} parent=0 // pred_check_branch
    %98 = sbr.rel (0) target = $region21
  $region20: #{cait_forward.39} parent=0 // pred_region
    _
  $region21: #{cait_forward.39} parent=0 // pred_fallthru
    _
  // Predicated region
  $region22: #{cait_forward.39} parent=0 // pred_check
    _
  $region23: #{cait_forward.39} parent=0 // pred_check_branch
    %100 = sbr.rel (0) target = $region25
  $region24: #{cait_forward.39} parent=0 // pred_region
    _
  $region25: #{cait_forward.39} parent=0 // pred_fallthru
    _

</llo_original>
